<compile_context>
chip_gen: v5e
topology: v5e:2x2
jax: 0.10.0
libtpu: 0.0.40
codegen_flags: <defaults>
</compile_context>

<pallas_src>
import numpy as np

import jax
import jax.numpy as jnp
from jax.experimental import pallas as pl
from jax.experimental.pallas import tpu as pltpu

LRELU_SLOPE = 0.2
BN_EPS = 1e-5  # PyTorch BatchNorm2d default eps

_VMEM = pl.BlockSpec(memory_space=pltpu.MemorySpace.VMEM)

_N_INPUTS = 1 + 4 * 5 + 2   # x2d, 4 layers x (L, M, R, E, gb), w5tiled, G5


# ------------------------------ Pallas kernel ------------------------------ #

def _linnet_d_kernel(*refs):
    """Entire LINnet_D forward: 4 x (conv -> BN(batch stats) -> LeakyReLU) + final conv."""
    x_ref = refs[0]
    layer_refs = refs[1:1 + 4 * 5]
    w5t_ref = refs[21]
    g5_ref = refs[22]
    o_ref = refs[23]

    act = x_ref[...]                                   # (N*H, W*Cin), f32

    for i in range(4):
        l_ref, m_ref, r_ref, e_ref, gb_ref = layer_refs[5 * i:5 * i + 5]

        # ---- Conv2d(k=4, s=2, p=1) as 8 dense matmuls (no gathers/strides) --
        acc = jnp.zeros((l_ref.shape[1], m_ref.shape[2]), jnp.float32)
        for k in range(4):                             # kh taps
            z = jnp.dot(l_ref[k], act, preferred_element_type=jnp.float32)
            acc = acc + jnp.dot(z, m_ref[k], preferred_element_type=jnp.float32)
        # acc: (N*Ho, Wo*Co), rows = (n, oh), cols = (ow, co)

        # ---- BatchNorm2d (training-mode batch stats, two-pass) + LeakyReLU --
        wo = r_ref.shape[0] // r_ref.shape[1]
        inv_count = 1.0 / float(acc.shape[0] * wo)     # 1 / (N*Ho*Wo)

        row_sum = jnp.sum(acc, axis=0, keepdims=True)                      # (1, Wo*Co)
        mean = jnp.dot(row_sum, r_ref[...],
                       preferred_element_type=jnp.float32) * inv_count     # (1, Co)
        mean_exp = jnp.dot(mean, e_ref[...],
                           preferred_element_type=jnp.float32)             # (1, Wo*Co)
        d = acc - mean_exp
        var = jnp.dot(jnp.sum(d * d, axis=0, keepdims=True), r_ref[...],
                      preferred_element_type=jnp.float32) * inv_count      # (1, Co)

        a = gb_ref[0:1, :] * jax.lax.rsqrt(var + BN_EPS)                   # gamma / sqrt(var+eps)
        a_exp = jnp.dot(a, e_ref[...], preferred_element_type=jnp.float32)
        beta_exp = jnp.dot(gb_ref[1:2, :], e_ref[...],
                           preferred_element_type=jnp.float32)

        y = d * a_exp + beta_exp
        act = jnp.where(y >= 0.0, y, LRELU_SLOPE * y)   # next layer's (N*H, W*C)

    # ---- Final Conv2d(ndf*8, 1, (3,5), s=1, p=0): full-window dot per sample.
    rowdot = jnp.sum(act * w5t_ref[...], axis=1, keepdims=True)            # (N*3, 1)
    o_ref[...] = jnp.dot(g5_ref[...], rowdot, preferred_element_type=jnp.float32)


# ------------------------- constant-operand planning ------------------------ #

def _sel(in_len, out_len, k):
    """sel[i, o] = 1 iff i == 2*o + k - 1 (stride 2, pad 1)."""
    i = np.arange(in_len)[:, None]
    o = np.arange(out_len)[None, :]
    return (i == (2 * o + k - 1)).astype(np.float32)


def build_plan(params, n, height, width, nc=1):
    """Precompute every constant matrix the fused kernel needs (done once)."""
    plan = []
    h, w, ci = height, width, nc
    for idx in range(1, 5):
        wgt = np.asarray(params[f"w{idx}"], np.float32)          # (Co, Ci, 4, 4)
        co = wgt.shape[0]
        ho, wo = h // 2, w // 2
        wk = np.transpose(wgt, (2, 3, 1, 0))                     # (kh, kw, ci, co)

        # Row-tap selection (also encodes zero padding): (4, N*Ho, N*H)
        sel_h = np.stack([_sel(h, ho, k) for k in range(4)])
        eye_n = np.eye(n, dtype=np.float32)
        lmat = np.stack([np.kron(eye_n, sel_h[k].T) for k in range(4)])

        # Width-tap expanded weights: (4, W*Ci, Wo*Co)
        sel_w = np.stack([_sel(w, wo, k) for k in range(4)])     # (4, W, Wo)
        mmat = np.einsum("qwo,kqcd->kwcod", sel_w, wk).reshape(4, w * ci, wo * co)
        mmat = np.ascontiguousarray(mmat, dtype=np.float32)

        # Per-channel reduce / expand helpers for BN stats.
        rmat = np.tile(np.eye(co, dtype=np.float32), (wo, 1))    # (Wo*Co, Co)
        emat = np.ascontiguousarray(rmat.T)                      # (Co, Wo*Co)

        gb = np.stack([np.asarray(params[f"g{idx}"], np.float32),
                       np.asarray(params[f"b{idx}"], np.float32)])   # (2, Co)

        plan += [jnp.asarray(lmat), jnp.asarray(mmat), jnp.asarray(rmat),
                 jnp.asarray(emat), jnp.asarray(gb)]
        h, w, ci = ho, wo, co

    # Final (3,5) conv folded into the same kernel.
    w5 = np.asarray(params["w5"], np.float32)                    # (1, C, 3, 5)
    kh5, kw5 = w5.shape[2], w5.shape[3]
    w5r = np.transpose(w5[0], (1, 2, 0)).reshape(kh5, kw5 * w5.shape[1])  # (3, 5*C)
    w5t = np.tile(w5r, (n, 1))                                   # (N*3, 5*C)
    g5 = np.kron(np.eye(n, dtype=np.float32),
                 np.ones((1, kh5), np.float32))                  # (N, N*3)
    plan += [jnp.asarray(w5t), jnp.asarray(g5)]
    return tuple(plan)


# ------------------------------ forward pass -------------------------------- #

def linnet_d_forward(plan, x_nchw):
    n, c, h, w = x_nchw.shape
    # NCHW -> (N*H, W*C); the only XLA work in the forward besides the kernel.
    x2d = jnp.transpose(x_nchw.astype(jnp.float32), (0, 2, 3, 1)).reshape(n * h, w * c)
    out = pl.pallas_call(
        _linnet_d_kernel,
        out_shape=jax.ShapeDtypeStruct((n, 1), jnp.float32),
        in_specs=[_VMEM] * _N_INPUTS,
        out_specs=_VMEM,
    )(x2d, *plan)
    return out.reshape(-1)                                        # h.view(-1)


# ------------------------- parameters (weights_init) ------------------------ #

def init_params(key, nc=1, ndf=8):
    """Conv ~ N(0, 0.02), BN weight ~ N(1, 0.02), BN bias = 0 (weights_init)."""
    ks = jax.random.split(key, 9)

    def conv_w(k, co, ci, kh, kw):
        return (0.02 * jax.random.normal(k, (co, ci, kh, kw))).astype(jnp.float32)

    def bn(k, c):
        g = (1.0 + 0.02 * jax.random.normal(k, (c,))).astype(jnp.float32)
        return g, jnp.zeros((c,), jnp.float32)

    p = {}
    p["w1"] = conv_w(ks[0], ndf, nc, 4, 4)
    p["g1"], p["b1"] = bn(ks[1], ndf)
    p["w2"] = conv_w(ks[2], ndf * 2, ndf, 4, 4)
    p["g2"], p["b2"] = bn(ks[3], ndf * 2)
    p["w3"] = conv_w(ks[4], ndf * 4, ndf * 2, 4, 4)
    p["g3"], p["b3"] = bn(ks[5], ndf * 4)
    p["w4"] = conv_w(ks[6], ndf * 8, ndf * 4, 4, 4)
    p["g4"], p["b4"] = bn(ks[7], ndf * 8)
    p["w5"] = conv_w(ks[8], 1, ndf * 8, 3, 5)     # Conv2d(ndf*8, 1, (3,5), bias=False)
    return p


# ------------------------------ pure-JAX reference -------------------------- #

def _ref_forward(params, x_nchw):
    def conv(x, w, stride, pad):
        return jax.lax.conv_general_dilated(
            x, w, (stride, stride), [(pad, pad), (pad, pad)],
            dimension_numbers=("NCHW", "OIHW", "NCHW"))

    def bn_lrelu(x, g, b):
        mean = jnp.mean(x, axis=(0, 2, 3), keepdims=True)
        var = jnp.var(x, axis=(0, 2, 3), keepdims=True)
        y = g[None, :, None, None] * (x - mean) / jnp.sqrt(var + BN_EPS) \
            + b[None, :, None, None]
        return jnp.where(y >= 0, y, LRELU_SLOPE * y)

    h = bn_lrelu(conv(x_nchw, params["w1"], 2, 1), params["g1"], params["b1"])
    h = bn_lrelu(conv(h, params["w2"], 2, 1), params["g2"], params["b2"])
    h = bn_lrelu(conv(h, params["w3"], 2, 1), params["g3"], params["b3"])
    h = bn_lrelu(conv(h, params["w4"], 2, 1), params["g4"], params["b4"])
    h = conv(h, params["w5"], 1, 0)
    return h.reshape(-1)


# --------------------------------- main -------------------------------------- #

if __name__ == "__main__":
    key = jax.random.PRNGKey(0)
    k_param, k_x = jax.random.split(key)

    # nc=1, ndf=8, spatial 48x80 so the final (3,5) conv yields a 1x1 map.
    batch, nc, H, W, ndf = 2, 1, 48, 80, 8
    params = init_params(k_param, nc=nc, ndf=ndf)
    x = jax.random.normal(k_x, (batch, nc, H, W), jnp.float32)

    plan = build_plan(params, batch, H, W, nc=nc)     # constants built once

    fwd = jax.jit(linnet_d_forward)
    out = fwd(plan, x)
    jax.block_until_ready(out)

    ref = _ref_forward(params, x)
    assert out.shape == ref.shape == (batch,), (out.shape, ref.shape)
    assert bool(jnp.all(jnp.isfinite(out)))
    assert bool(jnp.allclose(out, ref, atol=2e-3, rtol=2e-3)), (out, ref)

    print("KERNEL_OK")
</pallas_src>

<mosaic_0001>
module attributes {stable_mosaic.version = 11 : i64} {
  func.func @_linnet_d_kernel(%arg0: memref<96x80xf32, #tpu.memory_space<vmem>>, %arg1: memref<4x48x96xf32, #tpu.memory_space<vmem>>, %arg2: memref<4x80x320xf32, #tpu.memory_space<vmem>>, %arg3: memref<320x8xf32, #tpu.memory_space<vmem>>, %arg4: memref<8x320xf32, #tpu.memory_space<vmem>>, %arg5: memref<2x8xf32, #tpu.memory_space<vmem>>, %arg6: memref<4x24x48xf32, #tpu.memory_space<vmem>>, %arg7: memref<4x320x320xf32, #tpu.memory_space<vmem>>, %arg8: memref<320x16xf32, #tpu.memory_space<vmem>>, %arg9: memref<16x320xf32, #tpu.memory_space<vmem>>, %arg10: memref<2x16xf32, #tpu.memory_space<vmem>>, %arg11: memref<4x12x24xf32, #tpu.memory_space<vmem>>, %arg12: memref<4x320x320xf32, #tpu.memory_space<vmem>>, %arg13: memref<320x32xf32, #tpu.memory_space<vmem>>, %arg14: memref<32x320xf32, #tpu.memory_space<vmem>>, %arg15: memref<2x32xf32, #tpu.memory_space<vmem>>, %arg16: memref<4x6x12xf32, #tpu.memory_space<vmem>>, %arg17: memref<4x320x320xf32, #tpu.memory_space<vmem>>, %arg18: memref<320x64xf32, #tpu.memory_space<vmem>>, %arg19: memref<64x320xf32, #tpu.memory_space<vmem>>, %arg20: memref<2x64xf32, #tpu.memory_space<vmem>>, %arg21: memref<6x320xf32, #tpu.memory_space<vmem>>, %arg22: memref<2x6xf32, #tpu.memory_space<vmem>>, %arg23: memref<2x1xf32, #tpu.memory_space<vmem>>) attributes {dimension_semantics = [], scalar_prefetch = 0 : i64, scratch_operands = 0 : i64, tpu.core_type = #tpu.core_type<tc>} {
    %c0 = arith.constant 0 : index
    %c0_0 = arith.constant 0 : index
    %0 = vector.load %arg0[%c0, %c0_0] : memref<96x80xf32, #tpu.memory_space<vmem>>, vector<96x80xf32>
    %cst = arith.constant 0.000000e+00 : f32
    %1 = vector.broadcast %cst : f32 to vector<48x320xf32>
    %c0_1 = arith.constant 0 : index
    %c0_2 = arith.constant 0 : index
    %c0_3 = arith.constant 0 : index
    %2 = vector.load %arg1[%c0_1, %c0_2, %c0_3] : memref<4x48x96xf32, #tpu.memory_space<vmem>>, vector<1x48x96xf32>
    %3 = vector.shape_cast %2 : vector<1x48x96xf32> to vector<48x96xf32>
    %cst_4 = arith.constant dense<0.000000e+00> : vector<48x80xf32>
    %4 = tpu.matmul %3, %0, %cst_4 {dimension_numbers = #tpu.dot_dimension_numbers<[1], [0], [0], [1], [0, 0, 1, 1], [], []>} : vector<48x96xf32>, vector<96x80xf32>, vector<48x80xf32> -> vector<48x80xf32>
    %c0_5 = arith.constant 0 : index
    %c0_6 = arith.constant 0 : index
    %c0_7 = arith.constant 0 : index
    %5 = vector.load %arg2[%c0_5, %c0_6, %c0_7] : memref<4x80x320xf32, #tpu.memory_space<vmem>>, vector<1x80x320xf32>
    %6 = vector.shape_cast %5 : vector<1x80x320xf32> to vector<80x320xf32>
    %cst_8 = arith.constant dense<0.000000e+00> : vector<48x320xf32>
    %7 = tpu.matmul %4, %6, %cst_8 {dimension_numbers = #tpu.dot_dimension_numbers<[1], [0], [0], [1], [0, 0, 1, 1], [], []>} : vector<48x80xf32>, vector<80x320xf32>, vector<48x320xf32> -> vector<48x320xf32>
    %8 = arith.addf %1, %7 : vector<48x320xf32>
    %c1 = arith.constant 1 : index
    %c0_9 = arith.constant 0 : index
    %c0_10 = arith.constant 0 : index
    %9 = vector.load %arg1[%c1, %c0_9, %c0_10] : memref<4x48x96xf32, #tpu.memory_space<vmem>>, vector<1x48x96xf32>
    %10 = vector.shape_cast %9 : vector<1x48x96xf32> to vector<48x96xf32>
    %cst_11 = arith.constant dense<0.000000e+00> : vector<48x80xf32>
    %11 = tpu.matmul %10, %0, %cst_11 {dimension_numbers = #tpu.dot_dimension_numbers<[1], [0], [0], [1], [0, 0, 1, 1], [], []>} : vector<48x96xf32>, vector<96x80xf32>, vector<48x80xf32> -> vector<48x80xf32>
    %c1_12 = arith.constant 1 : index
    %c0_13 = arith.constant 0 : index
    %c0_14 = arith.constant 0 : index
    %12 = vector.load %arg2[%c1_12, %c0_13, %c0_14] : memref<4x80x320xf32, #tpu.memory_space<vmem>>, vector<1x80x320xf32>
    %13 = vector.shape_cast %12 : vector<1x80x320xf32> to vector<80x320xf32>
    %cst_15 = arith.constant dense<0.000000e+00> : vector<48x320xf32>
    %14 = tpu.matmul %11, %13, %cst_15 {dimension_numbers = #tpu.dot_dimension_numbers<[1], [0], [0], [1], [0, 0, 1, 1], [], []>} : vector<48x80xf32>, vector<80x320xf32>, vector<48x320xf32> -> vector<48x320xf32>
    %15 = arith.addf %8, %14 : vector<48x320xf32>
    %c2 = arith.constant 2 : index
    %c0_16 = arith.constant 0 : index
    %c0_17 = arith.constant 0 : index
    %16 = vector.load %arg1[%c2, %c0_16, %c0_17] : memref<4x48x96xf32, #tpu.memory_space<vmem>>, vector<1x48x96xf32>
    %17 = vector.shape_cast %16 : vector<1x48x96xf32> to vector<48x96xf32>
    %cst_18 = arith.constant dense<0.000000e+00> : vector<48x80xf32>
    %18 = tpu.matmul %17, %0, %cst_18 {dimension_numbers = #tpu.dot_dimension_numbers<[1], [0], [0], [1], [0, 0, 1, 1], [], []>} : vector<48x96xf32>, vector<96x80xf32>, vector<48x80xf32> -> vector<48x80xf32>
    %c2_19 = arith.constant 2 : index
    %c0_20 = arith.constant 0 : index
    %c0_21 = arith.constant 0 : index
    %19 = vector.load %arg2[%c2_19, %c0_20, %c0_21] : memref<4x80x320xf32, #tpu.memory_space<vmem>>, vector<1x80x320xf32>
    %20 = vector.shape_cast %19 : vector<1x80x320xf32> to vector<80x320xf32>
    %cst_22 = arith.constant dense<0.000000e+00> : vector<48x320xf32>
    %21 = tpu.matmul %18, %20, %cst_22 {dimension_numbers = #tpu.dot_dimension_numbers<[1], [0], [0], [1], [0, 0, 1, 1], [], []>} : vector<48x80xf32>, vector<80x320xf32>, vector<48x320xf32> -> vector<48x320xf32>
    %22 = arith.addf %15, %21 : vector<48x320xf32>
    %c3 = arith.constant 3 : index
    %c0_23 = arith.constant 0 : index
    %c0_24 = arith.constant 0 : index
    %23 = vector.load %arg1[%c3, %c0_23, %c0_24] : memref<4x48x96xf32, #tpu.memory_space<vmem>>, vector<1x48x96xf32>
    %24 = vector.shape_cast %23 : vector<1x48x96xf32> to vector<48x96xf32>
    %cst_25 = arith.constant dense<0.000000e+00> : vector<48x80xf32>
    %25 = tpu.matmul %24, %0, %cst_25 {dimension_numbers = #tpu.dot_dimension_numbers<[1], [0], [0], [1], [0, 0, 1, 1], [], []>} : vector<48x96xf32>, vector<96x80xf32>, vector<48x80xf32> -> vector<48x80xf32>
    %c3_26 = arith.constant 3 : index
    %c0_27 = arith.constant 0 : index
    %c0_28 = arith.constant 0 : index
    %26 = vector.load %arg2[%c3_26, %c0_27, %c0_28] : memref<4x80x320xf32, #tpu.memory_space<vmem>>, vector<1x80x320xf32>
    %27 = vector.shape_cast %26 : vector<1x80x320xf32> to vector<80x320xf32>
    %cst_29 = arith.constant dense<0.000000e+00> : vector<48x320xf32>
    %28 = tpu.matmul %25, %27, %cst_29 {dimension_numbers = #tpu.dot_dimension_numbers<[1], [0], [0], [1], [0, 0, 1, 1], [], []>} : vector<48x80xf32>, vector<80x320xf32>, vector<48x320xf32> -> vector<48x320xf32>
    %29 = arith.addf %22, %28 : vector<48x320xf32>
    %cst_30 = arith.constant dense<0.000000e+00> : vector<320xf32>
    %30 = vector.multi_reduction <add>, %29, %cst_30 [0] : vector<48x320xf32> to vector<320xf32>
    %31 = vector.shape_cast %30 : vector<320xf32> to vector<1x320xf32>
    %c0_31 = arith.constant 0 : index
    %c0_32 = arith.constant 0 : index
    %32 = vector.load %arg3[%c0_31, %c0_32] : memref<320x8xf32, #tpu.memory_space<vmem>>, vector<320x8xf32>
    %cst_33 = arith.constant dense<0.000000e+00> : vector<1x8xf32>
    %33 = tpu.matmul %31, %32, %cst_33 {dimension_numbers = #tpu.dot_dimension_numbers<[1], [0], [0], [1], [0, 0, 1, 1], [], []>} : vector<1x320xf32>, vector<320x8xf32>, vector<1x8xf32> -> vector<1x8xf32>
    %cst_34 = arith.constant 5.2083336E-4 : f32
    %34 = vector.broadcast %cst_34 : f32 to vector<1x8xf32>
    %35 = arith.mulf %33, %34 : vector<1x8xf32>
    %c0_35 = arith.constant 0 : index
    %c0_36 = arith.constant 0 : index
    %36 = vector.load %arg4[%c0_35, %c0_36] : memref<8x320xf32, #tpu.memory_space<vmem>>, vector<8x320xf32>
    %cst_37 = arith.constant dense<0.000000e+00> : vector<1x320xf32>
    %37 = tpu.matmul %35, %36, %cst_37 {dimension_numbers = #tpu.dot_dimension_numbers<[1], [0], [0], [1], [0, 0, 1, 1], [], []>} : vector<1x8xf32>, vector<8x320xf32>, vector<1x320xf32> -> vector<1x320xf32>
    %38 = vector.broadcast %37 : vector<1x320xf32> to vector<48x320xf32>
    %39 = arith.subf %29, %38 : vector<48x320xf32>
    %40 = arith.mulf %39, %39 : vector<48x320xf32>
    %cst_38 = arith.constant dense<0.000000e+00> : vector<320xf32>
    %41 = vector.multi_reduction <add>, %40, %cst_38 [0] : vector<48x320xf32> to vector<320xf32>
    %42 = vector.shape_cast %41 : vector<320xf32> to vector<1x320xf32>
    %c0_39 = arith.constant 0 : index
    %c0_40 = arith.constant 0 : index
    %43 = vector.load %arg3[%c0_39, %c0_40] : memref<320x8xf32, #tpu.memory_space<vmem>>, vector<320x8xf32>
    %cst_41 = arith.constant dense<0.000000e+00> : vector<1x8xf32>
    %44 = tpu.matmul %42, %43, %cst_41 {dimension_numbers = #tpu.dot_dimension_numbers<[1], [0], [0], [1], [0, 0, 1, 1], [], []>} : vector<1x320xf32>, vector<320x8xf32>, vector<1x8xf32> -> vector<1x8xf32>
    %cst_42 = arith.constant 5.2083336E-4 : f32
    %45 = vector.broadcast %cst_42 : f32 to vector<1x8xf32>
    %46 = arith.mulf %44, %45 : vector<1x8xf32>
    %c0_43 = arith.constant 0 : index
    %c0_44 = arith.constant 0 : index
    %47 = vector.load %arg5[%c0_43, %c0_44] : memref<2x8xf32, #tpu.memory_space<vmem>>, vector<1x8xf32>
    %cst_45 = arith.constant 9.99999974E-6 : f32
    %48 = vector.broadcast %cst_45 : f32 to vector<1x8xf32>
    %49 = arith.addf %46, %48 : vector<1x8xf32>
    %50 = math.rsqrt %49 : vector<1x8xf32>
    %51 = arith.mulf %47, %50 : vector<1x8xf32>
    %c0_46 = arith.constant 0 : index
    %c0_47 = arith.constant 0 : index
    %52 = vector.load %arg4[%c0_46, %c0_47] : memref<8x320xf32, #tpu.memory_space<vmem>>, vector<8x320xf32>
    %cst_48 = arith.constant dense<0.000000e+00> : vector<1x320xf32>
    %53 = tpu.matmul %51, %52, %cst_48 {dimension_numbers = #tpu.dot_dimension_numbers<[1], [0], [0], [1], [0, 0, 1, 1], [], []>} : vector<1x8xf32>, vector<8x320xf32>, vector<1x320xf32> -> vector<1x320xf32>
    %c1_49 = arith.constant 1 : index
    %c0_50 = arith.constant 0 : index
    %54 = vector.load %arg5[%c1_49, %c0_50] : memref<2x8xf32, #tpu.memory_space<vmem>>, vector<1x8xf32>
    %c0_51 = arith.constant 0 : index
    %c0_52 = arith.constant 0 : index
    %55 = vector.load %arg4[%c0_51, %c0_52] : memref<8x320xf32, #tpu.memory_space<vmem>>, vector<8x320xf32>
    %cst_53 = arith.constant dense<0.000000e+00> : vector<1x320xf32>
    %56 = tpu.matmul %54, %55, %cst_53 {dimension_numbers = #tpu.dot_dimension_numbers<[1], [0], [0], [1], [0, 0, 1, 1], [], []>} : vector<1x8xf32>, vector<8x320xf32>, vector<1x320xf32> -> vector<1x320xf32>
    %57 = vector.broadcast %53 : vector<1x320xf32> to vector<48x320xf32>
    %58 = arith.mulf %39, %57 : vector<48x320xf32>
    %59 = vector.broadcast %56 : vector<1x320xf32> to vector<48x320xf32>
    %60 = arith.addf %58, %59 : vector<48x320xf32>
    %cst_54 = arith.constant 0.000000e+00 : f32
    %61 = vector.broadcast %cst_54 : f32 to vector<48x320xf32>
    %62 = arith.cmpf oge, %60, %61 : vector<48x320xf32>
    %cst_55 = arith.constant 2.000000e-01 : f32
    %63 = vector.broadcast %cst_55 : f32 to vector<48x320xf32>
    %64 = arith.mulf %63, %60 : vector<48x320xf32>
    %65 = arith.select %62, %60, %64 : vector<48x320xi1>, vector<48x320xf32>
    %cst_56 = arith.constant 0.000000e+00 : f32
    %66 = vector.broadcast %cst_56 : f32 to vector<24x320xf32>
    %c0_57 = arith.constant 0 : index
    %c0_58 = arith.constant 0 : index
    %c0_59 = arith.constant 0 : index
    %67 = vector.load %arg6[%c0_57, %c0_58, %c0_59] : memref<4x24x48xf32, #tpu.memory_space<vmem>>, vector<1x24x48xf32>
    %68 = vector.shape_cast %67 : vector<1x24x48xf32> to vector<24x48xf32>
    %cst_60 = arith.constant dense<0.000000e+00> : vector<24x320xf32>
    %69 = tpu.matmul %68, %65, %cst_60 {dimension_numbers = #tpu.dot_dimension_numbers<[1], [0], [0], [1], [0, 0, 1, 1], [], []>} : vector<24x48xf32>, vector<48x320xf32>, vector<24x320xf32> -> vector<24x320xf32>
    %c0_61 = arith.constant 0 : index
    %c0_62 = arith.constant 0 : index
    %c0_63 = arith.constant 0 : index
    %70 = vector.load %arg7[%c0_61, %c0_62, %c0_63] : memref<4x320x320xf32, #tpu.memory_space<vmem>>, vector<1x320x320xf32>
    %71 = vector.shape_cast %70 : vector<1x320x320xf32> to vector<320x320xf32>
    %cst_64 = arith.constant dense<0.000000e+00> : vector<24x320xf32>
    %72 = tpu.matmul %69, %71, %cst_64 {dimension_numbers = #tpu.dot_dimension_numbers<[1], [0], [0], [1], [0, 0, 1, 1], [], []>} : vector<24x320xf32>, vector<320x320xf32>, vector<24x320xf32> -> vector<24x320xf32>
    %73 = arith.addf %66, %72 : vector<24x320xf32>
    %c1_65 = arith.constant 1 : index
    %c0_66 = arith.constant 0 : index
    %c0_67 = arith.constant 0 : index
    %74 = vector.load %arg6[%c1_65, %c0_66, %c0_67] : memref<4x24x48xf32, #tpu.memory_space<vmem>>, vector<1x24x48xf32>
    %75 = vector.shape_cast %74 : vector<1x24x48xf32> to vector<24x48xf32>
    %cst_68 = arith.constant dense<0.000000e+00> : vector<24x320xf32>
    %76 = tpu.matmul %75, %65, %cst_68 {dimension_numbers = #tpu.dot_dimension_numbers<[1], [0], [0], [1], [0, 0, 1, 1], [], []>} : vector<24x48xf32>, vector<48x320xf32>, vector<24x320xf32> -> vector<24x320xf32>
    %c1_69 = arith.constant 1 : index
    %c0_70 = arith.constant 0 : index
    %c0_71 = arith.constant 0 : index
    %77 = vector.load %arg7[%c1_69, %c0_70, %c0_71] : memref<4x320x320xf32, #tpu.memory_space<vmem>>, vector<1x320x320xf32>
    %78 = vector.shape_cast %77 : vector<1x320x320xf32> to vector<320x320xf32>
    %cst_72 = arith.constant dense<0.000000e+00> : vector<24x320xf32>
    %79 = tpu.matmul %76, %78, %cst_72 {dimension_numbers = #tpu.dot_dimension_numbers<[1], [0], [0], [1], [0, 0, 1, 1], [], []>} : vector<24x320xf32>, vector<320x320xf32>, vector<24x320xf32> -> vector<24x320xf32>
    %80 = arith.addf %73, %79 : vector<24x320xf32>
    %c2_73 = arith.constant 2 : index
    %c0_74 = arith.constant 0 : index
    %c0_75 = arith.constant 0 : index
    %81 = vector.load %arg6[%c2_73, %c0_74, %c0_75] : memref<4x24x48xf32, #tpu.memory_space<vmem>>, vector<1x24x48xf32>
    %82 = vector.shape_cast %81 : vector<1x24x48xf32> to vector<24x48xf32>
    %cst_76 = arith.constant dense<0.000000e+00> : vector<24x320xf32>
    %83 = tpu.matmul %82, %65, %cst_76 {dimension_numbers = #tpu.dot_dimension_numbers<[1], [0], [0], [1], [0, 0, 1, 1], [], []>} : vector<24x48xf32>, vector<48x320xf32>, vector<24x320xf32> -> vector<24x320xf32>
    %c2_77 = arith.constant 2 : index
    %c0_78 = arith.constant 0 : index
    %c0_79 = arith.constant 0 : index
    %84 = vector.load %arg7[%c2_77, %c0_78, %c0_79] : memref<4x320x320xf32, #tpu.memory_space<vmem>>, vector<1x320x320xf32>
    %85 = vector.shape_cast %84 : vector<1x320x320xf32> to vector<320x320xf32>
    %cst_80 = arith.constant dense<0.000000e+00> : vector<24x320xf32>
    %86 = tpu.matmul %83, %85, %cst_80 {dimension_numbers = #tpu.dot_dimension_numbers<[1], [0], [0], [1], [0, 0, 1, 1], [], []>} : vector<24x320xf32>, vector<320x320xf32>, vector<24x320xf32> -> vector<24x320xf32>
    %87 = arith.addf %80, %86 : vector<24x320xf32>
    %c3_81 = arith.constant 3 : index
    %c0_82 = arith.constant 0 : index
    %c0_83 = arith.constant 0 : index
    %88 = vector.load %arg6[%c3_81, %c0_82, %c0_83] : memref<4x24x48xf32, #tpu.memory_space<vmem>>, vector<1x24x48xf32>
    %89 = vector.shape_cast %88 : vector<1x24x48xf32> to vector<24x48xf32>
    %cst_84 = arith.constant dense<0.000000e+00> : vector<24x320xf32>
    %90 = tpu.matmul %89, %65, %cst_84 {dimension_numbers = #tpu.dot_dimension_numbers<[1], [0], [0], [1], [0, 0, 1, 1], [], []>} : vector<24x48xf32>, vector<48x320xf32>, vector<24x320xf32> -> vector<24x320xf32>
    %c3_85 = arith.constant 3 : index
    %c0_86 = arith.constant 0 : index
    %c0_87 = arith.constant 0 : index
    %91 = vector.load %arg7[%c3_85, %c0_86, %c0_87] : memref<4x320x320xf32, #tpu.memory_space<vmem>>, vector<1x320x320xf32>
    %92 = vector.shape_cast %91 : vector<1x320x320xf32> to vector<320x320xf32>
    %cst_88 = arith.constant dense<0.000000e+00> : vector<24x320xf32>
    %93 = tpu.matmul %90, %92, %cst_88 {dimension_numbers = #tpu.dot_dimension_numbers<[1], [0], [0], [1], [0, 0, 1, 1], [], []>} : vector<24x320xf32>, vector<320x320xf32>, vector<24x320xf32> -> vector<24x320xf32>
    %94 = arith.addf %87, %93 : vector<24x320xf32>
    %cst_89 = arith.constant dense<0.000000e+00> : vector<320xf32>
    %95 = vector.multi_reduction <add>, %94, %cst_89 [0] : vector<24x320xf32> to vector<320xf32>
    %96 = vector.shape_cast %95 : vector<320xf32> to vector<1x320xf32>
    %c0_90 = arith.constant 0 : index
    %c0_91 = arith.constant 0 : index
    %97 = vector.load %arg8[%c0_90, %c0_91] : memref<320x16xf32, #tpu.memory_space<vmem>>, vector<320x16xf32>
    %cst_92 = arith.constant dense<0.000000e+00> : vector<1x16xf32>
    %98 = tpu.matmul %96, %97, %cst_92 {dimension_numbers = #tpu.dot_dimension_numbers<[1], [0], [0], [1], [0, 0, 1, 1], [], []>} : vector<1x320xf32>, vector<320x16xf32>, vector<1x16xf32> -> vector<1x16xf32>
    %cst_93 = arith.constant 0.00208333344 : f32
    %99 = vector.broadcast %cst_93 : f32 to vector<1x16xf32>
    %100 = arith.mulf %98, %99 : vector<1x16xf32>
    %c0_94 = arith.constant 0 : index
    %c0_95 = arith.constant 0 : index
    %101 = vector.load %arg9[%c0_94, %c0_95] : memref<16x320xf32, #tpu.memory_space<vmem>>, vector<16x320xf32>
    %cst_96 = arith.constant dense<0.000000e+00> : vector<1x320xf32>
    %102 = tpu.matmul %100, %101, %cst_96 {dimension_numbers = #tpu.dot_dimension_numbers<[1], [0], [0], [1], [0, 0, 1, 1], [], []>} : vector<1x16xf32>, vector<16x320xf32>, vector<1x320xf32> -> vector<1x320xf32>
    %103 = vector.broadcast %102 : vector<1x320xf32> to vector<24x320xf32>
    %104 = arith.subf %94, %103 : vector<24x320xf32>
    %105 = arith.mulf %104, %104 : vector<24x320xf32>
    %cst_97 = arith.constant dense<0.000000e+00> : vector<320xf32>
    %106 = vector.multi_reduction <add>, %105, %cst_97 [0] : vector<24x320xf32> to vector<320xf32>
    %107 = vector.shape_cast %106 : vector<320xf32> to vector<1x320xf32>
    %c0_98 = arith.constant 0 : index
    %c0_99 = arith.constant 0 : index
    %108 = vector.load %arg8[%c0_98, %c0_99] : memref<320x16xf32, #tpu.memory_space<vmem>>, vector<320x16xf32>
    %cst_100 = arith.constant dense<0.000000e+00> : vector<1x16xf32>
    %109 = tpu.matmul %107, %108, %cst_100 {dimension_numbers = #tpu.dot_dimension_numbers<[1], [0], [0], [1], [0, 0, 1, 1], [], []>} : vector<1x320xf32>, vector<320x16xf32>, vector<1x16xf32> -> vector<1x16xf32>
    %cst_101 = arith.constant 0.00208333344 : f32
    %110 = vector.broadcast %cst_101 : f32 to vector<1x16xf32>
    %111 = arith.mulf %109, %110 : vector<1x16xf32>
    %c0_102 = arith.constant 0 : index
    %c0_103 = arith.constant 0 : index
    %112 = vector.load %arg10[%c0_102, %c0_103] : memref<2x16xf32, #tpu.memory_space<vmem>>, vector<1x16xf32>
    %cst_104 = arith.constant 9.99999974E-6 : f32
    %113 = vector.broadcast %cst_104 : f32 to vector<1x16xf32>
    %114 = arith.addf %111, %113 : vector<1x16xf32>
    %115 = math.rsqrt %114 : vector<1x16xf32>
    %116 = arith.mulf %112, %115 : vector<1x16xf32>
    %c0_105 = arith.constant 0 : index
    %c0_106 = arith.constant 0 : index
    %117 = vector.load %arg9[%c0_105, %c0_106] : memref<16x320xf32, #tpu.memory_space<vmem>>, vector<16x320xf32>
    %cst_107 = arith.constant dense<0.000000e+00> : vector<1x320xf32>
    %118 = tpu.matmul %116, %117, %cst_107 {dimension_numbers = #tpu.dot_dimension_numbers<[1], [0], [0], [1], [0, 0, 1, 1], [], []>} : vector<1x16xf32>, vector<16x320xf32>, vector<1x320xf32> -> vector<1x320xf32>
    %c1_108 = arith.constant 1 : index
    %c0_109 = arith.constant 0 : index
    %119 = vector.load %arg10[%c1_108, %c0_109] : memref<2x16xf32, #tpu.memory_space<vmem>>, vector<1x16xf32>
    %c0_110 = arith.constant 0 : index
    %c0_111 = arith.constant 0 : index
    %120 = vector.load %arg9[%c0_110, %c0_111] : memref<16x320xf32, #tpu.memory_space<vmem>>, vector<16x320xf32>
    %cst_112 = arith.constant dense<0.000000e+00> : vector<1x320xf32>
    %121 = tpu.matmul %119, %120, %cst_112 {dimension_numbers = #tpu.dot_dimension_numbers<[1], [0], [0], [1], [0, 0, 1, 1], [], []>} : vector<1x16xf32>, vector<16x320xf32>, vector<1x320xf32> -> vector<1x320xf32>
    %122 = vector.broadcast %118 : vector<1x320xf32> to vector<24x320xf32>
    %123 = arith.mulf %104, %122 : vector<24x320xf32>
    %124 = vector.broadcast %121 : vector<1x320xf32> to vector<24x320xf32>
    %125 = arith.addf %123, %124 : vector<24x320xf32>
    %cst_113 = arith.constant 0.000000e+00 : f32
    %126 = vector.broadcast %cst_113 : f32 to vector<24x320xf32>
    %127 = arith.cmpf oge, %125, %126 : vector<24x320xf32>
    %cst_114 = arith.constant 2.000000e-01 : f32
    %128 = vector.broadcast %cst_114 : f32 to vector<24x320xf32>
    %129 = arith.mulf %128, %125 : vector<24x320xf32>
    %130 = arith.select %127, %125, %129 : vector<24x320xi1>, vector<24x320xf32>
    %cst_115 = arith.constant 0.000000e+00 : f32
    %131 = vector.broadcast %cst_115 : f32 to vector<12x320xf32>
    %c0_116 = arith.constant 0 : index
    %c0_117 = arith.constant 0 : index
    %c0_118 = arith.constant 0 : index
    %132 = vector.load %arg11[%c0_116, %c0_117, %c0_118] : memref<4x12x24xf32, #tpu.memory_space<vmem>>, vector<1x12x24xf32>
    %133 = vector.shape_cast %132 : vector<1x12x24xf32> to vector<12x24xf32>
    %cst_119 = arith.constant dense<0.000000e+00> : vector<12x320xf32>
    %134 = tpu.matmul %133, %130, %cst_119 {dimension_numbers = #tpu.dot_dimension_numbers<[1], [0], [0], [1], [0, 0, 1, 1], [], []>} : vector<12x24xf32>, vector<24x320xf32>, vector<12x320xf32> -> vector<12x320xf32>
    %c0_120 = arith.constant 0 : index
    %c0_121 = arith.constant 0 : index
    %c0_122 = arith.constant 0 : index
    %135 = vector.load %arg12[%c0_120, %c0_121, %c0_122] : memref<4x320x320xf32, #tpu.memory_space<vmem>>, vector<1x320x320xf32>
    %136 = vector.shape_cast %135 : vector<1x320x320xf32> to vector<320x320xf32>
    %cst_123 = arith.constant dense<0.000000e+00> : vector<12x320xf32>
    %137 = tpu.matmul %134, %136, %cst_123 {dimension_numbers = #tpu.dot_dimension_numbers<[1], [0], [0], [1], [0, 0, 1, 1], [], []>} : vector<12x320xf32>, vector<320x320xf32>, vector<12x320xf32> -> vector<12x320xf32>
    %138 = arith.addf %131, %137 : vector<12x320xf32>
    %c1_124 = arith.constant 1 : index
    %c0_125 = arith.constant 0 : index
    %c0_126 = arith.constant 0 : index
    %139 = vector.load %arg11[%c1_124, %c0_125, %c0_126] : memref<4x12x24xf32, #tpu.memory_space<vmem>>, vector<1x12x24xf32>
    %140 = vector.shape_cast %139 : vector<1x12x24xf32> to vector<12x24xf32>
    %cst_127 = arith.constant dense<0.000000e+00> : vector<12x320xf32>
    %141 = tpu.matmul %140, %130, %cst_127 {dimension_numbers = #tpu.dot_dimension_numbers<[1], [0], [0], [1], [0, 0, 1, 1], [], []>} : vector<12x24xf32>, vector<24x320xf32>, vector<12x320xf32> -> vector<12x320xf32>
    %c1_128 = arith.constant 1 : index
    %c0_129 = arith.constant 0 : index
    %c0_130 = arith.constant 0 : index
    %142 = vector.load %arg12[%c1_128, %c0_129, %c0_130] : memref<4x320x320xf32, #tpu.memory_space<vmem>>, vector<1x320x320xf32>
    %143 = vector.shape_cast %142 : vector<1x320x320xf32> to vector<320x320xf32>
    %cst_131 = arith.constant dense<0.000000e+00> : vector<12x320xf32>
    %144 = tpu.matmul %141, %143, %cst_131 {dimension_numbers = #tpu.dot_dimension_numbers<[1], [0], [0], [1], [0, 0, 1, 1], [], []>} : vector<12x320xf32>, vector<320x320xf32>, vector<12x320xf32> -> vector<12x320xf32>
    %145 = arith.addf %138, %144 : vector<12x320xf32>
    %c2_132 = arith.constant 2 : index
    %c0_133 = arith.constant 0 : index
    %c0_134 = arith.constant 0 : index
    %146 = vector.load %arg11[%c2_132, %c0_133, %c0_134] : memref<4x12x24xf32, #tpu.memory_space<vmem>>, vector<1x12x24xf32>
    %147 = vector.shape_cast %146 : vector<1x12x24xf32> to vector<12x24xf32>
    %cst_135 = arith.constant dense<0.000000e+00> : vector<12x320xf32>
    %148 = tpu.matmul %147, %130, %cst_135 {dimension_numbers = #tpu.dot_dimension_numbers<[1], [0], [0], [1], [0, 0, 1, 1], [], []>} : vector<12x24xf32>, vector<24x320xf32>, vector<12x320xf32> -> vector<12x320xf32>
    %c2_136 = arith.constant 2 : index
    %c0_137 = arith.constant 0 : index
    %c0_138 = arith.constant 0 : index
    %149 = vector.load %arg12[%c2_136, %c0_137, %c0_138] : memref<4x320x320xf32, #tpu.memory_space<vmem>>, vector<1x320x320xf32>
    %150 = vector.shape_cast %149 : vector<1x320x320xf32> to vector<320x320xf32>
    %cst_139 = arith.constant dense<0.000000e+00> : vector<12x320xf32>
    %151 = tpu.matmul %148, %150, %cst_139 {dimension_numbers = #tpu.dot_dimension_numbers<[1], [0], [0], [1], [0, 0, 1, 1], [], []>} : vector<12x320xf32>, vector<320x320xf32>, vector<12x320xf32> -> vector<12x320xf32>
    %152 = arith.addf %145, %151 : vector<12x320xf32>
    %c3_140 = arith.constant 3 : index
    %c0_141 = arith.constant 0 : index
    %c0_142 = arith.constant 0 : index
    %153 = vector.load %arg11[%c3_140, %c0_141, %c0_142] : memref<4x12x24xf32, #tpu.memory_space<vmem>>, vector<1x12x24xf32>
    %154 = vector.shape_cast %153 : vector<1x12x24xf32> to vector<12x24xf32>
    %cst_143 = arith.constant dense<0.000000e+00> : vector<12x320xf32>
    %155 = tpu.matmul %154, %130, %cst_143 {dimension_numbers = #tpu.dot_dimension_numbers<[1], [0], [0], [1], [0, 0, 1, 1], [], []>} : vector<12x24xf32>, vector<24x320xf32>, vector<12x320xf32> -> vector<12x320xf32>
    %c3_144 = arith.constant 3 : index
    %c0_145 = arith.constant 0 : index
    %c0_146 = arith.constant 0 : index
    %156 = vector.load %arg12[%c3_144, %c0_145, %c0_146] : memref<4x320x320xf32, #tpu.memory_space<vmem>>, vector<1x320x320xf32>
    %157 = vector.shape_cast %156 : vector<1x320x320xf32> to vector<320x320xf32>
    %cst_147 = arith.constant dense<0.000000e+00> : vector<12x320xf32>
    %158 = tpu.matmul %155, %157, %cst_147 {dimension_numbers = #tpu.dot_dimension_numbers<[1], [0], [0], [1], [0, 0, 1, 1], [], []>} : vector<12x320xf32>, vector<320x320xf32>, vector<12x320xf32> -> vector<12x320xf32>
    %159 = arith.addf %152, %158 : vector<12x320xf32>
    %cst_148 = arith.constant dense<0.000000e+00> : vector<320xf32>
    %160 = vector.multi_reduction <add>, %159, %cst_148 [0] : vector<12x320xf32> to vector<320xf32>
    %161 = vector.shape_cast %160 : vector<320xf32> to vector<1x320xf32>
    %c0_149 = arith.constant 0 : index
    %c0_150 = arith.constant 0 : index
    %162 = vector.load %arg13[%c0_149, %c0_150] : memref<320x32xf32, #tpu.memory_space<vmem>>, vector<320x32xf32>
    %cst_151 = arith.constant dense<0.000000e+00> : vector<1x32xf32>
    %163 = tpu.matmul %161, %162, %cst_151 {dimension_numbers = #tpu.dot_dimension_numbers<[1], [0], [0], [1], [0, 0, 1, 1], [], []>} : vector<1x320xf32>, vector<320x32xf32>, vector<1x32xf32> -> vector<1x32xf32>
    %cst_152 = arith.constant 0.00833333377 : f32
    %164 = vector.broadcast %cst_152 : f32 to vector<1x32xf32>
    %165 = arith.mulf %163, %164 : vector<1x32xf32>
    %c0_153 = arith.constant 0 : index
    %c0_154 = arith.constant 0 : index
    %166 = vector.load %arg14[%c0_153, %c0_154] : memref<32x320xf32, #tpu.memory_space<vmem>>, vector<32x320xf32>
    %cst_155 = arith.constant dense<0.000000e+00> : vector<1x320xf32>
    %167 = tpu.matmul %165, %166, %cst_155 {dimension_numbers = #tpu.dot_dimension_numbers<[1], [0], [0], [1], [0, 0, 1, 1], [], []>} : vector<1x32xf32>, vector<32x320xf32>, vector<1x320xf32> -> vector<1x320xf32>
    %168 = vector.broadcast %167 : vector<1x320xf32> to vector<12x320xf32>
    %169 = arith.subf %159, %168 : vector<12x320xf32>
    %170 = arith.mulf %169, %169 : vector<12x320xf32>
    %cst_156 = arith.constant dense<0.000000e+00> : vector<320xf32>
    %171 = vector.multi_reduction <add>, %170, %cst_156 [0] : vector<12x320xf32> to vector<320xf32>
    %172 = vector.shape_cast %171 : vector<320xf32> to vector<1x320xf32>
    %c0_157 = arith.constant 0 : index
    %c0_158 = arith.constant 0 : index
    %173 = vector.load %arg13[%c0_157, %c0_158] : memref<320x32xf32, #tpu.memory_space<vmem>>, vector<320x32xf32>
    %cst_159 = arith.constant dense<0.000000e+00> : vector<1x32xf32>
    %174 = tpu.matmul %172, %173, %cst_159 {dimension_numbers = #tpu.dot_dimension_numbers<[1], [0], [0], [1], [0, 0, 1, 1], [], []>} : vector<1x320xf32>, vector<320x32xf32>, vector<1x32xf32> -> vector<1x32xf32>
    %cst_160 = arith.constant 0.00833333377 : f32
    %175 = vector.broadcast %cst_160 : f32 to vector<1x32xf32>
    %176 = arith.mulf %174, %175 : vector<1x32xf32>
    %c0_161 = arith.constant 0 : index
    %c0_162 = arith.constant 0 : index
    %177 = vector.load %arg15[%c0_161, %c0_162] : memref<2x32xf32, #tpu.memory_space<vmem>>, vector<1x32xf32>
    %cst_163 = arith.constant 9.99999974E-6 : f32
    %178 = vector.broadcast %cst_163 : f32 to vector<1x32xf32>
    %179 = arith.addf %176, %178 : vector<1x32xf32>
    %180 = math.rsqrt %179 : vector<1x32xf32>
    %181 = arith.mulf %177, %180 : vector<1x32xf32>
    %c0_164 = arith.constant 0 : index
    %c0_165 = arith.constant 0 : index
    %182 = vector.load %arg14[%c0_164, %c0_165] : memref<32x320xf32, #tpu.memory_space<vmem>>, vector<32x320xf32>
    %cst_166 = arith.constant dense<0.000000e+00> : vector<1x320xf32>
    %183 = tpu.matmul %181, %182, %cst_166 {dimension_numbers = #tpu.dot_dimension_numbers<[1], [0], [0], [1], [0, 0, 1, 1], [], []>} : vector<1x32xf32>, vector<32x320xf32>, vector<1x320xf32> -> vector<1x320xf32>
    %c1_167 = arith.constant 1 : index
    %c0_168 = arith.constant 0 : index
    %184 = vector.load %arg15[%c1_167, %c0_168] : memref<2x32xf32, #tpu.memory_space<vmem>>, vector<1x32xf32>
    %c0_169 = arith.constant 0 : index
    %c0_170 = arith.constant 0 : index
    %185 = vector.load %arg14[%c0_169, %c0_170] : memref<32x320xf32, #tpu.memory_space<vmem>>, vector<32x320xf32>
    %cst_171 = arith.constant dense<0.000000e+00> : vector<1x320xf32>
    %186 = tpu.matmul %184, %185, %cst_171 {dimension_numbers = #tpu.dot_dimension_numbers<[1], [0], [0], [1], [0, 0, 1, 1], [], []>} : vector<1x32xf32>, vector<32x320xf32>, vector<1x320xf32> -> vector<1x320xf32>
    %187 = vector.broadcast %183 : vector<1x320xf32> to vector<12x320xf32>
    %188 = arith.mulf %169, %187 : vector<12x320xf32>
    %189 = vector.broadcast %186 : vector<1x320xf32> to vector<12x320xf32>
    %190 = arith.addf %188, %189 : vector<12x320xf32>
    %cst_172 = arith.constant 0.000000e+00 : f32
    %191 = vector.broadcast %cst_172 : f32 to vector<12x320xf32>
    %192 = arith.cmpf oge, %190, %191 : vector<12x320xf32>
    %cst_173 = arith.constant 2.000000e-01 : f32
    %193 = vector.broadcast %cst_173 : f32 to vector<12x320xf32>
    %194 = arith.mulf %193, %190 : vector<12x320xf32>
    %195 = arith.select %192, %190, %194 : vector<12x320xi1>, vector<12x320xf32>
    %cst_174 = arith.constant 0.000000e+00 : f32
    %196 = vector.broadcast %cst_174 : f32 to vector<6x320xf32>
    %c0_175 = arith.constant 0 : index
    %c0_176 = arith.constant 0 : index
    %c0_177 = arith.constant 0 : index
    %197 = vector.load %arg16[%c0_175, %c0_176, %c0_177] : memref<4x6x12xf32, #tpu.memory_space<vmem>>, vector<1x6x12xf32>
    %198 = vector.shape_cast %197 : vector<1x6x12xf32> to vector<6x12xf32>
    %cst_178 = arith.constant dense<0.000000e+00> : vector<6x320xf32>
    %199 = tpu.matmul %198, %195, %cst_178 {dimension_numbers = #tpu.dot_dimension_numbers<[1], [0], [0], [1], [0, 0, 1, 1], [], []>} : vector<6x12xf32>, vector<12x320xf32>, vector<6x320xf32> -> vector<6x320xf32>
    %c0_179 = arith.constant 0 : index
    %c0_180 = arith.constant 0 : index
    %c0_181 = arith.constant 0 : index
    %200 = vector.load %arg17[%c0_179, %c0_180, %c0_181] : memref<4x320x320xf32, #tpu.memory_space<vmem>>, vector<1x320x320xf32>
    %201 = vector.shape_cast %200 : vector<1x320x320xf32> to vector<320x320xf32>
    %cst_182 = arith.constant dense<0.000000e+00> : vector<6x320xf32>
    %202 = tpu.matmul %199, %201, %cst_182 {dimension_numbers = #tpu.dot_dimension_numbers<[1], [0], [0], [1], [0, 0, 1, 1], [], []>} : vector<6x320xf32>, vector<320x320xf32>, vector<6x320xf32> -> vector<6x320xf32>
    %203 = arith.addf %196, %202 : vector<6x320xf32>
    %c1_183 = arith.constant 1 : index
    %c0_184 = arith.constant 0 : index
    %c0_185 = arith.constant 0 : index
    %204 = vector.load %arg16[%c1_183, %c0_184, %c0_185] : memref<4x6x12xf32, #tpu.memory_space<vmem>>, vector<1x6x12xf32>
    %205 = vector.shape_cast %204 : vector<1x6x12xf32> to vector<6x12xf32>
    %cst_186 = arith.constant dense<0.000000e+00> : vector<6x320xf32>
    %206 = tpu.matmul %205, %195, %cst_186 {dimension_numbers = #tpu.dot_dimension_numbers<[1], [0], [0], [1], [0, 0, 1, 1], [], []>} : vector<6x12xf32>, vector<12x320xf32>, vector<6x320xf32> -> vector<6x320xf32>
    %c1_187 = arith.constant 1 : index
    %c0_188 = arith.constant 0 : index
    %c0_189 = arith.constant 0 : index
    %207 = vector.load %arg17[%c1_187, %c0_188, %c0_189] : memref<4x320x320xf32, #tpu.memory_space<vmem>>, vector<1x320x320xf32>
    %208 = vector.shape_cast %207 : vector<1x320x320xf32> to vector<320x320xf32>
    %cst_190 = arith.constant dense<0.000000e+00> : vector<6x320xf32>
    %209 = tpu.matmul %206, %208, %cst_190 {dimension_numbers = #tpu.dot_dimension_numbers<[1], [0], [0], [1], [0, 0, 1, 1], [], []>} : vector<6x320xf32>, vector<320x320xf32>, vector<6x320xf32> -> vector<6x320xf32>
    %210 = arith.addf %203, %209 : vector<6x320xf32>
    %c2_191 = arith.constant 2 : index
    %c0_192 = arith.constant 0 : index
    %c0_193 = arith.constant 0 : index
    %211 = vector.load %arg16[%c2_191, %c0_192, %c0_193] : memref<4x6x12xf32, #tpu.memory_space<vmem>>, vector<1x6x12xf32>
    %212 = vector.shape_cast %211 : vector<1x6x12xf32> to vector<6x12xf32>
    %cst_194 = arith.constant dense<0.000000e+00> : vector<6x320xf32>
    %213 = tpu.matmul %212, %195, %cst_194 {dimension_numbers = #tpu.dot_dimension_numbers<[1], [0], [0], [1], [0, 0, 1, 1], [], []>} : vector<6x12xf32>, vector<12x320xf32>, vector<6x320xf32> -> vector<6x320xf32>
    %c2_195 = arith.constant 2 : index
    %c0_196 = arith.constant 0 : index
    %c0_197 = arith.constant 0 : index
    %214 = vector.load %arg17[%c2_195, %c0_196, %c0_197] : memref<4x320x320xf32, #tpu.memory_space<vmem>>, vector<1x320x320xf32>
    %215 = vector.shape_cast %214 : vector<1x320x320xf32> to vector<320x320xf32>
    %cst_198 = arith.constant dense<0.000000e+00> : vector<6x320xf32>
    %216 = tpu.matmul %213, %215, %cst_198 {dimension_numbers = #tpu.dot_dimension_numbers<[1], [0], [0], [1], [0, 0, 1, 1], [], []>} : vector<6x320xf32>, vector<320x320xf32>, vector<6x320xf32> -> vector<6x320xf32>
    %217 = arith.addf %210, %216 : vector<6x320xf32>
    %c3_199 = arith.constant 3 : index
    %c0_200 = arith.constant 0 : index
    %c0_201 = arith.constant 0 : index
    %218 = vector.load %arg16[%c3_199, %c0_200, %c0_201] : memref<4x6x12xf32, #tpu.memory_space<vmem>>, vector<1x6x12xf32>
    %219 = vector.shape_cast %218 : vector<1x6x12xf32> to vector<6x12xf32>
    %cst_202 = arith.constant dense<0.000000e+00> : vector<6x320xf32>
    %220 = tpu.matmul %219, %195, %cst_202 {dimension_numbers = #tpu.dot_dimension_numbers<[1], [0], [0], [1], [0, 0, 1, 1], [], []>} : vector<6x12xf32>, vector<12x320xf32>, vector<6x320xf32> -> vector<6x320xf32>
    %c3_203 = arith.constant 3 : index
    %c0_204 = arith.constant 0 : index
    %c0_205 = arith.constant 0 : index
    %221 = vector.load %arg17[%c3_203, %c0_204, %c0_205] : memref<4x320x320xf32, #tpu.memory_space<vmem>>, vector<1x320x320xf32>
    %222 = vector.shape_cast %221 : vector<1x320x320xf32> to vector<320x320xf32>
    %cst_206 = arith.constant dense<0.000000e+00> : vector<6x320xf32>
    %223 = tpu.matmul %220, %222, %cst_206 {dimension_numbers = #tpu.dot_dimension_numbers<[1], [0], [0], [1], [0, 0, 1, 1], [], []>} : vector<6x320xf32>, vector<320x320xf32>, vector<6x320xf32> -> vector<6x320xf32>
    %224 = arith.addf %217, %223 : vector<6x320xf32>
    %cst_207 = arith.constant dense<0.000000e+00> : vector<320xf32>
    %225 = vector.multi_reduction <add>, %224, %cst_207 [0] : vector<6x320xf32> to vector<320xf32>
    %226 = vector.shape_cast %225 : vector<320xf32> to vector<1x320xf32>
    %c0_208 = arith.constant 0 : index
    %c0_209 = arith.constant 0 : index
    %227 = vector.load %arg18[%c0_208, %c0_209] : memref<320x64xf32, #tpu.memory_space<vmem>>, vector<320x64xf32>
    %cst_210 = arith.constant dense<0.000000e+00> : vector<1x64xf32>
    %228 = tpu.matmul %226, %227, %cst_210 {dimension_numbers = #tpu.dot_dimension_numbers<[1], [0], [0], [1], [0, 0, 1, 1], [], []>} : vector<1x320xf32>, vector<320x64xf32>, vector<1x64xf32> -> vector<1x64xf32>
    %cst_211 = arith.constant 0.0333333351 : f32
    %229 = vector.broadcast %cst_211 : f32 to vector<1x64xf32>
    %230 = arith.mulf %228, %229 : vector<1x64xf32>
    %c0_212 = arith.constant 0 : index
    %c0_213 = arith.constant 0 : index
    %231 = vector.load %arg19[%c0_212, %c0_213] : memref<64x320xf32, #tpu.memory_space<vmem>>, vector<64x320xf32>
    %cst_214 = arith.constant dense<0.000000e+00> : vector<1x320xf32>
    %232 = tpu.matmul %230, %231, %cst_214 {dimension_numbers = #tpu.dot_dimension_numbers<[1], [0], [0], [1], [0, 0, 1, 1], [], []>} : vector<1x64xf32>, vector<64x320xf32>, vector<1x320xf32> -> vector<1x320xf32>
    %233 = vector.broadcast %232 : vector<1x320xf32> to vector<6x320xf32>
    %234 = arith.subf %224, %233 : vector<6x320xf32>
    %235 = arith.mulf %234, %234 : vector<6x320xf32>
    %cst_215 = arith.constant dense<0.000000e+00> : vector<320xf32>
    %236 = vector.multi_reduction <add>, %235, %cst_215 [0] : vector<6x320xf32> to vector<320xf32>
    %237 = vector.shape_cast %236 : vector<320xf32> to vector<1x320xf32>
    %c0_216 = arith.constant 0 : index
    %c0_217 = arith.constant 0 : index
    %238 = vector.load %arg18[%c0_216, %c0_217] : memref<320x64xf32, #tpu.memory_space<vmem>>, vector<320x64xf32>
    %cst_218 = arith.constant dense<0.000000e+00> : vector<1x64xf32>
    %239 = tpu.matmul %237, %238, %cst_218 {dimension_numbers = #tpu.dot_dimension_numbers<[1], [0], [0], [1], [0, 0, 1, 1], [], []>} : vector<1x320xf32>, vector<320x64xf32>, vector<1x64xf32> -> vector<1x64xf32>
    %cst_219 = arith.constant 0.0333333351 : f32
    %240 = vector.broadcast %cst_219 : f32 to vector<1x64xf32>
    %241 = arith.mulf %239, %240 : vector<1x64xf32>
    %c0_220 = arith.constant 0 : index
    %c0_221 = arith.constant 0 : index
    %242 = vector.load %arg20[%c0_220, %c0_221] : memref<2x64xf32, #tpu.memory_space<vmem>>, vector<1x64xf32>
    %cst_222 = arith.constant 9.99999974E-6 : f32
    %243 = vector.broadcast %cst_222 : f32 to vector<1x64xf32>
    %244 = arith.addf %241, %243 : vector<1x64xf32>
    %245 = math.rsqrt %244 : vector<1x64xf32>
    %246 = arith.mulf %242, %245 : vector<1x64xf32>
    %c0_223 = arith.constant 0 : index
    %c0_224 = arith.constant 0 : index
    %247 = vector.load %arg19[%c0_223, %c0_224] : memref<64x320xf32, #tpu.memory_space<vmem>>, vector<64x320xf32>
    %cst_225 = arith.constant dense<0.000000e+00> : vector<1x320xf32>
    %248 = tpu.matmul %246, %247, %cst_225 {dimension_numbers = #tpu.dot_dimension_numbers<[1], [0], [0], [1], [0, 0, 1, 1], [], []>} : vector<1x64xf32>, vector<64x320xf32>, vector<1x320xf32> -> vector<1x320xf32>
    %c1_226 = arith.constant 1 : index
    %c0_227 = arith.constant 0 : index
    %249 = vector.load %arg20[%c1_226, %c0_227] : memref<2x64xf32, #tpu.memory_space<vmem>>, vector<1x64xf32>
    %c0_228 = arith.constant 0 : index
    %c0_229 = arith.constant 0 : index
    %250 = vector.load %arg19[%c0_228, %c0_229] : memref<64x320xf32, #tpu.memory_space<vmem>>, vector<64x320xf32>
    %cst_230 = arith.constant dense<0.000000e+00> : vector<1x320xf32>
    %251 = tpu.matmul %249, %250, %cst_230 {dimension_numbers = #tpu.dot_dimension_numbers<[1], [0], [0], [1], [0, 0, 1, 1], [], []>} : vector<1x64xf32>, vector<64x320xf32>, vector<1x320xf32> -> vector<1x320xf32>
    %252 = vector.broadcast %248 : vector<1x320xf32> to vector<6x320xf32>
    %253 = arith.mulf %234, %252 : vector<6x320xf32>
    %254 = vector.broadcast %251 : vector<1x320xf32> to vector<6x320xf32>
    %255 = arith.addf %253, %254 : vector<6x320xf32>
    %cst_231 = arith.constant 0.000000e+00 : f32
    %256 = vector.broadcast %cst_231 : f32 to vector<6x320xf32>
    %257 = arith.cmpf oge, %255, %256 : vector<6x320xf32>
    %cst_232 = arith.constant 2.000000e-01 : f32
    %258 = vector.broadcast %cst_232 : f32 to vector<6x320xf32>
    %259 = arith.mulf %258, %255 : vector<6x320xf32>
    %260 = arith.select %257, %255, %259 : vector<6x320xi1>, vector<6x320xf32>
    %c0_233 = arith.constant 0 : index
    %c0_234 = arith.constant 0 : index
    %261 = vector.load %arg21[%c0_233, %c0_234] : memref<6x320xf32, #tpu.memory_space<vmem>>, vector<6x320xf32>
    %262 = arith.mulf %260, %261 : vector<6x320xf32>
    %cst_235 = arith.constant dense<0.000000e+00> : vector<6xf32>
    %263 = vector.multi_reduction <add>, %262, %cst_235 [1] : vector<6x320xf32> to vector<6xf32>
    %264 = vector.shape_cast %263 : vector<6xf32> to vector<6x1xf32>
    %c0_236 = arith.constant 0 : index
    %c0_237 = arith.constant 0 : index
    %265 = vector.load %arg22[%c0_236, %c0_237] : memref<2x6xf32, #tpu.memory_space<vmem>>, vector<2x6xf32>
    %cst_238 = arith.constant dense<0.000000e+00> : vector<2x1xf32>
    %266 = tpu.matmul %265, %264, %cst_238 {dimension_numbers = #tpu.dot_dimension_numbers<[1], [0], [0], [1], [0, 0, 1, 1], [], []>} : vector<2x6xf32>, vector<6x1xf32>, vector<2x1xf32> -> vector<2x1xf32>
    %c0_239 = arith.constant 0 : index
    %c0_240 = arith.constant 0 : index
    %267 = vector.load %arg23[%c0_239, %c0_240] : memref<2x1xf32, #tpu.memory_space<vmem>>, vector<2x1xf32>
    tpu.vector_store %arg23[%c0_239, %c0_240], %266 {strides = array<i32>} : memref<2x1xf32, #tpu.memory_space<vmem>>, vector<2x1xf32>,
    return
  }
}

</mosaic_0001>

<llo_original>
// kernel: linnet_d_forward.1
$region0: #{linnet_d_forward.1}
  #allocation0 [shape = 'u32[]', space=smem, size = 0x4, offset = 0x4, fixed_abs, tag = 'smem constant byte address 0x4 - core index']
  #allocation1 [shape = 'u32[72,128]{1,0:T(1,128)}', space=vmem, size = 0x9000, scoped, tag = 'internal scratch']
  %s0 = inlined_call_operand.hbm [shape: f32[96,80], index: 0, kind: input, shape index: {}]
  %s1 = inlined_call_operand.hbm [shape: f32[4,48,96], index: 1, kind: input, shape index: {}]
  %s2 = inlined_call_operand.hbm [shape: f32[4,80,320], index: 2, kind: input, shape index: {}]
  %s3 = inlined_call_operand.vmem [shape: f32[320,8], index: 3, kind: input, shape index: {}]
  %s4 = inlined_call_operand.hbm [shape: f32[8,320], index: 4, kind: input, shape index: {}]
  %s5 = inlined_call_operand.hbm [shape: f32[2,8], index: 5, kind: input, shape index: {}]
  %s6 = inlined_call_operand.hbm [shape: f32[4,24,48], index: 6, kind: input, shape index: {}]
  %s7 = inlined_call_operand.hbm [shape: f32[4,320,320], index: 7, kind: input, shape index: {}]
  %s8 = inlined_call_operand.vmem [shape: f32[320,16], index: 8, kind: input, shape index: {}]
  %s9 = inlined_call_operand.hbm [shape: f32[16,320], index: 9, kind: input, shape index: {}]
  %s10 = inlined_call_operand.hbm [shape: f32[2,16], index: 10, kind: input, shape index: {}]
  %s11 = inlined_call_operand.vmem [shape: f32[4,12,24], index: 11, kind: input, shape index: {}]
  %s12 = inlined_call_operand.hbm [shape: f32[4,320,320], index: 12, kind: input, shape index: {}]
  %s13 = inlined_call_operand.vmem [shape: f32[320,32], index: 13, kind: input, shape index: {}]
  %s14 = inlined_call_operand.hbm [shape: f32[32,320], index: 14, kind: input, shape index: {}]
  %s15 = inlined_call_operand.hbm [shape: f32[2,32], index: 15, kind: input, shape index: {}]
  %s16 = inlined_call_operand.vmem [shape: f32[4,6,12], index: 16, kind: input, shape index: {}]
  %s17 = inlined_call_operand.hbm [shape: f32[4,320,320], index: 17, kind: input, shape index: {}]
  %s18 = inlined_call_operand.vmem [shape: f32[320,64], index: 18, kind: input, shape index: {}]
  %s19 = inlined_call_operand.hbm [shape: f32[64,320], index: 19, kind: input, shape index: {}]
  %s20 = inlined_call_operand.hbm [shape: f32[2,64], index: 20, kind: input, shape index: {}]
  %s21 = inlined_call_operand.hbm [shape: f32[6,320], index: 21, kind: input, shape index: {}]
  %s22 = inlined_call_operand.hbm [shape: f32[2,6], index: 22, kind: input, shape index: {}]
  %s23 = inlined_call_operand.vmem [shape: f32[2,1], index: 23, kind: output, shape index: {}]
  %s24 = sld [smem:[#allocation0]]
  $region170: #{linnet_d_forward.1} parent=0
    _
  %s26 = ssub.s32 1, %s24
  %s27 = scalar_select 0, %s26, %s24
  $region1: #{linnet_d_forward.1} parent=0
    #allocation2 [shape = 'u8[49152]{0}', space=vmem, size = 0xc000, scoped, tag = 'input window, operand 0, single buffered']
    #allocation3 [shape = 's32[1]{0}', space=sflag, size = 0x4, scoped, tag = 'scoped memory for linnet_d_forward.1']
    #allocation4 [shape = 'u8[98304]{0}', space=vmem, size = 0x18000, scoped, tag = 'input window, operand 1, single buffered']
    #allocation5 [shape = 's32[1]{0}', space=sflag, size = 0x4, scoped, tag = 'scoped memory for linnet_d_forward.1']
    #allocation6 [shape = 'u8[491520]{0}', space=vmem, size = 0x78000, scoped, tag = 'input window, operand 2, single buffered']
    #allocation7 [shape = 'u8[12288]{0}', space=vmem, size = 0x3000, scoped, tag = 'input window, operand 4, single buffered']
    #allocation8 [shape = 's32[1]{0}', space=sflag, size = 0x4, scoped, tag = 'scoped memory for linnet_d_forward.1']
    #allocation9 [shape = 'u8[1024]{0}', space=vmem, size = 0x400, scoped, tag = 'input window, operand 5, single buffered']
    #allocation10 [shape = 'u8[49152]{0}', space=vmem, size = 0xc000, scoped, tag = 'input window, operand 6, single buffered']
    #allocation11 [shape = 's32[1]{0}', space=sflag, size = 0x4, scoped, tag = 'scoped memory for linnet_d_forward.1']
    #allocation12 [shape = 'u8[1966080]{0}', space=vmem, size = 0x1e0000, scoped, tag = 'input window, operand 7, single buffered']
    #allocation13 [shape = 'u8[24576]{0}', space=vmem, size = 0x6000, scoped, tag = 'input window, operand 9, single buffered']
    #allocation14 [shape = 's32[1]{0}', space=sflag, size = 0x4, scoped, tag = 'scoped memory for linnet_d_forward.1']
    #allocation15 [shape = 'u8[1024]{0}', space=vmem, size = 0x400, scoped, tag = 'input window, operand 10, single buffered']
    #allocation16 [shape = 'u8[1966080]{0}', space=vmem, size = 0x1e0000, scoped, tag = 'input window, operand 12, single buffered']
    #allocation17 [shape = 's32[1]{0}', space=sflag, size = 0x4, scoped, tag = 'scoped memory for linnet_d_forward.1']
    #allocation18 [shape = 'u8[49152]{0}', space=vmem, size = 0xc000, scoped, tag = 'input window, operand 14, single buffered']
    #allocation19 [shape = 'u8[1024]{0}', space=vmem, size = 0x400, scoped, tag = 'input window, operand 15, single buffered']
    #allocation20 [shape = 's32[1]{0}', space=sflag, size = 0x4, scoped, tag = 'scoped memory for linnet_d_forward.1']
    #allocation21 [shape = 'u8[1966080]{0}', space=vmem, size = 0x1e0000, scoped, tag = 'input window, operand 17, single buffered']
    #allocation22 [shape = 'u8[98304]{0}', space=vmem, size = 0x18000, scoped, tag = 'input window, operand 19, single buffered']
    #allocation23 [shape = 's32[1]{0}', space=sflag, size = 0x4, scoped, tag = 'scoped memory for linnet_d_forward.1']
    #allocation24 [shape = 'u8[1024]{0}', space=vmem, size = 0x400, scoped, tag = 'input window, operand 20, single buffered']
    #allocation25 [shape = 'u8[12288]{0}', space=vmem, size = 0x3000, scoped, tag = 'input window, operand 21, single buffered']
    #allocation26 [shape = 's32[1]{0}', space=sflag, size = 0x4, scoped, tag = 'scoped memory for linnet_d_forward.1']
    #allocation27 [shape = 'u8[1024]{0}', space=vmem, size = 0x400, scoped, tag = 'input window, operand 22, single buffered']
    %28 = vsyncpa [#allocation3], 0
    %29 = vsyncpa [#allocation5], 0
    %30 = vsyncpa [#allocation8], 0
    %31 = vsyncpa [#allocation11], 0
    %32 = vsyncpa [#allocation14], 0
    %33 = vsyncpa [#allocation17], 0
    %34 = vsyncpa [#allocation20], 0
    %35 = vsyncpa [#allocation23], 0
    %36 = vsyncpa [#allocation26], 0
    // Predicated region
    $region2: #{linnet_d_forward.1} parent=1 // pred_check
      _
    $region3: #{linnet_d_forward.1} parent=1 // pred_check_branch
      %38 = sbr.rel (0) target = $region5
    $region4: #{linnet_d_forward.1} parent=1 // pred_region
      %40 = vsyncadd [#allocation3], 0
      %s41 = sshll.u32 %s0, 4
      %s42 = int_to_ptr.hbm [resolvable:$true] %s41
      %s43 = sshll.u32 [#allocation2], 4
      %s44 = int_to_ptr.vmem [resolvable:$true] %s43
      %49 = dma.hbm_to_vmem [thread:$0]  %s42, 1536, %s44, [#allocation3], 128, 128, 8
    $region5: #{linnet_d_forward.1} parent=1 // pred_fallthru
      _
    // Predicated region
    $region6: #{linnet_d_forward.1} parent=1 // pred_check
      _
    $region7: #{linnet_d_forward.1} parent=1 // pred_check_branch
      %51 = sbr.rel (0) target = $region9
    $region8: #{linnet_d_forward.1} parent=1 // pred_region
      %53 = vsyncadd [#allocation5], 0
      %s54 = sshll.u32 %s1, 4
      %s55 = int_to_ptr.hbm [resolvable:$true] %s54
      %s56 = sshll.u32 [#allocation4], 4
      %s57 = int_to_ptr.vmem [resolvable:$true] %s56
      %62 = dma.hbm_to_vmem [thread:$0]  %s55, 3072, %s57, [#allocation5], 128, 128, 8
    $region9: #{linnet_d_forward.1} parent=1 // pred_fallthru
      _
    // Predicated region
    $region10: #{linnet_d_forward.1} parent=1 // pred_check
      _
    $region11: #{linnet_d_forward.1} parent=1 // pred_check_branch
      %64 = sbr.rel (0) target = $region13
    $region12: #{linnet_d_forward.1} parent=1 // pred_region
      %66 = vsyncadd [#allocation5], 0
      %s67 = sshll.u32 %s2, 4
      %s68 = int_to_ptr.hbm [resolvable:$true] %s67
      %s69 = sshll.u32 [#allocation6], 4
      %s70 = int_to_ptr.vmem [resolvable:$true] %s69
      %75 = dma.hbm_to_vmem [thread:$0]  %s68, 15360, %s70, [#allocation5], 384, 384, 24
    $region13: #{linnet_d_forward.1} parent=1 // pred_fallthru
      _
    // Predicated region
    $region14: #{linnet_d_forward.1} parent=1 // pred_check
      _
    $region15: #{linnet_d_forward.1} parent=1 // pred_check_branch
      %77 = sbr.rel (0) target = $region17
    $region16: #{linnet_d_forward.1} parent=1 // pred_region
      _
    $region17: #{linnet_d_forward.1} parent=1 // pred_fallthru
      _
    // Predicated region
    $region18: #{linnet_d_forward.1} parent=1 // pred_check
      _
    $region19: #{linnet_d_forward.1} parent=1 // pred_check_branch
      %79 = sbr.rel (0) target = $region21
    $region20: #{linnet_d_forward.1} parent=1 // pred_region
      %81 = vsyncadd [#allocation8], 0
      %s83 = sshll.u32 %s4, 4
      %s84 = int_to_ptr.hbm [resolvable:$true] %s83
      %s85 = sshll.u32 [#allocation7], 4
      %s86 = int_to_ptr.vmem [resolvable:$true] %s85
      %88 = dma.hbm_to_vmem [thread:$0]  %s84, 384, %s86, [#allocation8]
    $region21: #{linnet_d_forward.1} parent=1 // pred_fallthru
      _
    // Predicated region
    $region22: #{linnet_d_forward.1} parent=1 // pred_check
      _
    $region23: #{linnet_d_forward.1} parent=1 // pred_check_branch
      %90 = sbr.rel (0) target = $region25
    $region24: #{linnet_d_forward.1} parent=1 // pred_region
      %92 = vsyncadd [#allocation8], 0
      %s94 = sshll.u32 %s5, 4
      %s95 = int_to_ptr.hbm [resolvable:$true] %s94
      %s96 = sshll.u32 [#allocation9], 4
      %s97 = int_to_ptr.vmem [resolvable:$true] %s96
      %99 = dma.hbm_to_vmem [thread:$0]  %s95, 32, %s97, [#allocation8]
    $region25: #{linnet_d_forward.1} parent=1 // pred_fallthru
      _
    // Predicated region
    $region26: #{linnet_d_forward.1} parent=1 // pred_check
      _
    $region27: #{linnet_d_forward.1} parent=1 // pred_check_branch
      %101 = sbr.rel (0) target = $region29
    $region28: #{linnet_d_forward.1} parent=1 // pred_region
      %103 = vsyncadd [#allocation11], 0
      %s104 = sshll.u32 %s6, 4
      %s105 = int_to_ptr.hbm [resolvable:$true] %s104
      %s106 = sshll.u32 [#allocation10], 4
      %s107 = int_to_ptr.vmem [resolvable:$true] %s106
      %112 = dma.hbm_to_vmem [thread:$0]  %s105, 1536, %s107, [#allocation11], 128, 128, 8
    $region29: #{linnet_d_forward.1} parent=1 // pred_fallthru
      _
    // Predicated region
    $region30: #{linnet_d_forward.1} parent=1 // pred_check
      _
    $region31: #{linnet_d_forward.1} parent=1 // pred_check_branch
      %114 = sbr.rel (0) target = $region33
    $region32: #{linnet_d_forward.1} parent=1 // pred_region
      %116 = vsyncadd [#allocation11], 0
      %s117 = sshll.u32 %s7, 4
      %s118 = int_to_ptr.hbm [resolvable:$true] %s117
      %s119 = sshll.u32 [#allocation12], 4
      %s120 = int_to_ptr.vmem [resolvable:$true] %s119
      %125 = dma.hbm_to_vmem [thread:$0]  %s118, 61440, %s120, [#allocation11], 384, 384, 24
    $region33: #{linnet_d_forward.1} parent=1 // pred_fallthru
      _
    // Predicated region
    $region34: #{linnet_d_forward.1} parent=1 // pred_check
      _
    $region35: #{linnet_d_forward.1} parent=1 // pred_check_branch
      %127 = sbr.rel (0) target = $region37
    $region36: #{linnet_d_forward.1} parent=1 // pred_region
      _
    $region37: #{linnet_d_forward.1} parent=1 // pred_fallthru
      _
    // Predicated region
    $region38: #{linnet_d_forward.1} parent=1 // pred_check
      _
    $region39: #{linnet_d_forward.1} parent=1 // pred_check_branch
      %129 = sbr.rel (0) target = $region41
    $region40: #{linnet_d_forward.1} parent=1 // pred_region
      %131 = vsyncadd [#allocation14], 0
      %s132 = sshll.u32 %s9, 4
      %s133 = int_to_ptr.hbm [resolvable:$true] %s132
      %s134 = sshll.u32 [#allocation13], 4
      %s135 = int_to_ptr.vmem [resolvable:$true] %s134
      %140 = dma.hbm_to_vmem [thread:$0]  %s133, 768, %s135, [#allocation14], 384, 384, 24
    $region41: #{linnet_d_forward.1} parent=1 // pred_fallthru
      _
    // Predicated region
    $region42: #{linnet_d_forward.1} parent=1 // pred_check
      _
    $region43: #{linnet_d_forward.1} parent=1 // pred_check_branch
      %142 = sbr.rel (0) target = $region45
    $region44: #{linnet_d_forward.1} parent=1 // pred_region
      %144 = vsyncadd [#allocation14], 0
      %s146 = sshll.u32 %s10, 4
      %s147 = int_to_ptr.hbm [resolvable:$true] %s146
      %s148 = sshll.u32 [#allocation15], 4
      %s149 = int_to_ptr.vmem [resolvable:$true] %s148
      %151 = dma.hbm_to_vmem [thread:$0]  %s147, 32, %s149, [#allocation14]
    $region45: #{linnet_d_forward.1} parent=1 // pred_fallthru
      _
    // Predicated region
    $region46: #{linnet_d_forward.1} parent=1 // pred_check
      _
    $region47: #{linnet_d_forward.1} parent=1 // pred_check_branch
      %153 = sbr.rel (0) target = $region49
    $region48: #{linnet_d_forward.1} parent=1 // pred_region
      _
    $region49: #{linnet_d_forward.1} parent=1 // pred_fallthru
      _
    // Predicated region
    $region50: #{linnet_d_forward.1} parent=1 // pred_check
      _
    $region51: #{linnet_d_forward.1} parent=1 // pred_check_branch
      %155 = sbr.rel (0) target = $region53
    $region52: #{linnet_d_forward.1} parent=1 // pred_region
      %157 = vsyncadd [#allocation17], 0
      %s158 = sshll.u32 %s12, 4
      %s159 = int_to_ptr.hbm [resolvable:$true] %s158
      %s160 = sshll.u32 [#allocation16], 4
      %s161 = int_to_ptr.vmem [resolvable:$true] %s160
      %166 = dma.hbm_to_vmem [thread:$0]  %s159, 61440, %s161, [#allocation17], 384, 384, 24
    $region53: #{linnet_d_forward.1} parent=1 // pred_fallthru
      _
    // Predicated region
    $region54: #{linnet_d_forward.1} parent=1 // pred_check
      _
    $region55: #{linnet_d_forward.1} parent=1 // pred_check_branch
      %168 = sbr.rel (0) target = $region57
    $region56: #{linnet_d_forward.1} parent=1 // pred_region
      _
    $region57: #{linnet_d_forward.1} parent=1 // pred_fallthru
      _
    // Predicated region
    $region58: #{linnet_d_forward.1} parent=1 // pred_check
      _
    $region59: #{linnet_d_forward.1} parent=1 // pred_check_branch
      %170 = sbr.rel (0) target = $region61
    $region60: #{linnet_d_forward.1} parent=1 // pred_region
      %172 = vsyncadd [#allocation17], 0
      %s173 = sshll.u32 %s14, 4
      %s174 = int_to_ptr.hbm [resolvable:$true] %s173
      %s175 = sshll.u32 [#allocation18], 4
      %s176 = int_to_ptr.vmem [resolvable:$true] %s175
      %181 = dma.hbm_to_vmem [thread:$0]  %s174, 1536, %s176, [#allocation17], 384, 384, 24
    $region61: #{linnet_d_forward.1} parent=1 // pred_fallthru
      _
    // Predicated region
    $region62: #{linnet_d_forward.1} parent=1 // pred_check
      _
    $region63: #{linnet_d_forward.1} parent=1 // pred_check_branch
      %183 = sbr.rel (0) target = $region65
    $region64: #{linnet_d_forward.1} parent=1 // pred_region
      %185 = vsyncadd [#allocation20], 0
      %s187 = sshll.u32 %s15, 4
      %s188 = int_to_ptr.hbm [resolvable:$true] %s187
      %s189 = sshll.u32 [#allocation19], 4
      %s190 = int_to_ptr.vmem [resolvable:$true] %s189
      %192 = dma.hbm_to_vmem [thread:$0]  %s188, 32, %s190, [#allocation20]
    $region65: #{linnet_d_forward.1} parent=1 // pred_fallthru
      _
    // Predicated region
    $region66: #{linnet_d_forward.1} parent=1 // pred_check
      _
    $region67: #{linnet_d_forward.1} parent=1 // pred_check_branch
      %194 = sbr.rel (0) target = $region69
    $region68: #{linnet_d_forward.1} parent=1 // pred_region
      _
    $region69: #{linnet_d_forward.1} parent=1 // pred_fallthru
      _
    // Predicated region
    $region70: #{linnet_d_forward.1} parent=1 // pred_check
      _
    $region71: #{linnet_d_forward.1} parent=1 // pred_check_branch
      %196 = sbr.rel (0) target = $region73
    $region72: #{linnet_d_forward.1} parent=1 // pred_region
      %198 = vsyncadd [#allocation20], 0
      %s199 = sshll.u32 %s17, 4
      %s200 = int_to_ptr.hbm [resolvable:$true] %s199
      %s201 = sshll.u32 [#allocation21], 4
      %s202 = int_to_ptr.vmem [resolvable:$true] %s201
      %207 = dma.hbm_to_vmem [thread:$0]  %s200, 61440, %s202, [#allocation20], 384, 384, 24
    $region73: #{linnet_d_forward.1} parent=1 // pred_fallthru
      _
    // Predicated region
    $region74: #{linnet_d_forward.1} parent=1 // pred_check
      _
    $region75: #{linnet_d_forward.1} parent=1 // pred_check_branch
      %209 = sbr.rel (0) target = $region77
    $region76: #{linnet_d_forward.1} parent=1 // pred_region
      _
    $region77: #{linnet_d_forward.1} parent=1 // pred_fallthru
      _
    // Predicated region
    $region78: #{linnet_d_forward.1} parent=1 // pred_check
      _
    $region79: #{linnet_d_forward.1} parent=1 // pred_check_branch
      %211 = sbr.rel (0) target = $region81
    $region80: #{linnet_d_forward.1} parent=1 // pred_region
      %213 = vsyncadd [#allocation23], 0
      %s214 = sshll.u32 %s19, 4
      %s215 = int_to_ptr.hbm [resolvable:$true] %s214
      %s216 = sshll.u32 [#allocation22], 4
      %s217 = int_to_ptr.vmem [resolvable:$true] %s216
      %222 = dma.hbm_to_vmem [thread:$0]  %s215, 3072, %s217, [#allocation23], 384, 384, 24
    $region81: #{linnet_d_forward.1} parent=1 // pred_fallthru
      _
    // Predicated region
    $region82: #{linnet_d_forward.1} parent=1 // pred_check
      _
    $region83: #{linnet_d_forward.1} parent=1 // pred_check_branch
      %224 = sbr.rel (0) target = $region85
    $region84: #{linnet_d_forward.1} parent=1 // pred_region
      %226 = vsyncadd [#allocation23], 0
      %s228 = sshll.u32 %s20, 4
      %s229 = int_to_ptr.hbm [resolvable:$true] %s228
      %s230 = sshll.u32 [#allocation24], 4
      %s231 = int_to_ptr.vmem [resolvable:$true] %s230
      %233 = dma.hbm_to_vmem [thread:$0]  %s229, 32, %s231, [#allocation23]
    $region85: #{linnet_d_forward.1} parent=1 // pred_fallthru
      _
    // Predicated region
    $region86: #{linnet_d_forward.1} parent=1 // pred_check
      _
    $region87: #{linnet_d_forward.1} parent=1 // pred_check_branch
      %235 = sbr.rel (0) target = $region89
    $region88: #{linnet_d_forward.1} parent=1 // pred_region
      %237 = vsyncadd [#allocation26], 0
      %s239 = sshll.u32 %s21, 4
      %s240 = int_to_ptr.hbm [resolvable:$true] %s239
      %s241 = sshll.u32 [#allocation25], 4
      %s242 = int_to_ptr.vmem [resolvable:$true] %s241
      %244 = dma.hbm_to_vmem [thread:$0]  %s240, 384, %s242, [#allocation26]
    $region89: #{linnet_d_forward.1} parent=1 // pred_fallthru
      _
    // Predicated region
    $region90: #{linnet_d_forward.1} parent=1 // pred_check
      _
    $region91: #{linnet_d_forward.1} parent=1 // pred_check_branch
      %246 = sbr.rel (0) target = $region93
    $region92: #{linnet_d_forward.1} parent=1 // pred_region
      %248 = vsyncadd [#allocation26], 0
      %s250 = sshll.u32 %s22, 4
      %s251 = int_to_ptr.hbm [resolvable:$true] %s250
      %s252 = sshll.u32 [#allocation27], 4
      %s253 = int_to_ptr.vmem [resolvable:$true] %s252
      %255 = dma.hbm_to_vmem [thread:$0]  %s251, 32, %s253, [#allocation26]
    $region93: #{linnet_d_forward.1} parent=1 // pred_fallthru
      _
    // Predicated region
    $region94: #{linnet_d_forward.1} parent=1 // pred_check
      _
    $region95: #{linnet_d_forward.1} parent=1 // pred_check_branch
      %257 = sbr.rel (0) target = $region97
    $region96: #{linnet_d_forward.1} parent=1 // pred_region
      %259 = dma.done [#allocation3], 1536
    $region97: #{linnet_d_forward.1} parent=1 // pred_fallthru
      _
    // Predicated region
    $region98: #{linnet_d_forward.1} parent=1 // pred_check
      _
    $region99: #{linnet_d_forward.1} parent=1 // pred_check_branch
      %261 = sbr.rel (0) target = $region101
    $region100: #{linnet_d_forward.1} parent=1 // pred_region
      %263 = dma.done [#allocation5], 3072
    $region101: #{linnet_d_forward.1} parent=1 // pred_fallthru
      _
    // Predicated region
    $region102: #{linnet_d_forward.1} parent=1 // pred_check
      _
    $region103: #{linnet_d_forward.1} parent=1 // pred_check_branch
      %265 = sbr.rel (0) target = $region105
    $region104: #{linnet_d_forward.1} parent=1 // pred_region
      %267 = dma.done [#allocation5], 15360
    $region105: #{linnet_d_forward.1} parent=1 // pred_fallthru
      _
    // Predicated region
    $region106: #{linnet_d_forward.1} parent=1 // pred_check
      _
    $region107: #{linnet_d_forward.1} parent=1 // pred_check_branch
      %269 = sbr.rel (0) target = $region109
    $region108: #{linnet_d_forward.1} parent=1 // pred_region
      %271 = dma.done [#allocation8], 384
    $region109: #{linnet_d_forward.1} parent=1 // pred_fallthru
      _
    // Predicated region
    $region110: #{linnet_d_forward.1} parent=1 // pred_check
      _
    $region111: #{linnet_d_forward.1} parent=1 // pred_check_branch
      %273 = sbr.rel (0) target = $region113
    $region112: #{linnet_d_forward.1} parent=1 // pred_region
      %275 = dma.done [#allocation8], 32
    $region113: #{linnet_d_forward.1} parent=1 // pred_fallthru
      _
    // Predicated region
    $region114: #{linnet_d_forward.1} parent=1 // pred_check
      _
    $region115: #{linnet_d_forward.1} parent=1 // pred_check_branch
      %277 = sbr.rel (0) target = $region117
    $region116: #{linnet_d_forward.1} parent=1 // pred_region
      %279 = dma.done [#allocation11], 1536
    $region117: #{linnet_d_forward.1} parent=1 // pred_fallthru
      _
    // Predicated region
    $region118: #{linnet_d_forward.1} parent=1 // pred_check
      _
    $region119: #{linnet_d_forward.1} parent=1 // pred_check_branch
      %281 = sbr.rel (0) target = $region121
    $region120: #{linnet_d_forward.1} parent=1 // pred_region
      %283 = dma.done [#allocation11], 61440
    $region121: #{linnet_d_forward.1} parent=1 // pred_fallthru
      _
    // Predicated region
    $region122: #{linnet_d_forward.1} parent=1 // pred_check
      _
    $region123: #{linnet_d_forward.1} parent=1 // pred_check_branch
      %285 = sbr.rel (0) target = $region125
    $region124: #{linnet_d_forward.1} parent=1 // pred_region
      %287 = dma.done [#allocation14], 768
    $region125: #{linnet_d_forward.1} parent=1 // pred_fallthru
      _
    // Predicated region
    $region126: #{linnet_d_forward.1} parent=1 // pred_check
      _
    $region127: #{linnet_d_forward.1} parent=1 // pred_check_branch
      %289 = sbr.rel (0) target = $region129
    $region128: #{linnet_d_forward.1} parent=1 // pred_region
      %291 = dma.done [#allocation14], 32
    $region129: #{linnet_d_forward.1} parent=1 // pred_fallthru
      _
    // Predicated region
    $region130: #{linnet_d_forward.1} parent=1 // pred_check
      _
    $region131: #{linnet_d_forward.1} parent=1 // pred_check_branch
      %293 = sbr.rel (0) target = $region133
    $region132: #{linnet_d_forward.1} parent=1 // pred_region
      %295 = dma.done [#allocation17], 61440
    $region133: #{linnet_d_forward.1} parent=1 // pred_fallthru
      _
    // Predicated region
    $region134: #{linnet_d_forward.1} parent=1 // pred_check
      _
    $region135: #{linnet_d_forward.1} parent=1 // pred_check_branch
      %297 = sbr.rel (0) target = $region137
    $region136: #{linnet_d_forward.1} parent=1 // pred_region
      %299 = dma.done [#allocation17], 1536
    $region137: #{linnet_d_forward.1} parent=1 // pred_fallthru
      _
    // Predicated region
    $region138: #{linnet_d_forward.1} parent=1 // pred_check
      _
    $region139: #{linnet_d_forward.1} parent=1 // pred_check_branch
      %301 = sbr.rel (0) target = $region141
    $region140: #{linnet_d_forward.1} parent=1 // pred_region
      %303 = dma.done [#allocation20], 32
    $region141: #{linnet_d_forward.1} parent=1 // pred_fallthru
      _
    // Predicated region
    $region142: #{linnet_d_forward.1} parent=1 // pred_check
      _
    $region143: #{linnet_d_forward.1} parent=1 // pred_check_branch
      %305 = sbr.rel (0) target = $region145
    $region144: #{linnet_d_forward.1} parent=1 // pred_region
      %307 = dma.done [#allocation20], 61440
    $region145: #{linnet_d_forward.1} parent=1 // pred_fallthru
      _
    // Predicated region
    $region146: #{linnet_d_forward.1} parent=1 // pred_check
      _
    $region147: #{linnet_d_forward.1} parent=1 // pred_check_branch
      %309 = sbr.rel (0) target = $region149
    $region148: #{linnet_d_forward.1} parent=1 // pred_region
      %311 = dma.done [#allocation23], 3072
    $region149: #{linnet_d_forward.1} parent=1 // pred_fallthru
      _
    // Predicated region
    $region150: #{linnet_d_forward.1} parent=1 // pred_check
      _
    $region151: #{linnet_d_forward.1} parent=1 // pred_check_branch
      %313 = sbr.rel (0) target = $region153
    $region152: #{linnet_d_forward.1} parent=1 // pred_region
      %315 = dma.done [#allocation23], 32
    $region153: #{linnet_d_forward.1} parent=1 // pred_fallthru
      _
    // Predicated region
    $region154: #{linnet_d_forward.1} parent=1 // pred_check
      _
    $region155: #{linnet_d_forward.1} parent=1 // pred_check_branch
      %317 = sbr.rel (0) target = $region157
    $region156: #{linnet_d_forward.1} parent=1 // pred_region
      %319 = dma.done [#allocation26], 384
    $region157: #{linnet_d_forward.1} parent=1 // pred_fallthru
      _
    // Predicated region
    $region158: #{linnet_d_forward.1} parent=1 // pred_check
      _
    $region159: #{linnet_d_forward.1} parent=1 // pred_check_branch
      %321 = sbr.rel (0) target = $region161
    $region160: #{linnet_d_forward.1} parent=1 // pred_region
      %323 = dma.done [#allocation26], 32
    $region161: #{linnet_d_forward.1} parent=1 // pred_fallthru
      _
    %v324 = vld [vmem:[#allocation2] sm:$0xff]
    %v325 = vld [vmem:[#allocation2 + $0x8] sm:$0xff]
    %v326 = vld [vmem:[#allocation2 + $0x10] sm:$0xff]
    %v327 = vld [vmem:[#allocation2 + $0x18] sm:$0xff]
    %v328 = vld [vmem:[#allocation2 + $0x20] sm:$0xff]
    %v329 = vld [vmem:[#allocation2 + $0x28] sm:$0xff]
    %v330 = vld [vmem:[#allocation2 + $0x30] sm:$0xff]
    %v331 = vld [vmem:[#allocation2 + $0x38] sm:$0xff]
    %v332 = vld [vmem:[#allocation2 + $0x40] sm:$0xff]
    %v333 = vld [vmem:[#allocation2 + $0x48] sm:$0xff]
    %v334 = vld [vmem:[#allocation2 + $0x50] sm:$0xff]
    %v335 = vld [vmem:[#allocation2 + $0x58] sm:$0xff]
    %v336 = vld [vmem:[#allocation4] sm:$0xff]
    %v337 = vld [vmem:[#allocation4 + $0x8] sm:$0xff]
    %v338 = vld [vmem:[#allocation4 + $0x10] sm:$0xff]
    %v339 = vld [vmem:[#allocation4 + $0x18] sm:$0xff]
    %v340 = vld [vmem:[#allocation4 + $0x20] sm:$0xff]
    %v341 = vld [vmem:[#allocation4 + $0x28] sm:$0xff]
    %vm342 = vcmask 785408
    %v344 = vsel %vm342, %v336, 0
    %v347 = vsel %vm342, %v337, 0
    %v350 = vsel %vm342, %v338, 0
    %v353 = vsel %vm342, %v339, 0
    %v356 = vsel %vm342, %v340, 0
    %v359 = vsel %vm342, %v341, 0
    %361 = vmatpush.msra.mxu0 0.0
    %362 = vmatpush.msra.mxu0 0.0
    %363 = vmatpush.msra.mxu0 0.0
    %364 = vmatpush.msra.mxu0 0.0
    %365 = vmatpush.msra.mxu0 %v335
    %366 = vmatpush.msra.mxu0 %v334
    %367 = vmatpush.msra.mxu0 %v333
    %368 = vmatpush.msra.mxu0 %v332
    %369 = vmatpush.msra.mxu0 %v331
    %370 = vmatpush.msra.mxu0 %v330
    %371 = vmatpush.msra.mxu0 %v329
    %372 = vmatpush.msra.mxu0 %v328
    %373 = vmatpush.msra.mxu0 %v327
    %374 = vmatpush.msra.mxu0 %v326
    %375 = vmatpush.msra.mxu0 %v325
    %376 = vmatpush.msra.mxu0 %v324
    %377 = vmatmul.f32.gmra.mxu0 %v344
    %v378 = vpop.f32.mrf.mxu0
    %v379 = vadd.f32 0.0, %v378
    %380 = vmatmul.f32.gmra.mxu0 %v347
    %v381 = vpop.f32.mrf.mxu0
    %v382 = vadd.f32 0.0, %v381
    %383 = vmatmul.f32.gmra.mxu0 %v350
    %v384 = vpop.f32.mrf.mxu0
    %v385 = vadd.f32 0.0, %v384
    %386 = vmatmul.f32.gmra.mxu0 %v353
    %v387 = vpop.f32.mrf.mxu0
    %v388 = vadd.f32 0.0, %v387
    %389 = vmatmul.f32.gmra.mxu0 %v356
    %v390 = vpop.f32.mrf.mxu0
    %v391 = vadd.f32 0.0, %v390
    %392 = vmatmul.f32.gmra.mxu0 %v359
    %v393 = vpop.f32.mrf.mxu0
    %v394 = vadd.f32 0.0, %v393
    %395 = vdwg.mxu0
    %v396 = vld [vmem:[#allocation6] sm:$0xff]
    %v397 = vld [vmem:[#allocation6 + $0x8] sm:$0xff]
    %v398 = vld [vmem:[#allocation6 + $0x10] sm:$0xff]
    %v399 = vld [vmem:[#allocation6 + $0x18] sm:$0xff]
    %v400 = vld [vmem:[#allocation6 + $0x20] sm:$0xff]
    %v401 = vld [vmem:[#allocation6 + $0x28] sm:$0xff]
    %v402 = vld [vmem:[#allocation6 + $0x30] sm:$0xff]
    %v403 = vld [vmem:[#allocation6 + $0x38] sm:$0xff]
    %v404 = vld [vmem:[#allocation6 + $0x40] sm:$0xff]
    %v405 = vld [vmem:[#allocation6 + $0x48] sm:$0xff]
    %v406 = vld [vmem:[#allocation6 + $0x50] sm:$0xff]
    %v407 = vld [vmem:[#allocation6 + $0x58] sm:$0xff]
    %v408 = vld [vmem:[#allocation6 + $0x60] sm:$0xff]
    %v409 = vld [vmem:[#allocation6 + $0x68] sm:$0xff]
    %v410 = vld [vmem:[#allocation6 + $0x70] sm:$0xff]
    %v411 = vld [vmem:[#allocation6 + $0x78] sm:$0xff]
    %v412 = vld [vmem:[#allocation6 + $0x80] sm:$0xff]
    %v413 = vld [vmem:[#allocation6 + $0x88] sm:$0xff]
    %v414 = vld [vmem:[#allocation6 + $0x90] sm:$0xff]
    %v415 = vld [vmem:[#allocation6 + $0x98] sm:$0xff]
    %v416 = vld [vmem:[#allocation6 + $0xa0] sm:$0xff]
    %v417 = vld [vmem:[#allocation6 + $0xa8] sm:$0xff]
    %v418 = vld [vmem:[#allocation6 + $0xb0] sm:$0xff]
    %v419 = vld [vmem:[#allocation6 + $0xb8] sm:$0xff]
    %v420 = vld [vmem:[#allocation6 + $0xc0] sm:$0xff]
    %v421 = vld [vmem:[#allocation6 + $0xc8] sm:$0xff]
    %v422 = vld [vmem:[#allocation6 + $0xd0] sm:$0xff]
    %v423 = vld [vmem:[#allocation6 + $0xd8] sm:$0xff]
    %v424 = vld [vmem:[#allocation6 + $0xe0] sm:$0xff]
    %v425 = vld [vmem:[#allocation6 + $0xe8] sm:$0xff]
    %s426 = scalar_lea.vmem [#allocation4], 48
    %v427 = vld [vmem:[%s426] sm:$0xff]
    %v428 = vld [vmem:[%s426 + $0x8] sm:$0xff]
    %v429 = vld [vmem:[%s426 + $0x10] sm:$0xff]
    %v430 = vld [vmem:[%s426 + $0x18] sm:$0xff]
    %v431 = vld [vmem:[%s426 + $0x20] sm:$0xff]
    %v432 = vld [vmem:[%s426 + $0x28] sm:$0xff]
    %v434 = vsel %vm342, %v427, 0
    %v437 = vsel %vm342, %v428, 0
    %v440 = vsel %vm342, %v429, 0
    %v443 = vsel %vm342, %v430, 0
    %v446 = vsel %vm342, %v431, 0
    %v449 = vsel %vm342, %v432, 0
    %451 = vmatpush.msra.mxu0 0.0
    %452 = vmatpush.msra.mxu0 0.0
    %453 = vmatpush.msra.mxu0 0.0
    %454 = vmatpush.msra.mxu0 0.0
    %455 = vmatpush.msra.mxu0 %v335
    %456 = vmatpush.msra.mxu0 %v334
    %457 = vmatpush.msra.mxu0 %v333
    %458 = vmatpush.msra.mxu0 %v332
    %459 = vmatpush.msra.mxu0 %v331
    %460 = vmatpush.msra.mxu0 %v330
    %461 = vmatpush.msra.mxu0 %v329
    %462 = vmatpush.msra.mxu0 %v328
    %463 = vmatpush.msra.mxu0 %v327
    %464 = vmatpush.msra.mxu0 %v326
    %465 = vmatpush.msra.mxu0 %v325
    %466 = vmatpush.msra.mxu0 %v324
    %467 = vmatmul.f32.gmra.mxu0 %v434
    %v468 = vpop.f32.mrf.mxu0
    %v469 = vadd.f32 0.0, %v468
    %470 = vmatmul.f32.gmra.mxu0 %v437
    %v471 = vpop.f32.mrf.mxu0
    %v472 = vadd.f32 0.0, %v471
    %473 = vmatmul.f32.gmra.mxu0 %v440
    %v474 = vpop.f32.mrf.mxu0
    %v475 = vadd.f32 0.0, %v474
    %476 = vmatmul.f32.gmra.mxu0 %v443
    %v477 = vpop.f32.mrf.mxu0
    %v478 = vadd.f32 0.0, %v477
    %479 = vmatmul.f32.gmra.mxu0 %v446
    %v480 = vpop.f32.mrf.mxu0
    %v481 = vadd.f32 0.0, %v480
    %482 = vmatmul.f32.gmra.mxu0 %v449
    %v483 = vpop.f32.mrf.mxu0
    %v484 = vadd.f32 0.0, %v483
    %485 = vdwg.mxu0
    %s486 = scalar_lea.vmem [#allocation6], 240
    %v487 = vld [vmem:[%s486] sm:$0xff]
    %v488 = vld [vmem:[%s486 + $0x8] sm:$0xff]
    %v489 = vld [vmem:[%s486 + $0x10] sm:$0xff]
    %v490 = vld [vmem:[%s486 + $0x18] sm:$0xff]
    %v491 = vld [vmem:[%s486 + $0x20] sm:$0xff]
    %v492 = vld [vmem:[%s486 + $0x28] sm:$0xff]
    %v493 = vld [vmem:[%s486 + $0x30] sm:$0xff]
    %v494 = vld [vmem:[%s486 + $0x38] sm:$0xff]
    %v495 = vld [vmem:[%s486 + $0x40] sm:$0xff]
    %v496 = vld [vmem:[%s486 + $0x48] sm:$0xff]
    %v497 = vld [vmem:[%s486 + $0x50] sm:$0xff]
    %v498 = vld [vmem:[%s486 + $0x58] sm:$0xff]
    %v499 = vld [vmem:[%s486 + $0x60] sm:$0xff]
    %v500 = vld [vmem:[%s486 + $0x68] sm:$0xff]
    %v501 = vld [vmem:[%s486 + $0x70] sm:$0xff]
    %v502 = vld [vmem:[%s486 + $0x78] sm:$0xff]
    %v503 = vld [vmem:[%s486 + $0x80] sm:$0xff]
    %v504 = vld [vmem:[%s486 + $0x88] sm:$0xff]
    %v505 = vld [vmem:[%s486 + $0x90] sm:$0xff]
    %v506 = vld [vmem:[%s486 + $0x98] sm:$0xff]
    %v507 = vld [vmem:[%s486 + $0xa0] sm:$0xff]
    %v508 = vld [vmem:[%s486 + $0xa8] sm:$0xff]
    %v509 = vld [vmem:[%s486 + $0xb0] sm:$0xff]
    %v510 = vld [vmem:[%s486 + $0xb8] sm:$0xff]
    %v511 = vld [vmem:[%s486 + $0xc0] sm:$0xff]
    %v512 = vld [vmem:[%s486 + $0xc8] sm:$0xff]
    %v513 = vld [vmem:[%s486 + $0xd0] sm:$0xff]
    %v514 = vld [vmem:[%s486 + $0xd8] sm:$0xff]
    %v515 = vld [vmem:[%s486 + $0xe0] sm:$0xff]
    %v516 = vld [vmem:[%s486 + $0xe8] sm:$0xff]
    %vm517 = vcmask 654336
    %v519 = vsel %vm517, %v469, 0
    %v522 = vsel %vm517, %v472, 0
    %v525 = vsel %vm517, %v475, 0
    %v528 = vsel %vm517, %v478, 0
    %v531 = vsel %vm517, %v481, 0
    %v534 = vsel %vm517, %v484, 0
    %536 = vmatpush.msra.mxu0 0.0
    %537 = vmatpush.msra.mxu0 0.0
    %538 = vmatpush.msra.mxu0 0.0
    %539 = vmatpush.msra.mxu0 0.0
    %540 = vmatpush.msra.mxu0 0.0
    %541 = vmatpush.msra.mxu0 0.0
    %542 = vmatpush.msra.mxu0 %v514
    %543 = vmatpush.msra.mxu0 %v511
    %544 = vmatpush.msra.mxu0 %v508
    %545 = vmatpush.msra.mxu0 %v505
    %546 = vmatpush.msra.mxu0 %v502
    %547 = vmatpush.msra.mxu0 %v499
    %548 = vmatpush.msra.mxu0 %v496
    %549 = vmatpush.msra.mxu0 %v493
    %550 = vmatpush.msra.mxu0 %v490
    %551 = vmatpush.msra.mxu0 %v487
    %552 = vmatmul.f32.gmra.mxu0 %v519
    %v553 = vpop.f32.mrf.mxu0
    %v554 = vadd.f32 0.0, %v553
    %555 = vmatmul.f32.gmra.mxu0 %v522
    %v556 = vpop.f32.mrf.mxu0
    %v557 = vadd.f32 0.0, %v556
    %558 = vmatmul.f32.gmra.mxu0 %v525
    %v559 = vpop.f32.mrf.mxu0
    %v560 = vadd.f32 0.0, %v559
    %561 = vmatmul.f32.gmra.mxu0 %v528
    %v562 = vpop.f32.mrf.mxu0
    %v563 = vadd.f32 0.0, %v562
    %564 = vmatmul.f32.gmra.mxu0 %v531
    %v565 = vpop.f32.mrf.mxu0
    %v566 = vadd.f32 0.0, %v565
    %567 = vmatmul.f32.gmra.mxu0 %v534
    %v568 = vpop.f32.mrf.mxu0
    %v569 = vadd.f32 0.0, %v568
    %570 = vdwg.mxu0
    %571 = vmatpush.msra.mxu0 0.0
    %572 = vmatpush.msra.mxu0 0.0
    %573 = vmatpush.msra.mxu0 0.0
    %574 = vmatpush.msra.mxu0 0.0
    %575 = vmatpush.msra.mxu0 0.0
    %576 = vmatpush.msra.mxu0 0.0
    %577 = vmatpush.msra.mxu0 %v515
    %578 = vmatpush.msra.mxu0 %v512
    %579 = vmatpush.msra.mxu0 %v509
    %580 = vmatpush.msra.mxu0 %v506
    %581 = vmatpush.msra.mxu0 %v503
    %582 = vmatpush.msra.mxu0 %v500
    %583 = vmatpush.msra.mxu0 %v497
    %584 = vmatpush.msra.mxu0 %v494
    %585 = vmatpush.msra.mxu0 %v491
    %586 = vmatpush.msra.mxu0 %v488
    %587 = vmatmul.f32.gmra.mxu0 %v519
    %v588 = vpop.f32.mrf.mxu0
    %v589 = vadd.f32 0.0, %v588
    %590 = vmatmul.f32.gmra.mxu0 %v522
    %v591 = vpop.f32.mrf.mxu0
    %v592 = vadd.f32 0.0, %v591
    %593 = vmatmul.f32.gmra.mxu0 %v525
    %v594 = vpop.f32.mrf.mxu0
    %v595 = vadd.f32 0.0, %v594
    %596 = vmatmul.f32.gmra.mxu0 %v528
    %v597 = vpop.f32.mrf.mxu0
    %v598 = vadd.f32 0.0, %v597
    %599 = vmatmul.f32.gmra.mxu0 %v531
    %v600 = vpop.f32.mrf.mxu0
    %v601 = vadd.f32 0.0, %v600
    %602 = vmatmul.f32.gmra.mxu0 %v534
    %v603 = vpop.f32.mrf.mxu0
    %v604 = vadd.f32 0.0, %v603
    %605 = vdwg.mxu0
    %606 = vmatpush.msra.mxu0 0.0
    %607 = vmatpush.msra.mxu0 0.0
    %608 = vmatpush.msra.mxu0 0.0
    %609 = vmatpush.msra.mxu0 0.0
    %610 = vmatpush.msra.mxu0 0.0
    %611 = vmatpush.msra.mxu0 0.0
    %612 = vmatpush.msra.mxu0 %v516
    %613 = vmatpush.msra.mxu0 %v513
    %614 = vmatpush.msra.mxu0 %v510
    %615 = vmatpush.msra.mxu0 %v507
    %616 = vmatpush.msra.mxu0 %v504
    %617 = vmatpush.msra.mxu0 %v501
    %618 = vmatpush.msra.mxu0 %v498
    %619 = vmatpush.msra.mxu0 %v495
    %620 = vmatpush.msra.mxu0 %v492
    %621 = vmatpush.msra.mxu0 %v489
    %622 = vmatmul.f32.gmra.mxu0 %v519
    %v623 = vpop.f32.mrf.mxu0
    %v624 = vadd.f32 0.0, %v623
    %625 = vmatmul.f32.gmra.mxu0 %v522
    %v626 = vpop.f32.mrf.mxu0
    %v627 = vadd.f32 0.0, %v626
    %628 = vmatmul.f32.gmra.mxu0 %v525
    %v629 = vpop.f32.mrf.mxu0
    %v630 = vadd.f32 0.0, %v629
    %631 = vmatmul.f32.gmra.mxu0 %v528
    %v632 = vpop.f32.mrf.mxu0
    %v633 = vadd.f32 0.0, %v632
    %634 = vmatmul.f32.gmra.mxu0 %v531
    %v635 = vpop.f32.mrf.mxu0
    %v636 = vadd.f32 0.0, %v635
    %637 = vmatmul.f32.gmra.mxu0 %v534
    %v638 = vpop.f32.mrf.mxu0
    %v639 = vadd.f32 0.0, %v638
    %640 = vdwg.mxu0
    %v642 = vsel %vm517, %v379, 0
    %v645 = vsel %vm517, %v382, 0
    %v648 = vsel %vm517, %v385, 0
    %v651 = vsel %vm517, %v388, 0
    %v654 = vsel %vm517, %v391, 0
    %v657 = vsel %vm517, %v394, 0
    %659 = vmatpush.msra.mxu0 0.0
    %660 = vmatpush.msra.mxu0 0.0
    %661 = vmatpush.msra.mxu0 0.0
    %662 = vmatpush.msra.mxu0 0.0
    %663 = vmatpush.msra.mxu0 0.0
    %664 = vmatpush.msra.mxu0 0.0
    %665 = vmatpush.msra.mxu0 %v423
    %666 = vmatpush.msra.mxu0 %v420
    %667 = vmatpush.msra.mxu0 %v417
    %668 = vmatpush.msra.mxu0 %v414
    %669 = vmatpush.msra.mxu0 %v411
    %670 = vmatpush.msra.mxu0 %v408
    %671 = vmatpush.msra.mxu0 %v405
    %672 = vmatpush.msra.mxu0 %v402
    %673 = vmatpush.msra.mxu0 %v399
    %674 = vmatpush.msra.mxu0 %v396
    %675 = vmatmul.f32.gmra.mxu0 %v642
    %v676 = vpop.f32.mrf.mxu0
    %v677 = vadd.f32 %v554, %v676
    %678 = vmatmul.f32.gmra.mxu0 %v645
    %v679 = vpop.f32.mrf.mxu0
    %v680 = vadd.f32 %v557, %v679
    %681 = vmatmul.f32.gmra.mxu0 %v648
    %v682 = vpop.f32.mrf.mxu0
    %v683 = vadd.f32 %v560, %v682
    %684 = vmatmul.f32.gmra.mxu0 %v651
    %v685 = vpop.f32.mrf.mxu0
    %v686 = vadd.f32 %v563, %v685
    %687 = vmatmul.f32.gmra.mxu0 %v654
    %v688 = vpop.f32.mrf.mxu0
    %v689 = vadd.f32 %v566, %v688
    %690 = vmatmul.f32.gmra.mxu0 %v657
    %v691 = vpop.f32.mrf.mxu0
    %v692 = vadd.f32 %v569, %v691
    %693 = vdwg.mxu0
    %694 = vmatpush.msra.mxu0 0.0
    %695 = vmatpush.msra.mxu0 0.0
    %696 = vmatpush.msra.mxu0 0.0
    %697 = vmatpush.msra.mxu0 0.0
    %698 = vmatpush.msra.mxu0 0.0
    %699 = vmatpush.msra.mxu0 0.0
    %700 = vmatpush.msra.mxu0 %v424
    %701 = vmatpush.msra.mxu0 %v421
    %702 = vmatpush.msra.mxu0 %v418
    %703 = vmatpush.msra.mxu0 %v415
    %704 = vmatpush.msra.mxu0 %v412
    %705 = vmatpush.msra.mxu0 %v409
    %706 = vmatpush.msra.mxu0 %v406
    %707 = vmatpush.msra.mxu0 %v403
    %708 = vmatpush.msra.mxu0 %v400
    %709 = vmatpush.msra.mxu0 %v397
    %710 = vmatmul.f32.gmra.mxu0 %v642
    %v711 = vpop.f32.mrf.mxu0
    %v712 = vadd.f32 %v589, %v711
    %713 = vmatmul.f32.gmra.mxu0 %v645
    %v714 = vpop.f32.mrf.mxu0
    %v715 = vadd.f32 %v592, %v714
    %716 = vmatmul.f32.gmra.mxu0 %v648
    %v717 = vpop.f32.mrf.mxu0
    %v718 = vadd.f32 %v595, %v717
    %719 = vmatmul.f32.gmra.mxu0 %v651
    %v720 = vpop.f32.mrf.mxu0
    %v721 = vadd.f32 %v598, %v720
    %722 = vmatmul.f32.gmra.mxu0 %v654
    %v723 = vpop.f32.mrf.mxu0
    %v724 = vadd.f32 %v601, %v723
    %725 = vmatmul.f32.gmra.mxu0 %v657
    %v726 = vpop.f32.mrf.mxu0
    %v727 = vadd.f32 %v604, %v726
    %728 = vdwg.mxu0
    %729 = vmatpush.msra.mxu0 0.0
    %730 = vmatpush.msra.mxu0 0.0
    %731 = vmatpush.msra.mxu0 0.0
    %732 = vmatpush.msra.mxu0 0.0
    %733 = vmatpush.msra.mxu0 0.0
    %734 = vmatpush.msra.mxu0 0.0
    %735 = vmatpush.msra.mxu0 %v425
    %736 = vmatpush.msra.mxu0 %v422
    %737 = vmatpush.msra.mxu0 %v419
    %738 = vmatpush.msra.mxu0 %v416
    %739 = vmatpush.msra.mxu0 %v413
    %740 = vmatpush.msra.mxu0 %v410
    %741 = vmatpush.msra.mxu0 %v407
    %742 = vmatpush.msra.mxu0 %v404
    %743 = vmatpush.msra.mxu0 %v401
    %744 = vmatpush.msra.mxu0 %v398
    %745 = vmatmul.f32.gmra.mxu0 %v642
    %v746 = vpop.f32.mrf.mxu0
    %v747 = vadd.f32 %v624, %v746
    %748 = vmatmul.f32.gmra.mxu0 %v645
    %v749 = vpop.f32.mrf.mxu0
    %v750 = vadd.f32 %v627, %v749
    %751 = vmatmul.f32.gmra.mxu0 %v648
    %v752 = vpop.f32.mrf.mxu0
    %v753 = vadd.f32 %v630, %v752
    %754 = vmatmul.f32.gmra.mxu0 %v651
    %v755 = vpop.f32.mrf.mxu0
    %v756 = vadd.f32 %v633, %v755
    %757 = vmatmul.f32.gmra.mxu0 %v654
    %v758 = vpop.f32.mrf.mxu0
    %v759 = vadd.f32 %v636, %v758
    %760 = vmatmul.f32.gmra.mxu0 %v657
    %v761 = vpop.f32.mrf.mxu0
    %v762 = vadd.f32 %v639, %v761
    %763 = vdwg.mxu0
    %s764 = scalar_lea.vmem [#allocation4], 96
    %v765 = vld [vmem:[%s764] sm:$0xff]
    %v766 = vld [vmem:[%s764 + $0x8] sm:$0xff]
    %v767 = vld [vmem:[%s764 + $0x10] sm:$0xff]
    %v768 = vld [vmem:[%s764 + $0x18] sm:$0xff]
    %v769 = vld [vmem:[%s764 + $0x20] sm:$0xff]
    %v770 = vld [vmem:[%s764 + $0x28] sm:$0xff]
    %v772 = vsel %vm342, %v765, 0
    %v775 = vsel %vm342, %v766, 0
    %v778 = vsel %vm342, %v767, 0
    %v781 = vsel %vm342, %v768, 0
    %v784 = vsel %vm342, %v769, 0
    %v787 = vsel %vm342, %v770, 0
    %789 = vmatpush.msra.mxu0 0.0
    %790 = vmatpush.msra.mxu0 0.0
    %791 = vmatpush.msra.mxu0 0.0
    %792 = vmatpush.msra.mxu0 0.0
    %793 = vmatpush.msra.mxu0 %v335
    %794 = vmatpush.msra.mxu0 %v334
    %795 = vmatpush.msra.mxu0 %v333
    %796 = vmatpush.msra.mxu0 %v332
    %797 = vmatpush.msra.mxu0 %v331
    %798 = vmatpush.msra.mxu0 %v330
    %799 = vmatpush.msra.mxu0 %v329
    %800 = vmatpush.msra.mxu0 %v328
    %801 = vmatpush.msra.mxu0 %v327
    %802 = vmatpush.msra.mxu0 %v326
    %803 = vmatpush.msra.mxu0 %v325
    %804 = vmatpush.msra.mxu0 %v324
    %805 = vmatmul.f32.gmra.mxu0 %v772
    %v806 = vpop.f32.mrf.mxu0
    %v807 = vadd.f32 0.0, %v806
    %808 = vmatmul.f32.gmra.mxu0 %v775
    %v809 = vpop.f32.mrf.mxu0
    %v810 = vadd.f32 0.0, %v809
    %811 = vmatmul.f32.gmra.mxu0 %v778
    %v812 = vpop.f32.mrf.mxu0
    %v813 = vadd.f32 0.0, %v812
    %814 = vmatmul.f32.gmra.mxu0 %v781
    %v815 = vpop.f32.mrf.mxu0
    %v816 = vadd.f32 0.0, %v815
    %817 = vmatmul.f32.gmra.mxu0 %v784
    %v818 = vpop.f32.mrf.mxu0
    %v819 = vadd.f32 0.0, %v818
    %820 = vmatmul.f32.gmra.mxu0 %v787
    %v821 = vpop.f32.mrf.mxu0
    %v822 = vadd.f32 0.0, %v821
    %823 = vdwg.mxu0
    %s824 = scalar_lea.vmem [#allocation6], 480
    %v825 = vld [vmem:[%s824] sm:$0xff]
    %v826 = vld [vmem:[%s824 + $0x8] sm:$0xff]
    %v827 = vld [vmem:[%s824 + $0x10] sm:$0xff]
    %v828 = vld [vmem:[%s824 + $0x18] sm:$0xff]
    %v829 = vld [vmem:[%s824 + $0x20] sm:$0xff]
    %v830 = vld [vmem:[%s824 + $0x28] sm:$0xff]
    %v831 = vld [vmem:[%s824 + $0x30] sm:$0xff]
    %v832 = vld [vmem:[%s824 + $0x38] sm:$0xff]
    %v833 = vld [vmem:[%s824 + $0x40] sm:$0xff]
    %v834 = vld [vmem:[%s824 + $0x48] sm:$0xff]
    %v835 = vld [vmem:[%s824 + $0x50] sm:$0xff]
    %v836 = vld [vmem:[%s824 + $0x58] sm:$0xff]
    %v837 = vld [vmem:[%s824 + $0x60] sm:$0xff]
    %v838 = vld [vmem:[%s824 + $0x68] sm:$0xff]
    %v839 = vld [vmem:[%s824 + $0x70] sm:$0xff]
    %v840 = vld [vmem:[%s824 + $0x78] sm:$0xff]
    %v841 = vld [vmem:[%s824 + $0x80] sm:$0xff]
    %v842 = vld [vmem:[%s824 + $0x88] sm:$0xff]
    %v843 = vld [vmem:[%s824 + $0x90] sm:$0xff]
    %v844 = vld [vmem:[%s824 + $0x98] sm:$0xff]
    %v845 = vld [vmem:[%s824 + $0xa0] sm:$0xff]
    %v846 = vld [vmem:[%s824 + $0xa8] sm:$0xff]
    %v847 = vld [vmem:[%s824 + $0xb0] sm:$0xff]
    %v848 = vld [vmem:[%s824 + $0xb8] sm:$0xff]
    %v849 = vld [vmem:[%s824 + $0xc0] sm:$0xff]
    %v850 = vld [vmem:[%s824 + $0xc8] sm:$0xff]
    %v851 = vld [vmem:[%s824 + $0xd0] sm:$0xff]
    %v852 = vld [vmem:[%s824 + $0xd8] sm:$0xff]
    %v853 = vld [vmem:[%s824 + $0xe0] sm:$0xff]
    %v854 = vld [vmem:[%s824 + $0xe8] sm:$0xff]
    %v856 = vsel %vm517, %v807, 0
    %v859 = vsel %vm517, %v810, 0
    %v862 = vsel %vm517, %v813, 0
    %v865 = vsel %vm517, %v816, 0
    %v868 = vsel %vm517, %v819, 0
    %v871 = vsel %vm517, %v822, 0
    %873 = vmatpush.msra.mxu0 0.0
    %874 = vmatpush.msra.mxu0 0.0
    %875 = vmatpush.msra.mxu0 0.0
    %876 = vmatpush.msra.mxu0 0.0
    %877 = vmatpush.msra.mxu0 0.0
    %878 = vmatpush.msra.mxu0 0.0
    %879 = vmatpush.msra.mxu0 %v852
    %880 = vmatpush.msra.mxu0 %v849
    %881 = vmatpush.msra.mxu0 %v846
    %882 = vmatpush.msra.mxu0 %v843
    %883 = vmatpush.msra.mxu0 %v840
    %884 = vmatpush.msra.mxu0 %v837
    %885 = vmatpush.msra.mxu0 %v834
    %886 = vmatpush.msra.mxu0 %v831
    %887 = vmatpush.msra.mxu0 %v828
    %888 = vmatpush.msra.mxu0 %v825
    %889 = vmatmul.f32.gmra.mxu0 %v856
    %v890 = vpop.f32.mrf.mxu0
    %v891 = vadd.f32 0.0, %v890
    %892 = vmatmul.f32.gmra.mxu0 %v859
    %v893 = vpop.f32.mrf.mxu0
    %v894 = vadd.f32 0.0, %v893
    %895 = vmatmul.f32.gmra.mxu0 %v862
    %v896 = vpop.f32.mrf.mxu0
    %v897 = vadd.f32 0.0, %v896
    %898 = vmatmul.f32.gmra.mxu0 %v865
    %v899 = vpop.f32.mrf.mxu0
    %v900 = vadd.f32 0.0, %v899
    %901 = vmatmul.f32.gmra.mxu0 %v868
    %v902 = vpop.f32.mrf.mxu0
    %v903 = vadd.f32 0.0, %v902
    %904 = vmatmul.f32.gmra.mxu0 %v871
    %v905 = vpop.f32.mrf.mxu0
    %v906 = vadd.f32 0.0, %v905
    %907 = vdwg.mxu0
    %908 = vmatpush.msra.mxu0 0.0
    %909 = vmatpush.msra.mxu0 0.0
    %910 = vmatpush.msra.mxu0 0.0
    %911 = vmatpush.msra.mxu0 0.0
    %912 = vmatpush.msra.mxu0 0.0
    %913 = vmatpush.msra.mxu0 0.0
    %914 = vmatpush.msra.mxu0 %v853
    %915 = vmatpush.msra.mxu0 %v850
    %916 = vmatpush.msra.mxu0 %v847
    %917 = vmatpush.msra.mxu0 %v844
    %918 = vmatpush.msra.mxu0 %v841
    %919 = vmatpush.msra.mxu0 %v838
    %920 = vmatpush.msra.mxu0 %v835
    %921 = vmatpush.msra.mxu0 %v832
    %922 = vmatpush.msra.mxu0 %v829
    %923 = vmatpush.msra.mxu0 %v826
    %924 = vmatmul.f32.gmra.mxu0 %v856
    %v925 = vpop.f32.mrf.mxu0
    %v926 = vadd.f32 0.0, %v925
    %927 = vmatmul.f32.gmra.mxu0 %v859
    %v928 = vpop.f32.mrf.mxu0
    %v929 = vadd.f32 0.0, %v928
    %930 = vmatmul.f32.gmra.mxu0 %v862
    %v931 = vpop.f32.mrf.mxu0
    %v932 = vadd.f32 0.0, %v931
    %933 = vmatmul.f32.gmra.mxu0 %v865
    %v934 = vpop.f32.mrf.mxu0
    %v935 = vadd.f32 0.0, %v934
    %936 = vmatmul.f32.gmra.mxu0 %v868
    %v937 = vpop.f32.mrf.mxu0
    %v938 = vadd.f32 0.0, %v937
    %939 = vmatmul.f32.gmra.mxu0 %v871
    %v940 = vpop.f32.mrf.mxu0
    %v941 = vadd.f32 0.0, %v940
    %942 = vdwg.mxu0
    %943 = vmatpush.msra.mxu0 0.0
    %944 = vmatpush.msra.mxu0 0.0
    %945 = vmatpush.msra.mxu0 0.0
    %946 = vmatpush.msra.mxu0 0.0
    %947 = vmatpush.msra.mxu0 0.0
    %948 = vmatpush.msra.mxu0 0.0
    %949 = vmatpush.msra.mxu0 %v854
    %950 = vmatpush.msra.mxu0 %v851
    %951 = vmatpush.msra.mxu0 %v848
    %952 = vmatpush.msra.mxu0 %v845
    %953 = vmatpush.msra.mxu0 %v842
    %954 = vmatpush.msra.mxu0 %v839
    %955 = vmatpush.msra.mxu0 %v836
    %956 = vmatpush.msra.mxu0 %v833
    %957 = vmatpush.msra.mxu0 %v830
    %958 = vmatpush.msra.mxu0 %v827
    %959 = vmatmul.f32.gmra.mxu0 %v856
    %v960 = vpop.f32.mrf.mxu0
    %v961 = vadd.f32 0.0, %v960
    %962 = vmatmul.f32.gmra.mxu0 %v859
    %v963 = vpop.f32.mrf.mxu0
    %v964 = vadd.f32 0.0, %v963
    %965 = vmatmul.f32.gmra.mxu0 %v862
    %v966 = vpop.f32.mrf.mxu0
    %v967 = vadd.f32 0.0, %v966
    %968 = vmatmul.f32.gmra.mxu0 %v865
    %v969 = vpop.f32.mrf.mxu0
    %v970 = vadd.f32 0.0, %v969
    %971 = vmatmul.f32.gmra.mxu0 %v868
    %v972 = vpop.f32.mrf.mxu0
    %v973 = vadd.f32 0.0, %v972
    %974 = vmatmul.f32.gmra.mxu0 %v871
    %v975 = vpop.f32.mrf.mxu0
    %v976 = vadd.f32 0.0, %v975
    %977 = vdwg.mxu0
    %v978 = vadd.f32 %v677, %v891
    %v979 = vadd.f32 %v712, %v926
    %v980 = vadd.f32 %v747, %v961
    %v981 = vadd.f32 %v680, %v894
    %v982 = vadd.f32 %v715, %v929
    %v983 = vadd.f32 %v750, %v964
    %v984 = vadd.f32 %v683, %v897
    %v985 = vadd.f32 %v718, %v932
    %v986 = vadd.f32 %v753, %v967
    %v987 = vadd.f32 %v686, %v900
    %v988 = vadd.f32 %v721, %v935
    %v989 = vadd.f32 %v756, %v970
    %v990 = vadd.f32 %v689, %v903
    %v991 = vadd.f32 %v724, %v938
    %v992 = vadd.f32 %v759, %v973
    %v993 = vadd.f32 %v692, %v906
    %v994 = vadd.f32 %v727, %v941
    %v995 = vadd.f32 %v762, %v976
    %s996 = scalar_lea.vmem [#allocation4], 144
    %v997 = vld [vmem:[%s996] sm:$0xff]
    %v998 = vld [vmem:[%s996 + $0x8] sm:$0xff]
    %v999 = vld [vmem:[%s996 + $0x10] sm:$0xff]
    %v1000 = vld [vmem:[%s996 + $0x18] sm:$0xff]
    %v1001 = vld [vmem:[%s996 + $0x20] sm:$0xff]
    %v1002 = vld [vmem:[%s996 + $0x28] sm:$0xff]
    %v1004 = vsel %vm342, %v997, 0
    %v1007 = vsel %vm342, %v998, 0
    %v1010 = vsel %vm342, %v999, 0
    %v1013 = vsel %vm342, %v1000, 0
    %v1016 = vsel %vm342, %v1001, 0
    %v1019 = vsel %vm342, %v1002, 0
    %1021 = vmatpush.msra.mxu0 0.0
    %1022 = vmatpush.msra.mxu0 0.0
    %1023 = vmatpush.msra.mxu0 0.0
    %1024 = vmatpush.msra.mxu0 0.0
    %1025 = vmatpush.msra.mxu0 %v335
    %1026 = vmatpush.msra.mxu0 %v334
    %1027 = vmatpush.msra.mxu0 %v333
    %1028 = vmatpush.msra.mxu0 %v332
    %1029 = vmatpush.msra.mxu0 %v331
    %1030 = vmatpush.msra.mxu0 %v330
    %1031 = vmatpush.msra.mxu0 %v329
    %1032 = vmatpush.msra.mxu0 %v328
    %1033 = vmatpush.msra.mxu0 %v327
    %1034 = vmatpush.msra.mxu0 %v326
    %1035 = vmatpush.msra.mxu0 %v325
    %1036 = vmatpush.msra.mxu0 %v324
    %1037 = vmatmul.f32.gmra.mxu0 %v1004
    %v1038 = vpop.f32.mrf.mxu0
    %v1039 = vadd.f32 0.0, %v1038
    %1040 = vmatmul.f32.gmra.mxu0 %v1007
    %v1041 = vpop.f32.mrf.mxu0
    %v1042 = vadd.f32 0.0, %v1041
    %1043 = vmatmul.f32.gmra.mxu0 %v1010
    %v1044 = vpop.f32.mrf.mxu0
    %v1045 = vadd.f32 0.0, %v1044
    %1046 = vmatmul.f32.gmra.mxu0 %v1013
    %v1047 = vpop.f32.mrf.mxu0
    %v1048 = vadd.f32 0.0, %v1047
    %1049 = vmatmul.f32.gmra.mxu0 %v1016
    %v1050 = vpop.f32.mrf.mxu0
    %v1051 = vadd.f32 0.0, %v1050
    %1052 = vmatmul.f32.gmra.mxu0 %v1019
    %v1053 = vpop.f32.mrf.mxu0
    %v1054 = vadd.f32 0.0, %v1053
    %1055 = vdwg.mxu0
    %s1056 = scalar_lea.vmem [#allocation6], 720
    %v1057 = vld [vmem:[%s1056] sm:$0xff]
    %v1058 = vld [vmem:[%s1056 + $0x8] sm:$0xff]
    %v1059 = vld [vmem:[%s1056 + $0x10] sm:$0xff]
    %v1060 = vld [vmem:[%s1056 + $0x18] sm:$0xff]
    %v1061 = vld [vmem:[%s1056 + $0x20] sm:$0xff]
    %v1062 = vld [vmem:[%s1056 + $0x28] sm:$0xff]
    %v1063 = vld [vmem:[%s1056 + $0x30] sm:$0xff]
    %v1064 = vld [vmem:[%s1056 + $0x38] sm:$0xff]
    %v1065 = vld [vmem:[%s1056 + $0x40] sm:$0xff]
    %v1066 = vld [vmem:[%s1056 + $0x48] sm:$0xff]
    %v1067 = vld [vmem:[%s1056 + $0x50] sm:$0xff]
    %v1068 = vld [vmem:[%s1056 + $0x58] sm:$0xff]
    %v1069 = vld [vmem:[%s1056 + $0x60] sm:$0xff]
    %v1070 = vld [vmem:[%s1056 + $0x68] sm:$0xff]
    %v1071 = vld [vmem:[%s1056 + $0x70] sm:$0xff]
    %v1072 = vld [vmem:[%s1056 + $0x78] sm:$0xff]
    %v1073 = vld [vmem:[%s1056 + $0x80] sm:$0xff]
    %v1074 = vld [vmem:[%s1056 + $0x88] sm:$0xff]
    %v1075 = vld [vmem:[%s1056 + $0x90] sm:$0xff]
    %v1076 = vld [vmem:[%s1056 + $0x98] sm:$0xff]
    %v1077 = vld [vmem:[%s1056 + $0xa0] sm:$0xff]
    %v1078 = vld [vmem:[%s1056 + $0xa8] sm:$0xff]
    %v1079 = vld [vmem:[%s1056 + $0xb0] sm:$0xff]
    %v1080 = vld [vmem:[%s1056 + $0xb8] sm:$0xff]
    %v1081 = vld [vmem:[%s1056 + $0xc0] sm:$0xff]
    %v1082 = vld [vmem:[%s1056 + $0xc8] sm:$0xff]
    %v1083 = vld [vmem:[%s1056 + $0xd0] sm:$0xff]
    %v1084 = vld [vmem:[%s1056 + $0xd8] sm:$0xff]
    %v1085 = vld [vmem:[%s1056 + $0xe0] sm:$0xff]
    %v1086 = vld [vmem:[%s1056 + $0xe8] sm:$0xff]
    %v1088 = vsel %vm517, %v1039, 0
    %v1091 = vsel %vm517, %v1042, 0
    %v1094 = vsel %vm517, %v1045, 0
    %v1097 = vsel %vm517, %v1048, 0
    %v1100 = vsel %vm517, %v1051, 0
    %v1103 = vsel %vm517, %v1054, 0
    %1105 = vmatpush.msra.mxu0 0.0
    %1106 = vmatpush.msra.mxu0 0.0
    %1107 = vmatpush.msra.mxu0 0.0
    %1108 = vmatpush.msra.mxu0 0.0
    %1109 = vmatpush.msra.mxu0 0.0
    %1110 = vmatpush.msra.mxu0 0.0
    %1111 = vmatpush.msra.mxu0 %v1084
    %1112 = vmatpush.msra.mxu0 %v1081
    %1113 = vmatpush.msra.mxu0 %v1078
    %1114 = vmatpush.msra.mxu0 %v1075
    %1115 = vmatpush.msra.mxu0 %v1072
    %1116 = vmatpush.msra.mxu0 %v1069
    %1117 = vmatpush.msra.mxu0 %v1066
    %1118 = vmatpush.msra.mxu0 %v1063
    %1119 = vmatpush.msra.mxu0 %v1060
    %1120 = vmatpush.msra.mxu0 %v1057
    %1121 = vmatmul.f32.gmra.mxu0 %v1088
    %v1122 = vpop.f32.mrf.mxu0
    %v1123 = vadd.f32 0.0, %v1122
    %1124 = vmatmul.f32.gmra.mxu0 %v1091
    %v1125 = vpop.f32.mrf.mxu0
    %v1126 = vadd.f32 0.0, %v1125
    %1127 = vmatmul.f32.gmra.mxu0 %v1094
    %v1128 = vpop.f32.mrf.mxu0
    %v1129 = vadd.f32 0.0, %v1128
    %1130 = vmatmul.f32.gmra.mxu0 %v1097
    %v1131 = vpop.f32.mrf.mxu0
    %v1132 = vadd.f32 0.0, %v1131
    %1133 = vmatmul.f32.gmra.mxu0 %v1100
    %v1134 = vpop.f32.mrf.mxu0
    %v1135 = vadd.f32 0.0, %v1134
    %1136 = vmatmul.f32.gmra.mxu0 %v1103
    %v1137 = vpop.f32.mrf.mxu0
    %v1138 = vadd.f32 0.0, %v1137
    %1139 = vdwg.mxu0
    %1140 = vmatpush.msra.mxu0 0.0
    %1141 = vmatpush.msra.mxu0 0.0
    %1142 = vmatpush.msra.mxu0 0.0
    %1143 = vmatpush.msra.mxu0 0.0
    %1144 = vmatpush.msra.mxu0 0.0
    %1145 = vmatpush.msra.mxu0 0.0
    %1146 = vmatpush.msra.mxu0 %v1085
    %1147 = vmatpush.msra.mxu0 %v1082
    %1148 = vmatpush.msra.mxu0 %v1079
    %1149 = vmatpush.msra.mxu0 %v1076
    %1150 = vmatpush.msra.mxu0 %v1073
    %1151 = vmatpush.msra.mxu0 %v1070
    %1152 = vmatpush.msra.mxu0 %v1067
    %1153 = vmatpush.msra.mxu0 %v1064
    %1154 = vmatpush.msra.mxu0 %v1061
    %1155 = vmatpush.msra.mxu0 %v1058
    %1156 = vmatmul.f32.gmra.mxu0 %v1088
    %v1157 = vpop.f32.mrf.mxu0
    %v1158 = vadd.f32 0.0, %v1157
    %1159 = vmatmul.f32.gmra.mxu0 %v1091
    %v1160 = vpop.f32.mrf.mxu0
    %v1161 = vadd.f32 0.0, %v1160
    %1162 = vmatmul.f32.gmra.mxu0 %v1094
    %v1163 = vpop.f32.mrf.mxu0
    %v1164 = vadd.f32 0.0, %v1163
    %1165 = vmatmul.f32.gmra.mxu0 %v1097
    %v1166 = vpop.f32.mrf.mxu0
    %v1167 = vadd.f32 0.0, %v1166
    %1168 = vmatmul.f32.gmra.mxu0 %v1100
    %v1169 = vpop.f32.mrf.mxu0
    %v1170 = vadd.f32 0.0, %v1169
    %1171 = vmatmul.f32.gmra.mxu0 %v1103
    %v1172 = vpop.f32.mrf.mxu0
    %v1173 = vadd.f32 0.0, %v1172
    %1174 = vdwg.mxu0
    %1175 = vmatpush.msra.mxu0 0.0
    %1176 = vmatpush.msra.mxu0 0.0
    %1177 = vmatpush.msra.mxu0 0.0
    %1178 = vmatpush.msra.mxu0 0.0
    %1179 = vmatpush.msra.mxu0 0.0
    %1180 = vmatpush.msra.mxu0 0.0
    %1181 = vmatpush.msra.mxu0 %v1086
    %1182 = vmatpush.msra.mxu0 %v1083
    %1183 = vmatpush.msra.mxu0 %v1080
    %1184 = vmatpush.msra.mxu0 %v1077
    %1185 = vmatpush.msra.mxu0 %v1074
    %1186 = vmatpush.msra.mxu0 %v1071
    %1187 = vmatpush.msra.mxu0 %v1068
    %1188 = vmatpush.msra.mxu0 %v1065
    %1189 = vmatpush.msra.mxu0 %v1062
    %1190 = vmatpush.msra.mxu0 %v1059
    %1191 = vmatmul.f32.gmra.mxu0 %v1088
    %v1192 = vpop.f32.mrf.mxu0
    %v1193 = vadd.f32 0.0, %v1192
    %1194 = vmatmul.f32.gmra.mxu0 %v1091
    %v1195 = vpop.f32.mrf.mxu0
    %v1196 = vadd.f32 0.0, %v1195
    %1197 = vmatmul.f32.gmra.mxu0 %v1094
    %v1198 = vpop.f32.mrf.mxu0
    %v1199 = vadd.f32 0.0, %v1198
    %1200 = vmatmul.f32.gmra.mxu0 %v1097
    %v1201 = vpop.f32.mrf.mxu0
    %v1202 = vadd.f32 0.0, %v1201
    %1203 = vmatmul.f32.gmra.mxu0 %v1100
    %v1204 = vpop.f32.mrf.mxu0
    %v1205 = vadd.f32 0.0, %v1204
    %1206 = vmatmul.f32.gmra.mxu0 %v1103
    %v1207 = vpop.f32.mrf.mxu0
    %v1208 = vadd.f32 0.0, %v1207
    %1209 = vdwg.mxu0
    %v1210 = vadd.f32 %v978, %v1123
    %v1211 = vadd.f32 %v979, %v1158
    %v1212 = vadd.f32 %v980, %v1193
    %v1213 = vadd.f32 %v981, %v1126
    %v1214 = vadd.f32 %v982, %v1161
    %v1215 = vadd.f32 %v983, %v1196
    %v1216 = vadd.f32 %v984, %v1129
    %v1217 = vadd.f32 %v985, %v1164
    %v1218 = vadd.f32 %v986, %v1199
    %v1219 = vadd.f32 %v987, %v1132
    %v1220 = vadd.f32 %v988, %v1167
    %v1221 = vadd.f32 %v989, %v1202
    %v1222 = vadd.f32 %v990, %v1135
    %v1223 = vadd.f32 %v991, %v1170
    %v1224 = vadd.f32 %v992, %v1205
    %v1225 = vadd.f32 %v993, %v1138
    %v1226 = vadd.f32 %v994, %v1173
    %v1227 = vadd.f32 %v995, %v1208
    %v1228 = vadd.f32 %v1210, %v1213
    %v1229 = vadd.f32 %v1228, %v1216
    %v1230 = vadd.f32 %v1229, %v1219
    %v1231 = vadd.f32 %v1230, %v1222
    %v1232 = vadd.f32 %v1231, %v1225
    %v1233 = vrot.slane %v1232, 4
    %v1234 = vadd.f32 %v1232, %v1233
    %v1235 = vrot.slane %v1234, 2
    %v1236 = vadd.f32 %v1234, %v1235
    %v1237 = vrot.slane %v1236, 1
    %v1238 = vadd.f32 %v1236, %v1237
    %v1239 = vadd.f32 %v1211, %v1214
    %v1240 = vadd.f32 %v1239, %v1217
    %v1241 = vadd.f32 %v1240, %v1220
    %v1242 = vadd.f32 %v1241, %v1223
    %v1243 = vadd.f32 %v1242, %v1226
    %v1244 = vrot.slane %v1243, 4
    %v1245 = vadd.f32 %v1243, %v1244
    %v1246 = vrot.slane %v1245, 2
    %v1247 = vadd.f32 %v1245, %v1246
    %v1248 = vrot.slane %v1247, 1
    %v1249 = vadd.f32 %v1247, %v1248
    %vm1250 = vcmask 523264
    %v1251 = vsel %vm1250, %v1212, 0.0
    %v1252 = vsel %vm1250, %v1215, 0.0
    %v1253 = vadd.f32 %v1251, %v1252
    %v1254 = vsel %vm1250, %v1218, 0.0
    %v1255 = vadd.f32 %v1253, %v1254
    %v1256 = vsel %vm1250, %v1221, 0.0
    %v1257 = vadd.f32 %v1255, %v1256
    %v1258 = vsel %vm1250, %v1224, 0.0
    %v1259 = vadd.f32 %v1257, %v1258
    %v1260 = vsel %vm1250, %v1227, 0.0
    %v1261 = vadd.f32 %v1259, %v1260
    %v1262 = vrot.slane %v1261, 4
    %v1263 = vadd.f32 %v1261, %v1262
    %v1264 = vrot.slane %v1263, 2
    %v1265 = vadd.f32 %v1263, %v1264
    %v1266 = vrot.slane %v1265, 1
    %v1267 = vadd.f32 %v1265, %v1266
    %v1268 = vld [vmem:[%s3] sm:$0xff]
    %v1269 = vld [vmem:[%s3 + $0x8] sm:$0xff]
    %v1270 = vld [vmem:[%s3 + $0x10] sm:$0xff]
    %v1271 = vld [vmem:[%s3 + $0x18] sm:$0xff]
    %v1272 = vld [vmem:[%s3 + $0x20] sm:$0xff]
    %v1273 = vld [vmem:[%s3 + $0x28] sm:$0xff]
    %v1274 = vld [vmem:[%s3 + $0x30] sm:$0xff]
    %v1275 = vld [vmem:[%s3 + $0x38] sm:$0xff]
    %v1276 = vld [vmem:[%s3 + $0x40] sm:$0xff]
    %v1277 = vld [vmem:[%s3 + $0x48] sm:$0xff]
    %v1278 = vld [vmem:[%s3 + $0x50] sm:$0xff]
    %v1279 = vld [vmem:[%s3 + $0x58] sm:$0xff]
    %v1280 = vld [vmem:[%s3 + $0x60] sm:$0xff]
    %v1281 = vld [vmem:[%s3 + $0x68] sm:$0xff]
    %v1282 = vld [vmem:[%s3 + $0x70] sm:$0xff]
    %v1283 = vld [vmem:[%s3 + $0x78] sm:$0xff]
    %v1284 = vld [vmem:[%s3 + $0x80] sm:$0xff]
    %v1285 = vld [vmem:[%s3 + $0x88] sm:$0xff]
    %v1286 = vld [vmem:[%s3 + $0x90] sm:$0xff]
    %v1287 = vld [vmem:[%s3 + $0x98] sm:$0xff]
    %v1288 = vld [vmem:[%s3 + $0xa0] sm:$0xff]
    %v1289 = vld [vmem:[%s3 + $0xa8] sm:$0xff]
    %v1290 = vld [vmem:[%s3 + $0xb0] sm:$0xff]
    %v1291 = vld [vmem:[%s3 + $0xb8] sm:$0xff]
    %v1292 = vld [vmem:[%s3 + $0xc0] sm:$0xff]
    %v1293 = vld [vmem:[%s3 + $0xc8] sm:$0xff]
    %v1294 = vld [vmem:[%s3 + $0xd0] sm:$0xff]
    %v1295 = vld [vmem:[%s3 + $0xd8] sm:$0xff]
    %v1296 = vld [vmem:[%s3 + $0xe0] sm:$0xff]
    %v1297 = vld [vmem:[%s3 + $0xe8] sm:$0xff]
    %v1298 = vld [vmem:[%s3 + $0xf0] sm:$0xff]
    %v1299 = vld [vmem:[%s3 + $0xf8] sm:$0xff]
    %v1300 = vld [vmem:[%s3 + $0x100] sm:$0xff]
    %v1301 = vld [vmem:[%s3 + $0x108] sm:$0xff]
    %v1302 = vld [vmem:[%s3 + $0x110] sm:$0xff]
    %v1303 = vld [vmem:[%s3 + $0x118] sm:$0xff]
    %v1304 = vld [vmem:[%s3 + $0x120] sm:$0xff]
    %v1305 = vld [vmem:[%s3 + $0x128] sm:$0xff]
    %v1306 = vld [vmem:[%s3 + $0x130] sm:$0xff]
    %v1307 = vld [vmem:[%s3 + $0x138] sm:$0xff]
    %v1309 = vsel %vm1250, %v1267, 0
    %1311 = vmatpush.msra.mxu0 %v1283
    %1312 = vmatpush.msra.mxu0 %v1282
    %1313 = vmatpush.msra.mxu0 %v1281
    %1314 = vmatpush.msra.mxu0 %v1280
    %1315 = vmatpush.msra.mxu0 %v1279
    %1316 = vmatpush.msra.mxu0 %v1278
    %1317 = vmatpush.msra.mxu0 %v1277
    %1318 = vmatpush.msra.mxu0 %v1276
    %1319 = vmatpush.msra.mxu0 %v1275
    %1320 = vmatpush.msra.mxu0 %v1274
    %1321 = vmatpush.msra.mxu0 %v1273
    %1322 = vmatpush.msra.mxu0 %v1272
    %1323 = vmatpush.msra.mxu0 %v1271
    %1324 = vmatpush.msra.mxu0 %v1270
    %1325 = vmatpush.msra.mxu0 %v1269
    %1326 = vmatpush.msra.mxu0 %v1268
    %1327 = vmatmul.f32.gmra.mxu0 %v1238
    %v1328 = vpop.f32.mrf.mxu0
    %v1329 = vadd.f32 0.0, %v1328
    %1330 = vdwg.mxu0
    %1331 = vmatpush.msra.mxu0 %v1299
    %1332 = vmatpush.msra.mxu0 %v1298
    %1333 = vmatpush.msra.mxu0 %v1297
    %1334 = vmatpush.msra.mxu0 %v1296
    %1335 = vmatpush.msra.mxu0 %v1295
    %1336 = vmatpush.msra.mxu0 %v1294
    %1337 = vmatpush.msra.mxu0 %v1293
    %1338 = vmatpush.msra.mxu0 %v1292
    %1339 = vmatpush.msra.mxu0 %v1291
    %1340 = vmatpush.msra.mxu0 %v1290
    %1341 = vmatpush.msra.mxu0 %v1289
    %1342 = vmatpush.msra.mxu0 %v1288
    %1343 = vmatpush.msra.mxu0 %v1287
    %1344 = vmatpush.msra.mxu0 %v1286
    %1345 = vmatpush.msra.mxu0 %v1285
    %1346 = vmatpush.msra.mxu0 %v1284
    %1347 = vmatmul.f32.gmra.mxu0 %v1249
    %v1348 = vpop.f32.mrf.mxu0
    %v1349 = vadd.f32 %v1329, %v1348
    %1350 = vdwg.mxu0
    %1351 = vmatpush.msra.mxu0 0.0
    %1352 = vmatpush.msra.mxu0 0.0
    %1353 = vmatpush.msra.mxu0 0.0
    %1354 = vmatpush.msra.mxu0 0.0
    %1355 = vmatpush.msra.mxu0 0.0
    %1356 = vmatpush.msra.mxu0 0.0
    %1357 = vmatpush.msra.mxu0 0.0
    %1358 = vmatpush.msra.mxu0 0.0
    %1359 = vmatpush.msra.mxu0 %v1307
    %1360 = vmatpush.msra.mxu0 %v1306
    %1361 = vmatpush.msra.mxu0 %v1305
    %1362 = vmatpush.msra.mxu0 %v1304
    %1363 = vmatpush.msra.mxu0 %v1303
    %1364 = vmatpush.msra.mxu0 %v1302
    %1365 = vmatpush.msra.mxu0 %v1301
    %1366 = vmatpush.msra.mxu0 %v1300
    %1367 = vmatmul.f32.gmra.mxu0 %v1309
    %v1368 = vpop.f32.mrf.mxu0
    %v1369 = vadd.f32 %v1349, %v1368
    %1370 = vdwg.mxu0
    %v1371 = vmul.f32 %v1369, 0.00052083336
    %v1372 = vld [vmem:[#allocation7] sm:$0xff]
    %v1373 = vld [vmem:[#allocation7 + $0x8] sm:$0xff]
    %v1374 = vld [vmem:[#allocation7 + $0x10] sm:$0xff]
    %vm1375 = vcmask 64512
    %v1377 = vsel %vm1375, %v1371, 0
    %1379 = vmatpush.msra.mxu0 0.0
    %1380 = vmatpush.msra.mxu0 0.0
    %1381 = vmatpush.msra.mxu0 0.0
    %1382 = vmatpush.msra.mxu0 0.0
    %1383 = vmatpush.msra.mxu0 0.0
    %1384 = vmatpush.msra.mxu0 0.0
    %1385 = vmatpush.msra.mxu0 0.0
    %1386 = vmatpush.msra.mxu0 0.0
    %1387 = vmatpush.msra.mxu0 0.0
    %1388 = vmatpush.msra.mxu0 0.0
    %1389 = vmatpush.msra.mxu0 0.0
    %1390 = vmatpush.msra.mxu0 0.0
    %1391 = vmatpush.msra.mxu0 0.0
    %1392 = vmatpush.msra.mxu0 0.0
    %1393 = vmatpush.msra.mxu0 0.0
    %1394 = vmatpush.msra.mxu0 %v1372
    %1395 = vmatmul.f32.gmra.mxu0 %v1377
    %v1396 = vpop.f32.mrf.mxu0
    %v1397 = vadd.f32 0.0, %v1396
    %1398 = vdwg.mxu0
    %1399 = vmatpush.msra.mxu0 0.0
    %1400 = vmatpush.msra.mxu0 0.0
    %1401 = vmatpush.msra.mxu0 0.0
    %1402 = vmatpush.msra.mxu0 0.0
    %1403 = vmatpush.msra.mxu0 0.0
    %1404 = vmatpush.msra.mxu0 0.0
    %1405 = vmatpush.msra.mxu0 0.0
    %1406 = vmatpush.msra.mxu0 0.0
    %1407 = vmatpush.msra.mxu0 0.0
    %1408 = vmatpush.msra.mxu0 0.0
    %1409 = vmatpush.msra.mxu0 0.0
    %1410 = vmatpush.msra.mxu0 0.0
    %1411 = vmatpush.msra.mxu0 0.0
    %1412 = vmatpush.msra.mxu0 0.0
    %1413 = vmatpush.msra.mxu0 0.0
    %1414 = vmatpush.msra.mxu0 %v1373
    %1415 = vmatmul.f32.gmra.mxu0 %v1377
    %v1416 = vpop.f32.mrf.mxu0
    %v1417 = vadd.f32 0.0, %v1416
    %1418 = vdwg.mxu0
    %1419 = vmatpush.msra.mxu0 0.0
    %1420 = vmatpush.msra.mxu0 0.0
    %1421 = vmatpush.msra.mxu0 0.0
    %1422 = vmatpush.msra.mxu0 0.0
    %1423 = vmatpush.msra.mxu0 0.0
    %1424 = vmatpush.msra.mxu0 0.0
    %1425 = vmatpush.msra.mxu0 0.0
    %1426 = vmatpush.msra.mxu0 0.0
    %1427 = vmatpush.msra.mxu0 0.0
    %1428 = vmatpush.msra.mxu0 0.0
    %1429 = vmatpush.msra.mxu0 0.0
    %1430 = vmatpush.msra.mxu0 0.0
    %1431 = vmatpush.msra.mxu0 0.0
    %1432 = vmatpush.msra.mxu0 0.0
    %1433 = vmatpush.msra.mxu0 0.0
    %1434 = vmatpush.msra.mxu0 %v1374
    %1435 = vmatmul.f32.gmra.mxu0 %v1377
    %v1436 = vpop.f32.mrf.mxu0
    %v1437 = vadd.f32 0.0, %v1436
    %1438 = vdwg.mxu0
    %v1439 = vperm.slane %v1397, 0
    %v1440 = vperm.slane %v1417, 0
    %v1441 = vperm.slane %v1437, 0
    %v1442 = vsub.f32 %v1210, %v1439
    %v1443 = vsub.f32 %v1211, %v1440
    %v1444 = vsub.f32 %v1212, %v1441
    %v1445 = vsub.f32 %v1213, %v1439
    %v1446 = vsub.f32 %v1214, %v1440
    %v1447 = vsub.f32 %v1215, %v1441
    %v1448 = vsub.f32 %v1216, %v1439
    %v1449 = vsub.f32 %v1217, %v1440
    %v1450 = vsub.f32 %v1218, %v1441
    %v1451 = vsub.f32 %v1219, %v1439
    %v1452 = vsub.f32 %v1220, %v1440
    %v1453 = vsub.f32 %v1221, %v1441
    %v1454 = vsub.f32 %v1222, %v1439
    %v1455 = vsub.f32 %v1223, %v1440
    %v1456 = vsub.f32 %v1224, %v1441
    %v1457 = vsub.f32 %v1225, %v1439
    %v1458 = vsub.f32 %v1226, %v1440
    %v1459 = vsub.f32 %v1227, %v1441
    %v1460 = vmul.f32 %v1442, %v1442
    %v1461 = vmul.f32 %v1443, %v1443
    %v1462 = vmul.f32 %v1444, %v1444
    %v1463 = vmul.f32 %v1445, %v1445
    %v1464 = vmul.f32 %v1446, %v1446
    %v1465 = vmul.f32 %v1447, %v1447
    %v1466 = vmul.f32 %v1448, %v1448
    %v1467 = vmul.f32 %v1449, %v1449
    %v1468 = vmul.f32 %v1450, %v1450
    %v1469 = vmul.f32 %v1451, %v1451
    %v1470 = vmul.f32 %v1452, %v1452
    %v1471 = vmul.f32 %v1453, %v1453
    %v1472 = vmul.f32 %v1454, %v1454
    %v1473 = vmul.f32 %v1455, %v1455
    %v1474 = vmul.f32 %v1456, %v1456
    %v1475 = vmul.f32 %v1457, %v1457
    %v1476 = vmul.f32 %v1458, %v1458
    %v1477 = vmul.f32 %v1459, %v1459
    %v1478 = vadd.f32 %v1460, %v1463
    %v1479 = vadd.f32 %v1478, %v1466
    %v1480 = vadd.f32 %v1479, %v1469
    %v1481 = vadd.f32 %v1480, %v1472
    %v1482 = vadd.f32 %v1481, %v1475
    %v1483 = vrot.slane %v1482, 4
    %v1484 = vadd.f32 %v1482, %v1483
    %v1485 = vrot.slane %v1484, 2
    %v1486 = vadd.f32 %v1484, %v1485
    %v1487 = vrot.slane %v1486, 1
    %v1488 = vadd.f32 %v1486, %v1487
    %v1489 = vadd.f32 %v1461, %v1464
    %v1490 = vadd.f32 %v1489, %v1467
    %v1491 = vadd.f32 %v1490, %v1470
    %v1492 = vadd.f32 %v1491, %v1473
    %v1493 = vadd.f32 %v1492, %v1476
    %v1494 = vrot.slane %v1493, 4
    %v1495 = vadd.f32 %v1493, %v1494
    %v1496 = vrot.slane %v1495, 2
    %v1497 = vadd.f32 %v1495, %v1496
    %v1498 = vrot.slane %v1497, 1
    %v1499 = vadd.f32 %v1497, %v1498
    %v1500 = vsel %vm1250, %v1462, 0.0
    %v1501 = vsel %vm1250, %v1465, 0.0
    %v1502 = vadd.f32 %v1500, %v1501
    %v1503 = vsel %vm1250, %v1468, 0.0
    %v1504 = vadd.f32 %v1502, %v1503
    %v1505 = vsel %vm1250, %v1471, 0.0
    %v1506 = vadd.f32 %v1504, %v1505
    %v1507 = vsel %vm1250, %v1474, 0.0
    %v1508 = vadd.f32 %v1506, %v1507
    %v1509 = vsel %vm1250, %v1477, 0.0
    %v1510 = vadd.f32 %v1508, %v1509
    %v1511 = vrot.slane %v1510, 4
    %v1512 = vadd.f32 %v1510, %v1511
    %v1513 = vrot.slane %v1512, 2
    %v1514 = vadd.f32 %v1512, %v1513
    %v1515 = vrot.slane %v1514, 1
    %v1516 = vadd.f32 %v1514, %v1515
    %v1518 = vsel %vm1250, %v1516, 0
    %1520 = vmatpush.msra.mxu0 %v1283
    %1521 = vmatpush.msra.mxu0 %v1282
    %1522 = vmatpush.msra.mxu0 %v1281
    %1523 = vmatpush.msra.mxu0 %v1280
    %1524 = vmatpush.msra.mxu0 %v1279
    %1525 = vmatpush.msra.mxu0 %v1278
    %1526 = vmatpush.msra.mxu0 %v1277
    %1527 = vmatpush.msra.mxu0 %v1276
    %1528 = vmatpush.msra.mxu0 %v1275
    %1529 = vmatpush.msra.mxu0 %v1274
    %1530 = vmatpush.msra.mxu0 %v1273
    %1531 = vmatpush.msra.mxu0 %v1272
    %1532 = vmatpush.msra.mxu0 %v1271
    %1533 = vmatpush.msra.mxu0 %v1270
    %1534 = vmatpush.msra.mxu0 %v1269
    %1535 = vmatpush.msra.mxu0 %v1268
    %1536 = vmatmul.f32.gmra.mxu0 %v1488
    %v1537 = vpop.f32.mrf.mxu0
    %v1538 = vadd.f32 0.0, %v1537
    %1539 = vdwg.mxu0
    %1540 = vmatpush.msra.mxu0 %v1299
    %1541 = vmatpush.msra.mxu0 %v1298
    %1542 = vmatpush.msra.mxu0 %v1297
    %1543 = vmatpush.msra.mxu0 %v1296
    %1544 = vmatpush.msra.mxu0 %v1295
    %1545 = vmatpush.msra.mxu0 %v1294
    %1546 = vmatpush.msra.mxu0 %v1293
    %1547 = vmatpush.msra.mxu0 %v1292
    %1548 = vmatpush.msra.mxu0 %v1291
    %1549 = vmatpush.msra.mxu0 %v1290
    %1550 = vmatpush.msra.mxu0 %v1289
    %1551 = vmatpush.msra.mxu0 %v1288
    %1552 = vmatpush.msra.mxu0 %v1287
    %1553 = vmatpush.msra.mxu0 %v1286
    %1554 = vmatpush.msra.mxu0 %v1285
    %1555 = vmatpush.msra.mxu0 %v1284
    %1556 = vmatmul.f32.gmra.mxu0 %v1499
    %v1557 = vpop.f32.mrf.mxu0
    %v1558 = vadd.f32 %v1538, %v1557
    %1559 = vdwg.mxu0
    %1560 = vmatpush.msra.mxu0 0.0
    %1561 = vmatpush.msra.mxu0 0.0
    %1562 = vmatpush.msra.mxu0 0.0
    %1563 = vmatpush.msra.mxu0 0.0
    %1564 = vmatpush.msra.mxu0 0.0
    %1565 = vmatpush.msra.mxu0 0.0
    %1566 = vmatpush.msra.mxu0 0.0
    %1567 = vmatpush.msra.mxu0 0.0
    %1568 = vmatpush.msra.mxu0 %v1307
    %1569 = vmatpush.msra.mxu0 %v1306
    %1570 = vmatpush.msra.mxu0 %v1305
    %1571 = vmatpush.msra.mxu0 %v1304
    %1572 = vmatpush.msra.mxu0 %v1303
    %1573 = vmatpush.msra.mxu0 %v1302
    %1574 = vmatpush.msra.mxu0 %v1301
    %1575 = vmatpush.msra.mxu0 %v1300
    %1576 = vmatmul.f32.gmra.mxu0 %v1518
    %v1577 = vpop.f32.mrf.mxu0
    %v1578 = vadd.f32 %v1558, %v1577
    %1579 = vdwg.mxu0
    %v1580 = vmul.f32 %v1578, 0.00052083336
    %v1581 = vld [vmem:[#allocation9] sm:$0x1]
    %v1582 = vadd.f32 %v1580, 1e-05
    %v1583 = vrsqrt.pop %v1582
    %v1584 = vmul.f32 %v1583, %v1582
    %v1585 = vmul.f32 %v1584, %v1583
    %v1586 = vmul.f32 0.5, %v1585
    %v1587 = vsub.f32 1.5, %v1586
    %v1588 = vmul.f32 %v1583, %v1587
    %vm1589 = vweird.f32 %v1582
    %vm1590 = vweird.f32 %v1583
    %vm1591 = vmor %vm1589, %vm1590
    %v1592 = vsel %vm1591, %v1583, %v1588
    %v1593 = vmul.f32 %v1581, %v1592
    %v1595 = vsel %vm1375, %v1593, 0
    %1597 = vmatpush.msra.mxu0 0.0
    %1598 = vmatpush.msra.mxu0 0.0
    %1599 = vmatpush.msra.mxu0 0.0
    %1600 = vmatpush.msra.mxu0 0.0
    %1601 = vmatpush.msra.mxu0 0.0
    %1602 = vmatpush.msra.mxu0 0.0
    %1603 = vmatpush.msra.mxu0 0.0
    %1604 = vmatpush.msra.mxu0 0.0
    %1605 = vmatpush.msra.mxu0 0.0
    %1606 = vmatpush.msra.mxu0 0.0
    %1607 = vmatpush.msra.mxu0 0.0
    %1608 = vmatpush.msra.mxu0 0.0
    %1609 = vmatpush.msra.mxu0 0.0
    %1610 = vmatpush.msra.mxu0 0.0
    %1611 = vmatpush.msra.mxu0 0.0
    %1612 = vmatpush.msra.mxu0 %v1372
    %1613 = vmatmul.f32.gmra.mxu0 %v1595
    %v1614 = vpop.f32.mrf.mxu0
    %v1615 = vadd.f32 0.0, %v1614
    %1616 = vdwg.mxu0
    %1617 = vmatpush.msra.mxu0 0.0
    %1618 = vmatpush.msra.mxu0 0.0
    %1619 = vmatpush.msra.mxu0 0.0
    %1620 = vmatpush.msra.mxu0 0.0
    %1621 = vmatpush.msra.mxu0 0.0
    %1622 = vmatpush.msra.mxu0 0.0
    %1623 = vmatpush.msra.mxu0 0.0
    %1624 = vmatpush.msra.mxu0 0.0
    %1625 = vmatpush.msra.mxu0 0.0
    %1626 = vmatpush.msra.mxu0 0.0
    %1627 = vmatpush.msra.mxu0 0.0
    %1628 = vmatpush.msra.mxu0 0.0
    %1629 = vmatpush.msra.mxu0 0.0
    %1630 = vmatpush.msra.mxu0 0.0
    %1631 = vmatpush.msra.mxu0 0.0
    %1632 = vmatpush.msra.mxu0 %v1373
    %1633 = vmatmul.f32.gmra.mxu0 %v1595
    %v1634 = vpop.f32.mrf.mxu0
    %v1635 = vadd.f32 0.0, %v1634
    %1636 = vdwg.mxu0
    %1637 = vmatpush.msra.mxu0 0.0
    %1638 = vmatpush.msra.mxu0 0.0
    %1639 = vmatpush.msra.mxu0 0.0
    %1640 = vmatpush.msra.mxu0 0.0
    %1641 = vmatpush.msra.mxu0 0.0
    %1642 = vmatpush.msra.mxu0 0.0
    %1643 = vmatpush.msra.mxu0 0.0
    %1644 = vmatpush.msra.mxu0 0.0
    %1645 = vmatpush.msra.mxu0 0.0
    %1646 = vmatpush.msra.mxu0 0.0
    %1647 = vmatpush.msra.mxu0 0.0
    %1648 = vmatpush.msra.mxu0 0.0
    %1649 = vmatpush.msra.mxu0 0.0
    %1650 = vmatpush.msra.mxu0 0.0
    %1651 = vmatpush.msra.mxu0 0.0
    %1652 = vmatpush.msra.mxu0 %v1374
    %1653 = vmatmul.f32.gmra.mxu0 %v1595
    %v1654 = vpop.f32.mrf.mxu0
    %v1655 = vadd.f32 0.0, %v1654
    %1656 = vdwg.mxu0
    %v1657 = vld [vmem:[#allocation9 + $0x1] sm:$0x1]
    %v1659 = vsel %vm1375, %v1657, 0
    %1661 = vmatpush.msra.mxu0 0.0
    %1662 = vmatpush.msra.mxu0 0.0
    %1663 = vmatpush.msra.mxu0 0.0
    %1664 = vmatpush.msra.mxu0 0.0
    %1665 = vmatpush.msra.mxu0 0.0
    %1666 = vmatpush.msra.mxu0 0.0
    %1667 = vmatpush.msra.mxu0 0.0
    %1668 = vmatpush.msra.mxu0 0.0
    %1669 = vmatpush.msra.mxu0 0.0
    %1670 = vmatpush.msra.mxu0 0.0
    %1671 = vmatpush.msra.mxu0 0.0
    %1672 = vmatpush.msra.mxu0 0.0
    %1673 = vmatpush.msra.mxu0 0.0
    %1674 = vmatpush.msra.mxu0 0.0
    %1675 = vmatpush.msra.mxu0 0.0
    %1676 = vmatpush.msra.mxu0 %v1372
    %1677 = vmatmul.f32.gmra.mxu0 %v1659
    %v1678 = vpop.f32.mrf.mxu0
    %v1679 = vadd.f32 0.0, %v1678
    %1680 = vdwg.mxu0
    %1681 = vmatpush.msra.mxu0 0.0
    %1682 = vmatpush.msra.mxu0 0.0
    %1683 = vmatpush.msra.mxu0 0.0
    %1684 = vmatpush.msra.mxu0 0.0
    %1685 = vmatpush.msra.mxu0 0.0
    %1686 = vmatpush.msra.mxu0 0.0
    %1687 = vmatpush.msra.mxu0 0.0
    %1688 = vmatpush.msra.mxu0 0.0
    %1689 = vmatpush.msra.mxu0 0.0
    %1690 = vmatpush.msra.mxu0 0.0
    %1691 = vmatpush.msra.mxu0 0.0
    %1692 = vmatpush.msra.mxu0 0.0
    %1693 = vmatpush.msra.mxu0 0.0
    %1694 = vmatpush.msra.mxu0 0.0
    %1695 = vmatpush.msra.mxu0 0.0
    %1696 = vmatpush.msra.mxu0 %v1373
    %1697 = vmatmul.f32.gmra.mxu0 %v1659
    %v1698 = vpop.f32.mrf.mxu0
    %v1699 = vadd.f32 0.0, %v1698
    %1700 = vdwg.mxu0
    %1701 = vmatpush.msra.mxu0 0.0
    %1702 = vmatpush.msra.mxu0 0.0
    %1703 = vmatpush.msra.mxu0 0.0
    %1704 = vmatpush.msra.mxu0 0.0
    %1705 = vmatpush.msra.mxu0 0.0
    %1706 = vmatpush.msra.mxu0 0.0
    %1707 = vmatpush.msra.mxu0 0.0
    %1708 = vmatpush.msra.mxu0 0.0
    %1709 = vmatpush.msra.mxu0 0.0
    %1710 = vmatpush.msra.mxu0 0.0
    %1711 = vmatpush.msra.mxu0 0.0
    %1712 = vmatpush.msra.mxu0 0.0
    %1713 = vmatpush.msra.mxu0 0.0
    %1714 = vmatpush.msra.mxu0 0.0
    %1715 = vmatpush.msra.mxu0 0.0
    %1716 = vmatpush.msra.mxu0 %v1374
    %1717 = vmatmul.f32.gmra.mxu0 %v1659
    %v1718 = vpop.f32.mrf.mxu0
    %v1719 = vadd.f32 0.0, %v1718
    %1720 = vdwg.mxu0
    %v1721 = vperm.slane %v1615, 0
    %v1722 = vperm.slane %v1635, 0
    %v1723 = vperm.slane %v1655, 0
    %v1724 = vmul.f32 %v1442, %v1721
    %v1725 = vmul.f32 %v1443, %v1722
    %v1726 = vmul.f32 %v1444, %v1723
    %v1727 = vmul.f32 %v1445, %v1721
    %v1728 = vmul.f32 %v1446, %v1722
    %v1729 = vmul.f32 %v1447, %v1723
    %v1730 = vmul.f32 %v1448, %v1721
    %v1731 = vmul.f32 %v1449, %v1722
    %v1732 = vmul.f32 %v1450, %v1723
    %v1733 = vmul.f32 %v1451, %v1721
    %v1734 = vmul.f32 %v1452, %v1722
    %v1735 = vmul.f32 %v1453, %v1723
    %v1736 = vmul.f32 %v1454, %v1721
    %v1737 = vmul.f32 %v1455, %v1722
    %v1738 = vmul.f32 %v1456, %v1723
    %v1739 = vmul.f32 %v1457, %v1721
    %v1740 = vmul.f32 %v1458, %v1722
    %v1741 = vmul.f32 %v1459, %v1723
    %v1742 = vperm.slane %v1679, 0
    %v1743 = vperm.slane %v1699, 0
    %v1744 = vperm.slane %v1719, 0
    %v1745 = vadd.f32 %v1724, %v1742
    %v1746 = vadd.f32 %v1725, %v1743
    %v1747 = vadd.f32 %v1726, %v1744
    %v1748 = vadd.f32 %v1727, %v1742
    %v1749 = vadd.f32 %v1728, %v1743
    %v1750 = vadd.f32 %v1729, %v1744
    %v1751 = vadd.f32 %v1730, %v1742
    %v1752 = vadd.f32 %v1731, %v1743
    %v1753 = vadd.f32 %v1732, %v1744
    %v1754 = vadd.f32 %v1733, %v1742
    %v1755 = vadd.f32 %v1734, %v1743
    %v1756 = vadd.f32 %v1735, %v1744
    %v1757 = vadd.f32 %v1736, %v1742
    %v1758 = vadd.f32 %v1737, %v1743
    %v1759 = vadd.f32 %v1738, %v1744
    %v1760 = vadd.f32 %v1739, %v1742
    %v1761 = vadd.f32 %v1740, %v1743
    %v1762 = vadd.f32 %v1741, %v1744
    %vm1763 = vcmp.ge.f32.partialorder %v1745, 0.0
    %vm1764 = vcmp.ge.f32.partialorder %v1746, 0.0
    %vm1765 = vcmp.ge.f32.partialorder %v1747, 0.0
    %vm1766 = vcmp.ge.f32.partialorder %v1748, 0.0
    %vm1767 = vcmp.ge.f32.partialorder %v1749, 0.0
    %vm1768 = vcmp.ge.f32.partialorder %v1750, 0.0
    %vm1769 = vcmp.ge.f32.partialorder %v1751, 0.0
    %vm1770 = vcmp.ge.f32.partialorder %v1752, 0.0
    %vm1771 = vcmp.ge.f32.partialorder %v1753, 0.0
    %vm1772 = vcmp.ge.f32.partialorder %v1754, 0.0
    %vm1773 = vcmp.ge.f32.partialorder %v1755, 0.0
    %vm1774 = vcmp.ge.f32.partialorder %v1756, 0.0
    %vm1775 = vcmp.ge.f32.partialorder %v1757, 0.0
    %vm1776 = vcmp.ge.f32.partialorder %v1758, 0.0
    %vm1777 = vcmp.ge.f32.partialorder %v1759, 0.0
    %vm1778 = vcmp.ge.f32.partialorder %v1760, 0.0
    %vm1779 = vcmp.ge.f32.partialorder %v1761, 0.0
    %vm1780 = vcmp.ge.f32.partialorder %v1762, 0.0
    %v1781 = vmul.f32 %v1745, 0.2
    %v1782 = vmul.f32 %v1746, 0.2
    %v1783 = vmul.f32 %v1747, 0.2
    %v1784 = vmul.f32 %v1748, 0.2
    %v1785 = vmul.f32 %v1749, 0.2
    %v1786 = vmul.f32 %v1750, 0.2
    %v1787 = vmul.f32 %v1751, 0.2
    %v1788 = vmul.f32 %v1752, 0.2
    %v1789 = vmul.f32 %v1753, 0.2
    %v1790 = vmul.f32 %v1754, 0.2
    %v1791 = vmul.f32 %v1755, 0.2
    %v1792 = vmul.f32 %v1756, 0.2
    %v1793 = vmul.f32 %v1757, 0.2
    %v1794 = vmul.f32 %v1758, 0.2
    %v1795 = vmul.f32 %v1759, 0.2
    %v1796 = vmul.f32 %v1760, 0.2
    %v1797 = vmul.f32 %v1761, 0.2
    %v1798 = vmul.f32 %v1762, 0.2
    %v1799 = vsel %vm1763, %v1745, %v1781
    %v1800 = vsel %vm1764, %v1746, %v1782
    %v1801 = vsel %vm1765, %v1747, %v1783
    %v1802 = vsel %vm1766, %v1748, %v1784
    %v1803 = vsel %vm1767, %v1749, %v1785
    %v1804 = vsel %vm1768, %v1750, %v1786
    %v1805 = vsel %vm1769, %v1751, %v1787
    %v1806 = vsel %vm1770, %v1752, %v1788
    %v1807 = vsel %vm1771, %v1753, %v1789
    %v1808 = vsel %vm1772, %v1754, %v1790
    %v1809 = vsel %vm1773, %v1755, %v1791
    %v1810 = vsel %vm1774, %v1756, %v1792
    %v1811 = vsel %vm1775, %v1757, %v1793
    %v1812 = vsel %vm1776, %v1758, %v1794
    %v1813 = vsel %vm1777, %v1759, %v1795
    %v1814 = vsel %vm1778, %v1760, %v1796
    %v1815 = vsel %vm1779, %v1761, %v1797
    %v1816 = vsel %vm1780, %v1762, %v1798
    %v1817 = vld [vmem:[#allocation10] sm:$0xff]
    %v1818 = vld [vmem:[#allocation10 + $0x8] sm:$0xff]
    %v1819 = vld [vmem:[#allocation10 + $0x10] sm:$0xff]
    %vm1820 = vcmask 392192
    %v1822 = vsel %vm1820, %v1817, 0
    %v1825 = vsel %vm1820, %v1818, 0
    %v1828 = vsel %vm1820, %v1819, 0
    %1830 = vmatpush.msra.mxu0 0.0
    %1831 = vmatpush.msra.mxu0 0.0
    %1832 = vmatpush.msra.mxu0 0.0
    %1833 = vmatpush.msra.mxu0 0.0
    %1834 = vmatpush.msra.mxu0 0.0
    %1835 = vmatpush.msra.mxu0 0.0
    %1836 = vmatpush.msra.mxu0 0.0
    %1837 = vmatpush.msra.mxu0 0.0
    %1838 = vmatpush.msra.mxu0 0.0
    %1839 = vmatpush.msra.mxu0 0.0
    %1840 = vmatpush.msra.mxu0 %v1814
    %1841 = vmatpush.msra.mxu0 %v1811
    %1842 = vmatpush.msra.mxu0 %v1808
    %1843 = vmatpush.msra.mxu0 %v1805
    %1844 = vmatpush.msra.mxu0 %v1802
    %1845 = vmatpush.msra.mxu0 %v1799
    %1846 = vmatmul.f32.gmra.mxu0 %v1822
    %v1847 = vpop.f32.mrf.mxu0
    %v1848 = vadd.f32 0.0, %v1847
    %1849 = vmatmul.f32.gmra.mxu0 %v1825
    %v1850 = vpop.f32.mrf.mxu0
    %v1851 = vadd.f32 0.0, %v1850
    %1852 = vmatmul.f32.gmra.mxu0 %v1828
    %v1853 = vpop.f32.mrf.mxu0
    %v1854 = vadd.f32 0.0, %v1853
    %1855 = vdwg.mxu0
    %1856 = vmatpush.msra.mxu0 0.0
    %1857 = vmatpush.msra.mxu0 0.0
    %1858 = vmatpush.msra.mxu0 0.0
    %1859 = vmatpush.msra.mxu0 0.0
    %1860 = vmatpush.msra.mxu0 0.0
    %1861 = vmatpush.msra.mxu0 0.0
    %1862 = vmatpush.msra.mxu0 0.0
    %1863 = vmatpush.msra.mxu0 0.0
    %1864 = vmatpush.msra.mxu0 0.0
    %1865 = vmatpush.msra.mxu0 0.0
    %1866 = vmatpush.msra.mxu0 %v1815
    %1867 = vmatpush.msra.mxu0 %v1812
    %1868 = vmatpush.msra.mxu0 %v1809
    %1869 = vmatpush.msra.mxu0 %v1806
    %1870 = vmatpush.msra.mxu0 %v1803
    %1871 = vmatpush.msra.mxu0 %v1800
    %1872 = vmatmul.f32.gmra.mxu0 %v1822
    %v1873 = vpop.f32.mrf.mxu0
    %v1874 = vadd.f32 0.0, %v1873
    %1875 = vmatmul.f32.gmra.mxu0 %v1825
    %v1876 = vpop.f32.mrf.mxu0
    %v1877 = vadd.f32 0.0, %v1876
    %1878 = vmatmul.f32.gmra.mxu0 %v1828
    %v1879 = vpop.f32.mrf.mxu0
    %v1880 = vadd.f32 0.0, %v1879
    %1881 = vdwg.mxu0
    %1882 = vmatpush.msra.mxu0 0.0
    %1883 = vmatpush.msra.mxu0 0.0
    %1884 = vmatpush.msra.mxu0 0.0
    %1885 = vmatpush.msra.mxu0 0.0
    %1886 = vmatpush.msra.mxu0 0.0
    %1887 = vmatpush.msra.mxu0 0.0
    %1888 = vmatpush.msra.mxu0 0.0
    %1889 = vmatpush.msra.mxu0 0.0
    %1890 = vmatpush.msra.mxu0 0.0
    %1891 = vmatpush.msra.mxu0 0.0
    %1892 = vmatpush.msra.mxu0 %v1816
    %1893 = vmatpush.msra.mxu0 %v1813
    %1894 = vmatpush.msra.mxu0 %v1810
    %1895 = vmatpush.msra.mxu0 %v1807
    %1896 = vmatpush.msra.mxu0 %v1804
    %1897 = vmatpush.msra.mxu0 %v1801
    %1898 = vmatmul.f32.gmra.mxu0 %v1822
    %v1899 = vpop.f32.mrf.mxu0
    %v1900 = vadd.f32 0.0, %v1899
    %1901 = vmatmul.f32.gmra.mxu0 %v1825
    %v1902 = vpop.f32.mrf.mxu0
    %v1903 = vadd.f32 0.0, %v1902
    %1904 = vmatmul.f32.gmra.mxu0 %v1828
    %v1905 = vpop.f32.mrf.mxu0
    %v1906 = vadd.f32 0.0, %v1905
    %1907 = vdwg.mxu0
    %v1908 = vld [vmem:[#allocation12] sm:$0xff]
    %v1909 = vld [vmem:[#allocation12 + $0x8] sm:$0xff]
    %v1910 = vld [vmem:[#allocation12 + $0x10] sm:$0xff]
    %v1911 = vld [vmem:[#allocation12 + $0x18] sm:$0xff]
    %v1912 = vld [vmem:[#allocation12 + $0x20] sm:$0xff]
    %v1913 = vld [vmem:[#allocation12 + $0x28] sm:$0xff]
    %v1914 = vld [vmem:[#allocation12 + $0x30] sm:$0xff]
    %v1915 = vld [vmem:[#allocation12 + $0x38] sm:$0xff]
    %v1916 = vld [vmem:[#allocation12 + $0x40] sm:$0xff]
    %v1917 = vld [vmem:[#allocation12 + $0x48] sm:$0xff]
    %v1918 = vld [vmem:[#allocation12 + $0x50] sm:$0xff]
    %v1919 = vld [vmem:[#allocation12 + $0x58] sm:$0xff]
    %v1920 = vld [vmem:[#allocation12 + $0x60] sm:$0xff]
    %v1921 = vld [vmem:[#allocation12 + $0x68] sm:$0xff]
    %v1922 = vld [vmem:[#allocation12 + $0x70] sm:$0xff]
    %v1923 = vld [vmem:[#allocation12 + $0x78] sm:$0xff]
    %v1924 = vld [vmem:[#allocation12 + $0x80] sm:$0xff]
    %v1925 = vld [vmem:[#allocation12 + $0x88] sm:$0xff]
    %v1926 = vld [vmem:[#allocation12 + $0x90] sm:$0xff]
    %v1927 = vld [vmem:[#allocation12 + $0x98] sm:$0xff]
    %v1928 = vld [vmem:[#allocation12 + $0xa0] sm:$0xff]
    %v1929 = vld [vmem:[#allocation12 + $0xa8] sm:$0xff]
    %v1930 = vld [vmem:[#allocation12 + $0xb0] sm:$0xff]
    %v1931 = vld [vmem:[#allocation12 + $0xb8] sm:$0xff]
    %v1932 = vld [vmem:[#allocation12 + $0xc0] sm:$0xff]
    %v1933 = vld [vmem:[#allocation12 + $0xc8] sm:$0xff]
    %v1934 = vld [vmem:[#allocation12 + $0xd0] sm:$0xff]
    %v1935 = vld [vmem:[#allocation12 + $0xd8] sm:$0xff]
    %v1936 = vld [vmem:[#allocation12 + $0xe0] sm:$0xff]
    %v1937 = vld [vmem:[#allocation12 + $0xe8] sm:$0xff]
    %v1938 = vld [vmem:[#allocation12 + $0xf0] sm:$0xff]
    %v1939 = vld [vmem:[#allocation12 + $0xf8] sm:$0xff]
    %v1940 = vld [vmem:[#allocation12 + $0x100] sm:$0xff]
    %v1941 = vld [vmem:[#allocation12 + $0x108] sm:$0xff]
    %v1942 = vld [vmem:[#allocation12 + $0x110] sm:$0xff]
    %v1943 = vld [vmem:[#allocation12 + $0x118] sm:$0xff]
    %v1944 = vld [vmem:[#allocation12 + $0x120] sm:$0xff]
    %v1945 = vld [vmem:[#allocation12 + $0x128] sm:$0xff]
    %v1946 = vld [vmem:[#allocation12 + $0x130] sm:$0xff]
    %v1947 = vld [vmem:[#allocation12 + $0x138] sm:$0xff]
    %v1948 = vld [vmem:[#allocation12 + $0x140] sm:$0xff]
    %v1949 = vld [vmem:[#allocation12 + $0x148] sm:$0xff]
    %v1950 = vld [vmem:[#allocation12 + $0x150] sm:$0xff]
    %v1951 = vld [vmem:[#allocation12 + $0x158] sm:$0xff]
    %v1952 = vld [vmem:[#allocation12 + $0x160] sm:$0xff]
    %v1953 = vld [vmem:[#allocation12 + $0x168] sm:$0xff]
    %v1954 = vld [vmem:[#allocation12 + $0x170] sm:$0xff]
    %v1955 = vld [vmem:[#allocation12 + $0x178] sm:$0xff]
    %v1956 = vld [vmem:[#allocation12 + $0x180] sm:$0xff]
    %v1957 = vld [vmem:[#allocation12 + $0x188] sm:$0xff]
    %v1958 = vld [vmem:[#allocation12 + $0x190] sm:$0xff]
    %v1959 = vld [vmem:[#allocation12 + $0x198] sm:$0xff]
    %v1960 = vld [vmem:[#allocation12 + $0x1a0] sm:$0xff]
    %v1961 = vld [vmem:[#allocation12 + $0x1a8] sm:$0xff]
    %v1962 = vld [vmem:[#allocation12 + $0x1b0] sm:$0xff]
    %v1963 = vld [vmem:[#allocation12 + $0x1b8] sm:$0xff]
    %v1964 = vld [vmem:[#allocation12 + $0x1c0] sm:$0xff]
    %v1965 = vld [vmem:[#allocation12 + $0x1c8] sm:$0xff]
    %v1966 = vld [vmem:[#allocation12 + $0x1d0] sm:$0xff]
    %v1967 = vld [vmem:[#allocation12 + $0x1d8] sm:$0xff]
    %v1968 = vld [vmem:[#allocation12 + $0x1e0] sm:$0xff]
    %v1969 = vld [vmem:[#allocation12 + $0x1e8] sm:$0xff]
    %v1970 = vld [vmem:[#allocation12 + $0x1f0] sm:$0xff]
    %v1971 = vld [vmem:[#allocation12 + $0x1f8] sm:$0xff]
    %v1972 = vld [vmem:[#allocation12 + $0x200] sm:$0xff]
    %v1973 = vld [vmem:[#allocation12 + $0x208] sm:$0xff]
    %v1974 = vld [vmem:[#allocation12 + $0x210] sm:$0xff]
    %v1975 = vld [vmem:[#allocation12 + $0x218] sm:$0xff]
    %v1976 = vld [vmem:[#allocation12 + $0x220] sm:$0xff]
    %v1977 = vld [vmem:[#allocation12 + $0x228] sm:$0xff]
    %v1978 = vld [vmem:[#allocation12 + $0x230] sm:$0xff]
    %v1979 = vld [vmem:[#allocation12 + $0x238] sm:$0xff]
    %v1980 = vld [vmem:[#allocation12 + $0x240] sm:$0xff]
    %v1981 = vld [vmem:[#allocation12 + $0x248] sm:$0xff]
    %v1982 = vld [vmem:[#allocation12 + $0x250] sm:$0xff]
    %v1983 = vld [vmem:[#allocation12 + $0x258] sm:$0xff]
    %v1984 = vld [vmem:[#allocation12 + $0x260] sm:$0xff]
    %v1985 = vld [vmem:[#allocation12 + $0x268] sm:$0xff]
    %v1986 = vld [vmem:[#allocation12 + $0x270] sm:$0xff]
    %v1987 = vld [vmem:[#allocation12 + $0x278] sm:$0xff]
    %v1988 = vld [vmem:[#allocation12 + $0x280] sm:$0xff]
    %v1989 = vld [vmem:[#allocation12 + $0x288] sm:$0xff]
    %v1990 = vld [vmem:[#allocation12 + $0x290] sm:$0xff]
    %v1991 = vld [vmem:[#allocation12 + $0x298] sm:$0xff]
    %v1992 = vld [vmem:[#allocation12 + $0x2a0] sm:$0xff]
    %v1993 = vld [vmem:[#allocation12 + $0x2a8] sm:$0xff]
    %v1994 = vld [vmem:[#allocation12 + $0x2b0] sm:$0xff]
    %v1995 = vld [vmem:[#allocation12 + $0x2b8] sm:$0xff]
    %v1996 = vld [vmem:[#allocation12 + $0x2c0] sm:$0xff]
    %v1997 = vld [vmem:[#allocation12 + $0x2c8] sm:$0xff]
    %v1998 = vld [vmem:[#allocation12 + $0x2d0] sm:$0xff]
    %v1999 = vld [vmem:[#allocation12 + $0x2d8] sm:$0xff]
    %v2000 = vld [vmem:[#allocation12 + $0x2e0] sm:$0xff]
    %v2001 = vld [vmem:[#allocation12 + $0x2e8] sm:$0xff]
    %v2002 = vld [vmem:[#allocation12 + $0x2f0] sm:$0xff]
    %v2003 = vld [vmem:[#allocation12 + $0x2f8] sm:$0xff]
    %v2004 = vld [vmem:[#allocation12 + $0x300] sm:$0xff]
    %v2005 = vld [vmem:[#allocation12 + $0x308] sm:$0xff]
    %v2006 = vld [vmem:[#allocation12 + $0x310] sm:$0xff]
    %v2007 = vld [vmem:[#allocation12 + $0x318] sm:$0xff]
    %v2008 = vld [vmem:[#allocation12 + $0x320] sm:$0xff]
    %v2009 = vld [vmem:[#allocation12 + $0x328] sm:$0xff]
    %v2010 = vld [vmem:[#allocation12 + $0x330] sm:$0xff]
    %v2011 = vld [vmem:[#allocation12 + $0x338] sm:$0xff]
    %v2012 = vld [vmem:[#allocation12 + $0x340] sm:$0xff]
    %v2013 = vld [vmem:[#allocation12 + $0x348] sm:$0xff]
    %v2014 = vld [vmem:[#allocation12 + $0x350] sm:$0xff]
    %v2015 = vld [vmem:[#allocation12 + $0x358] sm:$0xff]
    %v2016 = vld [vmem:[#allocation12 + $0x360] sm:$0xff]
    %v2017 = vld [vmem:[#allocation12 + $0x368] sm:$0xff]
    %v2018 = vld [vmem:[#allocation12 + $0x370] sm:$0xff]
    %v2019 = vld [vmem:[#allocation12 + $0x378] sm:$0xff]
    %v2020 = vld [vmem:[#allocation12 + $0x380] sm:$0xff]
    %v2021 = vld [vmem:[#allocation12 + $0x388] sm:$0xff]
    %v2022 = vld [vmem:[#allocation12 + $0x390] sm:$0xff]
    %v2023 = vld [vmem:[#allocation12 + $0x398] sm:$0xff]
    %v2024 = vld [vmem:[#allocation12 + $0x3a0] sm:$0xff]
    %v2025 = vld [vmem:[#allocation12 + $0x3a8] sm:$0xff]
    %v2026 = vld [vmem:[#allocation12 + $0x3b0] sm:$0xff]
    %v2027 = vld [vmem:[#allocation12 + $0x3b8] sm:$0xff]
    %s2028 = scalar_lea.vmem [#allocation10], 24
    %v2029 = vld [vmem:[%s2028] sm:$0xff]
    %v2030 = vld [vmem:[%s2028 + $0x8] sm:$0xff]
    %v2031 = vld [vmem:[%s2028 + $0x10] sm:$0xff]
    %v2033 = vsel %vm1820, %v2029, 0
    %v2036 = vsel %vm1820, %v2030, 0
    %v2039 = vsel %vm1820, %v2031, 0
    %2041 = vmatpush.msra.mxu0 0.0
    %2042 = vmatpush.msra.mxu0 0.0
    %2043 = vmatpush.msra.mxu0 0.0
    %2044 = vmatpush.msra.mxu0 0.0
    %2045 = vmatpush.msra.mxu0 0.0
    %2046 = vmatpush.msra.mxu0 0.0
    %2047 = vmatpush.msra.mxu0 0.0
    %2048 = vmatpush.msra.mxu0 0.0
    %2049 = vmatpush.msra.mxu0 0.0
    %2050 = vmatpush.msra.mxu0 0.0
    %2051 = vmatpush.msra.mxu0 %v1814
    %2052 = vmatpush.msra.mxu0 %v1811
    %2053 = vmatpush.msra.mxu0 %v1808
    %2054 = vmatpush.msra.mxu0 %v1805
    %2055 = vmatpush.msra.mxu0 %v1802
    %2056 = vmatpush.msra.mxu0 %v1799
    %2057 = vmatmul.f32.gmra.mxu0 %v2033
    %v2058 = vpop.f32.mrf.mxu0
    %v2059 = vadd.f32 0.0, %v2058
    %2060 = vmatmul.f32.gmra.mxu0 %v2036
    %v2061 = vpop.f32.mrf.mxu0
    %v2062 = vadd.f32 0.0, %v2061
    %2063 = vmatmul.f32.gmra.mxu0 %v2039
    %v2064 = vpop.f32.mrf.mxu0
    %v2065 = vadd.f32 0.0, %v2064
    %2066 = vdwg.mxu0
    %2067 = vmatpush.msra.mxu0 0.0
    %2068 = vmatpush.msra.mxu0 0.0
    %2069 = vmatpush.msra.mxu0 0.0
    %2070 = vmatpush.msra.mxu0 0.0
    %2071 = vmatpush.msra.mxu0 0.0
    %2072 = vmatpush.msra.mxu0 0.0
    %2073 = vmatpush.msra.mxu0 0.0
    %2074 = vmatpush.msra.mxu0 0.0
    %2075 = vmatpush.msra.mxu0 0.0
    %2076 = vmatpush.msra.mxu0 0.0
    %2077 = vmatpush.msra.mxu0 %v1815
    %2078 = vmatpush.msra.mxu0 %v1812
    %2079 = vmatpush.msra.mxu0 %v1809
    %2080 = vmatpush.msra.mxu0 %v1806
    %2081 = vmatpush.msra.mxu0 %v1803
    %2082 = vmatpush.msra.mxu0 %v1800
    %2083 = vmatmul.f32.gmra.mxu0 %v2033
    %v2084 = vpop.f32.mrf.mxu0
    %v2085 = vadd.f32 0.0, %v2084
    %2086 = vmatmul.f32.gmra.mxu0 %v2036
    %v2087 = vpop.f32.mrf.mxu0
    %v2088 = vadd.f32 0.0, %v2087
    %2089 = vmatmul.f32.gmra.mxu0 %v2039
    %v2090 = vpop.f32.mrf.mxu0
    %v2091 = vadd.f32 0.0, %v2090
    %2092 = vdwg.mxu0
    %2093 = vmatpush.msra.mxu0 0.0
    %2094 = vmatpush.msra.mxu0 0.0
    %2095 = vmatpush.msra.mxu0 0.0
    %2096 = vmatpush.msra.mxu0 0.0
    %2097 = vmatpush.msra.mxu0 0.0
    %2098 = vmatpush.msra.mxu0 0.0
    %2099 = vmatpush.msra.mxu0 0.0
    %2100 = vmatpush.msra.mxu0 0.0
    %2101 = vmatpush.msra.mxu0 0.0
    %2102 = vmatpush.msra.mxu0 0.0
    %2103 = vmatpush.msra.mxu0 %v1816
    %2104 = vmatpush.msra.mxu0 %v1813
    %2105 = vmatpush.msra.mxu0 %v1810
    %2106 = vmatpush.msra.mxu0 %v1807
    %2107 = vmatpush.msra.mxu0 %v1804
    %2108 = vmatpush.msra.mxu0 %v1801
    %2109 = vmatmul.f32.gmra.mxu0 %v2033
    %v2110 = vpop.f32.mrf.mxu0
    %v2111 = vadd.f32 0.0, %v2110
    %2112 = vmatmul.f32.gmra.mxu0 %v2036
    %v2113 = vpop.f32.mrf.mxu0
    %v2114 = vadd.f32 0.0, %v2113
    %2115 = vmatmul.f32.gmra.mxu0 %v2039
    %v2116 = vpop.f32.mrf.mxu0
    %v2117 = vadd.f32 0.0, %v2116
    %2118 = vdwg.mxu0
    %s2119 = scalar_lea.vmem [#allocation12], 960
    %v2120 = vld [vmem:[%s2119] sm:$0xff]
    %v2121 = vld [vmem:[%s2119 + $0x8] sm:$0xff]
    %v2122 = vld [vmem:[%s2119 + $0x10] sm:$0xff]
    %v2123 = vld [vmem:[%s2119 + $0x18] sm:$0xff]
    %v2124 = vld [vmem:[%s2119 + $0x20] sm:$0xff]
    %v2125 = vld [vmem:[%s2119 + $0x28] sm:$0xff]
    %v2126 = vld [vmem:[%s2119 + $0x30] sm:$0xff]
    %v2127 = vld [vmem:[%s2119 + $0x38] sm:$0xff]
    %v2128 = vld [vmem:[%s2119 + $0x40] sm:$0xff]
    %v2129 = vld [vmem:[%s2119 + $0x48] sm:$0xff]
    %v2130 = vld [vmem:[%s2119 + $0x50] sm:$0xff]
    %v2131 = vld [vmem:[%s2119 + $0x58] sm:$0xff]
    %v2132 = vld [vmem:[%s2119 + $0x60] sm:$0xff]
    %v2133 = vld [vmem:[%s2119 + $0x68] sm:$0xff]
    %v2134 = vld [vmem:[%s2119 + $0x70] sm:$0xff]
    %v2135 = vld [vmem:[%s2119 + $0x78] sm:$0xff]
    %v2136 = vld [vmem:[%s2119 + $0x80] sm:$0xff]
    %v2137 = vld [vmem:[%s2119 + $0x88] sm:$0xff]
    %v2138 = vld [vmem:[%s2119 + $0x90] sm:$0xff]
    %v2139 = vld [vmem:[%s2119 + $0x98] sm:$0xff]
    %v2140 = vld [vmem:[%s2119 + $0xa0] sm:$0xff]
    %v2141 = vld [vmem:[%s2119 + $0xa8] sm:$0xff]
    %v2142 = vld [vmem:[%s2119 + $0xb0] sm:$0xff]
    %v2143 = vld [vmem:[%s2119 + $0xb8] sm:$0xff]
    %v2144 = vld [vmem:[%s2119 + $0xc0] sm:$0xff]
    %v2145 = vld [vmem:[%s2119 + $0xc8] sm:$0xff]
    %v2146 = vld [vmem:[%s2119 + $0xd0] sm:$0xff]
    %v2147 = vld [vmem:[%s2119 + $0xd8] sm:$0xff]
    %v2148 = vld [vmem:[%s2119 + $0xe0] sm:$0xff]
    %v2149 = vld [vmem:[%s2119 + $0xe8] sm:$0xff]
    %v2150 = vld [vmem:[%s2119 + $0xf0] sm:$0xff]
    %v2151 = vld [vmem:[%s2119 + $0xf8] sm:$0xff]
    %v2152 = vld [vmem:[%s2119 + $0x100] sm:$0xff]
    %v2153 = vld [vmem:[%s2119 + $0x108] sm:$0xff]
    %v2154 = vld [vmem:[%s2119 + $0x110] sm:$0xff]
    %v2155 = vld [vmem:[%s2119 + $0x118] sm:$0xff]
    %v2156 = vld [vmem:[%s2119 + $0x120] sm:$0xff]
    %v2157 = vld [vmem:[%s2119 + $0x128] sm:$0xff]
    %v2158 = vld [vmem:[%s2119 + $0x130] sm:$0xff]
    %v2159 = vld [vmem:[%s2119 + $0x138] sm:$0xff]
    %v2160 = vld [vmem:[%s2119 + $0x140] sm:$0xff]
    %v2161 = vld [vmem:[%s2119 + $0x148] sm:$0xff]
    %v2162 = vld [vmem:[%s2119 + $0x150] sm:$0xff]
    %v2163 = vld [vmem:[%s2119 + $0x158] sm:$0xff]
    %v2164 = vld [vmem:[%s2119 + $0x160] sm:$0xff]
    %v2165 = vld [vmem:[%s2119 + $0x168] sm:$0xff]
    %v2166 = vld [vmem:[%s2119 + $0x170] sm:$0xff]
    %v2167 = vld [vmem:[%s2119 + $0x178] sm:$0xff]
    %v2168 = vld [vmem:[%s2119 + $0x180] sm:$0xff]
    %v2169 = vld [vmem:[%s2119 + $0x188] sm:$0xff]
    %v2170 = vld [vmem:[%s2119 + $0x190] sm:$0xff]
    %v2171 = vld [vmem:[%s2119 + $0x198] sm:$0xff]
    %v2172 = vld [vmem:[%s2119 + $0x1a0] sm:$0xff]
    %v2173 = vld [vmem:[%s2119 + $0x1a8] sm:$0xff]
    %v2174 = vld [vmem:[%s2119 + $0x1b0] sm:$0xff]
    %v2175 = vld [vmem:[%s2119 + $0x1b8] sm:$0xff]
    %v2176 = vld [vmem:[%s2119 + $0x1c0] sm:$0xff]
    %v2177 = vld [vmem:[%s2119 + $0x1c8] sm:$0xff]
    %v2178 = vld [vmem:[%s2119 + $0x1d0] sm:$0xff]
    %v2179 = vld [vmem:[%s2119 + $0x1d8] sm:$0xff]
    %v2180 = vld [vmem:[%s2119 + $0x1e0] sm:$0xff]
    %v2181 = vld [vmem:[%s2119 + $0x1e8] sm:$0xff]
    %v2182 = vld [vmem:[%s2119 + $0x1f0] sm:$0xff]
    %v2183 = vld [vmem:[%s2119 + $0x1f8] sm:$0xff]
    %v2184 = vld [vmem:[%s2119 + $0x200] sm:$0xff]
    %v2185 = vld [vmem:[%s2119 + $0x208] sm:$0xff]
    %v2186 = vld [vmem:[%s2119 + $0x210] sm:$0xff]
    %v2187 = vld [vmem:[%s2119 + $0x218] sm:$0xff]
    %v2188 = vld [vmem:[%s2119 + $0x220] sm:$0xff]
    %v2189 = vld [vmem:[%s2119 + $0x228] sm:$0xff]
    %v2190 = vld [vmem:[%s2119 + $0x230] sm:$0xff]
    %v2191 = vld [vmem:[%s2119 + $0x238] sm:$0xff]
    %v2192 = vld [vmem:[%s2119 + $0x240] sm:$0xff]
    %v2193 = vld [vmem:[%s2119 + $0x248] sm:$0xff]
    %v2194 = vld [vmem:[%s2119 + $0x250] sm:$0xff]
    %v2195 = vld [vmem:[%s2119 + $0x258] sm:$0xff]
    %v2196 = vld [vmem:[%s2119 + $0x260] sm:$0xff]
    %v2197 = vld [vmem:[%s2119 + $0x268] sm:$0xff]
    %v2198 = vld [vmem:[%s2119 + $0x270] sm:$0xff]
    %v2199 = vld [vmem:[%s2119 + $0x278] sm:$0xff]
    %v2200 = vld [vmem:[%s2119 + $0x280] sm:$0xff]
    %v2201 = vld [vmem:[%s2119 + $0x288] sm:$0xff]
    %v2202 = vld [vmem:[%s2119 + $0x290] sm:$0xff]
    %v2203 = vld [vmem:[%s2119 + $0x298] sm:$0xff]
    %v2204 = vld [vmem:[%s2119 + $0x2a0] sm:$0xff]
    %v2205 = vld [vmem:[%s2119 + $0x2a8] sm:$0xff]
    %v2206 = vld [vmem:[%s2119 + $0x2b0] sm:$0xff]
    %v2207 = vld [vmem:[%s2119 + $0x2b8] sm:$0xff]
    %v2208 = vld [vmem:[%s2119 + $0x2c0] sm:$0xff]
    %v2209 = vld [vmem:[%s2119 + $0x2c8] sm:$0xff]
    %v2210 = vld [vmem:[%s2119 + $0x2d0] sm:$0xff]
    %v2211 = vld [vmem:[%s2119 + $0x2d8] sm:$0xff]
    %v2212 = vld [vmem:[%s2119 + $0x2e0] sm:$0xff]
    %v2213 = vld [vmem:[%s2119 + $0x2e8] sm:$0xff]
    %v2214 = vld [vmem:[%s2119 + $0x2f0] sm:$0xff]
    %v2215 = vld [vmem:[%s2119 + $0x2f8] sm:$0xff]
    %v2216 = vld [vmem:[%s2119 + $0x300] sm:$0xff]
    %v2217 = vld [vmem:[%s2119 + $0x308] sm:$0xff]
    %v2218 = vld [vmem:[%s2119 + $0x310] sm:$0xff]
    %v2219 = vld [vmem:[%s2119 + $0x318] sm:$0xff]
    %v2220 = vld [vmem:[%s2119 + $0x320] sm:$0xff]
    %v2221 = vld [vmem:[%s2119 + $0x328] sm:$0xff]
    %v2222 = vld [vmem:[%s2119 + $0x330] sm:$0xff]
    %v2223 = vld [vmem:[%s2119 + $0x338] sm:$0xff]
    %v2224 = vld [vmem:[%s2119 + $0x340] sm:$0xff]
    %v2225 = vld [vmem:[%s2119 + $0x348] sm:$0xff]
    %v2226 = vld [vmem:[%s2119 + $0x350] sm:$0xff]
    %v2227 = vld [vmem:[%s2119 + $0x358] sm:$0xff]
    %v2228 = vld [vmem:[%s2119 + $0x360] sm:$0xff]
    %v2229 = vld [vmem:[%s2119 + $0x368] sm:$0xff]
    %v2230 = vld [vmem:[%s2119 + $0x370] sm:$0xff]
    %v2231 = vld [vmem:[%s2119 + $0x378] sm:$0xff]
    %v2232 = vld [vmem:[%s2119 + $0x380] sm:$0xff]
    %v2233 = vld [vmem:[%s2119 + $0x388] sm:$0xff]
    %v2234 = vld [vmem:[%s2119 + $0x390] sm:$0xff]
    %v2235 = vld [vmem:[%s2119 + $0x398] sm:$0xff]
    %v2236 = vld [vmem:[%s2119 + $0x3a0] sm:$0xff]
    %v2237 = vld [vmem:[%s2119 + $0x3a8] sm:$0xff]
    %v2238 = vld [vmem:[%s2119 + $0x3b0] sm:$0xff]
    %v2239 = vld [vmem:[%s2119 + $0x3b8] sm:$0xff]
    %v2241 = vsel %vm1250, %v2111, 0
    %v2244 = vsel %vm1250, %v2114, 0
    %v2247 = vsel %vm1250, %v2117, 0
    %2249 = vmatpush.msra.mxu0 %v2165
    %2250 = vmatpush.msra.mxu0 %v2162
    %2251 = vmatpush.msra.mxu0 %v2159
    %2252 = vmatpush.msra.mxu0 %v2156
    %2253 = vmatpush.msra.mxu0 %v2153
    %2254 = vmatpush.msra.mxu0 %v2150
    %2255 = vmatpush.msra.mxu0 %v2147
    %2256 = vmatpush.msra.mxu0 %v2144
    %2257 = vmatpush.msra.mxu0 %v2141
    %2258 = vmatpush.msra.mxu0 %v2138
    %2259 = vmatpush.msra.mxu0 %v2135
    %2260 = vmatpush.msra.mxu0 %v2132
    %2261 = vmatpush.msra.mxu0 %v2129
    %2262 = vmatpush.msra.mxu0 %v2126
    %2263 = vmatpush.msra.mxu0 %v2123
    %2264 = vmatpush.msra.mxu0 %v2120
    %2265 = vmatmul.f32.gmra.mxu0 %v2059
    %v2266 = vpop.f32.mrf.mxu0
    %v2267 = vadd.f32 0.0, %v2266
    %2268 = vmatmul.f32.gmra.mxu0 %v2062
    %v2269 = vpop.f32.mrf.mxu0
    %v2270 = vadd.f32 0.0, %v2269
    %2271 = vmatmul.f32.gmra.mxu0 %v2065
    %v2272 = vpop.f32.mrf.mxu0
    %v2273 = vadd.f32 0.0, %v2272
    %2274 = vdwg.mxu0
    %2275 = vmatpush.msra.mxu0 %v2213
    %2276 = vmatpush.msra.mxu0 %v2210
    %2277 = vmatpush.msra.mxu0 %v2207
    %2278 = vmatpush.msra.mxu0 %v2204
    %2279 = vmatpush.msra.mxu0 %v2201
    %2280 = vmatpush.msra.mxu0 %v2198
    %2281 = vmatpush.msra.mxu0 %v2195
    %2282 = vmatpush.msra.mxu0 %v2192
    %2283 = vmatpush.msra.mxu0 %v2189
    %2284 = vmatpush.msra.mxu0 %v2186
    %2285 = vmatpush.msra.mxu0 %v2183
    %2286 = vmatpush.msra.mxu0 %v2180
    %2287 = vmatpush.msra.mxu0 %v2177
    %2288 = vmatpush.msra.mxu0 %v2174
    %2289 = vmatpush.msra.mxu0 %v2171
    %2290 = vmatpush.msra.mxu0 %v2168
    %2291 = vmatmul.f32.gmra.mxu0 %v2085
    %v2292 = vpop.f32.mrf.mxu0
    %v2293 = vadd.f32 %v2267, %v2292
    %2294 = vmatmul.f32.gmra.mxu0 %v2088
    %v2295 = vpop.f32.mrf.mxu0
    %v2296 = vadd.f32 %v2270, %v2295
    %2297 = vmatmul.f32.gmra.mxu0 %v2091
    %v2298 = vpop.f32.mrf.mxu0
    %v2299 = vadd.f32 %v2273, %v2298
    %2300 = vdwg.mxu0
    %2301 = vmatpush.msra.mxu0 0.0
    %2302 = vmatpush.msra.mxu0 0.0
    %2303 = vmatpush.msra.mxu0 0.0
    %2304 = vmatpush.msra.mxu0 0.0
    %2305 = vmatpush.msra.mxu0 0.0
    %2306 = vmatpush.msra.mxu0 0.0
    %2307 = vmatpush.msra.mxu0 0.0
    %2308 = vmatpush.msra.mxu0 0.0
    %2309 = vmatpush.msra.mxu0 %v2237
    %2310 = vmatpush.msra.mxu0 %v2234
    %2311 = vmatpush.msra.mxu0 %v2231
    %2312 = vmatpush.msra.mxu0 %v2228
    %2313 = vmatpush.msra.mxu0 %v2225
    %2314 = vmatpush.msra.mxu0 %v2222
    %2315 = vmatpush.msra.mxu0 %v2219
    %2316 = vmatpush.msra.mxu0 %v2216
    %2317 = vmatmul.f32.gmra.mxu0 %v2241
    %v2318 = vpop.f32.mrf.mxu0
    %v2319 = vadd.f32 %v2293, %v2318
    %2320 = vmatmul.f32.gmra.mxu0 %v2244
    %v2321 = vpop.f32.mrf.mxu0
    %v2322 = vadd.f32 %v2296, %v2321
    %2323 = vmatmul.f32.gmra.mxu0 %v2247
    %v2324 = vpop.f32.mrf.mxu0
    %v2325 = vadd.f32 %v2299, %v2324
    %2326 = vdwg.mxu0
    %2327 = vmatpush.msra.mxu0 %v2166
    %2328 = vmatpush.msra.mxu0 %v2163
    %2329 = vmatpush.msra.mxu0 %v2160
    %2330 = vmatpush.msra.mxu0 %v2157
    %2331 = vmatpush.msra.mxu0 %v2154
    %2332 = vmatpush.msra.mxu0 %v2151
    %2333 = vmatpush.msra.mxu0 %v2148
    %2334 = vmatpush.msra.mxu0 %v2145
    %2335 = vmatpush.msra.mxu0 %v2142
    %2336 = vmatpush.msra.mxu0 %v2139
    %2337 = vmatpush.msra.mxu0 %v2136
    %2338 = vmatpush.msra.mxu0 %v2133
    %2339 = vmatpush.msra.mxu0 %v2130
    %2340 = vmatpush.msra.mxu0 %v2127
    %2341 = vmatpush.msra.mxu0 %v2124
    %2342 = vmatpush.msra.mxu0 %v2121
    %2343 = vmatmul.f32.gmra.mxu0 %v2059
    %v2344 = vpop.f32.mrf.mxu0
    %v2345 = vadd.f32 0.0, %v2344
    %2346 = vmatmul.f32.gmra.mxu0 %v2062
    %v2347 = vpop.f32.mrf.mxu0
    %v2348 = vadd.f32 0.0, %v2347
    %2349 = vmatmul.f32.gmra.mxu0 %v2065
    %v2350 = vpop.f32.mrf.mxu0
    %v2351 = vadd.f32 0.0, %v2350
    %2352 = vdwg.mxu0
    %2353 = vmatpush.msra.mxu0 %v2214
    %2354 = vmatpush.msra.mxu0 %v2211
    %2355 = vmatpush.msra.mxu0 %v2208
    %2356 = vmatpush.msra.mxu0 %v2205
    %2357 = vmatpush.msra.mxu0 %v2202
    %2358 = vmatpush.msra.mxu0 %v2199
    %2359 = vmatpush.msra.mxu0 %v2196
    %2360 = vmatpush.msra.mxu0 %v2193
    %2361 = vmatpush.msra.mxu0 %v2190
    %2362 = vmatpush.msra.mxu0 %v2187
    %2363 = vmatpush.msra.mxu0 %v2184
    %2364 = vmatpush.msra.mxu0 %v2181
    %2365 = vmatpush.msra.mxu0 %v2178
    %2366 = vmatpush.msra.mxu0 %v2175
    %2367 = vmatpush.msra.mxu0 %v2172
    %2368 = vmatpush.msra.mxu0 %v2169
    %2369 = vmatmul.f32.gmra.mxu0 %v2085
    %v2370 = vpop.f32.mrf.mxu0
    %v2371 = vadd.f32 %v2345, %v2370
    %2372 = vmatmul.f32.gmra.mxu0 %v2088
    %v2373 = vpop.f32.mrf.mxu0
    %v2374 = vadd.f32 %v2348, %v2373
    %2375 = vmatmul.f32.gmra.mxu0 %v2091
    %v2376 = vpop.f32.mrf.mxu0
    %v2377 = vadd.f32 %v2351, %v2376
    %2378 = vdwg.mxu0
    %2379 = vmatpush.msra.mxu0 0.0
    %2380 = vmatpush.msra.mxu0 0.0
    %2381 = vmatpush.msra.mxu0 0.0
    %2382 = vmatpush.msra.mxu0 0.0
    %2383 = vmatpush.msra.mxu0 0.0
    %2384 = vmatpush.msra.mxu0 0.0
    %2385 = vmatpush.msra.mxu0 0.0
    %2386 = vmatpush.msra.mxu0 0.0
    %2387 = vmatpush.msra.mxu0 %v2238
    %2388 = vmatpush.msra.mxu0 %v2235
    %2389 = vmatpush.msra.mxu0 %v2232
    %2390 = vmatpush.msra.mxu0 %v2229
    %2391 = vmatpush.msra.mxu0 %v2226
    %2392 = vmatpush.msra.mxu0 %v2223
    %2393 = vmatpush.msra.mxu0 %v2220
    %2394 = vmatpush.msra.mxu0 %v2217
    %2395 = vmatmul.f32.gmra.mxu0 %v2241
    %v2396 = vpop.f32.mrf.mxu0
    %v2397 = vadd.f32 %v2371, %v2396
    %2398 = vmatmul.f32.gmra.mxu0 %v2244
    %v2399 = vpop.f32.mrf.mxu0
    %v2400 = vadd.f32 %v2374, %v2399
    %2401 = vmatmul.f32.gmra.mxu0 %v2247
    %v2402 = vpop.f32.mrf.mxu0
    %v2403 = vadd.f32 %v2377, %v2402
    %2404 = vdwg.mxu0
    %2405 = vmatpush.msra.mxu0 %v2167
    %2406 = vmatpush.msra.mxu0 %v2164
    %2407 = vmatpush.msra.mxu0 %v2161
    %2408 = vmatpush.msra.mxu0 %v2158
    %2409 = vmatpush.msra.mxu0 %v2155
    %2410 = vmatpush.msra.mxu0 %v2152
    %2411 = vmatpush.msra.mxu0 %v2149
    %2412 = vmatpush.msra.mxu0 %v2146
    %2413 = vmatpush.msra.mxu0 %v2143
    %2414 = vmatpush.msra.mxu0 %v2140
    %2415 = vmatpush.msra.mxu0 %v2137
    %2416 = vmatpush.msra.mxu0 %v2134
    %2417 = vmatpush.msra.mxu0 %v2131
    %2418 = vmatpush.msra.mxu0 %v2128
    %2419 = vmatpush.msra.mxu0 %v2125
    %2420 = vmatpush.msra.mxu0 %v2122
    %2421 = vmatmul.f32.gmra.mxu0 %v2059
    %v2422 = vpop.f32.mrf.mxu0
    %v2423 = vadd.f32 0.0, %v2422
    %2424 = vmatmul.f32.gmra.mxu0 %v2062
    %v2425 = vpop.f32.mrf.mxu0
    %v2426 = vadd.f32 0.0, %v2425
    %2427 = vmatmul.f32.gmra.mxu0 %v2065
    %v2428 = vpop.f32.mrf.mxu0
    %v2429 = vadd.f32 0.0, %v2428
    %2430 = vdwg.mxu0
    %2431 = vmatpush.msra.mxu0 %v2215
    %2432 = vmatpush.msra.mxu0 %v2212
    %2433 = vmatpush.msra.mxu0 %v2209
    %2434 = vmatpush.msra.mxu0 %v2206
    %2435 = vmatpush.msra.mxu0 %v2203
    %2436 = vmatpush.msra.mxu0 %v2200
    %2437 = vmatpush.msra.mxu0 %v2197
    %2438 = vmatpush.msra.mxu0 %v2194
    %2439 = vmatpush.msra.mxu0 %v2191
    %2440 = vmatpush.msra.mxu0 %v2188
    %2441 = vmatpush.msra.mxu0 %v2185
    %2442 = vmatpush.msra.mxu0 %v2182
    %2443 = vmatpush.msra.mxu0 %v2179
    %2444 = vmatpush.msra.mxu0 %v2176
    %2445 = vmatpush.msra.mxu0 %v2173
    %2446 = vmatpush.msra.mxu0 %v2170
    %2447 = vmatmul.f32.gmra.mxu0 %v2085
    %v2448 = vpop.f32.mrf.mxu0
    %v2449 = vadd.f32 %v2423, %v2448
    %2450 = vmatmul.f32.gmra.mxu0 %v2088
    %v2451 = vpop.f32.mrf.mxu0
    %v2452 = vadd.f32 %v2426, %v2451
    %2453 = vmatmul.f32.gmra.mxu0 %v2091
    %v2454 = vpop.f32.mrf.mxu0
    %v2455 = vadd.f32 %v2429, %v2454
    %2456 = vdwg.mxu0
    %2457 = vmatpush.msra.mxu0 0.0
    %2458 = vmatpush.msra.mxu0 0.0
    %2459 = vmatpush.msra.mxu0 0.0
    %2460 = vmatpush.msra.mxu0 0.0
    %2461 = vmatpush.msra.mxu0 0.0
    %2462 = vmatpush.msra.mxu0 0.0
    %2463 = vmatpush.msra.mxu0 0.0
    %2464 = vmatpush.msra.mxu0 0.0
    %2465 = vmatpush.msra.mxu0 %v2239
    %2466 = vmatpush.msra.mxu0 %v2236
    %2467 = vmatpush.msra.mxu0 %v2233
    %2468 = vmatpush.msra.mxu0 %v2230
    %2469 = vmatpush.msra.mxu0 %v2227
    %2470 = vmatpush.msra.mxu0 %v2224
    %2471 = vmatpush.msra.mxu0 %v2221
    %2472 = vmatpush.msra.mxu0 %v2218
    %2473 = vmatmul.f32.gmra.mxu0 %v2241
    %v2474 = vpop.f32.mrf.mxu0
    %v2475 = vadd.f32 %v2449, %v2474
    %2476 = vmatmul.f32.gmra.mxu0 %v2244
    %v2477 = vpop.f32.mrf.mxu0
    %v2478 = vadd.f32 %v2452, %v2477
    %2479 = vmatmul.f32.gmra.mxu0 %v2247
    %v2480 = vpop.f32.mrf.mxu0
    %v2481 = vadd.f32 %v2455, %v2480
    %2482 = vdwg.mxu0
    %v2484 = vsel %vm1250, %v1900, 0
    %v2487 = vsel %vm1250, %v1903, 0
    %v2490 = vsel %vm1250, %v1906, 0
    %2492 = vmatpush.msra.mxu0 %v1953
    %2493 = vmatpush.msra.mxu0 %v1950
    %2494 = vmatpush.msra.mxu0 %v1947
    %2495 = vmatpush.msra.mxu0 %v1944
    %2496 = vmatpush.msra.mxu0 %v1941
    %2497 = vmatpush.msra.mxu0 %v1938
    %2498 = vmatpush.msra.mxu0 %v1935
    %2499 = vmatpush.msra.mxu0 %v1932
    %2500 = vmatpush.msra.mxu0 %v1929
    %2501 = vmatpush.msra.mxu0 %v1926
    %2502 = vmatpush.msra.mxu0 %v1923
    %2503 = vmatpush.msra.mxu0 %v1920
    %2504 = vmatpush.msra.mxu0 %v1917
    %2505 = vmatpush.msra.mxu0 %v1914
    %2506 = vmatpush.msra.mxu0 %v1911
    %2507 = vmatpush.msra.mxu0 %v1908
    %2508 = vmatmul.f32.gmra.mxu0 %v1848
    %v2509 = vpop.f32.mrf.mxu0
    %v2510 = vadd.f32 %v2319, %v2509
    %2511 = vmatmul.f32.gmra.mxu0 %v1851
    %v2512 = vpop.f32.mrf.mxu0
    %v2513 = vadd.f32 %v2322, %v2512
    %2514 = vmatmul.f32.gmra.mxu0 %v1854
    %v2515 = vpop.f32.mrf.mxu0
    %v2516 = vadd.f32 %v2325, %v2515
    %2517 = vdwg.mxu0
    %2518 = vmatpush.msra.mxu0 %v2001
    %2519 = vmatpush.msra.mxu0 %v1998
    %2520 = vmatpush.msra.mxu0 %v1995
    %2521 = vmatpush.msra.mxu0 %v1992
    %2522 = vmatpush.msra.mxu0 %v1989
    %2523 = vmatpush.msra.mxu0 %v1986
    %2524 = vmatpush.msra.mxu0 %v1983
    %2525 = vmatpush.msra.mxu0 %v1980
    %2526 = vmatpush.msra.mxu0 %v1977
    %2527 = vmatpush.msra.mxu0 %v1974
    %2528 = vmatpush.msra.mxu0 %v1971
    %2529 = vmatpush.msra.mxu0 %v1968
    %2530 = vmatpush.msra.mxu0 %v1965
    %2531 = vmatpush.msra.mxu0 %v1962
    %2532 = vmatpush.msra.mxu0 %v1959
    %2533 = vmatpush.msra.mxu0 %v1956
    %2534 = vmatmul.f32.gmra.mxu0 %v1874
    %v2535 = vpop.f32.mrf.mxu0
    %v2536 = vadd.f32 %v2510, %v2535
    %2537 = vmatmul.f32.gmra.mxu0 %v1877
    %v2538 = vpop.f32.mrf.mxu0
    %v2539 = vadd.f32 %v2513, %v2538
    %2540 = vmatmul.f32.gmra.mxu0 %v1880
    %v2541 = vpop.f32.mrf.mxu0
    %v2542 = vadd.f32 %v2516, %v2541
    %2543 = vdwg.mxu0
    %2544 = vmatpush.msra.mxu0 0.0
    %2545 = vmatpush.msra.mxu0 0.0
    %2546 = vmatpush.msra.mxu0 0.0
    %2547 = vmatpush.msra.mxu0 0.0
    %2548 = vmatpush.msra.mxu0 0.0
    %2549 = vmatpush.msra.mxu0 0.0
    %2550 = vmatpush.msra.mxu0 0.0
    %2551 = vmatpush.msra.mxu0 0.0
    %2552 = vmatpush.msra.mxu0 %v2025
    %2553 = vmatpush.msra.mxu0 %v2022
    %2554 = vmatpush.msra.mxu0 %v2019
    %2555 = vmatpush.msra.mxu0 %v2016
    %2556 = vmatpush.msra.mxu0 %v2013
    %2557 = vmatpush.msra.mxu0 %v2010
    %2558 = vmatpush.msra.mxu0 %v2007
    %2559 = vmatpush.msra.mxu0 %v2004
    %2560 = vmatmul.f32.gmra.mxu0 %v2484
    %v2561 = vpop.f32.mrf.mxu0
    %v2562 = vadd.f32 %v2536, %v2561
    %2563 = vmatmul.f32.gmra.mxu0 %v2487
    %v2564 = vpop.f32.mrf.mxu0
    %v2565 = vadd.f32 %v2539, %v2564
    %2566 = vmatmul.f32.gmra.mxu0 %v2490
    %v2567 = vpop.f32.mrf.mxu0
    %v2568 = vadd.f32 %v2542, %v2567
    %2569 = vdwg.mxu0
    %2570 = vmatpush.msra.mxu0 %v1954
    %2571 = vmatpush.msra.mxu0 %v1951
    %2572 = vmatpush.msra.mxu0 %v1948
    %2573 = vmatpush.msra.mxu0 %v1945
    %2574 = vmatpush.msra.mxu0 %v1942
    %2575 = vmatpush.msra.mxu0 %v1939
    %2576 = vmatpush.msra.mxu0 %v1936
    %2577 = vmatpush.msra.mxu0 %v1933
    %2578 = vmatpush.msra.mxu0 %v1930
    %2579 = vmatpush.msra.mxu0 %v1927
    %2580 = vmatpush.msra.mxu0 %v1924
    %2581 = vmatpush.msra.mxu0 %v1921
    %2582 = vmatpush.msra.mxu0 %v1918
    %2583 = vmatpush.msra.mxu0 %v1915
    %2584 = vmatpush.msra.mxu0 %v1912
    %2585 = vmatpush.msra.mxu0 %v1909
    %2586 = vmatmul.f32.gmra.mxu0 %v1848
    %v2587 = vpop.f32.mrf.mxu0
    %v2588 = vadd.f32 %v2397, %v2587
    %2589 = vmatmul.f32.gmra.mxu0 %v1851
    %v2590 = vpop.f32.mrf.mxu0
    %v2591 = vadd.f32 %v2400, %v2590
    %2592 = vmatmul.f32.gmra.mxu0 %v1854
    %v2593 = vpop.f32.mrf.mxu0
    %v2594 = vadd.f32 %v2403, %v2593
    %2595 = vdwg.mxu0
    %2596 = vmatpush.msra.mxu0 %v2002
    %2597 = vmatpush.msra.mxu0 %v1999
    %2598 = vmatpush.msra.mxu0 %v1996
    %2599 = vmatpush.msra.mxu0 %v1993
    %2600 = vmatpush.msra.mxu0 %v1990
    %2601 = vmatpush.msra.mxu0 %v1987
    %2602 = vmatpush.msra.mxu0 %v1984
    %2603 = vmatpush.msra.mxu0 %v1981
    %2604 = vmatpush.msra.mxu0 %v1978
    %2605 = vmatpush.msra.mxu0 %v1975
    %2606 = vmatpush.msra.mxu0 %v1972
    %2607 = vmatpush.msra.mxu0 %v1969
    %2608 = vmatpush.msra.mxu0 %v1966
    %2609 = vmatpush.msra.mxu0 %v1963
    %2610 = vmatpush.msra.mxu0 %v1960
    %2611 = vmatpush.msra.mxu0 %v1957
    %2612 = vmatmul.f32.gmra.mxu0 %v1874
    %v2613 = vpop.f32.mrf.mxu0
    %v2614 = vadd.f32 %v2588, %v2613
    %2615 = vmatmul.f32.gmra.mxu0 %v1877
    %v2616 = vpop.f32.mrf.mxu0
    %v2617 = vadd.f32 %v2591, %v2616
    %2618 = vmatmul.f32.gmra.mxu0 %v1880
    %v2619 = vpop.f32.mrf.mxu0
    %v2620 = vadd.f32 %v2594, %v2619
    %2621 = vdwg.mxu0
    %2622 = vmatpush.msra.mxu0 0.0
    %2623 = vmatpush.msra.mxu0 0.0
    %2624 = vmatpush.msra.mxu0 0.0
    %2625 = vmatpush.msra.mxu0 0.0
    %2626 = vmatpush.msra.mxu0 0.0
    %2627 = vmatpush.msra.mxu0 0.0
    %2628 = vmatpush.msra.mxu0 0.0
    %2629 = vmatpush.msra.mxu0 0.0
    %2630 = vmatpush.msra.mxu0 %v2026
    %2631 = vmatpush.msra.mxu0 %v2023
    %2632 = vmatpush.msra.mxu0 %v2020
    %2633 = vmatpush.msra.mxu0 %v2017
    %2634 = vmatpush.msra.mxu0 %v2014
    %2635 = vmatpush.msra.mxu0 %v2011
    %2636 = vmatpush.msra.mxu0 %v2008
    %2637 = vmatpush.msra.mxu0 %v2005
    %2638 = vmatmul.f32.gmra.mxu0 %v2484
    %v2639 = vpop.f32.mrf.mxu0
    %v2640 = vadd.f32 %v2614, %v2639
    %2641 = vmatmul.f32.gmra.mxu0 %v2487
    %v2642 = vpop.f32.mrf.mxu0
    %v2643 = vadd.f32 %v2617, %v2642
    %2644 = vmatmul.f32.gmra.mxu0 %v2490
    %v2645 = vpop.f32.mrf.mxu0
    %v2646 = vadd.f32 %v2620, %v2645
    %2647 = vdwg.mxu0
    %2648 = vmatpush.msra.mxu0 %v1955
    %2649 = vmatpush.msra.mxu0 %v1952
    %2650 = vmatpush.msra.mxu0 %v1949
    %2651 = vmatpush.msra.mxu0 %v1946
    %2652 = vmatpush.msra.mxu0 %v1943
    %2653 = vmatpush.msra.mxu0 %v1940
    %2654 = vmatpush.msra.mxu0 %v1937
    %2655 = vmatpush.msra.mxu0 %v1934
    %2656 = vmatpush.msra.mxu0 %v1931
    %2657 = vmatpush.msra.mxu0 %v1928
    %2658 = vmatpush.msra.mxu0 %v1925
    %2659 = vmatpush.msra.mxu0 %v1922
    %2660 = vmatpush.msra.mxu0 %v1919
    %2661 = vmatpush.msra.mxu0 %v1916
    %2662 = vmatpush.msra.mxu0 %v1913
    %2663 = vmatpush.msra.mxu0 %v1910
    %2664 = vmatmul.f32.gmra.mxu0 %v1848
    %v2665 = vpop.f32.mrf.mxu0
    %v2666 = vadd.f32 %v2475, %v2665
    %2667 = vmatmul.f32.gmra.mxu0 %v1851
    %v2668 = vpop.f32.mrf.mxu0
    %v2669 = vadd.f32 %v2478, %v2668
    %2670 = vmatmul.f32.gmra.mxu0 %v1854
    %v2671 = vpop.f32.mrf.mxu0
    %v2672 = vadd.f32 %v2481, %v2671
    %2673 = vdwg.mxu0
    %2674 = vmatpush.msra.mxu0 %v2003
    %2675 = vmatpush.msra.mxu0 %v2000
    %2676 = vmatpush.msra.mxu0 %v1997
    %2677 = vmatpush.msra.mxu0 %v1994
    %2678 = vmatpush.msra.mxu0 %v1991
    %2679 = vmatpush.msra.mxu0 %v1988
    %2680 = vmatpush.msra.mxu0 %v1985
    %2681 = vmatpush.msra.mxu0 %v1982
    %2682 = vmatpush.msra.mxu0 %v1979
    %2683 = vmatpush.msra.mxu0 %v1976
    %2684 = vmatpush.msra.mxu0 %v1973
    %2685 = vmatpush.msra.mxu0 %v1970
    %2686 = vmatpush.msra.mxu0 %v1967
    %2687 = vmatpush.msra.mxu0 %v1964
    %2688 = vmatpush.msra.mxu0 %v1961
    %2689 = vmatpush.msra.mxu0 %v1958
    %2690 = vmatmul.f32.gmra.mxu0 %v1874
    %v2691 = vpop.f32.mrf.mxu0
    %v2692 = vadd.f32 %v2666, %v2691
    %2693 = vmatmul.f32.gmra.mxu0 %v1877
    %v2694 = vpop.f32.mrf.mxu0
    %v2695 = vadd.f32 %v2669, %v2694
    %2696 = vmatmul.f32.gmra.mxu0 %v1880
    %v2697 = vpop.f32.mrf.mxu0
    %v2698 = vadd.f32 %v2672, %v2697
    %2699 = vdwg.mxu0
    %2700 = vmatpush.msra.mxu0 0.0
    %2701 = vmatpush.msra.mxu0 0.0
    %2702 = vmatpush.msra.mxu0 0.0
    %2703 = vmatpush.msra.mxu0 0.0
    %2704 = vmatpush.msra.mxu0 0.0
    %2705 = vmatpush.msra.mxu0 0.0
    %2706 = vmatpush.msra.mxu0 0.0
    %2707 = vmatpush.msra.mxu0 0.0
    %2708 = vmatpush.msra.mxu0 %v2027
    %2709 = vmatpush.msra.mxu0 %v2024
    %2710 = vmatpush.msra.mxu0 %v2021
    %2711 = vmatpush.msra.mxu0 %v2018
    %2712 = vmatpush.msra.mxu0 %v2015
    %2713 = vmatpush.msra.mxu0 %v2012
    %2714 = vmatpush.msra.mxu0 %v2009
    %2715 = vmatpush.msra.mxu0 %v2006
    %2716 = vmatmul.f32.gmra.mxu0 %v2484
    %v2717 = vpop.f32.mrf.mxu0
    %v2718 = vadd.f32 %v2692, %v2717
    %2719 = vmatmul.f32.gmra.mxu0 %v2487
    %v2720 = vpop.f32.mrf.mxu0
    %v2721 = vadd.f32 %v2695, %v2720
    %2722 = vmatmul.f32.gmra.mxu0 %v2490
    %v2723 = vpop.f32.mrf.mxu0
    %v2724 = vadd.f32 %v2698, %v2723
    %2725 = vdwg.mxu0
    %s2726 = scalar_lea.vmem [#allocation10], 48
    %v2727 = vld [vmem:[%s2726] sm:$0xff]
    %v2728 = vld [vmem:[%s2726 + $0x8] sm:$0xff]
    %v2729 = vld [vmem:[%s2726 + $0x10] sm:$0xff]
    %v2731 = vsel %vm1820, %v2727, 0
    %v2734 = vsel %vm1820, %v2728, 0
    %v2737 = vsel %vm1820, %v2729, 0
    %2739 = vmatpush.msra.mxu0 0.0
    %2740 = vmatpush.msra.mxu0 0.0
    %2741 = vmatpush.msra.mxu0 0.0
    %2742 = vmatpush.msra.mxu0 0.0
    %2743 = vmatpush.msra.mxu0 0.0
    %2744 = vmatpush.msra.mxu0 0.0
    %2745 = vmatpush.msra.mxu0 0.0
    %2746 = vmatpush.msra.mxu0 0.0
    %2747 = vmatpush.msra.mxu0 0.0
    %2748 = vmatpush.msra.mxu0 0.0
    %2749 = vmatpush.msra.mxu0 %v1814
    %2750 = vmatpush.msra.mxu0 %v1811
    %2751 = vmatpush.msra.mxu0 %v1808
    %2752 = vmatpush.msra.mxu0 %v1805
    %2753 = vmatpush.msra.mxu0 %v1802
    %2754 = vmatpush.msra.mxu0 %v1799
    %2755 = vmatmul.f32.gmra.mxu0 %v2731
    %v2756 = vpop.f32.mrf.mxu0
    %v2757 = vadd.f32 0.0, %v2756
    %2758 = vmatmul.f32.gmra.mxu0 %v2734
    %v2759 = vpop.f32.mrf.mxu0
    %v2760 = vadd.f32 0.0, %v2759
    %2761 = vmatmul.f32.gmra.mxu0 %v2737
    %v2762 = vpop.f32.mrf.mxu0
    %v2763 = vadd.f32 0.0, %v2762
    %2764 = vdwg.mxu0
    %2765 = vmatpush.msra.mxu0 0.0
    %2766 = vmatpush.msra.mxu0 0.0
    %2767 = vmatpush.msra.mxu0 0.0
    %2768 = vmatpush.msra.mxu0 0.0
    %2769 = vmatpush.msra.mxu0 0.0
    %2770 = vmatpush.msra.mxu0 0.0
    %2771 = vmatpush.msra.mxu0 0.0
    %2772 = vmatpush.msra.mxu0 0.0
    %2773 = vmatpush.msra.mxu0 0.0
    %2774 = vmatpush.msra.mxu0 0.0
    %2775 = vmatpush.msra.mxu0 %v1815
    %2776 = vmatpush.msra.mxu0 %v1812
    %2777 = vmatpush.msra.mxu0 %v1809
    %2778 = vmatpush.msra.mxu0 %v1806
    %2779 = vmatpush.msra.mxu0 %v1803
    %2780 = vmatpush.msra.mxu0 %v1800
    %2781 = vmatmul.f32.gmra.mxu0 %v2731
    %v2782 = vpop.f32.mrf.mxu0
    %v2783 = vadd.f32 0.0, %v2782
    %2784 = vmatmul.f32.gmra.mxu0 %v2734
    %v2785 = vpop.f32.mrf.mxu0
    %v2786 = vadd.f32 0.0, %v2785
    %2787 = vmatmul.f32.gmra.mxu0 %v2737
    %v2788 = vpop.f32.mrf.mxu0
    %v2789 = vadd.f32 0.0, %v2788
    %2790 = vdwg.mxu0
    %2791 = vmatpush.msra.mxu0 0.0
    %2792 = vmatpush.msra.mxu0 0.0
    %2793 = vmatpush.msra.mxu0 0.0
    %2794 = vmatpush.msra.mxu0 0.0
    %2795 = vmatpush.msra.mxu0 0.0
    %2796 = vmatpush.msra.mxu0 0.0
    %2797 = vmatpush.msra.mxu0 0.0
    %2798 = vmatpush.msra.mxu0 0.0
    %2799 = vmatpush.msra.mxu0 0.0
    %2800 = vmatpush.msra.mxu0 0.0
    %2801 = vmatpush.msra.mxu0 %v1816
    %2802 = vmatpush.msra.mxu0 %v1813
    %2803 = vmatpush.msra.mxu0 %v1810
    %2804 = vmatpush.msra.mxu0 %v1807
    %2805 = vmatpush.msra.mxu0 %v1804
    %2806 = vmatpush.msra.mxu0 %v1801
    %2807 = vmatmul.f32.gmra.mxu0 %v2731
    %v2808 = vpop.f32.mrf.mxu0
    %v2809 = vadd.f32 0.0, %v2808
    %2810 = vmatmul.f32.gmra.mxu0 %v2734
    %v2811 = vpop.f32.mrf.mxu0
    %v2812 = vadd.f32 0.0, %v2811
    %2813 = vmatmul.f32.gmra.mxu0 %v2737
    %v2814 = vpop.f32.mrf.mxu0
    %v2815 = vadd.f32 0.0, %v2814
    %2816 = vdwg.mxu0
    %s2817 = scalar_lea.vmem [#allocation12], 1920
    %v2818 = vld [vmem:[%s2817] sm:$0xff]
    %v2819 = vld [vmem:[%s2817 + $0x8] sm:$0xff]
    %v2820 = vld [vmem:[%s2817 + $0x10] sm:$0xff]
    %v2821 = vld [vmem:[%s2817 + $0x18] sm:$0xff]
    %v2822 = vld [vmem:[%s2817 + $0x20] sm:$0xff]
    %v2823 = vld [vmem:[%s2817 + $0x28] sm:$0xff]
    %v2824 = vld [vmem:[%s2817 + $0x30] sm:$0xff]
    %v2825 = vld [vmem:[%s2817 + $0x38] sm:$0xff]
    %v2826 = vld [vmem:[%s2817 + $0x40] sm:$0xff]
    %v2827 = vld [vmem:[%s2817 + $0x48] sm:$0xff]
    %v2828 = vld [vmem:[%s2817 + $0x50] sm:$0xff]
    %v2829 = vld [vmem:[%s2817 + $0x58] sm:$0xff]
    %v2830 = vld [vmem:[%s2817 + $0x60] sm:$0xff]
    %v2831 = vld [vmem:[%s2817 + $0x68] sm:$0xff]
    %v2832 = vld [vmem:[%s2817 + $0x70] sm:$0xff]
    %v2833 = vld [vmem:[%s2817 + $0x78] sm:$0xff]
    %v2834 = vld [vmem:[%s2817 + $0x80] sm:$0xff]
    %v2835 = vld [vmem:[%s2817 + $0x88] sm:$0xff]
    %v2836 = vld [vmem:[%s2817 + $0x90] sm:$0xff]
    %v2837 = vld [vmem:[%s2817 + $0x98] sm:$0xff]
    %v2838 = vld [vmem:[%s2817 + $0xa0] sm:$0xff]
    %v2839 = vld [vmem:[%s2817 + $0xa8] sm:$0xff]
    %v2840 = vld [vmem:[%s2817 + $0xb0] sm:$0xff]
    %v2841 = vld [vmem:[%s2817 + $0xb8] sm:$0xff]
    %v2842 = vld [vmem:[%s2817 + $0xc0] sm:$0xff]
    %v2843 = vld [vmem:[%s2817 + $0xc8] sm:$0xff]
    %v2844 = vld [vmem:[%s2817 + $0xd0] sm:$0xff]
    %v2845 = vld [vmem:[%s2817 + $0xd8] sm:$0xff]
    %v2846 = vld [vmem:[%s2817 + $0xe0] sm:$0xff]
    %v2847 = vld [vmem:[%s2817 + $0xe8] sm:$0xff]
    %v2848 = vld [vmem:[%s2817 + $0xf0] sm:$0xff]
    %v2849 = vld [vmem:[%s2817 + $0xf8] sm:$0xff]
    %v2850 = vld [vmem:[%s2817 + $0x100] sm:$0xff]
    %v2851 = vld [vmem:[%s2817 + $0x108] sm:$0xff]
    %v2852 = vld [vmem:[%s2817 + $0x110] sm:$0xff]
    %v2853 = vld [vmem:[%s2817 + $0x118] sm:$0xff]
    %v2854 = vld [vmem:[%s2817 + $0x120] sm:$0xff]
    %v2855 = vld [vmem:[%s2817 + $0x128] sm:$0xff]
    %v2856 = vld [vmem:[%s2817 + $0x130] sm:$0xff]
    %v2857 = vld [vmem:[%s2817 + $0x138] sm:$0xff]
    %v2858 = vld [vmem:[%s2817 + $0x140] sm:$0xff]
    %v2859 = vld [vmem:[%s2817 + $0x148] sm:$0xff]
    %v2860 = vld [vmem:[%s2817 + $0x150] sm:$0xff]
    %v2861 = vld [vmem:[%s2817 + $0x158] sm:$0xff]
    %v2862 = vld [vmem:[%s2817 + $0x160] sm:$0xff]
    %v2863 = vld [vmem:[%s2817 + $0x168] sm:$0xff]
    %v2864 = vld [vmem:[%s2817 + $0x170] sm:$0xff]
    %v2865 = vld [vmem:[%s2817 + $0x178] sm:$0xff]
    %v2866 = vld [vmem:[%s2817 + $0x180] sm:$0xff]
    %v2867 = vld [vmem:[%s2817 + $0x188] sm:$0xff]
    %v2868 = vld [vmem:[%s2817 + $0x190] sm:$0xff]
    %v2869 = vld [vmem:[%s2817 + $0x198] sm:$0xff]
    %v2870 = vld [vmem:[%s2817 + $0x1a0] sm:$0xff]
    %v2871 = vld [vmem:[%s2817 + $0x1a8] sm:$0xff]
    %v2872 = vld [vmem:[%s2817 + $0x1b0] sm:$0xff]
    %v2873 = vld [vmem:[%s2817 + $0x1b8] sm:$0xff]
    %v2874 = vld [vmem:[%s2817 + $0x1c0] sm:$0xff]
    %v2875 = vld [vmem:[%s2817 + $0x1c8] sm:$0xff]
    %v2876 = vld [vmem:[%s2817 + $0x1d0] sm:$0xff]
    %v2877 = vld [vmem:[%s2817 + $0x1d8] sm:$0xff]
    %v2878 = vld [vmem:[%s2817 + $0x1e0] sm:$0xff]
    %v2879 = vld [vmem:[%s2817 + $0x1e8] sm:$0xff]
    %v2880 = vld [vmem:[%s2817 + $0x1f0] sm:$0xff]
    %v2881 = vld [vmem:[%s2817 + $0x1f8] sm:$0xff]
    %v2882 = vld [vmem:[%s2817 + $0x200] sm:$0xff]
    %v2883 = vld [vmem:[%s2817 + $0x208] sm:$0xff]
    %v2884 = vld [vmem:[%s2817 + $0x210] sm:$0xff]
    %v2885 = vld [vmem:[%s2817 + $0x218] sm:$0xff]
    %v2886 = vld [vmem:[%s2817 + $0x220] sm:$0xff]
    %v2887 = vld [vmem:[%s2817 + $0x228] sm:$0xff]
    %v2888 = vld [vmem:[%s2817 + $0x230] sm:$0xff]
    %v2889 = vld [vmem:[%s2817 + $0x238] sm:$0xff]
    %v2890 = vld [vmem:[%s2817 + $0x240] sm:$0xff]
    %v2891 = vld [vmem:[%s2817 + $0x248] sm:$0xff]
    %v2892 = vld [vmem:[%s2817 + $0x250] sm:$0xff]
    %v2893 = vld [vmem:[%s2817 + $0x258] sm:$0xff]
    %v2894 = vld [vmem:[%s2817 + $0x260] sm:$0xff]
    %v2895 = vld [vmem:[%s2817 + $0x268] sm:$0xff]
    %v2896 = vld [vmem:[%s2817 + $0x270] sm:$0xff]
    %v2897 = vld [vmem:[%s2817 + $0x278] sm:$0xff]
    %v2898 = vld [vmem:[%s2817 + $0x280] sm:$0xff]
    %v2899 = vld [vmem:[%s2817 + $0x288] sm:$0xff]
    %v2900 = vld [vmem:[%s2817 + $0x290] sm:$0xff]
    %v2901 = vld [vmem:[%s2817 + $0x298] sm:$0xff]
    %v2902 = vld [vmem:[%s2817 + $0x2a0] sm:$0xff]
    %v2903 = vld [vmem:[%s2817 + $0x2a8] sm:$0xff]
    %v2904 = vld [vmem:[%s2817 + $0x2b0] sm:$0xff]
    %v2905 = vld [vmem:[%s2817 + $0x2b8] sm:$0xff]
    %v2906 = vld [vmem:[%s2817 + $0x2c0] sm:$0xff]
    %v2907 = vld [vmem:[%s2817 + $0x2c8] sm:$0xff]
    %v2908 = vld [vmem:[%s2817 + $0x2d0] sm:$0xff]
    %v2909 = vld [vmem:[%s2817 + $0x2d8] sm:$0xff]
    %v2910 = vld [vmem:[%s2817 + $0x2e0] sm:$0xff]
    %v2911 = vld [vmem:[%s2817 + $0x2e8] sm:$0xff]
    %v2912 = vld [vmem:[%s2817 + $0x2f0] sm:$0xff]
    %v2913 = vld [vmem:[%s2817 + $0x2f8] sm:$0xff]
    %v2914 = vld [vmem:[%s2817 + $0x300] sm:$0xff]
    %v2915 = vld [vmem:[%s2817 + $0x308] sm:$0xff]
    %v2916 = vld [vmem:[%s2817 + $0x310] sm:$0xff]
    %v2917 = vld [vmem:[%s2817 + $0x318] sm:$0xff]
    %v2918 = vld [vmem:[%s2817 + $0x320] sm:$0xff]
    %v2919 = vld [vmem:[%s2817 + $0x328] sm:$0xff]
    %v2920 = vld [vmem:[%s2817 + $0x330] sm:$0xff]
    %v2921 = vld [vmem:[%s2817 + $0x338] sm:$0xff]
    %v2922 = vld [vmem:[%s2817 + $0x340] sm:$0xff]
    %v2923 = vld [vmem:[%s2817 + $0x348] sm:$0xff]
    %v2924 = vld [vmem:[%s2817 + $0x350] sm:$0xff]
    %v2925 = vld [vmem:[%s2817 + $0x358] sm:$0xff]
    %v2926 = vld [vmem:[%s2817 + $0x360] sm:$0xff]
    %v2927 = vld [vmem:[%s2817 + $0x368] sm:$0xff]
    %v2928 = vld [vmem:[%s2817 + $0x370] sm:$0xff]
    %v2929 = vld [vmem:[%s2817 + $0x378] sm:$0xff]
    %v2930 = vld [vmem:[%s2817 + $0x380] sm:$0xff]
    %v2931 = vld [vmem:[%s2817 + $0x388] sm:$0xff]
    %v2932 = vld [vmem:[%s2817 + $0x390] sm:$0xff]
    %v2933 = vld [vmem:[%s2817 + $0x398] sm:$0xff]
    %v2934 = vld [vmem:[%s2817 + $0x3a0] sm:$0xff]
    %v2935 = vld [vmem:[%s2817 + $0x3a8] sm:$0xff]
    %v2936 = vld [vmem:[%s2817 + $0x3b0] sm:$0xff]
    %v2937 = vld [vmem:[%s2817 + $0x3b8] sm:$0xff]
    %v2939 = vsel %vm1250, %v2809, 0
    %v2942 = vsel %vm1250, %v2812, 0
    %v2945 = vsel %vm1250, %v2815, 0
    %2947 = vmatpush.msra.mxu0 %v2863
    %2948 = vmatpush.msra.mxu0 %v2860
    %2949 = vmatpush.msra.mxu0 %v2857
    %2950 = vmatpush.msra.mxu0 %v2854
    %2951 = vmatpush.msra.mxu0 %v2851
    %2952 = vmatpush.msra.mxu0 %v2848
    %2953 = vmatpush.msra.mxu0 %v2845
    %2954 = vmatpush.msra.mxu0 %v2842
    %2955 = vmatpush.msra.mxu0 %v2839
    %2956 = vmatpush.msra.mxu0 %v2836
    %2957 = vmatpush.msra.mxu0 %v2833
    %2958 = vmatpush.msra.mxu0 %v2830
    %2959 = vmatpush.msra.mxu0 %v2827
    %2960 = vmatpush.msra.mxu0 %v2824
    %2961 = vmatpush.msra.mxu0 %v2821
    %2962 = vmatpush.msra.mxu0 %v2818
    %2963 = vmatmul.f32.gmra.mxu0 %v2757
    %v2964 = vpop.f32.mrf.mxu0
    %v2965 = vadd.f32 0.0, %v2964
    %2966 = vmatmul.f32.gmra.mxu0 %v2760
    %v2967 = vpop.f32.mrf.mxu0
    %v2968 = vadd.f32 0.0, %v2967
    %2969 = vmatmul.f32.gmra.mxu0 %v2763
    %v2970 = vpop.f32.mrf.mxu0
    %v2971 = vadd.f32 0.0, %v2970
    %2972 = vdwg.mxu0
    %2973 = vmatpush.msra.mxu0 %v2911
    %2974 = vmatpush.msra.mxu0 %v2908
    %2975 = vmatpush.msra.mxu0 %v2905
    %2976 = vmatpush.msra.mxu0 %v2902
    %2977 = vmatpush.msra.mxu0 %v2899
    %2978 = vmatpush.msra.mxu0 %v2896
    %2979 = vmatpush.msra.mxu0 %v2893
    %2980 = vmatpush.msra.mxu0 %v2890
    %2981 = vmatpush.msra.mxu0 %v2887
    %2982 = vmatpush.msra.mxu0 %v2884
    %2983 = vmatpush.msra.mxu0 %v2881
    %2984 = vmatpush.msra.mxu0 %v2878
    %2985 = vmatpush.msra.mxu0 %v2875
    %2986 = vmatpush.msra.mxu0 %v2872
    %2987 = vmatpush.msra.mxu0 %v2869
    %2988 = vmatpush.msra.mxu0 %v2866
    %2989 = vmatmul.f32.gmra.mxu0 %v2783
    %v2990 = vpop.f32.mrf.mxu0
    %v2991 = vadd.f32 %v2965, %v2990
    %2992 = vmatmul.f32.gmra.mxu0 %v2786
    %v2993 = vpop.f32.mrf.mxu0
    %v2994 = vadd.f32 %v2968, %v2993
    %2995 = vmatmul.f32.gmra.mxu0 %v2789
    %v2996 = vpop.f32.mrf.mxu0
    %v2997 = vadd.f32 %v2971, %v2996
    %2998 = vdwg.mxu0
    %2999 = vmatpush.msra.mxu0 0.0
    %3000 = vmatpush.msra.mxu0 0.0
    %3001 = vmatpush.msra.mxu0 0.0
    %3002 = vmatpush.msra.mxu0 0.0
    %3003 = vmatpush.msra.mxu0 0.0
    %3004 = vmatpush.msra.mxu0 0.0
    %3005 = vmatpush.msra.mxu0 0.0
    %3006 = vmatpush.msra.mxu0 0.0
    %3007 = vmatpush.msra.mxu0 %v2935
    %3008 = vmatpush.msra.mxu0 %v2932
    %3009 = vmatpush.msra.mxu0 %v2929
    %3010 = vmatpush.msra.mxu0 %v2926
    %3011 = vmatpush.msra.mxu0 %v2923
    %3012 = vmatpush.msra.mxu0 %v2920
    %3013 = vmatpush.msra.mxu0 %v2917
    %3014 = vmatpush.msra.mxu0 %v2914
    %3015 = vmatmul.f32.gmra.mxu0 %v2939
    %v3016 = vpop.f32.mrf.mxu0
    %v3017 = vadd.f32 %v2991, %v3016
    %3018 = vmatmul.f32.gmra.mxu0 %v2942
    %v3019 = vpop.f32.mrf.mxu0
    %v3020 = vadd.f32 %v2994, %v3019
    %3021 = vmatmul.f32.gmra.mxu0 %v2945
    %v3022 = vpop.f32.mrf.mxu0
    %v3023 = vadd.f32 %v2997, %v3022
    %3024 = vdwg.mxu0
    %3025 = vmatpush.msra.mxu0 %v2864
    %3026 = vmatpush.msra.mxu0 %v2861
    %3027 = vmatpush.msra.mxu0 %v2858
    %3028 = vmatpush.msra.mxu0 %v2855
    %3029 = vmatpush.msra.mxu0 %v2852
    %3030 = vmatpush.msra.mxu0 %v2849
    %3031 = vmatpush.msra.mxu0 %v2846
    %3032 = vmatpush.msra.mxu0 %v2843
    %3033 = vmatpush.msra.mxu0 %v2840
    %3034 = vmatpush.msra.mxu0 %v2837
    %3035 = vmatpush.msra.mxu0 %v2834
    %3036 = vmatpush.msra.mxu0 %v2831
    %3037 = vmatpush.msra.mxu0 %v2828
    %3038 = vmatpush.msra.mxu0 %v2825
    %3039 = vmatpush.msra.mxu0 %v2822
    %3040 = vmatpush.msra.mxu0 %v2819
    %3041 = vmatmul.f32.gmra.mxu0 %v2757
    %v3042 = vpop.f32.mrf.mxu0
    %v3043 = vadd.f32 0.0, %v3042
    %3044 = vmatmul.f32.gmra.mxu0 %v2760
    %v3045 = vpop.f32.mrf.mxu0
    %v3046 = vadd.f32 0.0, %v3045
    %3047 = vmatmul.f32.gmra.mxu0 %v2763
    %v3048 = vpop.f32.mrf.mxu0
    %v3049 = vadd.f32 0.0, %v3048
    %3050 = vdwg.mxu0
    %3051 = vmatpush.msra.mxu0 %v2912
    %3052 = vmatpush.msra.mxu0 %v2909
    %3053 = vmatpush.msra.mxu0 %v2906
    %3054 = vmatpush.msra.mxu0 %v2903
    %3055 = vmatpush.msra.mxu0 %v2900
    %3056 = vmatpush.msra.mxu0 %v2897
    %3057 = vmatpush.msra.mxu0 %v2894
    %3058 = vmatpush.msra.mxu0 %v2891
    %3059 = vmatpush.msra.mxu0 %v2888
    %3060 = vmatpush.msra.mxu0 %v2885
    %3061 = vmatpush.msra.mxu0 %v2882
    %3062 = vmatpush.msra.mxu0 %v2879
    %3063 = vmatpush.msra.mxu0 %v2876
    %3064 = vmatpush.msra.mxu0 %v2873
    %3065 = vmatpush.msra.mxu0 %v2870
    %3066 = vmatpush.msra.mxu0 %v2867
    %3067 = vmatmul.f32.gmra.mxu0 %v2783
    %v3068 = vpop.f32.mrf.mxu0
    %v3069 = vadd.f32 %v3043, %v3068
    %3070 = vmatmul.f32.gmra.mxu0 %v2786
    %v3071 = vpop.f32.mrf.mxu0
    %v3072 = vadd.f32 %v3046, %v3071
    %3073 = vmatmul.f32.gmra.mxu0 %v2789
    %v3074 = vpop.f32.mrf.mxu0
    %v3075 = vadd.f32 %v3049, %v3074
    %3076 = vdwg.mxu0
    %3077 = vmatpush.msra.mxu0 0.0
    %3078 = vmatpush.msra.mxu0 0.0
    %3079 = vmatpush.msra.mxu0 0.0
    %3080 = vmatpush.msra.mxu0 0.0
    %3081 = vmatpush.msra.mxu0 0.0
    %3082 = vmatpush.msra.mxu0 0.0
    %3083 = vmatpush.msra.mxu0 0.0
    %3084 = vmatpush.msra.mxu0 0.0
    %3085 = vmatpush.msra.mxu0 %v2936
    %3086 = vmatpush.msra.mxu0 %v2933
    %3087 = vmatpush.msra.mxu0 %v2930
    %3088 = vmatpush.msra.mxu0 %v2927
    %3089 = vmatpush.msra.mxu0 %v2924
    %3090 = vmatpush.msra.mxu0 %v2921
    %3091 = vmatpush.msra.mxu0 %v2918
    %3092 = vmatpush.msra.mxu0 %v2915
    %3093 = vmatmul.f32.gmra.mxu0 %v2939
    %v3094 = vpop.f32.mrf.mxu0
    %v3095 = vadd.f32 %v3069, %v3094
    %3096 = vmatmul.f32.gmra.mxu0 %v2942
    %v3097 = vpop.f32.mrf.mxu0
    %v3098 = vadd.f32 %v3072, %v3097
    %3099 = vmatmul.f32.gmra.mxu0 %v2945
    %v3100 = vpop.f32.mrf.mxu0
    %v3101 = vadd.f32 %v3075, %v3100
    %3102 = vdwg.mxu0
    %3103 = vmatpush.msra.mxu0 %v2865
    %3104 = vmatpush.msra.mxu0 %v2862
    %3105 = vmatpush.msra.mxu0 %v2859
    %3106 = vmatpush.msra.mxu0 %v2856
    %3107 = vmatpush.msra.mxu0 %v2853
    %3108 = vmatpush.msra.mxu0 %v2850
    %3109 = vmatpush.msra.mxu0 %v2847
    %3110 = vmatpush.msra.mxu0 %v2844
    %3111 = vmatpush.msra.mxu0 %v2841
    %3112 = vmatpush.msra.mxu0 %v2838
    %3113 = vmatpush.msra.mxu0 %v2835
    %3114 = vmatpush.msra.mxu0 %v2832
    %3115 = vmatpush.msra.mxu0 %v2829
    %3116 = vmatpush.msra.mxu0 %v2826
    %3117 = vmatpush.msra.mxu0 %v2823
    %3118 = vmatpush.msra.mxu0 %v2820
    %3119 = vmatmul.f32.gmra.mxu0 %v2757
    %v3120 = vpop.f32.mrf.mxu0
    %v3121 = vadd.f32 0.0, %v3120
    %3122 = vmatmul.f32.gmra.mxu0 %v2760
    %v3123 = vpop.f32.mrf.mxu0
    %v3124 = vadd.f32 0.0, %v3123
    %3125 = vmatmul.f32.gmra.mxu0 %v2763
    %v3126 = vpop.f32.mrf.mxu0
    %v3127 = vadd.f32 0.0, %v3126
    %3128 = vdwg.mxu0
    %3129 = vmatpush.msra.mxu0 %v2913
    %3130 = vmatpush.msra.mxu0 %v2910
    %3131 = vmatpush.msra.mxu0 %v2907
    %3132 = vmatpush.msra.mxu0 %v2904
    %3133 = vmatpush.msra.mxu0 %v2901
    %3134 = vmatpush.msra.mxu0 %v2898
    %3135 = vmatpush.msra.mxu0 %v2895
    %3136 = vmatpush.msra.mxu0 %v2892
    %3137 = vmatpush.msra.mxu0 %v2889
    %3138 = vmatpush.msra.mxu0 %v2886
    %3139 = vmatpush.msra.mxu0 %v2883
    %3140 = vmatpush.msra.mxu0 %v2880
    %3141 = vmatpush.msra.mxu0 %v2877
    %3142 = vmatpush.msra.mxu0 %v2874
    %3143 = vmatpush.msra.mxu0 %v2871
    %3144 = vmatpush.msra.mxu0 %v2868
    %3145 = vmatmul.f32.gmra.mxu0 %v2783
    %v3146 = vpop.f32.mrf.mxu0
    %v3147 = vadd.f32 %v3121, %v3146
    %3148 = vmatmul.f32.gmra.mxu0 %v2786
    %v3149 = vpop.f32.mrf.mxu0
    %v3150 = vadd.f32 %v3124, %v3149
    %3151 = vmatmul.f32.gmra.mxu0 %v2789
    %v3152 = vpop.f32.mrf.mxu0
    %v3153 = vadd.f32 %v3127, %v3152
    %3154 = vdwg.mxu0
    %3155 = vmatpush.msra.mxu0 0.0
    %3156 = vmatpush.msra.mxu0 0.0
    %3157 = vmatpush.msra.mxu0 0.0
    %3158 = vmatpush.msra.mxu0 0.0
    %3159 = vmatpush.msra.mxu0 0.0
    %3160 = vmatpush.msra.mxu0 0.0
    %3161 = vmatpush.msra.mxu0 0.0
    %3162 = vmatpush.msra.mxu0 0.0
    %3163 = vmatpush.msra.mxu0 %v2937
    %3164 = vmatpush.msra.mxu0 %v2934
    %3165 = vmatpush.msra.mxu0 %v2931
    %3166 = vmatpush.msra.mxu0 %v2928
    %3167 = vmatpush.msra.mxu0 %v2925
    %3168 = vmatpush.msra.mxu0 %v2922
    %3169 = vmatpush.msra.mxu0 %v2919
    %3170 = vmatpush.msra.mxu0 %v2916
    %3171 = vmatmul.f32.gmra.mxu0 %v2939
    %v3172 = vpop.f32.mrf.mxu0
    %v3173 = vadd.f32 %v3147, %v3172
    %3174 = vmatmul.f32.gmra.mxu0 %v2942
    %v3175 = vpop.f32.mrf.mxu0
    %v3176 = vadd.f32 %v3150, %v3175
    %3177 = vmatmul.f32.gmra.mxu0 %v2945
    %v3178 = vpop.f32.mrf.mxu0
    %v3179 = vadd.f32 %v3153, %v3178
    %3180 = vdwg.mxu0
    %v3181 = vadd.f32 %v2562, %v3017
    %v3182 = vadd.f32 %v2640, %v3095
    %v3183 = vadd.f32 %v2718, %v3173
    %v3184 = vadd.f32 %v2565, %v3020
    %v3185 = vadd.f32 %v2643, %v3098
    %v3186 = vadd.f32 %v2721, %v3176
    %v3187 = vadd.f32 %v2568, %v3023
    %v3188 = vadd.f32 %v2646, %v3101
    %v3189 = vadd.f32 %v2724, %v3179
    %s3190 = scalar_lea.vmem [#allocation10], 72
    %v3191 = vld [vmem:[%s3190] sm:$0xff]
    %v3192 = vld [vmem:[%s3190 + $0x8] sm:$0xff]
    %v3193 = vld [vmem:[%s3190 + $0x10] sm:$0xff]
    %v3195 = vsel %vm1820, %v3191, 0
    %v3198 = vsel %vm1820, %v3192, 0
    %v3201 = vsel %vm1820, %v3193, 0
    %3203 = vmatpush.msra.mxu0 0.0
    %3204 = vmatpush.msra.mxu0 0.0
    %3205 = vmatpush.msra.mxu0 0.0
    %3206 = vmatpush.msra.mxu0 0.0
    %3207 = vmatpush.msra.mxu0 0.0
    %3208 = vmatpush.msra.mxu0 0.0
    %3209 = vmatpush.msra.mxu0 0.0
    %3210 = vmatpush.msra.mxu0 0.0
    %3211 = vmatpush.msra.mxu0 0.0
    %3212 = vmatpush.msra.mxu0 0.0
    %3213 = vmatpush.msra.mxu0 %v1814
    %3214 = vmatpush.msra.mxu0 %v1811
    %3215 = vmatpush.msra.mxu0 %v1808
    %3216 = vmatpush.msra.mxu0 %v1805
    %3217 = vmatpush.msra.mxu0 %v1802
    %3218 = vmatpush.msra.mxu0 %v1799
    %3219 = vmatmul.f32.gmra.mxu0 %v3195
    %v3220 = vpop.f32.mrf.mxu0
    %v3221 = vadd.f32 0.0, %v3220
    %3222 = vmatmul.f32.gmra.mxu0 %v3198
    %v3223 = vpop.f32.mrf.mxu0
    %v3224 = vadd.f32 0.0, %v3223
    %3225 = vmatmul.f32.gmra.mxu0 %v3201
    %v3226 = vpop.f32.mrf.mxu0
    %v3227 = vadd.f32 0.0, %v3226
    %3228 = vdwg.mxu0
    %3229 = vmatpush.msra.mxu0 0.0
    %3230 = vmatpush.msra.mxu0 0.0
    %3231 = vmatpush.msra.mxu0 0.0
    %3232 = vmatpush.msra.mxu0 0.0
    %3233 = vmatpush.msra.mxu0 0.0
    %3234 = vmatpush.msra.mxu0 0.0
    %3235 = vmatpush.msra.mxu0 0.0
    %3236 = vmatpush.msra.mxu0 0.0
    %3237 = vmatpush.msra.mxu0 0.0
    %3238 = vmatpush.msra.mxu0 0.0
    %3239 = vmatpush.msra.mxu0 %v1815
    %3240 = vmatpush.msra.mxu0 %v1812
    %3241 = vmatpush.msra.mxu0 %v1809
    %3242 = vmatpush.msra.mxu0 %v1806
    %3243 = vmatpush.msra.mxu0 %v1803
    %3244 = vmatpush.msra.mxu0 %v1800
    %3245 = vmatmul.f32.gmra.mxu0 %v3195
    %v3246 = vpop.f32.mrf.mxu0
    %v3247 = vadd.f32 0.0, %v3246
    %3248 = vmatmul.f32.gmra.mxu0 %v3198
    %v3249 = vpop.f32.mrf.mxu0
    %v3250 = vadd.f32 0.0, %v3249
    %3251 = vmatmul.f32.gmra.mxu0 %v3201
    %v3252 = vpop.f32.mrf.mxu0
    %v3253 = vadd.f32 0.0, %v3252
    %3254 = vdwg.mxu0
    %3255 = vmatpush.msra.mxu0 0.0
    %3256 = vmatpush.msra.mxu0 0.0
    %3257 = vmatpush.msra.mxu0 0.0
    %3258 = vmatpush.msra.mxu0 0.0
    %3259 = vmatpush.msra.mxu0 0.0
    %3260 = vmatpush.msra.mxu0 0.0
    %3261 = vmatpush.msra.mxu0 0.0
    %3262 = vmatpush.msra.mxu0 0.0
    %3263 = vmatpush.msra.mxu0 0.0
    %3264 = vmatpush.msra.mxu0 0.0
    %3265 = vmatpush.msra.mxu0 %v1816
    %3266 = vmatpush.msra.mxu0 %v1813
    %3267 = vmatpush.msra.mxu0 %v1810
    %3268 = vmatpush.msra.mxu0 %v1807
    %3269 = vmatpush.msra.mxu0 %v1804
    %3270 = vmatpush.msra.mxu0 %v1801
    %3271 = vmatmul.f32.gmra.mxu0 %v3195
    %v3272 = vpop.f32.mrf.mxu0
    %v3273 = vadd.f32 0.0, %v3272
    %3274 = vmatmul.f32.gmra.mxu0 %v3198
    %v3275 = vpop.f32.mrf.mxu0
    %v3276 = vadd.f32 0.0, %v3275
    %3277 = vmatmul.f32.gmra.mxu0 %v3201
    %v3278 = vpop.f32.mrf.mxu0
    %v3279 = vadd.f32 0.0, %v3278
    %3280 = vdwg.mxu0
    %s3281 = scalar_lea.vmem [#allocation12], 2880
    %v3282 = vld [vmem:[%s3281] sm:$0xff]
    %v3283 = vld [vmem:[%s3281 + $0x8] sm:$0xff]
    %v3284 = vld [vmem:[%s3281 + $0x10] sm:$0xff]
    %v3285 = vld [vmem:[%s3281 + $0x18] sm:$0xff]
    %v3286 = vld [vmem:[%s3281 + $0x20] sm:$0xff]
    %v3287 = vld [vmem:[%s3281 + $0x28] sm:$0xff]
    %v3288 = vld [vmem:[%s3281 + $0x30] sm:$0xff]
    %v3289 = vld [vmem:[%s3281 + $0x38] sm:$0xff]
    %v3290 = vld [vmem:[%s3281 + $0x40] sm:$0xff]
    %v3291 = vld [vmem:[%s3281 + $0x48] sm:$0xff]
    %v3292 = vld [vmem:[%s3281 + $0x50] sm:$0xff]
    %v3293 = vld [vmem:[%s3281 + $0x58] sm:$0xff]
    %v3294 = vld [vmem:[%s3281 + $0x60] sm:$0xff]
    %v3295 = vld [vmem:[%s3281 + $0x68] sm:$0xff]
    %v3296 = vld [vmem:[%s3281 + $0x70] sm:$0xff]
    %v3297 = vld [vmem:[%s3281 + $0x78] sm:$0xff]
    %v3298 = vld [vmem:[%s3281 + $0x80] sm:$0xff]
    %v3299 = vld [vmem:[%s3281 + $0x88] sm:$0xff]
    %v3300 = vld [vmem:[%s3281 + $0x90] sm:$0xff]
    %v3301 = vld [vmem:[%s3281 + $0x98] sm:$0xff]
    %v3302 = vld [vmem:[%s3281 + $0xa0] sm:$0xff]
    %v3303 = vld [vmem:[%s3281 + $0xa8] sm:$0xff]
    %v3304 = vld [vmem:[%s3281 + $0xb0] sm:$0xff]
    %v3305 = vld [vmem:[%s3281 + $0xb8] sm:$0xff]
    %v3306 = vld [vmem:[%s3281 + $0xc0] sm:$0xff]
    %v3307 = vld [vmem:[%s3281 + $0xc8] sm:$0xff]
    %v3308 = vld [vmem:[%s3281 + $0xd0] sm:$0xff]
    %v3309 = vld [vmem:[%s3281 + $0xd8] sm:$0xff]
    %v3310 = vld [vmem:[%s3281 + $0xe0] sm:$0xff]
    %v3311 = vld [vmem:[%s3281 + $0xe8] sm:$0xff]
    %v3312 = vld [vmem:[%s3281 + $0xf0] sm:$0xff]
    %v3313 = vld [vmem:[%s3281 + $0xf8] sm:$0xff]
    %v3314 = vld [vmem:[%s3281 + $0x100] sm:$0xff]
    %v3315 = vld [vmem:[%s3281 + $0x108] sm:$0xff]
    %v3316 = vld [vmem:[%s3281 + $0x110] sm:$0xff]
    %v3317 = vld [vmem:[%s3281 + $0x118] sm:$0xff]
    %v3318 = vld [vmem:[%s3281 + $0x120] sm:$0xff]
    %v3319 = vld [vmem:[%s3281 + $0x128] sm:$0xff]
    %v3320 = vld [vmem:[%s3281 + $0x130] sm:$0xff]
    %v3321 = vld [vmem:[%s3281 + $0x138] sm:$0xff]
    %v3322 = vld [vmem:[%s3281 + $0x140] sm:$0xff]
    %v3323 = vld [vmem:[%s3281 + $0x148] sm:$0xff]
    %v3324 = vld [vmem:[%s3281 + $0x150] sm:$0xff]
    %v3325 = vld [vmem:[%s3281 + $0x158] sm:$0xff]
    %v3326 = vld [vmem:[%s3281 + $0x160] sm:$0xff]
    %v3327 = vld [vmem:[%s3281 + $0x168] sm:$0xff]
    %v3328 = vld [vmem:[%s3281 + $0x170] sm:$0xff]
    %v3329 = vld [vmem:[%s3281 + $0x178] sm:$0xff]
    %v3330 = vld [vmem:[%s3281 + $0x180] sm:$0xff]
    %v3331 = vld [vmem:[%s3281 + $0x188] sm:$0xff]
    %v3332 = vld [vmem:[%s3281 + $0x190] sm:$0xff]
    %v3333 = vld [vmem:[%s3281 + $0x198] sm:$0xff]
    %v3334 = vld [vmem:[%s3281 + $0x1a0] sm:$0xff]
    %v3335 = vld [vmem:[%s3281 + $0x1a8] sm:$0xff]
    %v3336 = vld [vmem:[%s3281 + $0x1b0] sm:$0xff]
    %v3337 = vld [vmem:[%s3281 + $0x1b8] sm:$0xff]
    %v3338 = vld [vmem:[%s3281 + $0x1c0] sm:$0xff]
    %v3339 = vld [vmem:[%s3281 + $0x1c8] sm:$0xff]
    %v3340 = vld [vmem:[%s3281 + $0x1d0] sm:$0xff]
    %v3341 = vld [vmem:[%s3281 + $0x1d8] sm:$0xff]
    %v3342 = vld [vmem:[%s3281 + $0x1e0] sm:$0xff]
    %v3343 = vld [vmem:[%s3281 + $0x1e8] sm:$0xff]
    %v3344 = vld [vmem:[%s3281 + $0x1f0] sm:$0xff]
    %v3345 = vld [vmem:[%s3281 + $0x1f8] sm:$0xff]
    %v3346 = vld [vmem:[%s3281 + $0x200] sm:$0xff]
    %v3347 = vld [vmem:[%s3281 + $0x208] sm:$0xff]
    %v3348 = vld [vmem:[%s3281 + $0x210] sm:$0xff]
    %v3349 = vld [vmem:[%s3281 + $0x218] sm:$0xff]
    %v3350 = vld [vmem:[%s3281 + $0x220] sm:$0xff]
    %v3351 = vld [vmem:[%s3281 + $0x228] sm:$0xff]
    %v3352 = vld [vmem:[%s3281 + $0x230] sm:$0xff]
    %v3353 = vld [vmem:[%s3281 + $0x238] sm:$0xff]
    %v3354 = vld [vmem:[%s3281 + $0x240] sm:$0xff]
    %v3355 = vld [vmem:[%s3281 + $0x248] sm:$0xff]
    %v3356 = vld [vmem:[%s3281 + $0x250] sm:$0xff]
    %v3357 = vld [vmem:[%s3281 + $0x258] sm:$0xff]
    %v3358 = vld [vmem:[%s3281 + $0x260] sm:$0xff]
    %v3359 = vld [vmem:[%s3281 + $0x268] sm:$0xff]
    %v3360 = vld [vmem:[%s3281 + $0x270] sm:$0xff]
    %v3361 = vld [vmem:[%s3281 + $0x278] sm:$0xff]
    %v3362 = vld [vmem:[%s3281 + $0x280] sm:$0xff]
    %v3363 = vld [vmem:[%s3281 + $0x288] sm:$0xff]
    %v3364 = vld [vmem:[%s3281 + $0x290] sm:$0xff]
    %v3365 = vld [vmem:[%s3281 + $0x298] sm:$0xff]
    %v3366 = vld [vmem:[%s3281 + $0x2a0] sm:$0xff]
    %v3367 = vld [vmem:[%s3281 + $0x2a8] sm:$0xff]
    %v3368 = vld [vmem:[%s3281 + $0x2b0] sm:$0xff]
    %v3369 = vld [vmem:[%s3281 + $0x2b8] sm:$0xff]
    %v3370 = vld [vmem:[%s3281 + $0x2c0] sm:$0xff]
    %v3371 = vld [vmem:[%s3281 + $0x2c8] sm:$0xff]
    %v3372 = vld [vmem:[%s3281 + $0x2d0] sm:$0xff]
    %v3373 = vld [vmem:[%s3281 + $0x2d8] sm:$0xff]
    %v3374 = vld [vmem:[%s3281 + $0x2e0] sm:$0xff]
    %v3375 = vld [vmem:[%s3281 + $0x2e8] sm:$0xff]
    %v3376 = vld [vmem:[%s3281 + $0x2f0] sm:$0xff]
    %v3377 = vld [vmem:[%s3281 + $0x2f8] sm:$0xff]
    %v3378 = vld [vmem:[%s3281 + $0x300] sm:$0xff]
    %v3379 = vld [vmem:[%s3281 + $0x308] sm:$0xff]
    %v3380 = vld [vmem:[%s3281 + $0x310] sm:$0xff]
    %v3381 = vld [vmem:[%s3281 + $0x318] sm:$0xff]
    %v3382 = vld [vmem:[%s3281 + $0x320] sm:$0xff]
    %v3383 = vld [vmem:[%s3281 + $0x328] sm:$0xff]
    %v3384 = vld [vmem:[%s3281 + $0x330] sm:$0xff]
    %v3385 = vld [vmem:[%s3281 + $0x338] sm:$0xff]
    %v3386 = vld [vmem:[%s3281 + $0x340] sm:$0xff]
    %v3387 = vld [vmem:[%s3281 + $0x348] sm:$0xff]
    %v3388 = vld [vmem:[%s3281 + $0x350] sm:$0xff]
    %v3389 = vld [vmem:[%s3281 + $0x358] sm:$0xff]
    %v3390 = vld [vmem:[%s3281 + $0x360] sm:$0xff]
    %v3391 = vld [vmem:[%s3281 + $0x368] sm:$0xff]
    %v3392 = vld [vmem:[%s3281 + $0x370] sm:$0xff]
    %v3393 = vld [vmem:[%s3281 + $0x378] sm:$0xff]
    %v3394 = vld [vmem:[%s3281 + $0x380] sm:$0xff]
    %v3395 = vld [vmem:[%s3281 + $0x388] sm:$0xff]
    %v3396 = vld [vmem:[%s3281 + $0x390] sm:$0xff]
    %v3397 = vld [vmem:[%s3281 + $0x398] sm:$0xff]
    %v3398 = vld [vmem:[%s3281 + $0x3a0] sm:$0xff]
    %v3399 = vld [vmem:[%s3281 + $0x3a8] sm:$0xff]
    %v3400 = vld [vmem:[%s3281 + $0x3b0] sm:$0xff]
    %v3401 = vld [vmem:[%s3281 + $0x3b8] sm:$0xff]
    %v3403 = vsel %vm1250, %v3273, 0
    %v3406 = vsel %vm1250, %v3276, 0
    %v3409 = vsel %vm1250, %v3279, 0
    %3411 = vmatpush.msra.mxu0 %v3327
    %3412 = vmatpush.msra.mxu0 %v3324
    %3413 = vmatpush.msra.mxu0 %v3321
    %3414 = vmatpush.msra.mxu0 %v3318
    %3415 = vmatpush.msra.mxu0 %v3315
    %3416 = vmatpush.msra.mxu0 %v3312
    %3417 = vmatpush.msra.mxu0 %v3309
    %3418 = vmatpush.msra.mxu0 %v3306
    %3419 = vmatpush.msra.mxu0 %v3303
    %3420 = vmatpush.msra.mxu0 %v3300
    %3421 = vmatpush.msra.mxu0 %v3297
    %3422 = vmatpush.msra.mxu0 %v3294
    %3423 = vmatpush.msra.mxu0 %v3291
    %3424 = vmatpush.msra.mxu0 %v3288
    %3425 = vmatpush.msra.mxu0 %v3285
    %3426 = vmatpush.msra.mxu0 %v3282
    %3427 = vmatmul.f32.gmra.mxu0 %v3221
    %v3428 = vpop.f32.mrf.mxu0
    %v3429 = vadd.f32 0.0, %v3428
    %3430 = vmatmul.f32.gmra.mxu0 %v3224
    %v3431 = vpop.f32.mrf.mxu0
    %v3432 = vadd.f32 0.0, %v3431
    %3433 = vmatmul.f32.gmra.mxu0 %v3227
    %v3434 = vpop.f32.mrf.mxu0
    %v3435 = vadd.f32 0.0, %v3434
    %3436 = vdwg.mxu0
    %3437 = vmatpush.msra.mxu0 %v3375
    %3438 = vmatpush.msra.mxu0 %v3372
    %3439 = vmatpush.msra.mxu0 %v3369
    %3440 = vmatpush.msra.mxu0 %v3366
    %3441 = vmatpush.msra.mxu0 %v3363
    %3442 = vmatpush.msra.mxu0 %v3360
    %3443 = vmatpush.msra.mxu0 %v3357
    %3444 = vmatpush.msra.mxu0 %v3354
    %3445 = vmatpush.msra.mxu0 %v3351
    %3446 = vmatpush.msra.mxu0 %v3348
    %3447 = vmatpush.msra.mxu0 %v3345
    %3448 = vmatpush.msra.mxu0 %v3342
    %3449 = vmatpush.msra.mxu0 %v3339
    %3450 = vmatpush.msra.mxu0 %v3336
    %3451 = vmatpush.msra.mxu0 %v3333
    %3452 = vmatpush.msra.mxu0 %v3330
    %3453 = vmatmul.f32.gmra.mxu0 %v3247
    %v3454 = vpop.f32.mrf.mxu0
    %v3455 = vadd.f32 %v3429, %v3454
    %3456 = vmatmul.f32.gmra.mxu0 %v3250
    %v3457 = vpop.f32.mrf.mxu0
    %v3458 = vadd.f32 %v3432, %v3457
    %3459 = vmatmul.f32.gmra.mxu0 %v3253
    %v3460 = vpop.f32.mrf.mxu0
    %v3461 = vadd.f32 %v3435, %v3460
    %3462 = vdwg.mxu0
    %3463 = vmatpush.msra.mxu0 0.0
    %3464 = vmatpush.msra.mxu0 0.0
    %3465 = vmatpush.msra.mxu0 0.0
    %3466 = vmatpush.msra.mxu0 0.0
    %3467 = vmatpush.msra.mxu0 0.0
    %3468 = vmatpush.msra.mxu0 0.0
    %3469 = vmatpush.msra.mxu0 0.0
    %3470 = vmatpush.msra.mxu0 0.0
    %3471 = vmatpush.msra.mxu0 %v3399
    %3472 = vmatpush.msra.mxu0 %v3396
    %3473 = vmatpush.msra.mxu0 %v3393
    %3474 = vmatpush.msra.mxu0 %v3390
    %3475 = vmatpush.msra.mxu0 %v3387
    %3476 = vmatpush.msra.mxu0 %v3384
    %3477 = vmatpush.msra.mxu0 %v3381
    %3478 = vmatpush.msra.mxu0 %v3378
    %3479 = vmatmul.f32.gmra.mxu0 %v3403
    %v3480 = vpop.f32.mrf.mxu0
    %v3481 = vadd.f32 %v3455, %v3480
    %3482 = vmatmul.f32.gmra.mxu0 %v3406
    %v3483 = vpop.f32.mrf.mxu0
    %v3484 = vadd.f32 %v3458, %v3483
    %3485 = vmatmul.f32.gmra.mxu0 %v3409
    %v3486 = vpop.f32.mrf.mxu0
    %v3487 = vadd.f32 %v3461, %v3486
    %3488 = vdwg.mxu0
    %3489 = vmatpush.msra.mxu0 %v3328
    %3490 = vmatpush.msra.mxu0 %v3325
    %3491 = vmatpush.msra.mxu0 %v3322
    %3492 = vmatpush.msra.mxu0 %v3319
    %3493 = vmatpush.msra.mxu0 %v3316
    %3494 = vmatpush.msra.mxu0 %v3313
    %3495 = vmatpush.msra.mxu0 %v3310
    %3496 = vmatpush.msra.mxu0 %v3307
    %3497 = vmatpush.msra.mxu0 %v3304
    %3498 = vmatpush.msra.mxu0 %v3301
    %3499 = vmatpush.msra.mxu0 %v3298
    %3500 = vmatpush.msra.mxu0 %v3295
    %3501 = vmatpush.msra.mxu0 %v3292
    %3502 = vmatpush.msra.mxu0 %v3289
    %3503 = vmatpush.msra.mxu0 %v3286
    %3504 = vmatpush.msra.mxu0 %v3283
    %3505 = vmatmul.f32.gmra.mxu0 %v3221
    %v3506 = vpop.f32.mrf.mxu0
    %v3507 = vadd.f32 0.0, %v3506
    %3508 = vmatmul.f32.gmra.mxu0 %v3224
    %v3509 = vpop.f32.mrf.mxu0
    %v3510 = vadd.f32 0.0, %v3509
    %3511 = vmatmul.f32.gmra.mxu0 %v3227
    %v3512 = vpop.f32.mrf.mxu0
    %v3513 = vadd.f32 0.0, %v3512
    %3514 = vdwg.mxu0
    %3515 = vmatpush.msra.mxu0 %v3376
    %3516 = vmatpush.msra.mxu0 %v3373
    %3517 = vmatpush.msra.mxu0 %v3370
    %3518 = vmatpush.msra.mxu0 %v3367
    %3519 = vmatpush.msra.mxu0 %v3364
    %3520 = vmatpush.msra.mxu0 %v3361
    %3521 = vmatpush.msra.mxu0 %v3358
    %3522 = vmatpush.msra.mxu0 %v3355
    %3523 = vmatpush.msra.mxu0 %v3352
    %3524 = vmatpush.msra.mxu0 %v3349
    %3525 = vmatpush.msra.mxu0 %v3346
    %3526 = vmatpush.msra.mxu0 %v3343
    %3527 = vmatpush.msra.mxu0 %v3340
    %3528 = vmatpush.msra.mxu0 %v3337
    %3529 = vmatpush.msra.mxu0 %v3334
    %3530 = vmatpush.msra.mxu0 %v3331
    %3531 = vmatmul.f32.gmra.mxu0 %v3247
    %v3532 = vpop.f32.mrf.mxu0
    %v3533 = vadd.f32 %v3507, %v3532
    %3534 = vmatmul.f32.gmra.mxu0 %v3250
    %v3535 = vpop.f32.mrf.mxu0
    %v3536 = vadd.f32 %v3510, %v3535
    %3537 = vmatmul.f32.gmra.mxu0 %v3253
    %v3538 = vpop.f32.mrf.mxu0
    %v3539 = vadd.f32 %v3513, %v3538
    %3540 = vdwg.mxu0
    %3541 = vmatpush.msra.mxu0 0.0
    %3542 = vmatpush.msra.mxu0 0.0
    %3543 = vmatpush.msra.mxu0 0.0
    %3544 = vmatpush.msra.mxu0 0.0
    %3545 = vmatpush.msra.mxu0 0.0
    %3546 = vmatpush.msra.mxu0 0.0
    %3547 = vmatpush.msra.mxu0 0.0
    %3548 = vmatpush.msra.mxu0 0.0
    %3549 = vmatpush.msra.mxu0 %v3400
    %3550 = vmatpush.msra.mxu0 %v3397
    %3551 = vmatpush.msra.mxu0 %v3394
    %3552 = vmatpush.msra.mxu0 %v3391
    %3553 = vmatpush.msra.mxu0 %v3388
    %3554 = vmatpush.msra.mxu0 %v3385
    %3555 = vmatpush.msra.mxu0 %v3382
    %3556 = vmatpush.msra.mxu0 %v3379
    %3557 = vmatmul.f32.gmra.mxu0 %v3403
    %v3558 = vpop.f32.mrf.mxu0
    %v3559 = vadd.f32 %v3533, %v3558
    %3560 = vmatmul.f32.gmra.mxu0 %v3406
    %v3561 = vpop.f32.mrf.mxu0
    %v3562 = vadd.f32 %v3536, %v3561
    %3563 = vmatmul.f32.gmra.mxu0 %v3409
    %v3564 = vpop.f32.mrf.mxu0
    %v3565 = vadd.f32 %v3539, %v3564
    %3566 = vdwg.mxu0
    %3567 = vmatpush.msra.mxu0 %v3329
    %3568 = vmatpush.msra.mxu0 %v3326
    %3569 = vmatpush.msra.mxu0 %v3323
    %3570 = vmatpush.msra.mxu0 %v3320
    %3571 = vmatpush.msra.mxu0 %v3317
    %3572 = vmatpush.msra.mxu0 %v3314
    %3573 = vmatpush.msra.mxu0 %v3311
    %3574 = vmatpush.msra.mxu0 %v3308
    %3575 = vmatpush.msra.mxu0 %v3305
    %3576 = vmatpush.msra.mxu0 %v3302
    %3577 = vmatpush.msra.mxu0 %v3299
    %3578 = vmatpush.msra.mxu0 %v3296
    %3579 = vmatpush.msra.mxu0 %v3293
    %3580 = vmatpush.msra.mxu0 %v3290
    %3581 = vmatpush.msra.mxu0 %v3287
    %3582 = vmatpush.msra.mxu0 %v3284
    %3583 = vmatmul.f32.gmra.mxu0 %v3221
    %v3584 = vpop.f32.mrf.mxu0
    %v3585 = vadd.f32 0.0, %v3584
    %3586 = vmatmul.f32.gmra.mxu0 %v3224
    %v3587 = vpop.f32.mrf.mxu0
    %v3588 = vadd.f32 0.0, %v3587
    %3589 = vmatmul.f32.gmra.mxu0 %v3227
    %v3590 = vpop.f32.mrf.mxu0
    %v3591 = vadd.f32 0.0, %v3590
    %3592 = vdwg.mxu0
    %3593 = vmatpush.msra.mxu0 %v3377
    %3594 = vmatpush.msra.mxu0 %v3374
    %3595 = vmatpush.msra.mxu0 %v3371
    %3596 = vmatpush.msra.mxu0 %v3368
    %3597 = vmatpush.msra.mxu0 %v3365
    %3598 = vmatpush.msra.mxu0 %v3362
    %3599 = vmatpush.msra.mxu0 %v3359
    %3600 = vmatpush.msra.mxu0 %v3356
    %3601 = vmatpush.msra.mxu0 %v3353
    %3602 = vmatpush.msra.mxu0 %v3350
    %3603 = vmatpush.msra.mxu0 %v3347
    %3604 = vmatpush.msra.mxu0 %v3344
    %3605 = vmatpush.msra.mxu0 %v3341
    %3606 = vmatpush.msra.mxu0 %v3338
    %3607 = vmatpush.msra.mxu0 %v3335
    %3608 = vmatpush.msra.mxu0 %v3332
    %3609 = vmatmul.f32.gmra.mxu0 %v3247
    %v3610 = vpop.f32.mrf.mxu0
    %v3611 = vadd.f32 %v3585, %v3610
    %3612 = vmatmul.f32.gmra.mxu0 %v3250
    %v3613 = vpop.f32.mrf.mxu0
    %v3614 = vadd.f32 %v3588, %v3613
    %3615 = vmatmul.f32.gmra.mxu0 %v3253
    %v3616 = vpop.f32.mrf.mxu0
    %v3617 = vadd.f32 %v3591, %v3616
    %3618 = vdwg.mxu0
    %3619 = vmatpush.msra.mxu0 0.0
    %3620 = vmatpush.msra.mxu0 0.0
    %3621 = vmatpush.msra.mxu0 0.0
    %3622 = vmatpush.msra.mxu0 0.0
    %3623 = vmatpush.msra.mxu0 0.0
    %3624 = vmatpush.msra.mxu0 0.0
    %3625 = vmatpush.msra.mxu0 0.0
    %3626 = vmatpush.msra.mxu0 0.0
    %3627 = vmatpush.msra.mxu0 %v3401
    %3628 = vmatpush.msra.mxu0 %v3398
    %3629 = vmatpush.msra.mxu0 %v3395
    %3630 = vmatpush.msra.mxu0 %v3392
    %3631 = vmatpush.msra.mxu0 %v3389
    %3632 = vmatpush.msra.mxu0 %v3386
    %3633 = vmatpush.msra.mxu0 %v3383
    %3634 = vmatpush.msra.mxu0 %v3380
    %3635 = vmatmul.f32.gmra.mxu0 %v3403
    %v3636 = vpop.f32.mrf.mxu0
    %v3637 = vadd.f32 %v3611, %v3636
    %3638 = vmatmul.f32.gmra.mxu0 %v3406
    %v3639 = vpop.f32.mrf.mxu0
    %v3640 = vadd.f32 %v3614, %v3639
    %3641 = vmatmul.f32.gmra.mxu0 %v3409
    %v3642 = vpop.f32.mrf.mxu0
    %v3643 = vadd.f32 %v3617, %v3642
    %3644 = vdwg.mxu0
    %v3645 = vadd.f32 %v3181, %v3481
    %v3646 = vadd.f32 %v3182, %v3559
    %v3647 = vadd.f32 %v3183, %v3637
    %v3648 = vadd.f32 %v3184, %v3484
    %v3649 = vadd.f32 %v3185, %v3562
    %v3650 = vadd.f32 %v3186, %v3640
    %v3651 = vadd.f32 %v3187, %v3487
    %v3652 = vadd.f32 %v3188, %v3565
    %v3653 = vadd.f32 %v3189, %v3643
    %v3654 = vadd.f32 %v3645, %v3648
    %v3655 = vadd.f32 %v3654, %v3651
    %v3656 = vrot.slane %v3655, 4
    %v3657 = vadd.f32 %v3655, %v3656
    %v3658 = vrot.slane %v3657, 2
    %v3659 = vadd.f32 %v3657, %v3658
    %v3660 = vrot.slane %v3659, 1
    %v3661 = vadd.f32 %v3659, %v3660
    %v3662 = vadd.f32 %v3646, %v3649
    %v3663 = vadd.f32 %v3662, %v3652
    %v3664 = vrot.slane %v3663, 4
    %v3665 = vadd.f32 %v3663, %v3664
    %v3666 = vrot.slane %v3665, 2
    %v3667 = vadd.f32 %v3665, %v3666
    %v3668 = vrot.slane %v3667, 1
    %v3669 = vadd.f32 %v3667, %v3668
    %v3670 = vsel %vm1250, %v3647, 0.0
    %v3671 = vsel %vm1250, %v3650, 0.0
    %v3672 = vadd.f32 %v3670, %v3671
    %v3673 = vsel %vm1250, %v3653, 0.0
    %v3674 = vadd.f32 %v3672, %v3673
    %v3675 = vrot.slane %v3674, 4
    %v3676 = vadd.f32 %v3674, %v3675
    %v3677 = vrot.slane %v3676, 2
    %v3678 = vadd.f32 %v3676, %v3677
    %v3679 = vrot.slane %v3678, 1
    %v3680 = vadd.f32 %v3678, %v3679
    %v3681 = vld [vmem:[%s8] sm:$0xff]
    %v3682 = vld [vmem:[%s8 + $0x8] sm:$0xff]
    %v3683 = vld [vmem:[%s8 + $0x10] sm:$0xff]
    %v3684 = vld [vmem:[%s8 + $0x18] sm:$0xff]
    %v3685 = vld [vmem:[%s8 + $0x20] sm:$0xff]
    %v3686 = vld [vmem:[%s8 + $0x28] sm:$0xff]
    %v3687 = vld [vmem:[%s8 + $0x30] sm:$0xff]
    %v3688 = vld [vmem:[%s8 + $0x38] sm:$0xff]
    %v3689 = vld [vmem:[%s8 + $0x40] sm:$0xff]
    %v3690 = vld [vmem:[%s8 + $0x48] sm:$0xff]
    %v3691 = vld [vmem:[%s8 + $0x50] sm:$0xff]
    %v3692 = vld [vmem:[%s8 + $0x58] sm:$0xff]
    %v3693 = vld [vmem:[%s8 + $0x60] sm:$0xff]
    %v3694 = vld [vmem:[%s8 + $0x68] sm:$0xff]
    %v3695 = vld [vmem:[%s8 + $0x70] sm:$0xff]
    %v3696 = vld [vmem:[%s8 + $0x78] sm:$0xff]
    %v3697 = vld [vmem:[%s8 + $0x80] sm:$0xff]
    %v3698 = vld [vmem:[%s8 + $0x88] sm:$0xff]
    %v3699 = vld [vmem:[%s8 + $0x90] sm:$0xff]
    %v3700 = vld [vmem:[%s8 + $0x98] sm:$0xff]
    %v3701 = vld [vmem:[%s8 + $0xa0] sm:$0xff]
    %v3702 = vld [vmem:[%s8 + $0xa8] sm:$0xff]
    %v3703 = vld [vmem:[%s8 + $0xb0] sm:$0xff]
    %v3704 = vld [vmem:[%s8 + $0xb8] sm:$0xff]
    %v3705 = vld [vmem:[%s8 + $0xc0] sm:$0xff]
    %v3706 = vld [vmem:[%s8 + $0xc8] sm:$0xff]
    %v3707 = vld [vmem:[%s8 + $0xd0] sm:$0xff]
    %v3708 = vld [vmem:[%s8 + $0xd8] sm:$0xff]
    %v3709 = vld [vmem:[%s8 + $0xe0] sm:$0xff]
    %v3710 = vld [vmem:[%s8 + $0xe8] sm:$0xff]
    %v3711 = vld [vmem:[%s8 + $0xf0] sm:$0xff]
    %v3712 = vld [vmem:[%s8 + $0xf8] sm:$0xff]
    %v3713 = vld [vmem:[%s8 + $0x100] sm:$0xff]
    %v3714 = vld [vmem:[%s8 + $0x108] sm:$0xff]
    %v3715 = vld [vmem:[%s8 + $0x110] sm:$0xff]
    %v3716 = vld [vmem:[%s8 + $0x118] sm:$0xff]
    %v3717 = vld [vmem:[%s8 + $0x120] sm:$0xff]
    %v3718 = vld [vmem:[%s8 + $0x128] sm:$0xff]
    %v3719 = vld [vmem:[%s8 + $0x130] sm:$0xff]
    %v3720 = vld [vmem:[%s8 + $0x138] sm:$0xff]
    %v3722 = vsel %vm1250, %v3680, 0
    %3724 = vmatpush.msra.mxu0 %v3696
    %3725 = vmatpush.msra.mxu0 %v3695
    %3726 = vmatpush.msra.mxu0 %v3694
    %3727 = vmatpush.msra.mxu0 %v3693
    %3728 = vmatpush.msra.mxu0 %v3692
    %3729 = vmatpush.msra.mxu0 %v3691
    %3730 = vmatpush.msra.mxu0 %v3690
    %3731 = vmatpush.msra.mxu0 %v3689
    %3732 = vmatpush.msra.mxu0 %v3688
    %3733 = vmatpush.msra.mxu0 %v3687
    %3734 = vmatpush.msra.mxu0 %v3686
    %3735 = vmatpush.msra.mxu0 %v3685
    %3736 = vmatpush.msra.mxu0 %v3684
    %3737 = vmatpush.msra.mxu0 %v3683
    %3738 = vmatpush.msra.mxu0 %v3682
    %3739 = vmatpush.msra.mxu0 %v3681
    %3740 = vmatmul.f32.gmra.mxu0 %v3661
    %v3741 = vpop.f32.mrf.mxu0
    %v3742 = vadd.f32 0.0, %v3741
    %3743 = vdwg.mxu0
    %3744 = vmatpush.msra.mxu0 %v3712
    %3745 = vmatpush.msra.mxu0 %v3711
    %3746 = vmatpush.msra.mxu0 %v3710
    %3747 = vmatpush.msra.mxu0 %v3709
    %3748 = vmatpush.msra.mxu0 %v3708
    %3749 = vmatpush.msra.mxu0 %v3707
    %3750 = vmatpush.msra.mxu0 %v3706
    %3751 = vmatpush.msra.mxu0 %v3705
    %3752 = vmatpush.msra.mxu0 %v3704
    %3753 = vmatpush.msra.mxu0 %v3703
    %3754 = vmatpush.msra.mxu0 %v3702
    %3755 = vmatpush.msra.mxu0 %v3701
    %3756 = vmatpush.msra.mxu0 %v3700
    %3757 = vmatpush.msra.mxu0 %v3699
    %3758 = vmatpush.msra.mxu0 %v3698
    %3759 = vmatpush.msra.mxu0 %v3697
    %3760 = vmatmul.f32.gmra.mxu0 %v3669
    %v3761 = vpop.f32.mrf.mxu0
    %v3762 = vadd.f32 %v3742, %v3761
    %3763 = vdwg.mxu0
    %3764 = vmatpush.msra.mxu0 0.0
    %3765 = vmatpush.msra.mxu0 0.0
    %3766 = vmatpush.msra.mxu0 0.0
    %3767 = vmatpush.msra.mxu0 0.0
    %3768 = vmatpush.msra.mxu0 0.0
    %3769 = vmatpush.msra.mxu0 0.0
    %3770 = vmatpush.msra.mxu0 0.0
    %3771 = vmatpush.msra.mxu0 0.0
    %3772 = vmatpush.msra.mxu0 %v3720
    %3773 = vmatpush.msra.mxu0 %v3719
    %3774 = vmatpush.msra.mxu0 %v3718
    %3775 = vmatpush.msra.mxu0 %v3717
    %3776 = vmatpush.msra.mxu0 %v3716
    %3777 = vmatpush.msra.mxu0 %v3715
    %3778 = vmatpush.msra.mxu0 %v3714
    %3779 = vmatpush.msra.mxu0 %v3713
    %3780 = vmatmul.f32.gmra.mxu0 %v3722
    %v3781 = vpop.f32.mrf.mxu0
    %v3782 = vadd.f32 %v3762, %v3781
    %3783 = vdwg.mxu0
    %v3784 = vmul.f32 %v3782, 0.0020833334
    %v3785 = vld [vmem:[#allocation13] sm:$0xff]
    %v3786 = vld [vmem:[#allocation13 + $0x8] sm:$0xff]
    %v3787 = vld [vmem:[#allocation13 + $0x10] sm:$0xff]
    %v3788 = vld [vmem:[#allocation13 + $0x18] sm:$0xff]
    %v3789 = vld [vmem:[#allocation13 + $0x20] sm:$0xff]
    %v3790 = vld [vmem:[#allocation13 + $0x28] sm:$0xff]
    %vm3791 = vcmask 130048
    %v3793 = vsel %vm3791, %v3784, 0
    %3795 = vmatpush.msra.mxu0 0.0
    %3796 = vmatpush.msra.mxu0 0.0
    %3797 = vmatpush.msra.mxu0 0.0
    %3798 = vmatpush.msra.mxu0 0.0
    %3799 = vmatpush.msra.mxu0 0.0
    %3800 = vmatpush.msra.mxu0 0.0
    %3801 = vmatpush.msra.mxu0 0.0
    %3802 = vmatpush.msra.mxu0 0.0
    %3803 = vmatpush.msra.mxu0 0.0
    %3804 = vmatpush.msra.mxu0 0.0
    %3805 = vmatpush.msra.mxu0 0.0
    %3806 = vmatpush.msra.mxu0 0.0
    %3807 = vmatpush.msra.mxu0 0.0
    %3808 = vmatpush.msra.mxu0 0.0
    %3809 = vmatpush.msra.mxu0 %v3788
    %3810 = vmatpush.msra.mxu0 %v3785
    %3811 = vmatmul.f32.gmra.mxu0 %v3793
    %v3812 = vpop.f32.mrf.mxu0
    %v3813 = vadd.f32 0.0, %v3812
    %3814 = vdwg.mxu0
    %3815 = vmatpush.msra.mxu0 0.0
    %3816 = vmatpush.msra.mxu0 0.0
    %3817 = vmatpush.msra.mxu0 0.0
    %3818 = vmatpush.msra.mxu0 0.0
    %3819 = vmatpush.msra.mxu0 0.0
    %3820 = vmatpush.msra.mxu0 0.0
    %3821 = vmatpush.msra.mxu0 0.0
    %3822 = vmatpush.msra.mxu0 0.0
    %3823 = vmatpush.msra.mxu0 0.0
    %3824 = vmatpush.msra.mxu0 0.0
    %3825 = vmatpush.msra.mxu0 0.0
    %3826 = vmatpush.msra.mxu0 0.0
    %3827 = vmatpush.msra.mxu0 0.0
    %3828 = vmatpush.msra.mxu0 0.0
    %3829 = vmatpush.msra.mxu0 %v3789
    %3830 = vmatpush.msra.mxu0 %v3786
    %3831 = vmatmul.f32.gmra.mxu0 %v3793
    %v3832 = vpop.f32.mrf.mxu0
    %v3833 = vadd.f32 0.0, %v3832
    %3834 = vdwg.mxu0
    %3835 = vmatpush.msra.mxu0 0.0
    %3836 = vmatpush.msra.mxu0 0.0
    %3837 = vmatpush.msra.mxu0 0.0
    %3838 = vmatpush.msra.mxu0 0.0
    %3839 = vmatpush.msra.mxu0 0.0
    %3840 = vmatpush.msra.mxu0 0.0
    %3841 = vmatpush.msra.mxu0 0.0
    %3842 = vmatpush.msra.mxu0 0.0
    %3843 = vmatpush.msra.mxu0 0.0
    %3844 = vmatpush.msra.mxu0 0.0
    %3845 = vmatpush.msra.mxu0 0.0
    %3846 = vmatpush.msra.mxu0 0.0
    %3847 = vmatpush.msra.mxu0 0.0
    %3848 = vmatpush.msra.mxu0 0.0
    %3849 = vmatpush.msra.mxu0 %v3790
    %3850 = vmatpush.msra.mxu0 %v3787
    %3851 = vmatmul.f32.gmra.mxu0 %v3793
    %v3852 = vpop.f32.mrf.mxu0
    %v3853 = vadd.f32 0.0, %v3852
    %3854 = vdwg.mxu0
    %v3855 = vperm.slane %v3813, 0
    %v3856 = vperm.slane %v3833, 0
    %v3857 = vperm.slane %v3853, 0
    %v3858 = vsub.f32 %v3645, %v3855
    %v3859 = vsub.f32 %v3646, %v3856
    %v3860 = vsub.f32 %v3647, %v3857
    %v3861 = vsub.f32 %v3648, %v3855
    %v3862 = vsub.f32 %v3649, %v3856
    %v3863 = vsub.f32 %v3650, %v3857
    %v3864 = vsub.f32 %v3651, %v3855
    %v3865 = vsub.f32 %v3652, %v3856
    %v3866 = vsub.f32 %v3653, %v3857
    %v3867 = vmul.f32 %v3858, %v3858
    %v3868 = vmul.f32 %v3859, %v3859
    %v3869 = vmul.f32 %v3860, %v3860
    %v3870 = vmul.f32 %v3861, %v3861
    %v3871 = vmul.f32 %v3862, %v3862
    %v3872 = vmul.f32 %v3863, %v3863
    %v3873 = vmul.f32 %v3864, %v3864
    %v3874 = vmul.f32 %v3865, %v3865
    %v3875 = vmul.f32 %v3866, %v3866
    %v3876 = vadd.f32 %v3867, %v3870
    %v3877 = vadd.f32 %v3876, %v3873
    %v3878 = vrot.slane %v3877, 4
    %v3879 = vadd.f32 %v3877, %v3878
    %v3880 = vrot.slane %v3879, 2
    %v3881 = vadd.f32 %v3879, %v3880
    %v3882 = vrot.slane %v3881, 1
    %v3883 = vadd.f32 %v3881, %v3882
    %v3884 = vadd.f32 %v3868, %v3871
    %v3885 = vadd.f32 %v3884, %v3874
    %v3886 = vrot.slane %v3885, 4
    %v3887 = vadd.f32 %v3885, %v3886
    %v3888 = vrot.slane %v3887, 2
    %v3889 = vadd.f32 %v3887, %v3888
    %v3890 = vrot.slane %v3889, 1
    %v3891 = vadd.f32 %v3889, %v3890
    %v3892 = vsel %vm1250, %v3869, 0.0
    %v3893 = vsel %vm1250, %v3872, 0.0
    %v3894 = vadd.f32 %v3892, %v3893
    %v3895 = vsel %vm1250, %v3875, 0.0
    %v3896 = vadd.f32 %v3894, %v3895
    %v3897 = vrot.slane %v3896, 4
    %v3898 = vadd.f32 %v3896, %v3897
    %v3899 = vrot.slane %v3898, 2
    %v3900 = vadd.f32 %v3898, %v3899
    %v3901 = vrot.slane %v3900, 1
    %v3902 = vadd.f32 %v3900, %v3901
    %v3904 = vsel %vm1250, %v3902, 0
    %3906 = vmatpush.msra.mxu0 %v3696
    %3907 = vmatpush.msra.mxu0 %v3695
    %3908 = vmatpush.msra.mxu0 %v3694
    %3909 = vmatpush.msra.mxu0 %v3693
    %3910 = vmatpush.msra.mxu0 %v3692
    %3911 = vmatpush.msra.mxu0 %v3691
    %3912 = vmatpush.msra.mxu0 %v3690
    %3913 = vmatpush.msra.mxu0 %v3689
    %3914 = vmatpush.msra.mxu0 %v3688
    %3915 = vmatpush.msra.mxu0 %v3687
    %3916 = vmatpush.msra.mxu0 %v3686
    %3917 = vmatpush.msra.mxu0 %v3685
    %3918 = vmatpush.msra.mxu0 %v3684
    %3919 = vmatpush.msra.mxu0 %v3683
    %3920 = vmatpush.msra.mxu0 %v3682
    %3921 = vmatpush.msra.mxu0 %v3681
    %3922 = vmatmul.f32.gmra.mxu0 %v3883
    %v3923 = vpop.f32.mrf.mxu0
    %v3924 = vadd.f32 0.0, %v3923
    %3925 = vdwg.mxu0
    %3926 = vmatpush.msra.mxu0 %v3712
    %3927 = vmatpush.msra.mxu0 %v3711
    %3928 = vmatpush.msra.mxu0 %v3710
    %3929 = vmatpush.msra.mxu0 %v3709
    %3930 = vmatpush.msra.mxu0 %v3708
    %3931 = vmatpush.msra.mxu0 %v3707
    %3932 = vmatpush.msra.mxu0 %v3706
    %3933 = vmatpush.msra.mxu0 %v3705
    %3934 = vmatpush.msra.mxu0 %v3704
    %3935 = vmatpush.msra.mxu0 %v3703
    %3936 = vmatpush.msra.mxu0 %v3702
    %3937 = vmatpush.msra.mxu0 %v3701
    %3938 = vmatpush.msra.mxu0 %v3700
    %3939 = vmatpush.msra.mxu0 %v3699
    %3940 = vmatpush.msra.mxu0 %v3698
    %3941 = vmatpush.msra.mxu0 %v3697
    %3942 = vmatmul.f32.gmra.mxu0 %v3891
    %v3943 = vpop.f32.mrf.mxu0
    %v3944 = vadd.f32 %v3924, %v3943
    %3945 = vdwg.mxu0
    %3946 = vmatpush.msra.mxu0 0.0
    %3947 = vmatpush.msra.mxu0 0.0
    %3948 = vmatpush.msra.mxu0 0.0
    %3949 = vmatpush.msra.mxu0 0.0
    %3950 = vmatpush.msra.mxu0 0.0
    %3951 = vmatpush.msra.mxu0 0.0
    %3952 = vmatpush.msra.mxu0 0.0
    %3953 = vmatpush.msra.mxu0 0.0
    %3954 = vmatpush.msra.mxu0 %v3720
    %3955 = vmatpush.msra.mxu0 %v3719
    %3956 = vmatpush.msra.mxu0 %v3718
    %3957 = vmatpush.msra.mxu0 %v3717
    %3958 = vmatpush.msra.mxu0 %v3716
    %3959 = vmatpush.msra.mxu0 %v3715
    %3960 = vmatpush.msra.mxu0 %v3714
    %3961 = vmatpush.msra.mxu0 %v3713
    %3962 = vmatmul.f32.gmra.mxu0 %v3904
    %v3963 = vpop.f32.mrf.mxu0
    %v3964 = vadd.f32 %v3944, %v3963
    %3965 = vdwg.mxu0
    %v3966 = vmul.f32 %v3964, 0.0020833334
    %v3967 = vld [vmem:[#allocation15] sm:$0x1]
    %v3968 = vadd.f32 %v3966, 1e-05
    %v3969 = vrsqrt.pop %v3968
    %v3970 = vmul.f32 %v3969, %v3968
    %v3971 = vmul.f32 %v3970, %v3969
    %v3972 = vmul.f32 0.5, %v3971
    %v3973 = vsub.f32 1.5, %v3972
    %v3974 = vmul.f32 %v3969, %v3973
    %vm3975 = vweird.f32 %v3968
    %vm3976 = vweird.f32 %v3969
    %vm3977 = vmor %vm3975, %vm3976
    %v3978 = vsel %vm3977, %v3969, %v3974
    %v3979 = vmul.f32 %v3967, %v3978
    %v3981 = vsel %vm3791, %v3979, 0
    %3983 = vmatpush.msra.mxu0 0.0
    %3984 = vmatpush.msra.mxu0 0.0
    %3985 = vmatpush.msra.mxu0 0.0
    %3986 = vmatpush.msra.mxu0 0.0
    %3987 = vmatpush.msra.mxu0 0.0
    %3988 = vmatpush.msra.mxu0 0.0
    %3989 = vmatpush.msra.mxu0 0.0
    %3990 = vmatpush.msra.mxu0 0.0
    %3991 = vmatpush.msra.mxu0 0.0
    %3992 = vmatpush.msra.mxu0 0.0
    %3993 = vmatpush.msra.mxu0 0.0
    %3994 = vmatpush.msra.mxu0 0.0
    %3995 = vmatpush.msra.mxu0 0.0
    %3996 = vmatpush.msra.mxu0 0.0
    %3997 = vmatpush.msra.mxu0 %v3788
    %3998 = vmatpush.msra.mxu0 %v3785
    %3999 = vmatmul.f32.gmra.mxu0 %v3981
    %v4000 = vpop.f32.mrf.mxu0
    %v4001 = vadd.f32 0.0, %v4000
    %4002 = vdwg.mxu0
    %4003 = vmatpush.msra.mxu0 0.0
    %4004 = vmatpush.msra.mxu0 0.0
    %4005 = vmatpush.msra.mxu0 0.0
    %4006 = vmatpush.msra.mxu0 0.0
    %4007 = vmatpush.msra.mxu0 0.0
    %4008 = vmatpush.msra.mxu0 0.0
    %4009 = vmatpush.msra.mxu0 0.0
    %4010 = vmatpush.msra.mxu0 0.0
    %4011 = vmatpush.msra.mxu0 0.0
    %4012 = vmatpush.msra.mxu0 0.0
    %4013 = vmatpush.msra.mxu0 0.0
    %4014 = vmatpush.msra.mxu0 0.0
    %4015 = vmatpush.msra.mxu0 0.0
    %4016 = vmatpush.msra.mxu0 0.0
    %4017 = vmatpush.msra.mxu0 %v3789
    %4018 = vmatpush.msra.mxu0 %v3786
    %4019 = vmatmul.f32.gmra.mxu0 %v3981
    %v4020 = vpop.f32.mrf.mxu0
    %v4021 = vadd.f32 0.0, %v4020
    %4022 = vdwg.mxu0
    %4023 = vmatpush.msra.mxu0 0.0
    %4024 = vmatpush.msra.mxu0 0.0
    %4025 = vmatpush.msra.mxu0 0.0
    %4026 = vmatpush.msra.mxu0 0.0
    %4027 = vmatpush.msra.mxu0 0.0
    %4028 = vmatpush.msra.mxu0 0.0
    %4029 = vmatpush.msra.mxu0 0.0
    %4030 = vmatpush.msra.mxu0 0.0
    %4031 = vmatpush.msra.mxu0 0.0
    %4032 = vmatpush.msra.mxu0 0.0
    %4033 = vmatpush.msra.mxu0 0.0
    %4034 = vmatpush.msra.mxu0 0.0
    %4035 = vmatpush.msra.mxu0 0.0
    %4036 = vmatpush.msra.mxu0 0.0
    %4037 = vmatpush.msra.mxu0 %v3790
    %4038 = vmatpush.msra.mxu0 %v3787
    %4039 = vmatmul.f32.gmra.mxu0 %v3981
    %v4040 = vpop.f32.mrf.mxu0
    %v4041 = vadd.f32 0.0, %v4040
    %4042 = vdwg.mxu0
    %v4043 = vld [vmem:[#allocation15 + $0x1] sm:$0x1]
    %v4045 = vsel %vm3791, %v4043, 0
    %4047 = vmatpush.msra.mxu0 0.0
    %4048 = vmatpush.msra.mxu0 0.0
    %4049 = vmatpush.msra.mxu0 0.0
    %4050 = vmatpush.msra.mxu0 0.0
    %4051 = vmatpush.msra.mxu0 0.0
    %4052 = vmatpush.msra.mxu0 0.0
    %4053 = vmatpush.msra.mxu0 0.0
    %4054 = vmatpush.msra.mxu0 0.0
    %4055 = vmatpush.msra.mxu0 0.0
    %4056 = vmatpush.msra.mxu0 0.0
    %4057 = vmatpush.msra.mxu0 0.0
    %4058 = vmatpush.msra.mxu0 0.0
    %4059 = vmatpush.msra.mxu0 0.0
    %4060 = vmatpush.msra.mxu0 0.0
    %4061 = vmatpush.msra.mxu0 %v3788
    %4062 = vmatpush.msra.mxu0 %v3785
    %4063 = vmatmul.f32.gmra.mxu0 %v4045
    %v4064 = vpop.f32.mrf.mxu0
    %v4065 = vadd.f32 0.0, %v4064
    %4066 = vdwg.mxu0
    %4067 = vmatpush.msra.mxu0 0.0
    %4068 = vmatpush.msra.mxu0 0.0
    %4069 = vmatpush.msra.mxu0 0.0
    %4070 = vmatpush.msra.mxu0 0.0
    %4071 = vmatpush.msra.mxu0 0.0
    %4072 = vmatpush.msra.mxu0 0.0
    %4073 = vmatpush.msra.mxu0 0.0
    %4074 = vmatpush.msra.mxu0 0.0
    %4075 = vmatpush.msra.mxu0 0.0
    %4076 = vmatpush.msra.mxu0 0.0
    %4077 = vmatpush.msra.mxu0 0.0
    %4078 = vmatpush.msra.mxu0 0.0
    %4079 = vmatpush.msra.mxu0 0.0
    %4080 = vmatpush.msra.mxu0 0.0
    %4081 = vmatpush.msra.mxu0 %v3789
    %4082 = vmatpush.msra.mxu0 %v3786
    %4083 = vmatmul.f32.gmra.mxu0 %v4045
    %v4084 = vpop.f32.mrf.mxu0
    %v4085 = vadd.f32 0.0, %v4084
    %4086 = vdwg.mxu0
    %4087 = vmatpush.msra.mxu0 0.0
    %4088 = vmatpush.msra.mxu0 0.0
    %4089 = vmatpush.msra.mxu0 0.0
    %4090 = vmatpush.msra.mxu0 0.0
    %4091 = vmatpush.msra.mxu0 0.0
    %4092 = vmatpush.msra.mxu0 0.0
    %4093 = vmatpush.msra.mxu0 0.0
    %4094 = vmatpush.msra.mxu0 0.0
    %4095 = vmatpush.msra.mxu0 0.0
    %4096 = vmatpush.msra.mxu0 0.0
    %4097 = vmatpush.msra.mxu0 0.0
    %4098 = vmatpush.msra.mxu0 0.0
    %4099 = vmatpush.msra.mxu0 0.0
    %4100 = vmatpush.msra.mxu0 0.0
    %4101 = vmatpush.msra.mxu0 %v3790
    %4102 = vmatpush.msra.mxu0 %v3787
    %4103 = vmatmul.f32.gmra.mxu0 %v4045
    %v4104 = vpop.f32.mrf.mxu0
    %v4105 = vadd.f32 0.0, %v4104
    %4106 = vdwg.mxu0
    %v4107 = vperm.slane %v4001, 0
    %v4108 = vperm.slane %v4021, 0
    %v4109 = vperm.slane %v4041, 0
    %v4110 = vmul.f32 %v3858, %v4107
    %v4111 = vmul.f32 %v3859, %v4108
    %v4112 = vmul.f32 %v3860, %v4109
    %v4113 = vmul.f32 %v3861, %v4107
    %v4114 = vmul.f32 %v3862, %v4108
    %v4115 = vmul.f32 %v3863, %v4109
    %v4116 = vmul.f32 %v3864, %v4107
    %v4117 = vmul.f32 %v3865, %v4108
    %v4118 = vmul.f32 %v3866, %v4109
    %v4119 = vperm.slane %v4065, 0
    %v4120 = vperm.slane %v4085, 0
    %v4121 = vperm.slane %v4105, 0
    %v4122 = vadd.f32 %v4110, %v4119
    %v4123 = vadd.f32 %v4111, %v4120
    %v4124 = vadd.f32 %v4112, %v4121
    %v4125 = vadd.f32 %v4113, %v4119
    %v4126 = vadd.f32 %v4114, %v4120
    %v4127 = vadd.f32 %v4115, %v4121
    %v4128 = vadd.f32 %v4116, %v4119
    %v4129 = vadd.f32 %v4117, %v4120
    %v4130 = vadd.f32 %v4118, %v4121
    %vm4131 = vcmp.ge.f32.partialorder %v4122, 0.0
    %vm4132 = vcmp.ge.f32.partialorder %v4123, 0.0
    %vm4133 = vcmp.ge.f32.partialorder %v4124, 0.0
    %vm4134 = vcmp.ge.f32.partialorder %v4125, 0.0
    %vm4135 = vcmp.ge.f32.partialorder %v4126, 0.0
    %vm4136 = vcmp.ge.f32.partialorder %v4127, 0.0
    %vm4137 = vcmp.ge.f32.partialorder %v4128, 0.0
    %vm4138 = vcmp.ge.f32.partialorder %v4129, 0.0
    %vm4139 = vcmp.ge.f32.partialorder %v4130, 0.0
    %v4140 = vmul.f32 %v4122, 0.2
    %v4141 = vmul.f32 %v4123, 0.2
    %v4142 = vmul.f32 %v4124, 0.2
    %v4143 = vmul.f32 %v4125, 0.2
    %v4144 = vmul.f32 %v4126, 0.2
    %v4145 = vmul.f32 %v4127, 0.2
    %v4146 = vmul.f32 %v4128, 0.2
    %v4147 = vmul.f32 %v4129, 0.2
    %v4148 = vmul.f32 %v4130, 0.2
    %v4149 = vsel %vm4131, %v4122, %v4140
    %v4150 = vsel %vm4132, %v4123, %v4141
    %v4151 = vsel %vm4133, %v4124, %v4142
    %v4152 = vsel %vm4134, %v4125, %v4143
    %v4153 = vsel %vm4135, %v4126, %v4144
    %v4154 = vsel %vm4136, %v4127, %v4145
    %v4155 = vsel %vm4137, %v4128, %v4146
    %v4156 = vsel %vm4138, %v4129, %v4147
    %v4157 = vsel %vm4139, %v4130, %v4148
    %v4158 = vld [vmem:[%s11] sm:$0xff]
    %v4159 = vld [vmem:[%s11 + $0x8] sm:$0xf]
    %vm4160 = vcmask 195584
    %v4162 = vsel %vm4160, %v4158, 0
    %v4165 = vsel %vm4160, %v4159, 0
    %4167 = vmatpush.msra.mxu0 0.0
    %4168 = vmatpush.msra.mxu0 0.0
    %4169 = vmatpush.msra.mxu0 0.0
    %4170 = vmatpush.msra.mxu0 0.0
    %4171 = vmatpush.msra.mxu0 0.0
    %4172 = vmatpush.msra.mxu0 0.0
    %4173 = vmatpush.msra.mxu0 0.0
    %4174 = vmatpush.msra.mxu0 0.0
    %4175 = vmatpush.msra.mxu0 0.0
    %4176 = vmatpush.msra.mxu0 0.0
    %4177 = vmatpush.msra.mxu0 0.0
    %4178 = vmatpush.msra.mxu0 0.0
    %4179 = vmatpush.msra.mxu0 0.0
    %4180 = vmatpush.msra.mxu0 %v4155
    %4181 = vmatpush.msra.mxu0 %v4152
    %4182 = vmatpush.msra.mxu0 %v4149
    %4183 = vmatmul.f32.gmra.mxu0 %v4162
    %v4184 = vpop.f32.mrf.mxu0
    %v4185 = vadd.f32 0.0, %v4184
    %4186 = vmatmul.f32.gmra.mxu0 %v4165
    %v4187 = vpop.f32.mrf.mxu0
    %v4188 = vadd.f32 0.0, %v4187
    %4189 = vdwg.mxu0
    %4190 = vmatpush.msra.mxu0 0.0
    %4191 = vmatpush.msra.mxu0 0.0
    %4192 = vmatpush.msra.mxu0 0.0
    %4193 = vmatpush.msra.mxu0 0.0
    %4194 = vmatpush.msra.mxu0 0.0
    %4195 = vmatpush.msra.mxu0 0.0
    %4196 = vmatpush.msra.mxu0 0.0
    %4197 = vmatpush.msra.mxu0 0.0
    %4198 = vmatpush.msra.mxu0 0.0
    %4199 = vmatpush.msra.mxu0 0.0
    %4200 = vmatpush.msra.mxu0 0.0
    %4201 = vmatpush.msra.mxu0 0.0
    %4202 = vmatpush.msra.mxu0 0.0
    %4203 = vmatpush.msra.mxu0 %v4156
    %4204 = vmatpush.msra.mxu0 %v4153
    %4205 = vmatpush.msra.mxu0 %v4150
    %4206 = vmatmul.f32.gmra.mxu0 %v4162
    %v4207 = vpop.f32.mrf.mxu0
    %v4208 = vadd.f32 0.0, %v4207
    %4209 = vmatmul.f32.gmra.mxu0 %v4165
    %v4210 = vpop.f32.mrf.mxu0
    %v4211 = vadd.f32 0.0, %v4210
    %4212 = vdwg.mxu0
    %4213 = vmatpush.msra.mxu0 0.0
    %4214 = vmatpush.msra.mxu0 0.0
    %4215 = vmatpush.msra.mxu0 0.0
    %4216 = vmatpush.msra.mxu0 0.0
    %4217 = vmatpush.msra.mxu0 0.0
    %4218 = vmatpush.msra.mxu0 0.0
    %4219 = vmatpush.msra.mxu0 0.0
    %4220 = vmatpush.msra.mxu0 0.0
    %4221 = vmatpush.msra.mxu0 0.0
    %4222 = vmatpush.msra.mxu0 0.0
    %4223 = vmatpush.msra.mxu0 0.0
    %4224 = vmatpush.msra.mxu0 0.0
    %4225 = vmatpush.msra.mxu0 0.0
    %4226 = vmatpush.msra.mxu0 %v4157
    %4227 = vmatpush.msra.mxu0 %v4154
    %4228 = vmatpush.msra.mxu0 %v4151
    %4229 = vmatmul.f32.gmra.mxu0 %v4162
    %v4230 = vpop.f32.mrf.mxu0
    %v4231 = vadd.f32 0.0, %v4230
    %4232 = vmatmul.f32.gmra.mxu0 %v4165
    %v4233 = vpop.f32.mrf.mxu0
    %v4234 = vadd.f32 0.0, %v4233
    %4235 = vdwg.mxu0
    %v4236 = vld [vmem:[#allocation16] sm:$0xff]
    %v4237 = vld [vmem:[#allocation16 + $0x8] sm:$0xff]
    %v4238 = vld [vmem:[#allocation16 + $0x10] sm:$0xff]
    %v4239 = vld [vmem:[#allocation16 + $0x18] sm:$0xff]
    %v4240 = vld [vmem:[#allocation16 + $0x20] sm:$0xff]
    %v4241 = vld [vmem:[#allocation16 + $0x28] sm:$0xff]
    %v4242 = vld [vmem:[#allocation16 + $0x30] sm:$0xff]
    %v4243 = vld [vmem:[#allocation16 + $0x38] sm:$0xff]
    %v4244 = vld [vmem:[#allocation16 + $0x40] sm:$0xff]
    %v4245 = vld [vmem:[#allocation16 + $0x48] sm:$0xff]
    %v4246 = vld [vmem:[#allocation16 + $0x50] sm:$0xff]
    %v4247 = vld [vmem:[#allocation16 + $0x58] sm:$0xff]
    %v4248 = vld [vmem:[#allocation16 + $0x60] sm:$0xff]
    %v4249 = vld [vmem:[#allocation16 + $0x68] sm:$0xff]
    %v4250 = vld [vmem:[#allocation16 + $0x70] sm:$0xff]
    %v4251 = vld [vmem:[#allocation16 + $0x78] sm:$0xff]
    %v4252 = vld [vmem:[#allocation16 + $0x80] sm:$0xff]
    %v4253 = vld [vmem:[#allocation16 + $0x88] sm:$0xff]
    %v4254 = vld [vmem:[#allocation16 + $0x90] sm:$0xff]
    %v4255 = vld [vmem:[#allocation16 + $0x98] sm:$0xff]
    %v4256 = vld [vmem:[#allocation16 + $0xa0] sm:$0xff]
    %v4257 = vld [vmem:[#allocation16 + $0xa8] sm:$0xff]
    %v4258 = vld [vmem:[#allocation16 + $0xb0] sm:$0xff]
    %v4259 = vld [vmem:[#allocation16 + $0xb8] sm:$0xff]
    %v4260 = vld [vmem:[#allocation16 + $0xc0] sm:$0xff]
    %v4261 = vld [vmem:[#allocation16 + $0xc8] sm:$0xff]
    %v4262 = vld [vmem:[#allocation16 + $0xd0] sm:$0xff]
    %v4263 = vld [vmem:[#allocation16 + $0xd8] sm:$0xff]
    %v4264 = vld [vmem:[#allocation16 + $0xe0] sm:$0xff]
    %v4265 = vld [vmem:[#allocation16 + $0xe8] sm:$0xff]
    %v4266 = vld [vmem:[#allocation16 + $0xf0] sm:$0xff]
    %v4267 = vld [vmem:[#allocation16 + $0xf8] sm:$0xff]
    %v4268 = vld [vmem:[#allocation16 + $0x100] sm:$0xff]
    %v4269 = vld [vmem:[#allocation16 + $0x108] sm:$0xff]
    %v4270 = vld [vmem:[#allocation16 + $0x110] sm:$0xff]
    %v4271 = vld [vmem:[#allocation16 + $0x118] sm:$0xff]
    %v4272 = vld [vmem:[#allocation16 + $0x120] sm:$0xff]
    %v4273 = vld [vmem:[#allocation16 + $0x128] sm:$0xff]
    %v4274 = vld [vmem:[#allocation16 + $0x130] sm:$0xff]
    %v4275 = vld [vmem:[#allocation16 + $0x138] sm:$0xff]
    %v4276 = vld [vmem:[#allocation16 + $0x140] sm:$0xff]
    %v4277 = vld [vmem:[#allocation16 + $0x148] sm:$0xff]
    %v4278 = vld [vmem:[#allocation16 + $0x150] sm:$0xff]
    %v4279 = vld [vmem:[#allocation16 + $0x158] sm:$0xff]
    %v4280 = vld [vmem:[#allocation16 + $0x160] sm:$0xff]
    %v4281 = vld [vmem:[#allocation16 + $0x168] sm:$0xff]
    %v4282 = vld [vmem:[#allocation16 + $0x170] sm:$0xff]
    %v4283 = vld [vmem:[#allocation16 + $0x178] sm:$0xff]
    %v4284 = vld [vmem:[#allocation16 + $0x180] sm:$0xff]
    %v4285 = vld [vmem:[#allocation16 + $0x188] sm:$0xff]
    %v4286 = vld [vmem:[#allocation16 + $0x190] sm:$0xff]
    %v4287 = vld [vmem:[#allocation16 + $0x198] sm:$0xff]
    %v4288 = vld [vmem:[#allocation16 + $0x1a0] sm:$0xff]
    %v4289 = vld [vmem:[#allocation16 + $0x1a8] sm:$0xff]
    %v4290 = vld [vmem:[#allocation16 + $0x1b0] sm:$0xff]
    %v4291 = vld [vmem:[#allocation16 + $0x1b8] sm:$0xff]
    %v4292 = vld [vmem:[#allocation16 + $0x1c0] sm:$0xff]
    %v4293 = vld [vmem:[#allocation16 + $0x1c8] sm:$0xff]
    %v4294 = vld [vmem:[#allocation16 + $0x1d0] sm:$0xff]
    %v4295 = vld [vmem:[#allocation16 + $0x1d8] sm:$0xff]
    %v4296 = vld [vmem:[#allocation16 + $0x1e0] sm:$0xff]
    %v4297 = vld [vmem:[#allocation16 + $0x1e8] sm:$0xff]
    %v4298 = vld [vmem:[#allocation16 + $0x1f0] sm:$0xff]
    %v4299 = vld [vmem:[#allocation16 + $0x1f8] sm:$0xff]
    %v4300 = vld [vmem:[#allocation16 + $0x200] sm:$0xff]
    %v4301 = vld [vmem:[#allocation16 + $0x208] sm:$0xff]
    %v4302 = vld [vmem:[#allocation16 + $0x210] sm:$0xff]
    %v4303 = vld [vmem:[#allocation16 + $0x218] sm:$0xff]
    %v4304 = vld [vmem:[#allocation16 + $0x220] sm:$0xff]
    %v4305 = vld [vmem:[#allocation16 + $0x228] sm:$0xff]
    %v4306 = vld [vmem:[#allocation16 + $0x230] sm:$0xff]
    %v4307 = vld [vmem:[#allocation16 + $0x238] sm:$0xff]
    %v4308 = vld [vmem:[#allocation16 + $0x240] sm:$0xff]
    %v4309 = vld [vmem:[#allocation16 + $0x248] sm:$0xff]
    %v4310 = vld [vmem:[#allocation16 + $0x250] sm:$0xff]
    %v4311 = vld [vmem:[#allocation16 + $0x258] sm:$0xff]
    %v4312 = vld [vmem:[#allocation16 + $0x260] sm:$0xff]
    %v4313 = vld [vmem:[#allocation16 + $0x268] sm:$0xff]
    %v4314 = vld [vmem:[#allocation16 + $0x270] sm:$0xff]
    %v4315 = vld [vmem:[#allocation16 + $0x278] sm:$0xff]
    %v4316 = vld [vmem:[#allocation16 + $0x280] sm:$0xff]
    %v4317 = vld [vmem:[#allocation16 + $0x288] sm:$0xff]
    %v4318 = vld [vmem:[#allocation16 + $0x290] sm:$0xff]
    %v4319 = vld [vmem:[#allocation16 + $0x298] sm:$0xff]
    %v4320 = vld [vmem:[#allocation16 + $0x2a0] sm:$0xff]
    %v4321 = vld [vmem:[#allocation16 + $0x2a8] sm:$0xff]
    %v4322 = vld [vmem:[#allocation16 + $0x2b0] sm:$0xff]
    %v4323 = vld [vmem:[#allocation16 + $0x2b8] sm:$0xff]
    %v4324 = vld [vmem:[#allocation16 + $0x2c0] sm:$0xff]
    %v4325 = vld [vmem:[#allocation16 + $0x2c8] sm:$0xff]
    %v4326 = vld [vmem:[#allocation16 + $0x2d0] sm:$0xff]
    %v4327 = vld [vmem:[#allocation16 + $0x2d8] sm:$0xff]
    %v4328 = vld [vmem:[#allocation16 + $0x2e0] sm:$0xff]
    %v4329 = vld [vmem:[#allocation16 + $0x2e8] sm:$0xff]
    %v4330 = vld [vmem:[#allocation16 + $0x2f0] sm:$0xff]
    %v4331 = vld [vmem:[#allocation16 + $0x2f8] sm:$0xff]
    %v4332 = vld [vmem:[#allocation16 + $0x300] sm:$0xff]
    %v4333 = vld [vmem:[#allocation16 + $0x308] sm:$0xff]
    %v4334 = vld [vmem:[#allocation16 + $0x310] sm:$0xff]
    %v4335 = vld [vmem:[#allocation16 + $0x318] sm:$0xff]
    %v4336 = vld [vmem:[#allocation16 + $0x320] sm:$0xff]
    %v4337 = vld [vmem:[#allocation16 + $0x328] sm:$0xff]
    %v4338 = vld [vmem:[#allocation16 + $0x330] sm:$0xff]
    %v4339 = vld [vmem:[#allocation16 + $0x338] sm:$0xff]
    %v4340 = vld [vmem:[#allocation16 + $0x340] sm:$0xff]
    %v4341 = vld [vmem:[#allocation16 + $0x348] sm:$0xff]
    %v4342 = vld [vmem:[#allocation16 + $0x350] sm:$0xff]
    %v4343 = vld [vmem:[#allocation16 + $0x358] sm:$0xff]
    %v4344 = vld [vmem:[#allocation16 + $0x360] sm:$0xff]
    %v4345 = vld [vmem:[#allocation16 + $0x368] sm:$0xff]
    %v4346 = vld [vmem:[#allocation16 + $0x370] sm:$0xff]
    %v4347 = vld [vmem:[#allocation16 + $0x378] sm:$0xff]
    %v4348 = vld [vmem:[#allocation16 + $0x380] sm:$0xff]
    %v4349 = vld [vmem:[#allocation16 + $0x388] sm:$0xff]
    %v4350 = vld [vmem:[#allocation16 + $0x390] sm:$0xff]
    %v4351 = vld [vmem:[#allocation16 + $0x398] sm:$0xff]
    %v4352 = vld [vmem:[#allocation16 + $0x3a0] sm:$0xff]
    %v4353 = vld [vmem:[#allocation16 + $0x3a8] sm:$0xff]
    %v4354 = vld [vmem:[#allocation16 + $0x3b0] sm:$0xff]
    %v4355 = vld [vmem:[#allocation16 + $0x3b8] sm:$0xff]
    %s4356 = scalar_lea.vmem %s11, 16
    %v4357 = vld [vmem:[%s4356] sm:$0xff]
    %v4358 = vld [vmem:[%s4356 + $0x8] sm:$0xf]
    %v4360 = vsel %vm4160, %v4357, 0
    %v4363 = vsel %vm4160, %v4358, 0
    %4365 = vmatpush.msra.mxu0 0.0
    %4366 = vmatpush.msra.mxu0 0.0
    %4367 = vmatpush.msra.mxu0 0.0
    %4368 = vmatpush.msra.mxu0 0.0
    %4369 = vmatpush.msra.mxu0 0.0
    %4370 = vmatpush.msra.mxu0 0.0
    %4371 = vmatpush.msra.mxu0 0.0
    %4372 = vmatpush.msra.mxu0 0.0
    %4373 = vmatpush.msra.mxu0 0.0
    %4374 = vmatpush.msra.mxu0 0.0
    %4375 = vmatpush.msra.mxu0 0.0
    %4376 = vmatpush.msra.mxu0 0.0
    %4377 = vmatpush.msra.mxu0 0.0
    %4378 = vmatpush.msra.mxu0 %v4155
    %4379 = vmatpush.msra.mxu0 %v4152
    %4380 = vmatpush.msra.mxu0 %v4149
    %4381 = vmatmul.f32.gmra.mxu0 %v4360
    %v4382 = vpop.f32.mrf.mxu0
    %v4383 = vadd.f32 0.0, %v4382
    %4384 = vmatmul.f32.gmra.mxu0 %v4363
    %v4385 = vpop.f32.mrf.mxu0
    %v4386 = vadd.f32 0.0, %v4385
    %4387 = vdwg.mxu0
    %4388 = vmatpush.msra.mxu0 0.0
    %4389 = vmatpush.msra.mxu0 0.0
    %4390 = vmatpush.msra.mxu0 0.0
    %4391 = vmatpush.msra.mxu0 0.0
    %4392 = vmatpush.msra.mxu0 0.0
    %4393 = vmatpush.msra.mxu0 0.0
    %4394 = vmatpush.msra.mxu0 0.0
    %4395 = vmatpush.msra.mxu0 0.0
    %4396 = vmatpush.msra.mxu0 0.0
    %4397 = vmatpush.msra.mxu0 0.0
    %4398 = vmatpush.msra.mxu0 0.0
    %4399 = vmatpush.msra.mxu0 0.0
    %4400 = vmatpush.msra.mxu0 0.0
    %4401 = vmatpush.msra.mxu0 %v4156
    %4402 = vmatpush.msra.mxu0 %v4153
    %4403 = vmatpush.msra.mxu0 %v4150
    %4404 = vmatmul.f32.gmra.mxu0 %v4360
    %v4405 = vpop.f32.mrf.mxu0
    %v4406 = vadd.f32 0.0, %v4405
    %4407 = vmatmul.f32.gmra.mxu0 %v4363
    %v4408 = vpop.f32.mrf.mxu0
    %v4409 = vadd.f32 0.0, %v4408
    %4410 = vdwg.mxu0
    %4411 = vmatpush.msra.mxu0 0.0
    %4412 = vmatpush.msra.mxu0 0.0
    %4413 = vmatpush.msra.mxu0 0.0
    %4414 = vmatpush.msra.mxu0 0.0
    %4415 = vmatpush.msra.mxu0 0.0
    %4416 = vmatpush.msra.mxu0 0.0
    %4417 = vmatpush.msra.mxu0 0.0
    %4418 = vmatpush.msra.mxu0 0.0
    %4419 = vmatpush.msra.mxu0 0.0
    %4420 = vmatpush.msra.mxu0 0.0
    %4421 = vmatpush.msra.mxu0 0.0
    %4422 = vmatpush.msra.mxu0 0.0
    %4423 = vmatpush.msra.mxu0 0.0
    %4424 = vmatpush.msra.mxu0 %v4157
    %4425 = vmatpush.msra.mxu0 %v4154
    %4426 = vmatpush.msra.mxu0 %v4151
    %4427 = vmatmul.f32.gmra.mxu0 %v4360
    %v4428 = vpop.f32.mrf.mxu0
    %v4429 = vadd.f32 0.0, %v4428
    %4430 = vmatmul.f32.gmra.mxu0 %v4363
    %v4431 = vpop.f32.mrf.mxu0
    %v4432 = vadd.f32 0.0, %v4431
    %4433 = vdwg.mxu0
    %s4434 = scalar_lea.vmem [#allocation16], 960
    %v4435 = vld [vmem:[%s4434] sm:$0xff]
    %v4436 = vld [vmem:[%s4434 + $0x8] sm:$0xff]
    %v4437 = vld [vmem:[%s4434 + $0x10] sm:$0xff]
    %v4438 = vld [vmem:[%s4434 + $0x18] sm:$0xff]
    %v4439 = vld [vmem:[%s4434 + $0x20] sm:$0xff]
    %v4440 = vld [vmem:[%s4434 + $0x28] sm:$0xff]
    %v4441 = vld [vmem:[%s4434 + $0x30] sm:$0xff]
    %v4442 = vld [vmem:[%s4434 + $0x38] sm:$0xff]
    %v4443 = vld [vmem:[%s4434 + $0x40] sm:$0xff]
    %v4444 = vld [vmem:[%s4434 + $0x48] sm:$0xff]
    %v4445 = vld [vmem:[%s4434 + $0x50] sm:$0xff]
    %v4446 = vld [vmem:[%s4434 + $0x58] sm:$0xff]
    %v4447 = vld [vmem:[%s4434 + $0x60] sm:$0xff]
    %v4448 = vld [vmem:[%s4434 + $0x68] sm:$0xff]
    %v4449 = vld [vmem:[%s4434 + $0x70] sm:$0xff]
    %v4450 = vld [vmem:[%s4434 + $0x78] sm:$0xff]
    %v4451 = vld [vmem:[%s4434 + $0x80] sm:$0xff]
    %v4452 = vld [vmem:[%s4434 + $0x88] sm:$0xff]
    %v4453 = vld [vmem:[%s4434 + $0x90] sm:$0xff]
    %v4454 = vld [vmem:[%s4434 + $0x98] sm:$0xff]
    %v4455 = vld [vmem:[%s4434 + $0xa0] sm:$0xff]
    %v4456 = vld [vmem:[%s4434 + $0xa8] sm:$0xff]
    %v4457 = vld [vmem:[%s4434 + $0xb0] sm:$0xff]
    %v4458 = vld [vmem:[%s4434 + $0xb8] sm:$0xff]
    %v4459 = vld [vmem:[%s4434 + $0xc0] sm:$0xff]
    %v4460 = vld [vmem:[%s4434 + $0xc8] sm:$0xff]
    %v4461 = vld [vmem:[%s4434 + $0xd0] sm:$0xff]
    %v4462 = vld [vmem:[%s4434 + $0xd8] sm:$0xff]
    %v4463 = vld [vmem:[%s4434 + $0xe0] sm:$0xff]
    %v4464 = vld [vmem:[%s4434 + $0xe8] sm:$0xff]
    %v4465 = vld [vmem:[%s4434 + $0xf0] sm:$0xff]
    %v4466 = vld [vmem:[%s4434 + $0xf8] sm:$0xff]
    %v4467 = vld [vmem:[%s4434 + $0x100] sm:$0xff]
    %v4468 = vld [vmem:[%s4434 + $0x108] sm:$0xff]
    %v4469 = vld [vmem:[%s4434 + $0x110] sm:$0xff]
    %v4470 = vld [vmem:[%s4434 + $0x118] sm:$0xff]
    %v4471 = vld [vmem:[%s4434 + $0x120] sm:$0xff]
    %v4472 = vld [vmem:[%s4434 + $0x128] sm:$0xff]
    %v4473 = vld [vmem:[%s4434 + $0x130] sm:$0xff]
    %v4474 = vld [vmem:[%s4434 + $0x138] sm:$0xff]
    %v4475 = vld [vmem:[%s4434 + $0x140] sm:$0xff]
    %v4476 = vld [vmem:[%s4434 + $0x148] sm:$0xff]
    %v4477 = vld [vmem:[%s4434 + $0x150] sm:$0xff]
    %v4478 = vld [vmem:[%s4434 + $0x158] sm:$0xff]
    %v4479 = vld [vmem:[%s4434 + $0x160] sm:$0xff]
    %v4480 = vld [vmem:[%s4434 + $0x168] sm:$0xff]
    %v4481 = vld [vmem:[%s4434 + $0x170] sm:$0xff]
    %v4482 = vld [vmem:[%s4434 + $0x178] sm:$0xff]
    %v4483 = vld [vmem:[%s4434 + $0x180] sm:$0xff]
    %v4484 = vld [vmem:[%s4434 + $0x188] sm:$0xff]
    %v4485 = vld [vmem:[%s4434 + $0x190] sm:$0xff]
    %v4486 = vld [vmem:[%s4434 + $0x198] sm:$0xff]
    %v4487 = vld [vmem:[%s4434 + $0x1a0] sm:$0xff]
    %v4488 = vld [vmem:[%s4434 + $0x1a8] sm:$0xff]
    %v4489 = vld [vmem:[%s4434 + $0x1b0] sm:$0xff]
    %v4490 = vld [vmem:[%s4434 + $0x1b8] sm:$0xff]
    %v4491 = vld [vmem:[%s4434 + $0x1c0] sm:$0xff]
    %v4492 = vld [vmem:[%s4434 + $0x1c8] sm:$0xff]
    %v4493 = vld [vmem:[%s4434 + $0x1d0] sm:$0xff]
    %v4494 = vld [vmem:[%s4434 + $0x1d8] sm:$0xff]
    %v4495 = vld [vmem:[%s4434 + $0x1e0] sm:$0xff]
    %v4496 = vld [vmem:[%s4434 + $0x1e8] sm:$0xff]
    %v4497 = vld [vmem:[%s4434 + $0x1f0] sm:$0xff]
    %v4498 = vld [vmem:[%s4434 + $0x1f8] sm:$0xff]
    %v4499 = vld [vmem:[%s4434 + $0x200] sm:$0xff]
    %v4500 = vld [vmem:[%s4434 + $0x208] sm:$0xff]
    %v4501 = vld [vmem:[%s4434 + $0x210] sm:$0xff]
    %v4502 = vld [vmem:[%s4434 + $0x218] sm:$0xff]
    %v4503 = vld [vmem:[%s4434 + $0x220] sm:$0xff]
    %v4504 = vld [vmem:[%s4434 + $0x228] sm:$0xff]
    %v4505 = vld [vmem:[%s4434 + $0x230] sm:$0xff]
    %v4506 = vld [vmem:[%s4434 + $0x238] sm:$0xff]
    %v4507 = vld [vmem:[%s4434 + $0x240] sm:$0xff]
    %v4508 = vld [vmem:[%s4434 + $0x248] sm:$0xff]
    %v4509 = vld [vmem:[%s4434 + $0x250] sm:$0xff]
    %v4510 = vld [vmem:[%s4434 + $0x258] sm:$0xff]
    %v4511 = vld [vmem:[%s4434 + $0x260] sm:$0xff]
    %v4512 = vld [vmem:[%s4434 + $0x268] sm:$0xff]
    %v4513 = vld [vmem:[%s4434 + $0x270] sm:$0xff]
    %v4514 = vld [vmem:[%s4434 + $0x278] sm:$0xff]
    %v4515 = vld [vmem:[%s4434 + $0x280] sm:$0xff]
    %v4516 = vld [vmem:[%s4434 + $0x288] sm:$0xff]
    %v4517 = vld [vmem:[%s4434 + $0x290] sm:$0xff]
    %v4518 = vld [vmem:[%s4434 + $0x298] sm:$0xff]
    %v4519 = vld [vmem:[%s4434 + $0x2a0] sm:$0xff]
    %v4520 = vld [vmem:[%s4434 + $0x2a8] sm:$0xff]
    %v4521 = vld [vmem:[%s4434 + $0x2b0] sm:$0xff]
    %v4522 = vld [vmem:[%s4434 + $0x2b8] sm:$0xff]
    %v4523 = vld [vmem:[%s4434 + $0x2c0] sm:$0xff]
    %v4524 = vld [vmem:[%s4434 + $0x2c8] sm:$0xff]
    %v4525 = vld [vmem:[%s4434 + $0x2d0] sm:$0xff]
    %v4526 = vld [vmem:[%s4434 + $0x2d8] sm:$0xff]
    %v4527 = vld [vmem:[%s4434 + $0x2e0] sm:$0xff]
    %v4528 = vld [vmem:[%s4434 + $0x2e8] sm:$0xff]
    %v4529 = vld [vmem:[%s4434 + $0x2f0] sm:$0xff]
    %v4530 = vld [vmem:[%s4434 + $0x2f8] sm:$0xff]
    %v4531 = vld [vmem:[%s4434 + $0x300] sm:$0xff]
    %v4532 = vld [vmem:[%s4434 + $0x308] sm:$0xff]
    %v4533 = vld [vmem:[%s4434 + $0x310] sm:$0xff]
    %v4534 = vld [vmem:[%s4434 + $0x318] sm:$0xff]
    %v4535 = vld [vmem:[%s4434 + $0x320] sm:$0xff]
    %v4536 = vld [vmem:[%s4434 + $0x328] sm:$0xff]
    %v4537 = vld [vmem:[%s4434 + $0x330] sm:$0xff]
    %v4538 = vld [vmem:[%s4434 + $0x338] sm:$0xff]
    %v4539 = vld [vmem:[%s4434 + $0x340] sm:$0xff]
    %v4540 = vld [vmem:[%s4434 + $0x348] sm:$0xff]
    %v4541 = vld [vmem:[%s4434 + $0x350] sm:$0xff]
    %v4542 = vld [vmem:[%s4434 + $0x358] sm:$0xff]
    %v4543 = vld [vmem:[%s4434 + $0x360] sm:$0xff]
    %v4544 = vld [vmem:[%s4434 + $0x368] sm:$0xff]
    %v4545 = vld [vmem:[%s4434 + $0x370] sm:$0xff]
    %v4546 = vld [vmem:[%s4434 + $0x378] sm:$0xff]
    %v4547 = vld [vmem:[%s4434 + $0x380] sm:$0xff]
    %v4548 = vld [vmem:[%s4434 + $0x388] sm:$0xff]
    %v4549 = vld [vmem:[%s4434 + $0x390] sm:$0xff]
    %v4550 = vld [vmem:[%s4434 + $0x398] sm:$0xff]
    %v4551 = vld [vmem:[%s4434 + $0x3a0] sm:$0xff]
    %v4552 = vld [vmem:[%s4434 + $0x3a8] sm:$0xff]
    %v4553 = vld [vmem:[%s4434 + $0x3b0] sm:$0xff]
    %v4554 = vld [vmem:[%s4434 + $0x3b8] sm:$0xff]
    %v4556 = vsel %vm1250, %v4429, 0
    %v4559 = vsel %vm1250, %v4432, 0
    %4561 = vmatpush.msra.mxu0 %v4480
    %4562 = vmatpush.msra.mxu0 %v4477
    %4563 = vmatpush.msra.mxu0 %v4474
    %4564 = vmatpush.msra.mxu0 %v4471
    %4565 = vmatpush.msra.mxu0 %v4468
    %4566 = vmatpush.msra.mxu0 %v4465
    %4567 = vmatpush.msra.mxu0 %v4462
    %4568 = vmatpush.msra.mxu0 %v4459
    %4569 = vmatpush.msra.mxu0 %v4456
    %4570 = vmatpush.msra.mxu0 %v4453
    %4571 = vmatpush.msra.mxu0 %v4450
    %4572 = vmatpush.msra.mxu0 %v4447
    %4573 = vmatpush.msra.mxu0 %v4444
    %4574 = vmatpush.msra.mxu0 %v4441
    %4575 = vmatpush.msra.mxu0 %v4438
    %4576 = vmatpush.msra.mxu0 %v4435
    %4577 = vmatmul.f32.gmra.mxu0 %v4383
    %v4578 = vpop.f32.mrf.mxu0
    %v4579 = vadd.f32 0.0, %v4578
    %4580 = vmatmul.f32.gmra.mxu0 %v4386
    %v4581 = vpop.f32.mrf.mxu0
    %v4582 = vadd.f32 0.0, %v4581
    %4583 = vdwg.mxu0
    %4584 = vmatpush.msra.mxu0 %v4528
    %4585 = vmatpush.msra.mxu0 %v4525
    %4586 = vmatpush.msra.mxu0 %v4522
    %4587 = vmatpush.msra.mxu0 %v4519
    %4588 = vmatpush.msra.mxu0 %v4516
    %4589 = vmatpush.msra.mxu0 %v4513
    %4590 = vmatpush.msra.mxu0 %v4510
    %4591 = vmatpush.msra.mxu0 %v4507
    %4592 = vmatpush.msra.mxu0 %v4504
    %4593 = vmatpush.msra.mxu0 %v4501
    %4594 = vmatpush.msra.mxu0 %v4498
    %4595 = vmatpush.msra.mxu0 %v4495
    %4596 = vmatpush.msra.mxu0 %v4492
    %4597 = vmatpush.msra.mxu0 %v4489
    %4598 = vmatpush.msra.mxu0 %v4486
    %4599 = vmatpush.msra.mxu0 %v4483
    %4600 = vmatmul.f32.gmra.mxu0 %v4406
    %v4601 = vpop.f32.mrf.mxu0
    %v4602 = vadd.f32 %v4579, %v4601
    %4603 = vmatmul.f32.gmra.mxu0 %v4409
    %v4604 = vpop.f32.mrf.mxu0
    %v4605 = vadd.f32 %v4582, %v4604
    %4606 = vdwg.mxu0
    %4607 = vmatpush.msra.mxu0 0.0
    %4608 = vmatpush.msra.mxu0 0.0
    %4609 = vmatpush.msra.mxu0 0.0
    %4610 = vmatpush.msra.mxu0 0.0
    %4611 = vmatpush.msra.mxu0 0.0
    %4612 = vmatpush.msra.mxu0 0.0
    %4613 = vmatpush.msra.mxu0 0.0
    %4614 = vmatpush.msra.mxu0 0.0
    %4615 = vmatpush.msra.mxu0 %v4552
    %4616 = vmatpush.msra.mxu0 %v4549
    %4617 = vmatpush.msra.mxu0 %v4546
    %4618 = vmatpush.msra.mxu0 %v4543
    %4619 = vmatpush.msra.mxu0 %v4540
    %4620 = vmatpush.msra.mxu0 %v4537
    %4621 = vmatpush.msra.mxu0 %v4534
    %4622 = vmatpush.msra.mxu0 %v4531
    %4623 = vmatmul.f32.gmra.mxu0 %v4556
    %v4624 = vpop.f32.mrf.mxu0
    %v4625 = vadd.f32 %v4602, %v4624
    %4626 = vmatmul.f32.gmra.mxu0 %v4559
    %v4627 = vpop.f32.mrf.mxu0
    %v4628 = vadd.f32 %v4605, %v4627
    %4629 = vdwg.mxu0
    %4630 = vmatpush.msra.mxu0 %v4481
    %4631 = vmatpush.msra.mxu0 %v4478
    %4632 = vmatpush.msra.mxu0 %v4475
    %4633 = vmatpush.msra.mxu0 %v4472
    %4634 = vmatpush.msra.mxu0 %v4469
    %4635 = vmatpush.msra.mxu0 %v4466
    %4636 = vmatpush.msra.mxu0 %v4463
    %4637 = vmatpush.msra.mxu0 %v4460
    %4638 = vmatpush.msra.mxu0 %v4457
    %4639 = vmatpush.msra.mxu0 %v4454
    %4640 = vmatpush.msra.mxu0 %v4451
    %4641 = vmatpush.msra.mxu0 %v4448
    %4642 = vmatpush.msra.mxu0 %v4445
    %4643 = vmatpush.msra.mxu0 %v4442
    %4644 = vmatpush.msra.mxu0 %v4439
    %4645 = vmatpush.msra.mxu0 %v4436
    %4646 = vmatmul.f32.gmra.mxu0 %v4383
    %v4647 = vpop.f32.mrf.mxu0
    %v4648 = vadd.f32 0.0, %v4647
    %4649 = vmatmul.f32.gmra.mxu0 %v4386
    %v4650 = vpop.f32.mrf.mxu0
    %v4651 = vadd.f32 0.0, %v4650
    %4652 = vdwg.mxu0
    %4653 = vmatpush.msra.mxu0 %v4529
    %4654 = vmatpush.msra.mxu0 %v4526
    %4655 = vmatpush.msra.mxu0 %v4523
    %4656 = vmatpush.msra.mxu0 %v4520
    %4657 = vmatpush.msra.mxu0 %v4517
    %4658 = vmatpush.msra.mxu0 %v4514
    %4659 = vmatpush.msra.mxu0 %v4511
    %4660 = vmatpush.msra.mxu0 %v4508
    %4661 = vmatpush.msra.mxu0 %v4505
    %4662 = vmatpush.msra.mxu0 %v4502
    %4663 = vmatpush.msra.mxu0 %v4499
    %4664 = vmatpush.msra.mxu0 %v4496
    %4665 = vmatpush.msra.mxu0 %v4493
    %4666 = vmatpush.msra.mxu0 %v4490
    %4667 = vmatpush.msra.mxu0 %v4487
    %4668 = vmatpush.msra.mxu0 %v4484
    %4669 = vmatmul.f32.gmra.mxu0 %v4406
    %v4670 = vpop.f32.mrf.mxu0
    %v4671 = vadd.f32 %v4648, %v4670
    %4672 = vmatmul.f32.gmra.mxu0 %v4409
    %v4673 = vpop.f32.mrf.mxu0
    %v4674 = vadd.f32 %v4651, %v4673
    %4675 = vdwg.mxu0
    %4676 = vmatpush.msra.mxu0 0.0
    %4677 = vmatpush.msra.mxu0 0.0
    %4678 = vmatpush.msra.mxu0 0.0
    %4679 = vmatpush.msra.mxu0 0.0
    %4680 = vmatpush.msra.mxu0 0.0
    %4681 = vmatpush.msra.mxu0 0.0
    %4682 = vmatpush.msra.mxu0 0.0
    %4683 = vmatpush.msra.mxu0 0.0
    %4684 = vmatpush.msra.mxu0 %v4553
    %4685 = vmatpush.msra.mxu0 %v4550
    %4686 = vmatpush.msra.mxu0 %v4547
    %4687 = vmatpush.msra.mxu0 %v4544
    %4688 = vmatpush.msra.mxu0 %v4541
    %4689 = vmatpush.msra.mxu0 %v4538
    %4690 = vmatpush.msra.mxu0 %v4535
    %4691 = vmatpush.msra.mxu0 %v4532
    %4692 = vmatmul.f32.gmra.mxu0 %v4556
    %v4693 = vpop.f32.mrf.mxu0
    %v4694 = vadd.f32 %v4671, %v4693
    %4695 = vmatmul.f32.gmra.mxu0 %v4559
    %v4696 = vpop.f32.mrf.mxu0
    %v4697 = vadd.f32 %v4674, %v4696
    %4698 = vdwg.mxu0
    %4699 = vmatpush.msra.mxu0 %v4482
    %4700 = vmatpush.msra.mxu0 %v4479
    %4701 = vmatpush.msra.mxu0 %v4476
    %4702 = vmatpush.msra.mxu0 %v4473
    %4703 = vmatpush.msra.mxu0 %v4470
    %4704 = vmatpush.msra.mxu0 %v4467
    %4705 = vmatpush.msra.mxu0 %v4464
    %4706 = vmatpush.msra.mxu0 %v4461
    %4707 = vmatpush.msra.mxu0 %v4458
    %4708 = vmatpush.msra.mxu0 %v4455
    %4709 = vmatpush.msra.mxu0 %v4452
    %4710 = vmatpush.msra.mxu0 %v4449
    %4711 = vmatpush.msra.mxu0 %v4446
    %4712 = vmatpush.msra.mxu0 %v4443
    %4713 = vmatpush.msra.mxu0 %v4440
    %4714 = vmatpush.msra.mxu0 %v4437
    %4715 = vmatmul.f32.gmra.mxu0 %v4383
    %v4716 = vpop.f32.mrf.mxu0
    %v4717 = vadd.f32 0.0, %v4716
    %4718 = vmatmul.f32.gmra.mxu0 %v4386
    %v4719 = vpop.f32.mrf.mxu0
    %v4720 = vadd.f32 0.0, %v4719
    %4721 = vdwg.mxu0
    %4722 = vmatpush.msra.mxu0 %v4530
    %4723 = vmatpush.msra.mxu0 %v4527
    %4724 = vmatpush.msra.mxu0 %v4524
    %4725 = vmatpush.msra.mxu0 %v4521
    %4726 = vmatpush.msra.mxu0 %v4518
    %4727 = vmatpush.msra.mxu0 %v4515
    %4728 = vmatpush.msra.mxu0 %v4512
    %4729 = vmatpush.msra.mxu0 %v4509
    %4730 = vmatpush.msra.mxu0 %v4506
    %4731 = vmatpush.msra.mxu0 %v4503
    %4732 = vmatpush.msra.mxu0 %v4500
    %4733 = vmatpush.msra.mxu0 %v4497
    %4734 = vmatpush.msra.mxu0 %v4494
    %4735 = vmatpush.msra.mxu0 %v4491
    %4736 = vmatpush.msra.mxu0 %v4488
    %4737 = vmatpush.msra.mxu0 %v4485
    %4738 = vmatmul.f32.gmra.mxu0 %v4406
    %v4739 = vpop.f32.mrf.mxu0
    %v4740 = vadd.f32 %v4717, %v4739
    %4741 = vmatmul.f32.gmra.mxu0 %v4409
    %v4742 = vpop.f32.mrf.mxu0
    %v4743 = vadd.f32 %v4720, %v4742
    %4744 = vdwg.mxu0
    %4745 = vmatpush.msra.mxu0 0.0
    %4746 = vmatpush.msra.mxu0 0.0
    %4747 = vmatpush.msra.mxu0 0.0
    %4748 = vmatpush.msra.mxu0 0.0
    %4749 = vmatpush.msra.mxu0 0.0
    %4750 = vmatpush.msra.mxu0 0.0
    %4751 = vmatpush.msra.mxu0 0.0
    %4752 = vmatpush.msra.mxu0 0.0
    %4753 = vmatpush.msra.mxu0 %v4554
    %4754 = vmatpush.msra.mxu0 %v4551
    %4755 = vmatpush.msra.mxu0 %v4548
    %4756 = vmatpush.msra.mxu0 %v4545
    %4757 = vmatpush.msra.mxu0 %v4542
    %4758 = vmatpush.msra.mxu0 %v4539
    %4759 = vmatpush.msra.mxu0 %v4536
    %4760 = vmatpush.msra.mxu0 %v4533
    %4761 = vmatmul.f32.gmra.mxu0 %v4556
    %v4762 = vpop.f32.mrf.mxu0
    %v4763 = vadd.f32 %v4740, %v4762
    %4764 = vmatmul.f32.gmra.mxu0 %v4559
    %v4765 = vpop.f32.mrf.mxu0
    %v4766 = vadd.f32 %v4743, %v4765
    %4767 = vdwg.mxu0
    %v4769 = vsel %vm1250, %v4231, 0
    %v4772 = vsel %vm1250, %v4234, 0
    %4774 = vmatpush.msra.mxu0 %v4281
    %4775 = vmatpush.msra.mxu0 %v4278
    %4776 = vmatpush.msra.mxu0 %v4275
    %4777 = vmatpush.msra.mxu0 %v4272
    %4778 = vmatpush.msra.mxu0 %v4269
    %4779 = vmatpush.msra.mxu0 %v4266
    %4780 = vmatpush.msra.mxu0 %v4263
    %4781 = vmatpush.msra.mxu0 %v4260
    %4782 = vmatpush.msra.mxu0 %v4257
    %4783 = vmatpush.msra.mxu0 %v4254
    %4784 = vmatpush.msra.mxu0 %v4251
    %4785 = vmatpush.msra.mxu0 %v4248
    %4786 = vmatpush.msra.mxu0 %v4245
    %4787 = vmatpush.msra.mxu0 %v4242
    %4788 = vmatpush.msra.mxu0 %v4239
    %4789 = vmatpush.msra.mxu0 %v4236
    %4790 = vmatmul.f32.gmra.mxu0 %v4185
    %v4791 = vpop.f32.mrf.mxu0
    %v4792 = vadd.f32 %v4625, %v4791
    %4793 = vmatmul.f32.gmra.mxu0 %v4188
    %v4794 = vpop.f32.mrf.mxu0
    %v4795 = vadd.f32 %v4628, %v4794
    %4796 = vdwg.mxu0
    %4797 = vmatpush.msra.mxu0 %v4329
    %4798 = vmatpush.msra.mxu0 %v4326
    %4799 = vmatpush.msra.mxu0 %v4323
    %4800 = vmatpush.msra.mxu0 %v4320
    %4801 = vmatpush.msra.mxu0 %v4317
    %4802 = vmatpush.msra.mxu0 %v4314
    %4803 = vmatpush.msra.mxu0 %v4311
    %4804 = vmatpush.msra.mxu0 %v4308
    %4805 = vmatpush.msra.mxu0 %v4305
    %4806 = vmatpush.msra.mxu0 %v4302
    %4807 = vmatpush.msra.mxu0 %v4299
    %4808 = vmatpush.msra.mxu0 %v4296
    %4809 = vmatpush.msra.mxu0 %v4293
    %4810 = vmatpush.msra.mxu0 %v4290
    %4811 = vmatpush.msra.mxu0 %v4287
    %4812 = vmatpush.msra.mxu0 %v4284
    %4813 = vmatmul.f32.gmra.mxu0 %v4208
    %v4814 = vpop.f32.mrf.mxu0
    %v4815 = vadd.f32 %v4792, %v4814
    %4816 = vmatmul.f32.gmra.mxu0 %v4211
    %v4817 = vpop.f32.mrf.mxu0
    %v4818 = vadd.f32 %v4795, %v4817
    %4819 = vdwg.mxu0
    %4820 = vmatpush.msra.mxu0 0.0
    %4821 = vmatpush.msra.mxu0 0.0
    %4822 = vmatpush.msra.mxu0 0.0
    %4823 = vmatpush.msra.mxu0 0.0
    %4824 = vmatpush.msra.mxu0 0.0
    %4825 = vmatpush.msra.mxu0 0.0
    %4826 = vmatpush.msra.mxu0 0.0
    %4827 = vmatpush.msra.mxu0 0.0
    %4828 = vmatpush.msra.mxu0 %v4353
    %4829 = vmatpush.msra.mxu0 %v4350
    %4830 = vmatpush.msra.mxu0 %v4347
    %4831 = vmatpush.msra.mxu0 %v4344
    %4832 = vmatpush.msra.mxu0 %v4341
    %4833 = vmatpush.msra.mxu0 %v4338
    %4834 = vmatpush.msra.mxu0 %v4335
    %4835 = vmatpush.msra.mxu0 %v4332
    %4836 = vmatmul.f32.gmra.mxu0 %v4769
    %v4837 = vpop.f32.mrf.mxu0
    %v4838 = vadd.f32 %v4815, %v4837
    %4839 = vmatmul.f32.gmra.mxu0 %v4772
    %v4840 = vpop.f32.mrf.mxu0
    %v4841 = vadd.f32 %v4818, %v4840
    %4842 = vdwg.mxu0
    %4843 = vmatpush.msra.mxu0 %v4282
    %4844 = vmatpush.msra.mxu0 %v4279
    %4845 = vmatpush.msra.mxu0 %v4276
    %4846 = vmatpush.msra.mxu0 %v4273
    %4847 = vmatpush.msra.mxu0 %v4270
    %4848 = vmatpush.msra.mxu0 %v4267
    %4849 = vmatpush.msra.mxu0 %v4264
    %4850 = vmatpush.msra.mxu0 %v4261
    %4851 = vmatpush.msra.mxu0 %v4258
    %4852 = vmatpush.msra.mxu0 %v4255
    %4853 = vmatpush.msra.mxu0 %v4252
    %4854 = vmatpush.msra.mxu0 %v4249
    %4855 = vmatpush.msra.mxu0 %v4246
    %4856 = vmatpush.msra.mxu0 %v4243
    %4857 = vmatpush.msra.mxu0 %v4240
    %4858 = vmatpush.msra.mxu0 %v4237
    %4859 = vmatmul.f32.gmra.mxu0 %v4185
    %v4860 = vpop.f32.mrf.mxu0
    %v4861 = vadd.f32 %v4694, %v4860
    %4862 = vmatmul.f32.gmra.mxu0 %v4188
    %v4863 = vpop.f32.mrf.mxu0
    %v4864 = vadd.f32 %v4697, %v4863
    %4865 = vdwg.mxu0
    %4866 = vmatpush.msra.mxu0 %v4330
    %4867 = vmatpush.msra.mxu0 %v4327
    %4868 = vmatpush.msra.mxu0 %v4324
    %4869 = vmatpush.msra.mxu0 %v4321
    %4870 = vmatpush.msra.mxu0 %v4318
    %4871 = vmatpush.msra.mxu0 %v4315
    %4872 = vmatpush.msra.mxu0 %v4312
    %4873 = vmatpush.msra.mxu0 %v4309
    %4874 = vmatpush.msra.mxu0 %v4306
    %4875 = vmatpush.msra.mxu0 %v4303
    %4876 = vmatpush.msra.mxu0 %v4300
    %4877 = vmatpush.msra.mxu0 %v4297
    %4878 = vmatpush.msra.mxu0 %v4294
    %4879 = vmatpush.msra.mxu0 %v4291
    %4880 = vmatpush.msra.mxu0 %v4288
    %4881 = vmatpush.msra.mxu0 %v4285
    %4882 = vmatmul.f32.gmra.mxu0 %v4208
    %v4883 = vpop.f32.mrf.mxu0
    %v4884 = vadd.f32 %v4861, %v4883
    %4885 = vmatmul.f32.gmra.mxu0 %v4211
    %v4886 = vpop.f32.mrf.mxu0
    %v4887 = vadd.f32 %v4864, %v4886
    %4888 = vdwg.mxu0
    %4889 = vmatpush.msra.mxu0 0.0
    %4890 = vmatpush.msra.mxu0 0.0
    %4891 = vmatpush.msra.mxu0 0.0
    %4892 = vmatpush.msra.mxu0 0.0
    %4893 = vmatpush.msra.mxu0 0.0
    %4894 = vmatpush.msra.mxu0 0.0
    %4895 = vmatpush.msra.mxu0 0.0
    %4896 = vmatpush.msra.mxu0 0.0
    %4897 = vmatpush.msra.mxu0 %v4354
    %4898 = vmatpush.msra.mxu0 %v4351
    %4899 = vmatpush.msra.mxu0 %v4348
    %4900 = vmatpush.msra.mxu0 %v4345
    %4901 = vmatpush.msra.mxu0 %v4342
    %4902 = vmatpush.msra.mxu0 %v4339
    %4903 = vmatpush.msra.mxu0 %v4336
    %4904 = vmatpush.msra.mxu0 %v4333
    %4905 = vmatmul.f32.gmra.mxu0 %v4769
    %v4906 = vpop.f32.mrf.mxu0
    %v4907 = vadd.f32 %v4884, %v4906
    %4908 = vmatmul.f32.gmra.mxu0 %v4772
    %v4909 = vpop.f32.mrf.mxu0
    %v4910 = vadd.f32 %v4887, %v4909
    %4911 = vdwg.mxu0
    %4912 = vmatpush.msra.mxu0 %v4283
    %4913 = vmatpush.msra.mxu0 %v4280
    %4914 = vmatpush.msra.mxu0 %v4277
    %4915 = vmatpush.msra.mxu0 %v4274
    %4916 = vmatpush.msra.mxu0 %v4271
    %4917 = vmatpush.msra.mxu0 %v4268
    %4918 = vmatpush.msra.mxu0 %v4265
    %4919 = vmatpush.msra.mxu0 %v4262
    %4920 = vmatpush.msra.mxu0 %v4259
    %4921 = vmatpush.msra.mxu0 %v4256
    %4922 = vmatpush.msra.mxu0 %v4253
    %4923 = vmatpush.msra.mxu0 %v4250
    %4924 = vmatpush.msra.mxu0 %v4247
    %4925 = vmatpush.msra.mxu0 %v4244
    %4926 = vmatpush.msra.mxu0 %v4241
    %4927 = vmatpush.msra.mxu0 %v4238
    %4928 = vmatmul.f32.gmra.mxu0 %v4185
    %v4929 = vpop.f32.mrf.mxu0
    %v4930 = vadd.f32 %v4763, %v4929
    %4931 = vmatmul.f32.gmra.mxu0 %v4188
    %v4932 = vpop.f32.mrf.mxu0
    %v4933 = vadd.f32 %v4766, %v4932
    %4934 = vdwg.mxu0
    %4935 = vmatpush.msra.mxu0 %v4331
    %4936 = vmatpush.msra.mxu0 %v4328
    %4937 = vmatpush.msra.mxu0 %v4325
    %4938 = vmatpush.msra.mxu0 %v4322
    %4939 = vmatpush.msra.mxu0 %v4319
    %4940 = vmatpush.msra.mxu0 %v4316
    %4941 = vmatpush.msra.mxu0 %v4313
    %4942 = vmatpush.msra.mxu0 %v4310
    %4943 = vmatpush.msra.mxu0 %v4307
    %4944 = vmatpush.msra.mxu0 %v4304
    %4945 = vmatpush.msra.mxu0 %v4301
    %4946 = vmatpush.msra.mxu0 %v4298
    %4947 = vmatpush.msra.mxu0 %v4295
    %4948 = vmatpush.msra.mxu0 %v4292
    %4949 = vmatpush.msra.mxu0 %v4289
    %4950 = vmatpush.msra.mxu0 %v4286
    %4951 = vmatmul.f32.gmra.mxu0 %v4208
    %v4952 = vpop.f32.mrf.mxu0
    %v4953 = vadd.f32 %v4930, %v4952
    %4954 = vmatmul.f32.gmra.mxu0 %v4211
    %v4955 = vpop.f32.mrf.mxu0
    %v4956 = vadd.f32 %v4933, %v4955
    %4957 = vdwg.mxu0
    %4958 = vmatpush.msra.mxu0 0.0
    %4959 = vmatpush.msra.mxu0 0.0
    %4960 = vmatpush.msra.mxu0 0.0
    %4961 = vmatpush.msra.mxu0 0.0
    %4962 = vmatpush.msra.mxu0 0.0
    %4963 = vmatpush.msra.mxu0 0.0
    %4964 = vmatpush.msra.mxu0 0.0
    %4965 = vmatpush.msra.mxu0 0.0
    %4966 = vmatpush.msra.mxu0 %v4355
    %4967 = vmatpush.msra.mxu0 %v4352
    %4968 = vmatpush.msra.mxu0 %v4349
    %4969 = vmatpush.msra.mxu0 %v4346
    %4970 = vmatpush.msra.mxu0 %v4343
    %4971 = vmatpush.msra.mxu0 %v4340
    %4972 = vmatpush.msra.mxu0 %v4337
    %4973 = vmatpush.msra.mxu0 %v4334
    %4974 = vmatmul.f32.gmra.mxu0 %v4769
    %v4975 = vpop.f32.mrf.mxu0
    %v4976 = vadd.f32 %v4953, %v4975
    %4977 = vmatmul.f32.gmra.mxu0 %v4772
    %v4978 = vpop.f32.mrf.mxu0
    %v4979 = vadd.f32 %v4956, %v4978
    %4980 = vdwg.mxu0
    %s4981 = scalar_lea.vmem %s11, 32
    %v4982 = vld [vmem:[%s4981] sm:$0xff]
    %v4983 = vld [vmem:[%s4981 + $0x8] sm:$0xf]
    %v4985 = vsel %vm4160, %v4982, 0
    %v4988 = vsel %vm4160, %v4983, 0
    %4990 = vmatpush.msra.mxu0 0.0
    %4991 = vmatpush.msra.mxu0 0.0
    %4992 = vmatpush.msra.mxu0 0.0
    %4993 = vmatpush.msra.mxu0 0.0
    %4994 = vmatpush.msra.mxu0 0.0
    %4995 = vmatpush.msra.mxu0 0.0
    %4996 = vmatpush.msra.mxu0 0.0
    %4997 = vmatpush.msra.mxu0 0.0
    %4998 = vmatpush.msra.mxu0 0.0
    %4999 = vmatpush.msra.mxu0 0.0
    %5000 = vmatpush.msra.mxu0 0.0
    %5001 = vmatpush.msra.mxu0 0.0
    %5002 = vmatpush.msra.mxu0 0.0
    %5003 = vmatpush.msra.mxu0 %v4155
    %5004 = vmatpush.msra.mxu0 %v4152
    %5005 = vmatpush.msra.mxu0 %v4149
    %5006 = vmatmul.f32.gmra.mxu0 %v4985
    %v5007 = vpop.f32.mrf.mxu0
    %v5008 = vadd.f32 0.0, %v5007
    %5009 = vmatmul.f32.gmra.mxu0 %v4988
    %v5010 = vpop.f32.mrf.mxu0
    %v5011 = vadd.f32 0.0, %v5010
    %5012 = vdwg.mxu0
    %5013 = vmatpush.msra.mxu0 0.0
    %5014 = vmatpush.msra.mxu0 0.0
    %5015 = vmatpush.msra.mxu0 0.0
    %5016 = vmatpush.msra.mxu0 0.0
    %5017 = vmatpush.msra.mxu0 0.0
    %5018 = vmatpush.msra.mxu0 0.0
    %5019 = vmatpush.msra.mxu0 0.0
    %5020 = vmatpush.msra.mxu0 0.0
    %5021 = vmatpush.msra.mxu0 0.0
    %5022 = vmatpush.msra.mxu0 0.0
    %5023 = vmatpush.msra.mxu0 0.0
    %5024 = vmatpush.msra.mxu0 0.0
    %5025 = vmatpush.msra.mxu0 0.0
    %5026 = vmatpush.msra.mxu0 %v4156
    %5027 = vmatpush.msra.mxu0 %v4153
    %5028 = vmatpush.msra.mxu0 %v4150
    %5029 = vmatmul.f32.gmra.mxu0 %v4985
    %v5030 = vpop.f32.mrf.mxu0
    %v5031 = vadd.f32 0.0, %v5030
    %5032 = vmatmul.f32.gmra.mxu0 %v4988
    %v5033 = vpop.f32.mrf.mxu0
    %v5034 = vadd.f32 0.0, %v5033
    %5035 = vdwg.mxu0
    %5036 = vmatpush.msra.mxu0 0.0
    %5037 = vmatpush.msra.mxu0 0.0
    %5038 = vmatpush.msra.mxu0 0.0
    %5039 = vmatpush.msra.mxu0 0.0
    %5040 = vmatpush.msra.mxu0 0.0
    %5041 = vmatpush.msra.mxu0 0.0
    %5042 = vmatpush.msra.mxu0 0.0
    %5043 = vmatpush.msra.mxu0 0.0
    %5044 = vmatpush.msra.mxu0 0.0
    %5045 = vmatpush.msra.mxu0 0.0
    %5046 = vmatpush.msra.mxu0 0.0
    %5047 = vmatpush.msra.mxu0 0.0
    %5048 = vmatpush.msra.mxu0 0.0
    %5049 = vmatpush.msra.mxu0 %v4157
    %5050 = vmatpush.msra.mxu0 %v4154
    %5051 = vmatpush.msra.mxu0 %v4151
    %5052 = vmatmul.f32.gmra.mxu0 %v4985
    %v5053 = vpop.f32.mrf.mxu0
    %v5054 = vadd.f32 0.0, %v5053
    %5055 = vmatmul.f32.gmra.mxu0 %v4988
    %v5056 = vpop.f32.mrf.mxu0
    %v5057 = vadd.f32 0.0, %v5056
    %5058 = vdwg.mxu0
    %s5059 = scalar_lea.vmem [#allocation16], 1920
    %v5060 = vld [vmem:[%s5059] sm:$0xff]
    %v5061 = vld [vmem:[%s5059 + $0x8] sm:$0xff]
    %v5062 = vld [vmem:[%s5059 + $0x10] sm:$0xff]
    %v5063 = vld [vmem:[%s5059 + $0x18] sm:$0xff]
    %v5064 = vld [vmem:[%s5059 + $0x20] sm:$0xff]
    %v5065 = vld [vmem:[%s5059 + $0x28] sm:$0xff]
    %v5066 = vld [vmem:[%s5059 + $0x30] sm:$0xff]
    %v5067 = vld [vmem:[%s5059 + $0x38] sm:$0xff]
    %v5068 = vld [vmem:[%s5059 + $0x40] sm:$0xff]
    %v5069 = vld [vmem:[%s5059 + $0x48] sm:$0xff]
    %v5070 = vld [vmem:[%s5059 + $0x50] sm:$0xff]
    %v5071 = vld [vmem:[%s5059 + $0x58] sm:$0xff]
    %v5072 = vld [vmem:[%s5059 + $0x60] sm:$0xff]
    %v5073 = vld [vmem:[%s5059 + $0x68] sm:$0xff]
    %v5074 = vld [vmem:[%s5059 + $0x70] sm:$0xff]
    %v5075 = vld [vmem:[%s5059 + $0x78] sm:$0xff]
    %v5076 = vld [vmem:[%s5059 + $0x80] sm:$0xff]
    %v5077 = vld [vmem:[%s5059 + $0x88] sm:$0xff]
    %v5078 = vld [vmem:[%s5059 + $0x90] sm:$0xff]
    %v5079 = vld [vmem:[%s5059 + $0x98] sm:$0xff]
    %v5080 = vld [vmem:[%s5059 + $0xa0] sm:$0xff]
    %v5081 = vld [vmem:[%s5059 + $0xa8] sm:$0xff]
    %v5082 = vld [vmem:[%s5059 + $0xb0] sm:$0xff]
    %v5083 = vld [vmem:[%s5059 + $0xb8] sm:$0xff]
    %v5084 = vld [vmem:[%s5059 + $0xc0] sm:$0xff]
    %v5085 = vld [vmem:[%s5059 + $0xc8] sm:$0xff]
    %v5086 = vld [vmem:[%s5059 + $0xd0] sm:$0xff]
    %v5087 = vld [vmem:[%s5059 + $0xd8] sm:$0xff]
    %v5088 = vld [vmem:[%s5059 + $0xe0] sm:$0xff]
    %v5089 = vld [vmem:[%s5059 + $0xe8] sm:$0xff]
    %v5090 = vld [vmem:[%s5059 + $0xf0] sm:$0xff]
    %v5091 = vld [vmem:[%s5059 + $0xf8] sm:$0xff]
    %v5092 = vld [vmem:[%s5059 + $0x100] sm:$0xff]
    %v5093 = vld [vmem:[%s5059 + $0x108] sm:$0xff]
    %v5094 = vld [vmem:[%s5059 + $0x110] sm:$0xff]
    %v5095 = vld [vmem:[%s5059 + $0x118] sm:$0xff]
    %v5096 = vld [vmem:[%s5059 + $0x120] sm:$0xff]
    %v5097 = vld [vmem:[%s5059 + $0x128] sm:$0xff]
    %v5098 = vld [vmem:[%s5059 + $0x130] sm:$0xff]
    %v5099 = vld [vmem:[%s5059 + $0x138] sm:$0xff]
    %v5100 = vld [vmem:[%s5059 + $0x140] sm:$0xff]
    %v5101 = vld [vmem:[%s5059 + $0x148] sm:$0xff]
    %v5102 = vld [vmem:[%s5059 + $0x150] sm:$0xff]
    %v5103 = vld [vmem:[%s5059 + $0x158] sm:$0xff]
    %v5104 = vld [vmem:[%s5059 + $0x160] sm:$0xff]
    %v5105 = vld [vmem:[%s5059 + $0x168] sm:$0xff]
    %v5106 = vld [vmem:[%s5059 + $0x170] sm:$0xff]
    %v5107 = vld [vmem:[%s5059 + $0x178] sm:$0xff]
    %v5108 = vld [vmem:[%s5059 + $0x180] sm:$0xff]
    %v5109 = vld [vmem:[%s5059 + $0x188] sm:$0xff]
    %v5110 = vld [vmem:[%s5059 + $0x190] sm:$0xff]
    %v5111 = vld [vmem:[%s5059 + $0x198] sm:$0xff]
    %v5112 = vld [vmem:[%s5059 + $0x1a0] sm:$0xff]
    %v5113 = vld [vmem:[%s5059 + $0x1a8] sm:$0xff]
    %v5114 = vld [vmem:[%s5059 + $0x1b0] sm:$0xff]
    %v5115 = vld [vmem:[%s5059 + $0x1b8] sm:$0xff]
    %v5116 = vld [vmem:[%s5059 + $0x1c0] sm:$0xff]
    %v5117 = vld [vmem:[%s5059 + $0x1c8] sm:$0xff]
    %v5118 = vld [vmem:[%s5059 + $0x1d0] sm:$0xff]
    %v5119 = vld [vmem:[%s5059 + $0x1d8] sm:$0xff]
    %v5120 = vld [vmem:[%s5059 + $0x1e0] sm:$0xff]
    %v5121 = vld [vmem:[%s5059 + $0x1e8] sm:$0xff]
    %v5122 = vld [vmem:[%s5059 + $0x1f0] sm:$0xff]
    %v5123 = vld [vmem:[%s5059 + $0x1f8] sm:$0xff]
    %v5124 = vld [vmem:[%s5059 + $0x200] sm:$0xff]
    %v5125 = vld [vmem:[%s5059 + $0x208] sm:$0xff]
    %v5126 = vld [vmem:[%s5059 + $0x210] sm:$0xff]
    %v5127 = vld [vmem:[%s5059 + $0x218] sm:$0xff]
    %v5128 = vld [vmem:[%s5059 + $0x220] sm:$0xff]
    %v5129 = vld [vmem:[%s5059 + $0x228] sm:$0xff]
    %v5130 = vld [vmem:[%s5059 + $0x230] sm:$0xff]
    %v5131 = vld [vmem:[%s5059 + $0x238] sm:$0xff]
    %v5132 = vld [vmem:[%s5059 + $0x240] sm:$0xff]
    %v5133 = vld [vmem:[%s5059 + $0x248] sm:$0xff]
    %v5134 = vld [vmem:[%s5059 + $0x250] sm:$0xff]
    %v5135 = vld [vmem:[%s5059 + $0x258] sm:$0xff]
    %v5136 = vld [vmem:[%s5059 + $0x260] sm:$0xff]
    %v5137 = vld [vmem:[%s5059 + $0x268] sm:$0xff]
    %v5138 = vld [vmem:[%s5059 + $0x270] sm:$0xff]
    %v5139 = vld [vmem:[%s5059 + $0x278] sm:$0xff]
    %v5140 = vld [vmem:[%s5059 + $0x280] sm:$0xff]
    %v5141 = vld [vmem:[%s5059 + $0x288] sm:$0xff]
    %v5142 = vld [vmem:[%s5059 + $0x290] sm:$0xff]
    %v5143 = vld [vmem:[%s5059 + $0x298] sm:$0xff]
    %v5144 = vld [vmem:[%s5059 + $0x2a0] sm:$0xff]
    %v5145 = vld [vmem:[%s5059 + $0x2a8] sm:$0xff]
    %v5146 = vld [vmem:[%s5059 + $0x2b0] sm:$0xff]
    %v5147 = vld [vmem:[%s5059 + $0x2b8] sm:$0xff]
    %v5148 = vld [vmem:[%s5059 + $0x2c0] sm:$0xff]
    %v5149 = vld [vmem:[%s5059 + $0x2c8] sm:$0xff]
    %v5150 = vld [vmem:[%s5059 + $0x2d0] sm:$0xff]
    %v5151 = vld [vmem:[%s5059 + $0x2d8] sm:$0xff]
    %v5152 = vld [vmem:[%s5059 + $0x2e0] sm:$0xff]
    %v5153 = vld [vmem:[%s5059 + $0x2e8] sm:$0xff]
    %v5154 = vld [vmem:[%s5059 + $0x2f0] sm:$0xff]
    %v5155 = vld [vmem:[%s5059 + $0x2f8] sm:$0xff]
    %v5156 = vld [vmem:[%s5059 + $0x300] sm:$0xff]
    %v5157 = vld [vmem:[%s5059 + $0x308] sm:$0xff]
    %v5158 = vld [vmem:[%s5059 + $0x310] sm:$0xff]
    %v5159 = vld [vmem:[%s5059 + $0x318] sm:$0xff]
    %v5160 = vld [vmem:[%s5059 + $0x320] sm:$0xff]
    %v5161 = vld [vmem:[%s5059 + $0x328] sm:$0xff]
    %v5162 = vld [vmem:[%s5059 + $0x330] sm:$0xff]
    %v5163 = vld [vmem:[%s5059 + $0x338] sm:$0xff]
    %v5164 = vld [vmem:[%s5059 + $0x340] sm:$0xff]
    %v5165 = vld [vmem:[%s5059 + $0x348] sm:$0xff]
    %v5166 = vld [vmem:[%s5059 + $0x350] sm:$0xff]
    %v5167 = vld [vmem:[%s5059 + $0x358] sm:$0xff]
    %v5168 = vld [vmem:[%s5059 + $0x360] sm:$0xff]
    %v5169 = vld [vmem:[%s5059 + $0x368] sm:$0xff]
    %v5170 = vld [vmem:[%s5059 + $0x370] sm:$0xff]
    %v5171 = vld [vmem:[%s5059 + $0x378] sm:$0xff]
    %v5172 = vld [vmem:[%s5059 + $0x380] sm:$0xff]
    %v5173 = vld [vmem:[%s5059 + $0x388] sm:$0xff]
    %v5174 = vld [vmem:[%s5059 + $0x390] sm:$0xff]
    %v5175 = vld [vmem:[%s5059 + $0x398] sm:$0xff]
    %v5176 = vld [vmem:[%s5059 + $0x3a0] sm:$0xff]
    %v5177 = vld [vmem:[%s5059 + $0x3a8] sm:$0xff]
    %v5178 = vld [vmem:[%s5059 + $0x3b0] sm:$0xff]
    %v5179 = vld [vmem:[%s5059 + $0x3b8] sm:$0xff]
    %v5181 = vsel %vm1250, %v5054, 0
    %v5184 = vsel %vm1250, %v5057, 0
    %5186 = vmatpush.msra.mxu0 %v5105
    %5187 = vmatpush.msra.mxu0 %v5102
    %5188 = vmatpush.msra.mxu0 %v5099
    %5189 = vmatpush.msra.mxu0 %v5096
    %5190 = vmatpush.msra.mxu0 %v5093
    %5191 = vmatpush.msra.mxu0 %v5090
    %5192 = vmatpush.msra.mxu0 %v5087
    %5193 = vmatpush.msra.mxu0 %v5084
    %5194 = vmatpush.msra.mxu0 %v5081
    %5195 = vmatpush.msra.mxu0 %v5078
    %5196 = vmatpush.msra.mxu0 %v5075
    %5197 = vmatpush.msra.mxu0 %v5072
    %5198 = vmatpush.msra.mxu0 %v5069
    %5199 = vmatpush.msra.mxu0 %v5066
    %5200 = vmatpush.msra.mxu0 %v5063
    %5201 = vmatpush.msra.mxu0 %v5060
    %5202 = vmatmul.f32.gmra.mxu0 %v5008
    %v5203 = vpop.f32.mrf.mxu0
    %v5204 = vadd.f32 0.0, %v5203
    %5205 = vmatmul.f32.gmra.mxu0 %v5011
    %v5206 = vpop.f32.mrf.mxu0
    %v5207 = vadd.f32 0.0, %v5206
    %5208 = vdwg.mxu0
    %5209 = vmatpush.msra.mxu0 %v5153
    %5210 = vmatpush.msra.mxu0 %v5150
    %5211 = vmatpush.msra.mxu0 %v5147
    %5212 = vmatpush.msra.mxu0 %v5144
    %5213 = vmatpush.msra.mxu0 %v5141
    %5214 = vmatpush.msra.mxu0 %v5138
    %5215 = vmatpush.msra.mxu0 %v5135
    %5216 = vmatpush.msra.mxu0 %v5132
    %5217 = vmatpush.msra.mxu0 %v5129
    %5218 = vmatpush.msra.mxu0 %v5126
    %5219 = vmatpush.msra.mxu0 %v5123
    %5220 = vmatpush.msra.mxu0 %v5120
    %5221 = vmatpush.msra.mxu0 %v5117
    %5222 = vmatpush.msra.mxu0 %v5114
    %5223 = vmatpush.msra.mxu0 %v5111
    %5224 = vmatpush.msra.mxu0 %v5108
    %5225 = vmatmul.f32.gmra.mxu0 %v5031
    %v5226 = vpop.f32.mrf.mxu0
    %v5227 = vadd.f32 %v5204, %v5226
    %5228 = vmatmul.f32.gmra.mxu0 %v5034
    %v5229 = vpop.f32.mrf.mxu0
    %v5230 = vadd.f32 %v5207, %v5229
    %5231 = vdwg.mxu0
    %5232 = vmatpush.msra.mxu0 0.0
    %5233 = vmatpush.msra.mxu0 0.0
    %5234 = vmatpush.msra.mxu0 0.0
    %5235 = vmatpush.msra.mxu0 0.0
    %5236 = vmatpush.msra.mxu0 0.0
    %5237 = vmatpush.msra.mxu0 0.0
    %5238 = vmatpush.msra.mxu0 0.0
    %5239 = vmatpush.msra.mxu0 0.0
    %5240 = vmatpush.msra.mxu0 %v5177
    %5241 = vmatpush.msra.mxu0 %v5174
    %5242 = vmatpush.msra.mxu0 %v5171
    %5243 = vmatpush.msra.mxu0 %v5168
    %5244 = vmatpush.msra.mxu0 %v5165
    %5245 = vmatpush.msra.mxu0 %v5162
    %5246 = vmatpush.msra.mxu0 %v5159
    %5247 = vmatpush.msra.mxu0 %v5156
    %5248 = vmatmul.f32.gmra.mxu0 %v5181
    %v5249 = vpop.f32.mrf.mxu0
    %v5250 = vadd.f32 %v5227, %v5249
    %5251 = vmatmul.f32.gmra.mxu0 %v5184
    %v5252 = vpop.f32.mrf.mxu0
    %v5253 = vadd.f32 %v5230, %v5252
    %5254 = vdwg.mxu0
    %5255 = vmatpush.msra.mxu0 %v5106
    %5256 = vmatpush.msra.mxu0 %v5103
    %5257 = vmatpush.msra.mxu0 %v5100
    %5258 = vmatpush.msra.mxu0 %v5097
    %5259 = vmatpush.msra.mxu0 %v5094
    %5260 = vmatpush.msra.mxu0 %v5091
    %5261 = vmatpush.msra.mxu0 %v5088
    %5262 = vmatpush.msra.mxu0 %v5085
    %5263 = vmatpush.msra.mxu0 %v5082
    %5264 = vmatpush.msra.mxu0 %v5079
    %5265 = vmatpush.msra.mxu0 %v5076
    %5266 = vmatpush.msra.mxu0 %v5073
    %5267 = vmatpush.msra.mxu0 %v5070
    %5268 = vmatpush.msra.mxu0 %v5067
    %5269 = vmatpush.msra.mxu0 %v5064
    %5270 = vmatpush.msra.mxu0 %v5061
    %5271 = vmatmul.f32.gmra.mxu0 %v5008
    %v5272 = vpop.f32.mrf.mxu0
    %v5273 = vadd.f32 0.0, %v5272
    %5274 = vmatmul.f32.gmra.mxu0 %v5011
    %v5275 = vpop.f32.mrf.mxu0
    %v5276 = vadd.f32 0.0, %v5275
    %5277 = vdwg.mxu0
    %5278 = vmatpush.msra.mxu0 %v5154
    %5279 = vmatpush.msra.mxu0 %v5151
    %5280 = vmatpush.msra.mxu0 %v5148
    %5281 = vmatpush.msra.mxu0 %v5145
    %5282 = vmatpush.msra.mxu0 %v5142
    %5283 = vmatpush.msra.mxu0 %v5139
    %5284 = vmatpush.msra.mxu0 %v5136
    %5285 = vmatpush.msra.mxu0 %v5133
    %5286 = vmatpush.msra.mxu0 %v5130
    %5287 = vmatpush.msra.mxu0 %v5127
    %5288 = vmatpush.msra.mxu0 %v5124
    %5289 = vmatpush.msra.mxu0 %v5121
    %5290 = vmatpush.msra.mxu0 %v5118
    %5291 = vmatpush.msra.mxu0 %v5115
    %5292 = vmatpush.msra.mxu0 %v5112
    %5293 = vmatpush.msra.mxu0 %v5109
    %5294 = vmatmul.f32.gmra.mxu0 %v5031
    %v5295 = vpop.f32.mrf.mxu0
    %v5296 = vadd.f32 %v5273, %v5295
    %5297 = vmatmul.f32.gmra.mxu0 %v5034
    %v5298 = vpop.f32.mrf.mxu0
    %v5299 = vadd.f32 %v5276, %v5298
    %5300 = vdwg.mxu0
    %5301 = vmatpush.msra.mxu0 0.0
    %5302 = vmatpush.msra.mxu0 0.0
    %5303 = vmatpush.msra.mxu0 0.0
    %5304 = vmatpush.msra.mxu0 0.0
    %5305 = vmatpush.msra.mxu0 0.0
    %5306 = vmatpush.msra.mxu0 0.0
    %5307 = vmatpush.msra.mxu0 0.0
    %5308 = vmatpush.msra.mxu0 0.0
    %5309 = vmatpush.msra.mxu0 %v5178
    %5310 = vmatpush.msra.mxu0 %v5175
    %5311 = vmatpush.msra.mxu0 %v5172
    %5312 = vmatpush.msra.mxu0 %v5169
    %5313 = vmatpush.msra.mxu0 %v5166
    %5314 = vmatpush.msra.mxu0 %v5163
    %5315 = vmatpush.msra.mxu0 %v5160
    %5316 = vmatpush.msra.mxu0 %v5157
    %5317 = vmatmul.f32.gmra.mxu0 %v5181
    %v5318 = vpop.f32.mrf.mxu0
    %v5319 = vadd.f32 %v5296, %v5318
    %5320 = vmatmul.f32.gmra.mxu0 %v5184
    %v5321 = vpop.f32.mrf.mxu0
    %v5322 = vadd.f32 %v5299, %v5321
    %5323 = vdwg.mxu0
    %5324 = vmatpush.msra.mxu0 %v5107
    %5325 = vmatpush.msra.mxu0 %v5104
    %5326 = vmatpush.msra.mxu0 %v5101
    %5327 = vmatpush.msra.mxu0 %v5098
    %5328 = vmatpush.msra.mxu0 %v5095
    %5329 = vmatpush.msra.mxu0 %v5092
    %5330 = vmatpush.msra.mxu0 %v5089
    %5331 = vmatpush.msra.mxu0 %v5086
    %5332 = vmatpush.msra.mxu0 %v5083
    %5333 = vmatpush.msra.mxu0 %v5080
    %5334 = vmatpush.msra.mxu0 %v5077
    %5335 = vmatpush.msra.mxu0 %v5074
    %5336 = vmatpush.msra.mxu0 %v5071
    %5337 = vmatpush.msra.mxu0 %v5068
    %5338 = vmatpush.msra.mxu0 %v5065
    %5339 = vmatpush.msra.mxu0 %v5062
    %5340 = vmatmul.f32.gmra.mxu0 %v5008
    %v5341 = vpop.f32.mrf.mxu0
    %v5342 = vadd.f32 0.0, %v5341
    %5343 = vmatmul.f32.gmra.mxu0 %v5011
    %v5344 = vpop.f32.mrf.mxu0
    %v5345 = vadd.f32 0.0, %v5344
    %5346 = vdwg.mxu0
    %5347 = vmatpush.msra.mxu0 %v5155
    %5348 = vmatpush.msra.mxu0 %v5152
    %5349 = vmatpush.msra.mxu0 %v5149
    %5350 = vmatpush.msra.mxu0 %v5146
    %5351 = vmatpush.msra.mxu0 %v5143
    %5352 = vmatpush.msra.mxu0 %v5140
    %5353 = vmatpush.msra.mxu0 %v5137
    %5354 = vmatpush.msra.mxu0 %v5134
    %5355 = vmatpush.msra.mxu0 %v5131
    %5356 = vmatpush.msra.mxu0 %v5128
    %5357 = vmatpush.msra.mxu0 %v5125
    %5358 = vmatpush.msra.mxu0 %v5122
    %5359 = vmatpush.msra.mxu0 %v5119
    %5360 = vmatpush.msra.mxu0 %v5116
    %5361 = vmatpush.msra.mxu0 %v5113
    %5362 = vmatpush.msra.mxu0 %v5110
    %5363 = vmatmul.f32.gmra.mxu0 %v5031
    %v5364 = vpop.f32.mrf.mxu0
    %v5365 = vadd.f32 %v5342, %v5364
    %5366 = vmatmul.f32.gmra.mxu0 %v5034
    %v5367 = vpop.f32.mrf.mxu0
    %v5368 = vadd.f32 %v5345, %v5367
    %5369 = vdwg.mxu0
    %5370 = vmatpush.msra.mxu0 0.0
    %5371 = vmatpush.msra.mxu0 0.0
    %5372 = vmatpush.msra.mxu0 0.0
    %5373 = vmatpush.msra.mxu0 0.0
    %5374 = vmatpush.msra.mxu0 0.0
    %5375 = vmatpush.msra.mxu0 0.0
    %5376 = vmatpush.msra.mxu0 0.0
    %5377 = vmatpush.msra.mxu0 0.0
    %5378 = vmatpush.msra.mxu0 %v5179
    %5379 = vmatpush.msra.mxu0 %v5176
    %5380 = vmatpush.msra.mxu0 %v5173
    %5381 = vmatpush.msra.mxu0 %v5170
    %5382 = vmatpush.msra.mxu0 %v5167
    %5383 = vmatpush.msra.mxu0 %v5164
    %5384 = vmatpush.msra.mxu0 %v5161
    %5385 = vmatpush.msra.mxu0 %v5158
    %5386 = vmatmul.f32.gmra.mxu0 %v5181
    %v5387 = vpop.f32.mrf.mxu0
    %v5388 = vadd.f32 %v5365, %v5387
    %5389 = vmatmul.f32.gmra.mxu0 %v5184
    %v5390 = vpop.f32.mrf.mxu0
    %v5391 = vadd.f32 %v5368, %v5390
    %5392 = vdwg.mxu0
    %v5393 = vadd.f32 %v4838, %v5250
    %v5394 = vadd.f32 %v4907, %v5319
    %v5395 = vadd.f32 %v4976, %v5388
    %v5396 = vadd.f32 %v4841, %v5253
    %v5397 = vadd.f32 %v4910, %v5322
    %v5398 = vadd.f32 %v4979, %v5391
    %s5399 = scalar_lea.vmem %s11, 48
    %v5400 = vld [vmem:[%s5399] sm:$0xff]
    %v5401 = vld [vmem:[%s5399 + $0x8] sm:$0xf]
    %v5403 = vsel %vm4160, %v5400, 0
    %v5406 = vsel %vm4160, %v5401, 0
    %5408 = vmatpush.msra.mxu0 0.0
    %5409 = vmatpush.msra.mxu0 0.0
    %5410 = vmatpush.msra.mxu0 0.0
    %5411 = vmatpush.msra.mxu0 0.0
    %5412 = vmatpush.msra.mxu0 0.0
    %5413 = vmatpush.msra.mxu0 0.0
    %5414 = vmatpush.msra.mxu0 0.0
    %5415 = vmatpush.msra.mxu0 0.0
    %5416 = vmatpush.msra.mxu0 0.0
    %5417 = vmatpush.msra.mxu0 0.0
    %5418 = vmatpush.msra.mxu0 0.0
    %5419 = vmatpush.msra.mxu0 0.0
    %5420 = vmatpush.msra.mxu0 0.0
    %5421 = vmatpush.msra.mxu0 %v4155
    %5422 = vmatpush.msra.mxu0 %v4152
    %5423 = vmatpush.msra.mxu0 %v4149
    %5424 = vmatmul.f32.gmra.mxu0 %v5403
    %v5425 = vpop.f32.mrf.mxu0
    %v5426 = vadd.f32 0.0, %v5425
    %5427 = vmatmul.f32.gmra.mxu0 %v5406
    %v5428 = vpop.f32.mrf.mxu0
    %v5429 = vadd.f32 0.0, %v5428
    %5430 = vdwg.mxu0
    %5431 = vmatpush.msra.mxu0 0.0
    %5432 = vmatpush.msra.mxu0 0.0
    %5433 = vmatpush.msra.mxu0 0.0
    %5434 = vmatpush.msra.mxu0 0.0
    %5435 = vmatpush.msra.mxu0 0.0
    %5436 = vmatpush.msra.mxu0 0.0
    %5437 = vmatpush.msra.mxu0 0.0
    %5438 = vmatpush.msra.mxu0 0.0
    %5439 = vmatpush.msra.mxu0 0.0
    %5440 = vmatpush.msra.mxu0 0.0
    %5441 = vmatpush.msra.mxu0 0.0
    %5442 = vmatpush.msra.mxu0 0.0
    %5443 = vmatpush.msra.mxu0 0.0
    %5444 = vmatpush.msra.mxu0 %v4156
    %5445 = vmatpush.msra.mxu0 %v4153
    %5446 = vmatpush.msra.mxu0 %v4150
    %5447 = vmatmul.f32.gmra.mxu0 %v5403
    %v5448 = vpop.f32.mrf.mxu0
    %v5449 = vadd.f32 0.0, %v5448
    %5450 = vmatmul.f32.gmra.mxu0 %v5406
    %v5451 = vpop.f32.mrf.mxu0
    %v5452 = vadd.f32 0.0, %v5451
    %5453 = vdwg.mxu0
    %5454 = vmatpush.msra.mxu0 0.0
    %5455 = vmatpush.msra.mxu0 0.0
    %5456 = vmatpush.msra.mxu0 0.0
    %5457 = vmatpush.msra.mxu0 0.0
    %5458 = vmatpush.msra.mxu0 0.0
    %5459 = vmatpush.msra.mxu0 0.0
    %5460 = vmatpush.msra.mxu0 0.0
    %5461 = vmatpush.msra.mxu0 0.0
    %5462 = vmatpush.msra.mxu0 0.0
    %5463 = vmatpush.msra.mxu0 0.0
    %5464 = vmatpush.msra.mxu0 0.0
    %5465 = vmatpush.msra.mxu0 0.0
    %5466 = vmatpush.msra.mxu0 0.0
    %5467 = vmatpush.msra.mxu0 %v4157
    %5468 = vmatpush.msra.mxu0 %v4154
    %5469 = vmatpush.msra.mxu0 %v4151
    %5470 = vmatmul.f32.gmra.mxu0 %v5403
    %v5471 = vpop.f32.mrf.mxu0
    %v5472 = vadd.f32 0.0, %v5471
    %5473 = vmatmul.f32.gmra.mxu0 %v5406
    %v5474 = vpop.f32.mrf.mxu0
    %v5475 = vadd.f32 0.0, %v5474
    %5476 = vdwg.mxu0
    %s5477 = scalar_lea.vmem [#allocation16], 2880
    %v5478 = vld [vmem:[%s5477] sm:$0xff]
    %v5479 = vld [vmem:[%s5477 + $0x8] sm:$0xff]
    %v5480 = vld [vmem:[%s5477 + $0x10] sm:$0xff]
    %v5481 = vld [vmem:[%s5477 + $0x18] sm:$0xff]
    %v5482 = vld [vmem:[%s5477 + $0x20] sm:$0xff]
    %v5483 = vld [vmem:[%s5477 + $0x28] sm:$0xff]
    %v5484 = vld [vmem:[%s5477 + $0x30] sm:$0xff]
    %v5485 = vld [vmem:[%s5477 + $0x38] sm:$0xff]
    %v5486 = vld [vmem:[%s5477 + $0x40] sm:$0xff]
    %v5487 = vld [vmem:[%s5477 + $0x48] sm:$0xff]
    %v5488 = vld [vmem:[%s5477 + $0x50] sm:$0xff]
    %v5489 = vld [vmem:[%s5477 + $0x58] sm:$0xff]
    %v5490 = vld [vmem:[%s5477 + $0x60] sm:$0xff]
    %v5491 = vld [vmem:[%s5477 + $0x68] sm:$0xff]
    %v5492 = vld [vmem:[%s5477 + $0x70] sm:$0xff]
    %v5493 = vld [vmem:[%s5477 + $0x78] sm:$0xff]
    %v5494 = vld [vmem:[%s5477 + $0x80] sm:$0xff]
    %v5495 = vld [vmem:[%s5477 + $0x88] sm:$0xff]
    %v5496 = vld [vmem:[%s5477 + $0x90] sm:$0xff]
    %v5497 = vld [vmem:[%s5477 + $0x98] sm:$0xff]
    %v5498 = vld [vmem:[%s5477 + $0xa0] sm:$0xff]
    %v5499 = vld [vmem:[%s5477 + $0xa8] sm:$0xff]
    %v5500 = vld [vmem:[%s5477 + $0xb0] sm:$0xff]
    %v5501 = vld [vmem:[%s5477 + $0xb8] sm:$0xff]
    %v5502 = vld [vmem:[%s5477 + $0xc0] sm:$0xff]
    %v5503 = vld [vmem:[%s5477 + $0xc8] sm:$0xff]
    %v5504 = vld [vmem:[%s5477 + $0xd0] sm:$0xff]
    %v5505 = vld [vmem:[%s5477 + $0xd8] sm:$0xff]
    %v5506 = vld [vmem:[%s5477 + $0xe0] sm:$0xff]
    %v5507 = vld [vmem:[%s5477 + $0xe8] sm:$0xff]
    %v5508 = vld [vmem:[%s5477 + $0xf0] sm:$0xff]
    %v5509 = vld [vmem:[%s5477 + $0xf8] sm:$0xff]
    %v5510 = vld [vmem:[%s5477 + $0x100] sm:$0xff]
    %v5511 = vld [vmem:[%s5477 + $0x108] sm:$0xff]
    %v5512 = vld [vmem:[%s5477 + $0x110] sm:$0xff]
    %v5513 = vld [vmem:[%s5477 + $0x118] sm:$0xff]
    %v5514 = vld [vmem:[%s5477 + $0x120] sm:$0xff]
    %v5515 = vld [vmem:[%s5477 + $0x128] sm:$0xff]
    %v5516 = vld [vmem:[%s5477 + $0x130] sm:$0xff]
    %v5517 = vld [vmem:[%s5477 + $0x138] sm:$0xff]
    %v5518 = vld [vmem:[%s5477 + $0x140] sm:$0xff]
    %v5519 = vld [vmem:[%s5477 + $0x148] sm:$0xff]
    %v5520 = vld [vmem:[%s5477 + $0x150] sm:$0xff]
    %v5521 = vld [vmem:[%s5477 + $0x158] sm:$0xff]
    %v5522 = vld [vmem:[%s5477 + $0x160] sm:$0xff]
    %v5523 = vld [vmem:[%s5477 + $0x168] sm:$0xff]
    %v5524 = vld [vmem:[%s5477 + $0x170] sm:$0xff]
    %v5525 = vld [vmem:[%s5477 + $0x178] sm:$0xff]
    %v5526 = vld [vmem:[%s5477 + $0x180] sm:$0xff]
    %v5527 = vld [vmem:[%s5477 + $0x188] sm:$0xff]
    %v5528 = vld [vmem:[%s5477 + $0x190] sm:$0xff]
    %v5529 = vld [vmem:[%s5477 + $0x198] sm:$0xff]
    %v5530 = vld [vmem:[%s5477 + $0x1a0] sm:$0xff]
    %v5531 = vld [vmem:[%s5477 + $0x1a8] sm:$0xff]
    %v5532 = vld [vmem:[%s5477 + $0x1b0] sm:$0xff]
    %v5533 = vld [vmem:[%s5477 + $0x1b8] sm:$0xff]
    %v5534 = vld [vmem:[%s5477 + $0x1c0] sm:$0xff]
    %v5535 = vld [vmem:[%s5477 + $0x1c8] sm:$0xff]
    %v5536 = vld [vmem:[%s5477 + $0x1d0] sm:$0xff]
    %v5537 = vld [vmem:[%s5477 + $0x1d8] sm:$0xff]
    %v5538 = vld [vmem:[%s5477 + $0x1e0] sm:$0xff]
    %v5539 = vld [vmem:[%s5477 + $0x1e8] sm:$0xff]
    %v5540 = vld [vmem:[%s5477 + $0x1f0] sm:$0xff]
    %v5541 = vld [vmem:[%s5477 + $0x1f8] sm:$0xff]
    %v5542 = vld [vmem:[%s5477 + $0x200] sm:$0xff]
    %v5543 = vld [vmem:[%s5477 + $0x208] sm:$0xff]
    %v5544 = vld [vmem:[%s5477 + $0x210] sm:$0xff]
    %v5545 = vld [vmem:[%s5477 + $0x218] sm:$0xff]
    %v5546 = vld [vmem:[%s5477 + $0x220] sm:$0xff]
    %v5547 = vld [vmem:[%s5477 + $0x228] sm:$0xff]
    %v5548 = vld [vmem:[%s5477 + $0x230] sm:$0xff]
    %v5549 = vld [vmem:[%s5477 + $0x238] sm:$0xff]
    %v5550 = vld [vmem:[%s5477 + $0x240] sm:$0xff]
    %v5551 = vld [vmem:[%s5477 + $0x248] sm:$0xff]
    %v5552 = vld [vmem:[%s5477 + $0x250] sm:$0xff]
    %v5553 = vld [vmem:[%s5477 + $0x258] sm:$0xff]
    %v5554 = vld [vmem:[%s5477 + $0x260] sm:$0xff]
    %v5555 = vld [vmem:[%s5477 + $0x268] sm:$0xff]
    %v5556 = vld [vmem:[%s5477 + $0x270] sm:$0xff]
    %v5557 = vld [vmem:[%s5477 + $0x278] sm:$0xff]
    %v5558 = vld [vmem:[%s5477 + $0x280] sm:$0xff]
    %v5559 = vld [vmem:[%s5477 + $0x288] sm:$0xff]
    %v5560 = vld [vmem:[%s5477 + $0x290] sm:$0xff]
    %v5561 = vld [vmem:[%s5477 + $0x298] sm:$0xff]
    %v5562 = vld [vmem:[%s5477 + $0x2a0] sm:$0xff]
    %v5563 = vld [vmem:[%s5477 + $0x2a8] sm:$0xff]
    %v5564 = vld [vmem:[%s5477 + $0x2b0] sm:$0xff]
    %v5565 = vld [vmem:[%s5477 + $0x2b8] sm:$0xff]
    %v5566 = vld [vmem:[%s5477 + $0x2c0] sm:$0xff]
    %v5567 = vld [vmem:[%s5477 + $0x2c8] sm:$0xff]
    %v5568 = vld [vmem:[%s5477 + $0x2d0] sm:$0xff]
    %v5569 = vld [vmem:[%s5477 + $0x2d8] sm:$0xff]
    %v5570 = vld [vmem:[%s5477 + $0x2e0] sm:$0xff]
    %v5571 = vld [vmem:[%s5477 + $0x2e8] sm:$0xff]
    %v5572 = vld [vmem:[%s5477 + $0x2f0] sm:$0xff]
    %v5573 = vld [vmem:[%s5477 + $0x2f8] sm:$0xff]
    %v5574 = vld [vmem:[%s5477 + $0x300] sm:$0xff]
    %v5575 = vld [vmem:[%s5477 + $0x308] sm:$0xff]
    %v5576 = vld [vmem:[%s5477 + $0x310] sm:$0xff]
    %v5577 = vld [vmem:[%s5477 + $0x318] sm:$0xff]
    %v5578 = vld [vmem:[%s5477 + $0x320] sm:$0xff]
    %v5579 = vld [vmem:[%s5477 + $0x328] sm:$0xff]
    %v5580 = vld [vmem:[%s5477 + $0x330] sm:$0xff]
    %v5581 = vld [vmem:[%s5477 + $0x338] sm:$0xff]
    %v5582 = vld [vmem:[%s5477 + $0x340] sm:$0xff]
    %v5583 = vld [vmem:[%s5477 + $0x348] sm:$0xff]
    %v5584 = vld [vmem:[%s5477 + $0x350] sm:$0xff]
    %v5585 = vld [vmem:[%s5477 + $0x358] sm:$0xff]
    %v5586 = vld [vmem:[%s5477 + $0x360] sm:$0xff]
    %v5587 = vld [vmem:[%s5477 + $0x368] sm:$0xff]
    %v5588 = vld [vmem:[%s5477 + $0x370] sm:$0xff]
    %v5589 = vld [vmem:[%s5477 + $0x378] sm:$0xff]
    %v5590 = vld [vmem:[%s5477 + $0x380] sm:$0xff]
    %v5591 = vld [vmem:[%s5477 + $0x388] sm:$0xff]
    %v5592 = vld [vmem:[%s5477 + $0x390] sm:$0xff]
    %v5593 = vld [vmem:[%s5477 + $0x398] sm:$0xff]
    %v5594 = vld [vmem:[%s5477 + $0x3a0] sm:$0xff]
    %v5595 = vld [vmem:[%s5477 + $0x3a8] sm:$0xff]
    %v5596 = vld [vmem:[%s5477 + $0x3b0] sm:$0xff]
    %v5597 = vld [vmem:[%s5477 + $0x3b8] sm:$0xff]
    %v5599 = vsel %vm1250, %v5472, 0
    %v5602 = vsel %vm1250, %v5475, 0
    %5604 = vmatpush.msra.mxu0 %v5523
    %5605 = vmatpush.msra.mxu0 %v5520
    %5606 = vmatpush.msra.mxu0 %v5517
    %5607 = vmatpush.msra.mxu0 %v5514
    %5608 = vmatpush.msra.mxu0 %v5511
    %5609 = vmatpush.msra.mxu0 %v5508
    %5610 = vmatpush.msra.mxu0 %v5505
    %5611 = vmatpush.msra.mxu0 %v5502
    %5612 = vmatpush.msra.mxu0 %v5499
    %5613 = vmatpush.msra.mxu0 %v5496
    %5614 = vmatpush.msra.mxu0 %v5493
    %5615 = vmatpush.msra.mxu0 %v5490
    %5616 = vmatpush.msra.mxu0 %v5487
    %5617 = vmatpush.msra.mxu0 %v5484
    %5618 = vmatpush.msra.mxu0 %v5481
    %5619 = vmatpush.msra.mxu0 %v5478
    %5620 = vmatmul.f32.gmra.mxu0 %v5426
    %v5621 = vpop.f32.mrf.mxu0
    %v5622 = vadd.f32 0.0, %v5621
    %5623 = vmatmul.f32.gmra.mxu0 %v5429
    %v5624 = vpop.f32.mrf.mxu0
    %v5625 = vadd.f32 0.0, %v5624
    %5626 = vdwg.mxu0
    %5627 = vmatpush.msra.mxu0 %v5571
    %5628 = vmatpush.msra.mxu0 %v5568
    %5629 = vmatpush.msra.mxu0 %v5565
    %5630 = vmatpush.msra.mxu0 %v5562
    %5631 = vmatpush.msra.mxu0 %v5559
    %5632 = vmatpush.msra.mxu0 %v5556
    %5633 = vmatpush.msra.mxu0 %v5553
    %5634 = vmatpush.msra.mxu0 %v5550
    %5635 = vmatpush.msra.mxu0 %v5547
    %5636 = vmatpush.msra.mxu0 %v5544
    %5637 = vmatpush.msra.mxu0 %v5541
    %5638 = vmatpush.msra.mxu0 %v5538
    %5639 = vmatpush.msra.mxu0 %v5535
    %5640 = vmatpush.msra.mxu0 %v5532
    %5641 = vmatpush.msra.mxu0 %v5529
    %5642 = vmatpush.msra.mxu0 %v5526
    %5643 = vmatmul.f32.gmra.mxu0 %v5449
    %v5644 = vpop.f32.mrf.mxu0
    %v5645 = vadd.f32 %v5622, %v5644
    %5646 = vmatmul.f32.gmra.mxu0 %v5452
    %v5647 = vpop.f32.mrf.mxu0
    %v5648 = vadd.f32 %v5625, %v5647
    %5649 = vdwg.mxu0
    %5650 = vmatpush.msra.mxu0 0.0
    %5651 = vmatpush.msra.mxu0 0.0
    %5652 = vmatpush.msra.mxu0 0.0
    %5653 = vmatpush.msra.mxu0 0.0
    %5654 = vmatpush.msra.mxu0 0.0
    %5655 = vmatpush.msra.mxu0 0.0
    %5656 = vmatpush.msra.mxu0 0.0
    %5657 = vmatpush.msra.mxu0 0.0
    %5658 = vmatpush.msra.mxu0 %v5595
    %5659 = vmatpush.msra.mxu0 %v5592
    %5660 = vmatpush.msra.mxu0 %v5589
    %5661 = vmatpush.msra.mxu0 %v5586
    %5662 = vmatpush.msra.mxu0 %v5583
    %5663 = vmatpush.msra.mxu0 %v5580
    %5664 = vmatpush.msra.mxu0 %v5577
    %5665 = vmatpush.msra.mxu0 %v5574
    %5666 = vmatmul.f32.gmra.mxu0 %v5599
    %v5667 = vpop.f32.mrf.mxu0
    %v5668 = vadd.f32 %v5645, %v5667
    %5669 = vmatmul.f32.gmra.mxu0 %v5602
    %v5670 = vpop.f32.mrf.mxu0
    %v5671 = vadd.f32 %v5648, %v5670
    %5672 = vdwg.mxu0
    %5673 = vmatpush.msra.mxu0 %v5524
    %5674 = vmatpush.msra.mxu0 %v5521
    %5675 = vmatpush.msra.mxu0 %v5518
    %5676 = vmatpush.msra.mxu0 %v5515
    %5677 = vmatpush.msra.mxu0 %v5512
    %5678 = vmatpush.msra.mxu0 %v5509
    %5679 = vmatpush.msra.mxu0 %v5506
    %5680 = vmatpush.msra.mxu0 %v5503
    %5681 = vmatpush.msra.mxu0 %v5500
    %5682 = vmatpush.msra.mxu0 %v5497
    %5683 = vmatpush.msra.mxu0 %v5494
    %5684 = vmatpush.msra.mxu0 %v5491
    %5685 = vmatpush.msra.mxu0 %v5488
    %5686 = vmatpush.msra.mxu0 %v5485
    %5687 = vmatpush.msra.mxu0 %v5482
    %5688 = vmatpush.msra.mxu0 %v5479
    %5689 = vmatmul.f32.gmra.mxu0 %v5426
    %v5690 = vpop.f32.mrf.mxu0
    %v5691 = vadd.f32 0.0, %v5690
    %5692 = vmatmul.f32.gmra.mxu0 %v5429
    %v5693 = vpop.f32.mrf.mxu0
    %v5694 = vadd.f32 0.0, %v5693
    %5695 = vdwg.mxu0
    %5696 = vmatpush.msra.mxu0 %v5572
    %5697 = vmatpush.msra.mxu0 %v5569
    %5698 = vmatpush.msra.mxu0 %v5566
    %5699 = vmatpush.msra.mxu0 %v5563
    %5700 = vmatpush.msra.mxu0 %v5560
    %5701 = vmatpush.msra.mxu0 %v5557
    %5702 = vmatpush.msra.mxu0 %v5554
    %5703 = vmatpush.msra.mxu0 %v5551
    %5704 = vmatpush.msra.mxu0 %v5548
    %5705 = vmatpush.msra.mxu0 %v5545
    %5706 = vmatpush.msra.mxu0 %v5542
    %5707 = vmatpush.msra.mxu0 %v5539
    %5708 = vmatpush.msra.mxu0 %v5536
    %5709 = vmatpush.msra.mxu0 %v5533
    %5710 = vmatpush.msra.mxu0 %v5530
    %5711 = vmatpush.msra.mxu0 %v5527
    %5712 = vmatmul.f32.gmra.mxu0 %v5449
    %v5713 = vpop.f32.mrf.mxu0
    %v5714 = vadd.f32 %v5691, %v5713
    %5715 = vmatmul.f32.gmra.mxu0 %v5452
    %v5716 = vpop.f32.mrf.mxu0
    %v5717 = vadd.f32 %v5694, %v5716
    %5718 = vdwg.mxu0
    %5719 = vmatpush.msra.mxu0 0.0
    %5720 = vmatpush.msra.mxu0 0.0
    %5721 = vmatpush.msra.mxu0 0.0
    %5722 = vmatpush.msra.mxu0 0.0
    %5723 = vmatpush.msra.mxu0 0.0
    %5724 = vmatpush.msra.mxu0 0.0
    %5725 = vmatpush.msra.mxu0 0.0
    %5726 = vmatpush.msra.mxu0 0.0
    %5727 = vmatpush.msra.mxu0 %v5596
    %5728 = vmatpush.msra.mxu0 %v5593
    %5729 = vmatpush.msra.mxu0 %v5590
    %5730 = vmatpush.msra.mxu0 %v5587
    %5731 = vmatpush.msra.mxu0 %v5584
    %5732 = vmatpush.msra.mxu0 %v5581
    %5733 = vmatpush.msra.mxu0 %v5578
    %5734 = vmatpush.msra.mxu0 %v5575
    %5735 = vmatmul.f32.gmra.mxu0 %v5599
    %v5736 = vpop.f32.mrf.mxu0
    %v5737 = vadd.f32 %v5714, %v5736
    %5738 = vmatmul.f32.gmra.mxu0 %v5602
    %v5739 = vpop.f32.mrf.mxu0
    %v5740 = vadd.f32 %v5717, %v5739
    %5741 = vdwg.mxu0
    %5742 = vmatpush.msra.mxu0 %v5525
    %5743 = vmatpush.msra.mxu0 %v5522
    %5744 = vmatpush.msra.mxu0 %v5519
    %5745 = vmatpush.msra.mxu0 %v5516
    %5746 = vmatpush.msra.mxu0 %v5513
    %5747 = vmatpush.msra.mxu0 %v5510
    %5748 = vmatpush.msra.mxu0 %v5507
    %5749 = vmatpush.msra.mxu0 %v5504
    %5750 = vmatpush.msra.mxu0 %v5501
    %5751 = vmatpush.msra.mxu0 %v5498
    %5752 = vmatpush.msra.mxu0 %v5495
    %5753 = vmatpush.msra.mxu0 %v5492
    %5754 = vmatpush.msra.mxu0 %v5489
    %5755 = vmatpush.msra.mxu0 %v5486
    %5756 = vmatpush.msra.mxu0 %v5483
    %5757 = vmatpush.msra.mxu0 %v5480
    %5758 = vmatmul.f32.gmra.mxu0 %v5426
    %v5759 = vpop.f32.mrf.mxu0
    %v5760 = vadd.f32 0.0, %v5759
    %5761 = vmatmul.f32.gmra.mxu0 %v5429
    %v5762 = vpop.f32.mrf.mxu0
    %v5763 = vadd.f32 0.0, %v5762
    %5764 = vdwg.mxu0
    %5765 = vmatpush.msra.mxu0 %v5573
    %5766 = vmatpush.msra.mxu0 %v5570
    %5767 = vmatpush.msra.mxu0 %v5567
    %5768 = vmatpush.msra.mxu0 %v5564
    %5769 = vmatpush.msra.mxu0 %v5561
    %5770 = vmatpush.msra.mxu0 %v5558
    %5771 = vmatpush.msra.mxu0 %v5555
    %5772 = vmatpush.msra.mxu0 %v5552
    %5773 = vmatpush.msra.mxu0 %v5549
    %5774 = vmatpush.msra.mxu0 %v5546
    %5775 = vmatpush.msra.mxu0 %v5543
    %5776 = vmatpush.msra.mxu0 %v5540
    %5777 = vmatpush.msra.mxu0 %v5537
    %5778 = vmatpush.msra.mxu0 %v5534
    %5779 = vmatpush.msra.mxu0 %v5531
    %5780 = vmatpush.msra.mxu0 %v5528
    %5781 = vmatmul.f32.gmra.mxu0 %v5449
    %v5782 = vpop.f32.mrf.mxu0
    %v5783 = vadd.f32 %v5760, %v5782
    %5784 = vmatmul.f32.gmra.mxu0 %v5452
    %v5785 = vpop.f32.mrf.mxu0
    %v5786 = vadd.f32 %v5763, %v5785
    %5787 = vdwg.mxu0
    %5788 = vmatpush.msra.mxu0 0.0
    %5789 = vmatpush.msra.mxu0 0.0
    %5790 = vmatpush.msra.mxu0 0.0
    %5791 = vmatpush.msra.mxu0 0.0
    %5792 = vmatpush.msra.mxu0 0.0
    %5793 = vmatpush.msra.mxu0 0.0
    %5794 = vmatpush.msra.mxu0 0.0
    %5795 = vmatpush.msra.mxu0 0.0
    %5796 = vmatpush.msra.mxu0 %v5597
    %5797 = vmatpush.msra.mxu0 %v5594
    %5798 = vmatpush.msra.mxu0 %v5591
    %5799 = vmatpush.msra.mxu0 %v5588
    %5800 = vmatpush.msra.mxu0 %v5585
    %5801 = vmatpush.msra.mxu0 %v5582
    %5802 = vmatpush.msra.mxu0 %v5579
    %5803 = vmatpush.msra.mxu0 %v5576
    %5804 = vmatmul.f32.gmra.mxu0 %v5599
    %v5805 = vpop.f32.mrf.mxu0
    %v5806 = vadd.f32 %v5783, %v5805
    %5807 = vmatmul.f32.gmra.mxu0 %v5602
    %v5808 = vpop.f32.mrf.mxu0
    %v5809 = vadd.f32 %v5786, %v5808
    %5810 = vdwg.mxu0
    %v5811 = vadd.f32 %v5393, %v5668
    %v5812 = vadd.f32 %v5394, %v5737
    %v5813 = vadd.f32 %v5395, %v5806
    %v5814 = vadd.f32 %v5396, %v5671
    %v5815 = vadd.f32 %v5397, %v5740
    %v5816 = vadd.f32 %v5398, %v5809
    %vm5817 = vcmask 1043456
    %v5818 = vsel %vm5817, %v5814, 0.0
    %v5819 = vadd.f32 %v5811, %v5818
    %v5820 = vrot.slane %v5819, 4
    %v5821 = vadd.f32 %v5819, %v5820
    %v5822 = vrot.slane %v5821, 2
    %v5823 = vadd.f32 %v5821, %v5822
    %v5824 = vrot.slane %v5823, 1
    %v5825 = vadd.f32 %v5823, %v5824
    %v5826 = vsel %vm5817, %v5815, 0.0
    %v5827 = vadd.f32 %v5812, %v5826
    %v5828 = vrot.slane %v5827, 4
    %v5829 = vadd.f32 %v5827, %v5828
    %v5830 = vrot.slane %v5829, 2
    %v5831 = vadd.f32 %v5829, %v5830
    %v5832 = vrot.slane %v5831, 1
    %v5833 = vadd.f32 %v5831, %v5832
    %v5834 = vsel %vm1250, %v5813, 0.0
    %vm5835 = vcmask 519168
    %v5836 = vsel %vm5835, %v5816, 0.0
    %v5837 = vadd.f32 %v5834, %v5836
    %v5838 = vrot.slane %v5837, 4
    %v5839 = vadd.f32 %v5837, %v5838
    %v5840 = vrot.slane %v5839, 2
    %v5841 = vadd.f32 %v5839, %v5840
    %v5842 = vrot.slane %v5841, 1
    %v5843 = vadd.f32 %v5841, %v5842
    %v5844 = vld [vmem:[%s13] sm:$0xff]
    %v5845 = vld [vmem:[%s13 + $0x8] sm:$0xff]
    %v5846 = vld [vmem:[%s13 + $0x10] sm:$0xff]
    %v5847 = vld [vmem:[%s13 + $0x18] sm:$0xff]
    %v5848 = vld [vmem:[%s13 + $0x20] sm:$0xff]
    %v5849 = vld [vmem:[%s13 + $0x28] sm:$0xff]
    %v5850 = vld [vmem:[%s13 + $0x30] sm:$0xff]
    %v5851 = vld [vmem:[%s13 + $0x38] sm:$0xff]
    %v5852 = vld [vmem:[%s13 + $0x40] sm:$0xff]
    %v5853 = vld [vmem:[%s13 + $0x48] sm:$0xff]
    %v5854 = vld [vmem:[%s13 + $0x50] sm:$0xff]
    %v5855 = vld [vmem:[%s13 + $0x58] sm:$0xff]
    %v5856 = vld [vmem:[%s13 + $0x60] sm:$0xff]
    %v5857 = vld [vmem:[%s13 + $0x68] sm:$0xff]
    %v5858 = vld [vmem:[%s13 + $0x70] sm:$0xff]
    %v5859 = vld [vmem:[%s13 + $0x78] sm:$0xff]
    %v5860 = vld [vmem:[%s13 + $0x80] sm:$0xff]
    %v5861 = vld [vmem:[%s13 + $0x88] sm:$0xff]
    %v5862 = vld [vmem:[%s13 + $0x90] sm:$0xff]
    %v5863 = vld [vmem:[%s13 + $0x98] sm:$0xff]
    %v5864 = vld [vmem:[%s13 + $0xa0] sm:$0xff]
    %v5865 = vld [vmem:[%s13 + $0xa8] sm:$0xff]
    %v5866 = vld [vmem:[%s13 + $0xb0] sm:$0xff]
    %v5867 = vld [vmem:[%s13 + $0xb8] sm:$0xff]
    %v5868 = vld [vmem:[%s13 + $0xc0] sm:$0xff]
    %v5869 = vld [vmem:[%s13 + $0xc8] sm:$0xff]
    %v5870 = vld [vmem:[%s13 + $0xd0] sm:$0xff]
    %v5871 = vld [vmem:[%s13 + $0xd8] sm:$0xff]
    %v5872 = vld [vmem:[%s13 + $0xe0] sm:$0xff]
    %v5873 = vld [vmem:[%s13 + $0xe8] sm:$0xff]
    %v5874 = vld [vmem:[%s13 + $0xf0] sm:$0xff]
    %v5875 = vld [vmem:[%s13 + $0xf8] sm:$0xff]
    %v5876 = vld [vmem:[%s13 + $0x100] sm:$0xff]
    %v5877 = vld [vmem:[%s13 + $0x108] sm:$0xff]
    %v5878 = vld [vmem:[%s13 + $0x110] sm:$0xff]
    %v5879 = vld [vmem:[%s13 + $0x118] sm:$0xff]
    %v5880 = vld [vmem:[%s13 + $0x120] sm:$0xff]
    %v5881 = vld [vmem:[%s13 + $0x128] sm:$0xff]
    %v5882 = vld [vmem:[%s13 + $0x130] sm:$0xff]
    %v5883 = vld [vmem:[%s13 + $0x138] sm:$0xff]
    %v5885 = vsel %vm1250, %v5843, 0
    %5887 = vmatpush.msra.mxu0 %v5859
    %5888 = vmatpush.msra.mxu0 %v5858
    %5889 = vmatpush.msra.mxu0 %v5857
    %5890 = vmatpush.msra.mxu0 %v5856
    %5891 = vmatpush.msra.mxu0 %v5855
    %5892 = vmatpush.msra.mxu0 %v5854
    %5893 = vmatpush.msra.mxu0 %v5853
    %5894 = vmatpush.msra.mxu0 %v5852
    %5895 = vmatpush.msra.mxu0 %v5851
    %5896 = vmatpush.msra.mxu0 %v5850
    %5897 = vmatpush.msra.mxu0 %v5849
    %5898 = vmatpush.msra.mxu0 %v5848
    %5899 = vmatpush.msra.mxu0 %v5847
    %5900 = vmatpush.msra.mxu0 %v5846
    %5901 = vmatpush.msra.mxu0 %v5845
    %5902 = vmatpush.msra.mxu0 %v5844
    %5903 = vmatmul.f32.gmra.mxu0 %v5825
    %v5904 = vpop.f32.mrf.mxu0
    %v5905 = vadd.f32 0.0, %v5904
    %5906 = vdwg.mxu0
    %5907 = vmatpush.msra.mxu0 %v5875
    %5908 = vmatpush.msra.mxu0 %v5874
    %5909 = vmatpush.msra.mxu0 %v5873
    %5910 = vmatpush.msra.mxu0 %v5872
    %5911 = vmatpush.msra.mxu0 %v5871
    %5912 = vmatpush.msra.mxu0 %v5870
    %5913 = vmatpush.msra.mxu0 %v5869
    %5914 = vmatpush.msra.mxu0 %v5868
    %5915 = vmatpush.msra.mxu0 %v5867
    %5916 = vmatpush.msra.mxu0 %v5866
    %5917 = vmatpush.msra.mxu0 %v5865
    %5918 = vmatpush.msra.mxu0 %v5864
    %5919 = vmatpush.msra.mxu0 %v5863
    %5920 = vmatpush.msra.mxu0 %v5862
    %5921 = vmatpush.msra.mxu0 %v5861
    %5922 = vmatpush.msra.mxu0 %v5860
    %5923 = vmatmul.f32.gmra.mxu0 %v5833
    %v5924 = vpop.f32.mrf.mxu0
    %v5925 = vadd.f32 %v5905, %v5924
    %5926 = vdwg.mxu0
    %5927 = vmatpush.msra.mxu0 0.0
    %5928 = vmatpush.msra.mxu0 0.0
    %5929 = vmatpush.msra.mxu0 0.0
    %5930 = vmatpush.msra.mxu0 0.0
    %5931 = vmatpush.msra.mxu0 0.0
    %5932 = vmatpush.msra.mxu0 0.0
    %5933 = vmatpush.msra.mxu0 0.0
    %5934 = vmatpush.msra.mxu0 0.0
    %5935 = vmatpush.msra.mxu0 %v5883
    %5936 = vmatpush.msra.mxu0 %v5882
    %5937 = vmatpush.msra.mxu0 %v5881
    %5938 = vmatpush.msra.mxu0 %v5880
    %5939 = vmatpush.msra.mxu0 %v5879
    %5940 = vmatpush.msra.mxu0 %v5878
    %5941 = vmatpush.msra.mxu0 %v5877
    %5942 = vmatpush.msra.mxu0 %v5876
    %5943 = vmatmul.f32.gmra.mxu0 %v5885
    %v5944 = vpop.f32.mrf.mxu0
    %v5945 = vadd.f32 %v5925, %v5944
    %5946 = vdwg.mxu0
    %v5947 = vmul.f32 %v5945, 0.008333334
    %v5948 = vld [vmem:[#allocation18] sm:$0xff]
    %v5949 = vld [vmem:[#allocation18 + $0x8] sm:$0xff]
    %v5950 = vld [vmem:[#allocation18 + $0x10] sm:$0xff]
    %v5951 = vld [vmem:[#allocation18 + $0x18] sm:$0xff]
    %v5952 = vld [vmem:[#allocation18 + $0x20] sm:$0xff]
    %v5953 = vld [vmem:[#allocation18 + $0x28] sm:$0xff]
    %v5954 = vld [vmem:[#allocation18 + $0x30] sm:$0xff]
    %v5955 = vld [vmem:[#allocation18 + $0x38] sm:$0xff]
    %v5956 = vld [vmem:[#allocation18 + $0x40] sm:$0xff]
    %v5957 = vld [vmem:[#allocation18 + $0x48] sm:$0xff]
    %v5958 = vld [vmem:[#allocation18 + $0x50] sm:$0xff]
    %v5959 = vld [vmem:[#allocation18 + $0x58] sm:$0xff]
    %vm5960 = vcmask 261120
    %v5962 = vsel %vm5960, %v5947, 0
    %5964 = vmatpush.msra.mxu0 0.0
    %5965 = vmatpush.msra.mxu0 0.0
    %5966 = vmatpush.msra.mxu0 0.0
    %5967 = vmatpush.msra.mxu0 0.0
    %5968 = vmatpush.msra.mxu0 0.0
    %5969 = vmatpush.msra.mxu0 0.0
    %5970 = vmatpush.msra.mxu0 0.0
    %5971 = vmatpush.msra.mxu0 0.0
    %5972 = vmatpush.msra.mxu0 0.0
    %5973 = vmatpush.msra.mxu0 0.0
    %5974 = vmatpush.msra.mxu0 0.0
    %5975 = vmatpush.msra.mxu0 0.0
    %5976 = vmatpush.msra.mxu0 %v5957
    %5977 = vmatpush.msra.mxu0 %v5954
    %5978 = vmatpush.msra.mxu0 %v5951
    %5979 = vmatpush.msra.mxu0 %v5948
    %5980 = vmatmul.f32.gmra.mxu0 %v5962
    %v5981 = vpop.f32.mrf.mxu0
    %v5982 = vadd.f32 0.0, %v5981
    %5983 = vdwg.mxu0
    %5984 = vmatpush.msra.mxu0 0.0
    %5985 = vmatpush.msra.mxu0 0.0
    %5986 = vmatpush.msra.mxu0 0.0
    %5987 = vmatpush.msra.mxu0 0.0
    %5988 = vmatpush.msra.mxu0 0.0
    %5989 = vmatpush.msra.mxu0 0.0
    %5990 = vmatpush.msra.mxu0 0.0
    %5991 = vmatpush.msra.mxu0 0.0
    %5992 = vmatpush.msra.mxu0 0.0
    %5993 = vmatpush.msra.mxu0 0.0
    %5994 = vmatpush.msra.mxu0 0.0
    %5995 = vmatpush.msra.mxu0 0.0
    %5996 = vmatpush.msra.mxu0 %v5958
    %5997 = vmatpush.msra.mxu0 %v5955
    %5998 = vmatpush.msra.mxu0 %v5952
    %5999 = vmatpush.msra.mxu0 %v5949
    %6000 = vmatmul.f32.gmra.mxu0 %v5962
    %v6001 = vpop.f32.mrf.mxu0
    %v6002 = vadd.f32 0.0, %v6001
    %6003 = vdwg.mxu0
    %6004 = vmatpush.msra.mxu0 0.0
    %6005 = vmatpush.msra.mxu0 0.0
    %6006 = vmatpush.msra.mxu0 0.0
    %6007 = vmatpush.msra.mxu0 0.0
    %6008 = vmatpush.msra.mxu0 0.0
    %6009 = vmatpush.msra.mxu0 0.0
    %6010 = vmatpush.msra.mxu0 0.0
    %6011 = vmatpush.msra.mxu0 0.0
    %6012 = vmatpush.msra.mxu0 0.0
    %6013 = vmatpush.msra.mxu0 0.0
    %6014 = vmatpush.msra.mxu0 0.0
    %6015 = vmatpush.msra.mxu0 0.0
    %6016 = vmatpush.msra.mxu0 %v5959
    %6017 = vmatpush.msra.mxu0 %v5956
    %6018 = vmatpush.msra.mxu0 %v5953
    %6019 = vmatpush.msra.mxu0 %v5950
    %6020 = vmatmul.f32.gmra.mxu0 %v5962
    %v6021 = vpop.f32.mrf.mxu0
    %v6022 = vadd.f32 0.0, %v6021
    %6023 = vdwg.mxu0
    %v6024 = vperm.slane %v5982, 0
    %v6025 = vperm.slane %v6002, 0
    %v6026 = vperm.slane %v6022, 0
    %v6027 = vsub.f32 %v5811, %v6024
    %v6028 = vsub.f32 %v5812, %v6025
    %v6029 = vsub.f32 %v5813, %v6026
    %v6030 = vsub.f32 %v5814, %v6024
    %v6031 = vsub.f32 %v5815, %v6025
    %v6032 = vsub.f32 %v5816, %v6026
    %v6033 = vmul.f32 %v6027, %v6027
    %v6034 = vmul.f32 %v6028, %v6028
    %v6035 = vmul.f32 %v6029, %v6029
    %v6036 = vmul.f32 %v6030, %v6030
    %v6037 = vmul.f32 %v6031, %v6031
    %v6038 = vmul.f32 %v6032, %v6032
    %v6039 = vsel %vm5817, %v6036, 0.0
    %v6040 = vadd.f32 %v6033, %v6039
    %v6041 = vrot.slane %v6040, 4
    %v6042 = vadd.f32 %v6040, %v6041
    %v6043 = vrot.slane %v6042, 2
    %v6044 = vadd.f32 %v6042, %v6043
    %v6045 = vrot.slane %v6044, 1
    %v6046 = vadd.f32 %v6044, %v6045
    %v6047 = vsel %vm5817, %v6037, 0.0
    %v6048 = vadd.f32 %v6034, %v6047
    %v6049 = vrot.slane %v6048, 4
    %v6050 = vadd.f32 %v6048, %v6049
    %v6051 = vrot.slane %v6050, 2
    %v6052 = vadd.f32 %v6050, %v6051
    %v6053 = vrot.slane %v6052, 1
    %v6054 = vadd.f32 %v6052, %v6053
    %v6055 = vsel %vm1250, %v6035, 0.0
    %v6056 = vsel %vm5835, %v6038, 0.0
    %v6057 = vadd.f32 %v6055, %v6056
    %v6058 = vrot.slane %v6057, 4
    %v6059 = vadd.f32 %v6057, %v6058
    %v6060 = vrot.slane %v6059, 2
    %v6061 = vadd.f32 %v6059, %v6060
    %v6062 = vrot.slane %v6061, 1
    %v6063 = vadd.f32 %v6061, %v6062
    %v6065 = vsel %vm1250, %v6063, 0
    %6067 = vmatpush.msra.mxu0 %v5859
    %6068 = vmatpush.msra.mxu0 %v5858
    %6069 = vmatpush.msra.mxu0 %v5857
    %6070 = vmatpush.msra.mxu0 %v5856
    %6071 = vmatpush.msra.mxu0 %v5855
    %6072 = vmatpush.msra.mxu0 %v5854
    %6073 = vmatpush.msra.mxu0 %v5853
    %6074 = vmatpush.msra.mxu0 %v5852
    %6075 = vmatpush.msra.mxu0 %v5851
    %6076 = vmatpush.msra.mxu0 %v5850
    %6077 = vmatpush.msra.mxu0 %v5849
    %6078 = vmatpush.msra.mxu0 %v5848
    %6079 = vmatpush.msra.mxu0 %v5847
    %6080 = vmatpush.msra.mxu0 %v5846
    %6081 = vmatpush.msra.mxu0 %v5845
    %6082 = vmatpush.msra.mxu0 %v5844
    %6083 = vmatmul.f32.gmra.mxu0 %v6046
    %v6084 = vpop.f32.mrf.mxu0
    %v6085 = vadd.f32 0.0, %v6084
    %6086 = vdwg.mxu0
    %6087 = vmatpush.msra.mxu0 %v5875
    %6088 = vmatpush.msra.mxu0 %v5874
    %6089 = vmatpush.msra.mxu0 %v5873
    %6090 = vmatpush.msra.mxu0 %v5872
    %6091 = vmatpush.msra.mxu0 %v5871
    %6092 = vmatpush.msra.mxu0 %v5870
    %6093 = vmatpush.msra.mxu0 %v5869
    %6094 = vmatpush.msra.mxu0 %v5868
    %6095 = vmatpush.msra.mxu0 %v5867
    %6096 = vmatpush.msra.mxu0 %v5866
    %6097 = vmatpush.msra.mxu0 %v5865
    %6098 = vmatpush.msra.mxu0 %v5864
    %6099 = vmatpush.msra.mxu0 %v5863
    %6100 = vmatpush.msra.mxu0 %v5862
    %6101 = vmatpush.msra.mxu0 %v5861
    %6102 = vmatpush.msra.mxu0 %v5860
    %6103 = vmatmul.f32.gmra.mxu0 %v6054
    %v6104 = vpop.f32.mrf.mxu0
    %v6105 = vadd.f32 %v6085, %v6104
    %6106 = vdwg.mxu0
    %6107 = vmatpush.msra.mxu0 0.0
    %6108 = vmatpush.msra.mxu0 0.0
    %6109 = vmatpush.msra.mxu0 0.0
    %6110 = vmatpush.msra.mxu0 0.0
    %6111 = vmatpush.msra.mxu0 0.0
    %6112 = vmatpush.msra.mxu0 0.0
    %6113 = vmatpush.msra.mxu0 0.0
    %6114 = vmatpush.msra.mxu0 0.0
    %6115 = vmatpush.msra.mxu0 %v5883
    %6116 = vmatpush.msra.mxu0 %v5882
    %6117 = vmatpush.msra.mxu0 %v5881
    %6118 = vmatpush.msra.mxu0 %v5880
    %6119 = vmatpush.msra.mxu0 %v5879
    %6120 = vmatpush.msra.mxu0 %v5878
    %6121 = vmatpush.msra.mxu0 %v5877
    %6122 = vmatpush.msra.mxu0 %v5876
    %6123 = vmatmul.f32.gmra.mxu0 %v6065
    %v6124 = vpop.f32.mrf.mxu0
    %v6125 = vadd.f32 %v6105, %v6124
    %6126 = vdwg.mxu0
    %v6127 = vmul.f32 %v6125, 0.008333334
    %v6128 = vld [vmem:[#allocation19] sm:$0x1]
    %v6129 = vadd.f32 %v6127, 1e-05
    %v6130 = vrsqrt.pop %v6129
    %v6131 = vmul.f32 %v6130, %v6129
    %v6132 = vmul.f32 %v6131, %v6130
    %v6133 = vmul.f32 0.5, %v6132
    %v6134 = vsub.f32 1.5, %v6133
    %v6135 = vmul.f32 %v6130, %v6134
    %vm6136 = vweird.f32 %v6129
    %vm6137 = vweird.f32 %v6130
    %vm6138 = vmor %vm6136, %vm6137
    %v6139 = vsel %vm6138, %v6130, %v6135
    %v6140 = vmul.f32 %v6128, %v6139
    %v6142 = vsel %vm5960, %v6140, 0
    %6144 = vmatpush.msra.mxu0 0.0
    %6145 = vmatpush.msra.mxu0 0.0
    %6146 = vmatpush.msra.mxu0 0.0
    %6147 = vmatpush.msra.mxu0 0.0
    %6148 = vmatpush.msra.mxu0 0.0
    %6149 = vmatpush.msra.mxu0 0.0
    %6150 = vmatpush.msra.mxu0 0.0
    %6151 = vmatpush.msra.mxu0 0.0
    %6152 = vmatpush.msra.mxu0 0.0
    %6153 = vmatpush.msra.mxu0 0.0
    %6154 = vmatpush.msra.mxu0 0.0
    %6155 = vmatpush.msra.mxu0 0.0
    %6156 = vmatpush.msra.mxu0 %v5957
    %6157 = vmatpush.msra.mxu0 %v5954
    %6158 = vmatpush.msra.mxu0 %v5951
    %6159 = vmatpush.msra.mxu0 %v5948
    %6160 = vmatmul.f32.gmra.mxu0 %v6142
    %v6161 = vpop.f32.mrf.mxu0
    %v6162 = vadd.f32 0.0, %v6161
    %6163 = vdwg.mxu0
    %6164 = vmatpush.msra.mxu0 0.0
    %6165 = vmatpush.msra.mxu0 0.0
    %6166 = vmatpush.msra.mxu0 0.0
    %6167 = vmatpush.msra.mxu0 0.0
    %6168 = vmatpush.msra.mxu0 0.0
    %6169 = vmatpush.msra.mxu0 0.0
    %6170 = vmatpush.msra.mxu0 0.0
    %6171 = vmatpush.msra.mxu0 0.0
    %6172 = vmatpush.msra.mxu0 0.0
    %6173 = vmatpush.msra.mxu0 0.0
    %6174 = vmatpush.msra.mxu0 0.0
    %6175 = vmatpush.msra.mxu0 0.0
    %6176 = vmatpush.msra.mxu0 %v5958
    %6177 = vmatpush.msra.mxu0 %v5955
    %6178 = vmatpush.msra.mxu0 %v5952
    %6179 = vmatpush.msra.mxu0 %v5949
    %6180 = vmatmul.f32.gmra.mxu0 %v6142
    %v6181 = vpop.f32.mrf.mxu0
    %v6182 = vadd.f32 0.0, %v6181
    %6183 = vdwg.mxu0
    %6184 = vmatpush.msra.mxu0 0.0
    %6185 = vmatpush.msra.mxu0 0.0
    %6186 = vmatpush.msra.mxu0 0.0
    %6187 = vmatpush.msra.mxu0 0.0
    %6188 = vmatpush.msra.mxu0 0.0
    %6189 = vmatpush.msra.mxu0 0.0
    %6190 = vmatpush.msra.mxu0 0.0
    %6191 = vmatpush.msra.mxu0 0.0
    %6192 = vmatpush.msra.mxu0 0.0
    %6193 = vmatpush.msra.mxu0 0.0
    %6194 = vmatpush.msra.mxu0 0.0
    %6195 = vmatpush.msra.mxu0 0.0
    %6196 = vmatpush.msra.mxu0 %v5959
    %6197 = vmatpush.msra.mxu0 %v5956
    %6198 = vmatpush.msra.mxu0 %v5953
    %6199 = vmatpush.msra.mxu0 %v5950
    %6200 = vmatmul.f32.gmra.mxu0 %v6142
    %v6201 = vpop.f32.mrf.mxu0
    %v6202 = vadd.f32 0.0, %v6201
    %6203 = vdwg.mxu0
    %v6204 = vld [vmem:[#allocation19 + $0x1] sm:$0x1]
    %v6206 = vsel %vm5960, %v6204, 0
    %6208 = vmatpush.msra.mxu0 0.0
    %6209 = vmatpush.msra.mxu0 0.0
    %6210 = vmatpush.msra.mxu0 0.0
    %6211 = vmatpush.msra.mxu0 0.0
    %6212 = vmatpush.msra.mxu0 0.0
    %6213 = vmatpush.msra.mxu0 0.0
    %6214 = vmatpush.msra.mxu0 0.0
    %6215 = vmatpush.msra.mxu0 0.0
    %6216 = vmatpush.msra.mxu0 0.0
    %6217 = vmatpush.msra.mxu0 0.0
    %6218 = vmatpush.msra.mxu0 0.0
    %6219 = vmatpush.msra.mxu0 0.0
    %6220 = vmatpush.msra.mxu0 %v5957
    %6221 = vmatpush.msra.mxu0 %v5954
    %6222 = vmatpush.msra.mxu0 %v5951
    %6223 = vmatpush.msra.mxu0 %v5948
    %6224 = vmatmul.f32.gmra.mxu0 %v6206
    %v6225 = vpop.f32.mrf.mxu0
    %v6226 = vadd.f32 0.0, %v6225
    %6227 = vdwg.mxu0
    %6228 = vmatpush.msra.mxu0 0.0
    %6229 = vmatpush.msra.mxu0 0.0
    %6230 = vmatpush.msra.mxu0 0.0
    %6231 = vmatpush.msra.mxu0 0.0
    %6232 = vmatpush.msra.mxu0 0.0
    %6233 = vmatpush.msra.mxu0 0.0
    %6234 = vmatpush.msra.mxu0 0.0
    %6235 = vmatpush.msra.mxu0 0.0
    %6236 = vmatpush.msra.mxu0 0.0
    %6237 = vmatpush.msra.mxu0 0.0
    %6238 = vmatpush.msra.mxu0 0.0
    %6239 = vmatpush.msra.mxu0 0.0
    %6240 = vmatpush.msra.mxu0 %v5958
    %6241 = vmatpush.msra.mxu0 %v5955
    %6242 = vmatpush.msra.mxu0 %v5952
    %6243 = vmatpush.msra.mxu0 %v5949
    %6244 = vmatmul.f32.gmra.mxu0 %v6206
    %v6245 = vpop.f32.mrf.mxu0
    %v6246 = vadd.f32 0.0, %v6245
    %6247 = vdwg.mxu0
    %6248 = vmatpush.msra.mxu0 0.0
    %6249 = vmatpush.msra.mxu0 0.0
    %6250 = vmatpush.msra.mxu0 0.0
    %6251 = vmatpush.msra.mxu0 0.0
    %6252 = vmatpush.msra.mxu0 0.0
    %6253 = vmatpush.msra.mxu0 0.0
    %6254 = vmatpush.msra.mxu0 0.0
    %6255 = vmatpush.msra.mxu0 0.0
    %6256 = vmatpush.msra.mxu0 0.0
    %6257 = vmatpush.msra.mxu0 0.0
    %6258 = vmatpush.msra.mxu0 0.0
    %6259 = vmatpush.msra.mxu0 0.0
    %6260 = vmatpush.msra.mxu0 %v5959
    %6261 = vmatpush.msra.mxu0 %v5956
    %6262 = vmatpush.msra.mxu0 %v5953
    %6263 = vmatpush.msra.mxu0 %v5950
    %6264 = vmatmul.f32.gmra.mxu0 %v6206
    %v6265 = vpop.f32.mrf.mxu0
    %v6266 = vadd.f32 0.0, %v6265
    %6267 = vdwg.mxu0
    %v6268 = vperm.slane %v6162, 0
    %v6269 = vperm.slane %v6182, 0
    %v6270 = vperm.slane %v6202, 0
    %v6271 = vmul.f32 %v6027, %v6268
    %v6272 = vmul.f32 %v6028, %v6269
    %v6273 = vmul.f32 %v6029, %v6270
    %v6274 = vmul.f32 %v6030, %v6268
    %v6275 = vmul.f32 %v6031, %v6269
    %v6276 = vmul.f32 %v6032, %v6270
    %v6277 = vperm.slane %v6226, 0
    %v6278 = vperm.slane %v6246, 0
    %v6279 = vperm.slane %v6266, 0
    %v6280 = vadd.f32 %v6271, %v6277
    %v6281 = vadd.f32 %v6272, %v6278
    %v6282 = vadd.f32 %v6273, %v6279
    %v6283 = vadd.f32 %v6274, %v6277
    %v6284 = vadd.f32 %v6275, %v6278
    %v6285 = vadd.f32 %v6276, %v6279
    %vm6286 = vcmp.ge.f32.partialorder %v6280, 0.0
    %vm6287 = vcmp.ge.f32.partialorder %v6281, 0.0
    %vm6288 = vcmp.ge.f32.partialorder %v6282, 0.0
    %vm6289 = vcmp.ge.f32.partialorder %v6283, 0.0
    %vm6290 = vcmp.ge.f32.partialorder %v6284, 0.0
    %vm6291 = vcmp.ge.f32.partialorder %v6285, 0.0
    %v6292 = vmul.f32 %v6280, 0.2
    %v6293 = vmul.f32 %v6281, 0.2
    %v6294 = vmul.f32 %v6282, 0.2
    %v6295 = vmul.f32 %v6283, 0.2
    %v6296 = vmul.f32 %v6284, 0.2
    %v6297 = vmul.f32 %v6285, 0.2
    %v6298 = vsel %vm6286, %v6280, %v6292
    %v6299 = vsel %vm6287, %v6281, %v6293
    %v6300 = vsel %vm6288, %v6282, %v6294
    %v6301 = vsel %vm6289, %v6283, %v6295
    %v6302 = vsel %vm6290, %v6284, %v6296
    %v6303 = vsel %vm6291, %v6285, %v6297
    %v6304 = vld [vmem:[%s16] sm:$0x3f]
    %vm6305 = vcmask 97280
    %v6307 = vsel %vm6305, %v6304, 0
    %v6310 = vsel %vm5817, %v6301, 0
    %v6313 = vsel %vm5817, %v6302, 0
    %v6316 = vsel %vm5817, %v6303, 0
    %6318 = vmatpush.msra.mxu0 0.0
    %6319 = vmatpush.msra.mxu0 0.0
    %6320 = vmatpush.msra.mxu0 0.0
    %6321 = vmatpush.msra.mxu0 0.0
    %6322 = vmatpush.msra.mxu0 0.0
    %6323 = vmatpush.msra.mxu0 0.0
    %6324 = vmatpush.msra.mxu0 0.0
    %6325 = vmatpush.msra.mxu0 0.0
    %6326 = vmatpush.msra.mxu0 0.0
    %6327 = vmatpush.msra.mxu0 0.0
    %6328 = vmatpush.msra.mxu0 0.0
    %6329 = vmatpush.msra.mxu0 0.0
    %6330 = vmatpush.msra.mxu0 0.0
    %6331 = vmatpush.msra.mxu0 0.0
    %6332 = vmatpush.msra.mxu0 %v6310
    %6333 = vmatpush.msra.mxu0 %v6298
    %6334 = vmatmul.f32.gmra.mxu0 %v6307
    %v6335 = vpop.f32.mrf.mxu0
    %v6336 = vadd.f32 0.0, %v6335
    %6337 = vdwg.mxu0
    %6338 = vmatpush.msra.mxu0 0.0
    %6339 = vmatpush.msra.mxu0 0.0
    %6340 = vmatpush.msra.mxu0 0.0
    %6341 = vmatpush.msra.mxu0 0.0
    %6342 = vmatpush.msra.mxu0 0.0
    %6343 = vmatpush.msra.mxu0 0.0
    %6344 = vmatpush.msra.mxu0 0.0
    %6345 = vmatpush.msra.mxu0 0.0
    %6346 = vmatpush.msra.mxu0 0.0
    %6347 = vmatpush.msra.mxu0 0.0
    %6348 = vmatpush.msra.mxu0 0.0
    %6349 = vmatpush.msra.mxu0 0.0
    %6350 = vmatpush.msra.mxu0 0.0
    %6351 = vmatpush.msra.mxu0 0.0
    %6352 = vmatpush.msra.mxu0 %v6313
    %6353 = vmatpush.msra.mxu0 %v6299
    %6354 = vmatmul.f32.gmra.mxu0 %v6307
    %v6355 = vpop.f32.mrf.mxu0
    %v6356 = vadd.f32 0.0, %v6355
    %6357 = vdwg.mxu0
    %6358 = vmatpush.msra.mxu0 0.0
    %6359 = vmatpush.msra.mxu0 0.0
    %6360 = vmatpush.msra.mxu0 0.0
    %6361 = vmatpush.msra.mxu0 0.0
    %6362 = vmatpush.msra.mxu0 0.0
    %6363 = vmatpush.msra.mxu0 0.0
    %6364 = vmatpush.msra.mxu0 0.0
    %6365 = vmatpush.msra.mxu0 0.0
    %6366 = vmatpush.msra.mxu0 0.0
    %6367 = vmatpush.msra.mxu0 0.0
    %6368 = vmatpush.msra.mxu0 0.0
    %6369 = vmatpush.msra.mxu0 0.0
    %6370 = vmatpush.msra.mxu0 0.0
    %6371 = vmatpush.msra.mxu0 0.0
    %6372 = vmatpush.msra.mxu0 %v6316
    %6373 = vmatpush.msra.mxu0 %v6300
    %6374 = vmatmul.f32.gmra.mxu0 %v6307
    %v6375 = vpop.f32.mrf.mxu0
    %v6376 = vadd.f32 0.0, %v6375
    %6377 = vdwg.mxu0
    %v6378 = vld [vmem:[#allocation21] sm:$0xff]
    %v6379 = vld [vmem:[#allocation21 + $0x8] sm:$0xff]
    %v6380 = vld [vmem:[#allocation21 + $0x10] sm:$0xff]
    %v6381 = vld [vmem:[#allocation21 + $0x18] sm:$0xff]
    %v6382 = vld [vmem:[#allocation21 + $0x20] sm:$0xff]
    %v6383 = vld [vmem:[#allocation21 + $0x28] sm:$0xff]
    %v6384 = vld [vmem:[#allocation21 + $0x30] sm:$0xff]
    %v6385 = vld [vmem:[#allocation21 + $0x38] sm:$0xff]
    %v6386 = vld [vmem:[#allocation21 + $0x40] sm:$0xff]
    %v6387 = vld [vmem:[#allocation21 + $0x48] sm:$0xff]
    %v6388 = vld [vmem:[#allocation21 + $0x50] sm:$0xff]
    %v6389 = vld [vmem:[#allocation21 + $0x58] sm:$0xff]
    %v6390 = vld [vmem:[#allocation21 + $0x60] sm:$0xff]
    %v6391 = vld [vmem:[#allocation21 + $0x68] sm:$0xff]
    %v6392 = vld [vmem:[#allocation21 + $0x70] sm:$0xff]
    %v6393 = vld [vmem:[#allocation21 + $0x78] sm:$0xff]
    %v6394 = vld [vmem:[#allocation21 + $0x80] sm:$0xff]
    %v6395 = vld [vmem:[#allocation21 + $0x88] sm:$0xff]
    %v6396 = vld [vmem:[#allocation21 + $0x90] sm:$0xff]
    %v6397 = vld [vmem:[#allocation21 + $0x98] sm:$0xff]
    %v6398 = vld [vmem:[#allocation21 + $0xa0] sm:$0xff]
    %v6399 = vld [vmem:[#allocation21 + $0xa8] sm:$0xff]
    %v6400 = vld [vmem:[#allocation21 + $0xb0] sm:$0xff]
    %v6401 = vld [vmem:[#allocation21 + $0xb8] sm:$0xff]
    %v6402 = vld [vmem:[#allocation21 + $0xc0] sm:$0xff]
    %v6403 = vld [vmem:[#allocation21 + $0xc8] sm:$0xff]
    %v6404 = vld [vmem:[#allocation21 + $0xd0] sm:$0xff]
    %v6405 = vld [vmem:[#allocation21 + $0xd8] sm:$0xff]
    %v6406 = vld [vmem:[#allocation21 + $0xe0] sm:$0xff]
    %v6407 = vld [vmem:[#allocation21 + $0xe8] sm:$0xff]
    %v6408 = vld [vmem:[#allocation21 + $0xf0] sm:$0xff]
    %v6409 = vld [vmem:[#allocation21 + $0xf8] sm:$0xff]
    %v6410 = vld [vmem:[#allocation21 + $0x100] sm:$0xff]
    %v6411 = vld [vmem:[#allocation21 + $0x108] sm:$0xff]
    %v6412 = vld [vmem:[#allocation21 + $0x110] sm:$0xff]
    %v6413 = vld [vmem:[#allocation21 + $0x118] sm:$0xff]
    %v6414 = vld [vmem:[#allocation21 + $0x120] sm:$0xff]
    %v6415 = vld [vmem:[#allocation21 + $0x128] sm:$0xff]
    %v6416 = vld [vmem:[#allocation21 + $0x130] sm:$0xff]
    %v6417 = vld [vmem:[#allocation21 + $0x138] sm:$0xff]
    %v6418 = vld [vmem:[#allocation21 + $0x140] sm:$0xff]
    %v6419 = vld [vmem:[#allocation21 + $0x148] sm:$0xff]
    %v6420 = vld [vmem:[#allocation21 + $0x150] sm:$0xff]
    %v6421 = vld [vmem:[#allocation21 + $0x158] sm:$0xff]
    %v6422 = vld [vmem:[#allocation21 + $0x160] sm:$0xff]
    %v6423 = vld [vmem:[#allocation21 + $0x168] sm:$0xff]
    %v6424 = vld [vmem:[#allocation21 + $0x170] sm:$0xff]
    %v6425 = vld [vmem:[#allocation21 + $0x178] sm:$0xff]
    %v6426 = vld [vmem:[#allocation21 + $0x180] sm:$0xff]
    %v6427 = vld [vmem:[#allocation21 + $0x188] sm:$0xff]
    %v6428 = vld [vmem:[#allocation21 + $0x190] sm:$0xff]
    %v6429 = vld [vmem:[#allocation21 + $0x198] sm:$0xff]
    %v6430 = vld [vmem:[#allocation21 + $0x1a0] sm:$0xff]
    %v6431 = vld [vmem:[#allocation21 + $0x1a8] sm:$0xff]
    %v6432 = vld [vmem:[#allocation21 + $0x1b0] sm:$0xff]
    %v6433 = vld [vmem:[#allocation21 + $0x1b8] sm:$0xff]
    %v6434 = vld [vmem:[#allocation21 + $0x1c0] sm:$0xff]
    %v6435 = vld [vmem:[#allocation21 + $0x1c8] sm:$0xff]
    %v6436 = vld [vmem:[#allocation21 + $0x1d0] sm:$0xff]
    %v6437 = vld [vmem:[#allocation21 + $0x1d8] sm:$0xff]
    %v6438 = vld [vmem:[#allocation21 + $0x1e0] sm:$0xff]
    %v6439 = vld [vmem:[#allocation21 + $0x1e8] sm:$0xff]
    %v6440 = vld [vmem:[#allocation21 + $0x1f0] sm:$0xff]
    %v6441 = vld [vmem:[#allocation21 + $0x1f8] sm:$0xff]
    %v6442 = vld [vmem:[#allocation21 + $0x200] sm:$0xff]
    %v6443 = vld [vmem:[#allocation21 + $0x208] sm:$0xff]
    %v6444 = vld [vmem:[#allocation21 + $0x210] sm:$0xff]
    %v6445 = vld [vmem:[#allocation21 + $0x218] sm:$0xff]
    %v6446 = vld [vmem:[#allocation21 + $0x220] sm:$0xff]
    %v6447 = vld [vmem:[#allocation21 + $0x228] sm:$0xff]
    %v6448 = vld [vmem:[#allocation21 + $0x230] sm:$0xff]
    %v6449 = vld [vmem:[#allocation21 + $0x238] sm:$0xff]
    %v6450 = vld [vmem:[#allocation21 + $0x240] sm:$0xff]
    %v6451 = vld [vmem:[#allocation21 + $0x248] sm:$0xff]
    %v6452 = vld [vmem:[#allocation21 + $0x250] sm:$0xff]
    %v6453 = vld [vmem:[#allocation21 + $0x258] sm:$0xff]
    %v6454 = vld [vmem:[#allocation21 + $0x260] sm:$0xff]
    %v6455 = vld [vmem:[#allocation21 + $0x268] sm:$0xff]
    %v6456 = vld [vmem:[#allocation21 + $0x270] sm:$0xff]
    %v6457 = vld [vmem:[#allocation21 + $0x278] sm:$0xff]
    %v6458 = vld [vmem:[#allocation21 + $0x280] sm:$0xff]
    %v6459 = vld [vmem:[#allocation21 + $0x288] sm:$0xff]
    %v6460 = vld [vmem:[#allocation21 + $0x290] sm:$0xff]
    %v6461 = vld [vmem:[#allocation21 + $0x298] sm:$0xff]
    %v6462 = vld [vmem:[#allocation21 + $0x2a0] sm:$0xff]
    %v6463 = vld [vmem:[#allocation21 + $0x2a8] sm:$0xff]
    %v6464 = vld [vmem:[#allocation21 + $0x2b0] sm:$0xff]
    %v6465 = vld [vmem:[#allocation21 + $0x2b8] sm:$0xff]
    %v6466 = vld [vmem:[#allocation21 + $0x2c0] sm:$0xff]
    %v6467 = vld [vmem:[#allocation21 + $0x2c8] sm:$0xff]
    %v6468 = vld [vmem:[#allocation21 + $0x2d0] sm:$0xff]
    %v6469 = vld [vmem:[#allocation21 + $0x2d8] sm:$0xff]
    %v6470 = vld [vmem:[#allocation21 + $0x2e0] sm:$0xff]
    %v6471 = vld [vmem:[#allocation21 + $0x2e8] sm:$0xff]
    %v6472 = vld [vmem:[#allocation21 + $0x2f0] sm:$0xff]
    %v6473 = vld [vmem:[#allocation21 + $0x2f8] sm:$0xff]
    %v6474 = vld [vmem:[#allocation21 + $0x300] sm:$0xff]
    %v6475 = vld [vmem:[#allocation21 + $0x308] sm:$0xff]
    %v6476 = vld [vmem:[#allocation21 + $0x310] sm:$0xff]
    %v6477 = vld [vmem:[#allocation21 + $0x318] sm:$0xff]
    %v6478 = vld [vmem:[#allocation21 + $0x320] sm:$0xff]
    %v6479 = vld [vmem:[#allocation21 + $0x328] sm:$0xff]
    %v6480 = vld [vmem:[#allocation21 + $0x330] sm:$0xff]
    %v6481 = vld [vmem:[#allocation21 + $0x338] sm:$0xff]
    %v6482 = vld [vmem:[#allocation21 + $0x340] sm:$0xff]
    %v6483 = vld [vmem:[#allocation21 + $0x348] sm:$0xff]
    %v6484 = vld [vmem:[#allocation21 + $0x350] sm:$0xff]
    %v6485 = vld [vmem:[#allocation21 + $0x358] sm:$0xff]
    %v6486 = vld [vmem:[#allocation21 + $0x360] sm:$0xff]
    %v6487 = vld [vmem:[#allocation21 + $0x368] sm:$0xff]
    %v6488 = vld [vmem:[#allocation21 + $0x370] sm:$0xff]
    %v6489 = vld [vmem:[#allocation21 + $0x378] sm:$0xff]
    %v6490 = vld [vmem:[#allocation21 + $0x380] sm:$0xff]
    %v6491 = vld [vmem:[#allocation21 + $0x388] sm:$0xff]
    %v6492 = vld [vmem:[#allocation21 + $0x390] sm:$0xff]
    %v6493 = vld [vmem:[#allocation21 + $0x398] sm:$0xff]
    %v6494 = vld [vmem:[#allocation21 + $0x3a0] sm:$0xff]
    %v6495 = vld [vmem:[#allocation21 + $0x3a8] sm:$0xff]
    %v6496 = vld [vmem:[#allocation21 + $0x3b0] sm:$0xff]
    %v6497 = vld [vmem:[#allocation21 + $0x3b8] sm:$0xff]
    %s6498 = scalar_lea.vmem %s16, 8
    %v6499 = vld [vmem:[%s6498] sm:$0x3f]
    %v6501 = vsel %vm6305, %v6499, 0
    %6503 = vmatpush.msra.mxu0 0.0
    %6504 = vmatpush.msra.mxu0 0.0
    %6505 = vmatpush.msra.mxu0 0.0
    %6506 = vmatpush.msra.mxu0 0.0
    %6507 = vmatpush.msra.mxu0 0.0
    %6508 = vmatpush.msra.mxu0 0.0
    %6509 = vmatpush.msra.mxu0 0.0
    %6510 = vmatpush.msra.mxu0 0.0
    %6511 = vmatpush.msra.mxu0 0.0
    %6512 = vmatpush.msra.mxu0 0.0
    %6513 = vmatpush.msra.mxu0 0.0
    %6514 = vmatpush.msra.mxu0 0.0
    %6515 = vmatpush.msra.mxu0 0.0
    %6516 = vmatpush.msra.mxu0 0.0
    %6517 = vmatpush.msra.mxu0 %v6310
    %6518 = vmatpush.msra.mxu0 %v6298
    %6519 = vmatmul.f32.gmra.mxu0 %v6501
    %v6520 = vpop.f32.mrf.mxu0
    %v6521 = vadd.f32 0.0, %v6520
    %6522 = vdwg.mxu0
    %6523 = vmatpush.msra.mxu0 0.0
    %6524 = vmatpush.msra.mxu0 0.0
    %6525 = vmatpush.msra.mxu0 0.0
    %6526 = vmatpush.msra.mxu0 0.0
    %6527 = vmatpush.msra.mxu0 0.0
    %6528 = vmatpush.msra.mxu0 0.0
    %6529 = vmatpush.msra.mxu0 0.0
    %6530 = vmatpush.msra.mxu0 0.0
    %6531 = vmatpush.msra.mxu0 0.0
    %6532 = vmatpush.msra.mxu0 0.0
    %6533 = vmatpush.msra.mxu0 0.0
    %6534 = vmatpush.msra.mxu0 0.0
    %6535 = vmatpush.msra.mxu0 0.0
    %6536 = vmatpush.msra.mxu0 0.0
    %6537 = vmatpush.msra.mxu0 %v6313
    %6538 = vmatpush.msra.mxu0 %v6299
    %6539 = vmatmul.f32.gmra.mxu0 %v6501
    %v6540 = vpop.f32.mrf.mxu0
    %v6541 = vadd.f32 0.0, %v6540
    %6542 = vdwg.mxu0
    %6543 = vmatpush.msra.mxu0 0.0
    %6544 = vmatpush.msra.mxu0 0.0
    %6545 = vmatpush.msra.mxu0 0.0
    %6546 = vmatpush.msra.mxu0 0.0
    %6547 = vmatpush.msra.mxu0 0.0
    %6548 = vmatpush.msra.mxu0 0.0
    %6549 = vmatpush.msra.mxu0 0.0
    %6550 = vmatpush.msra.mxu0 0.0
    %6551 = vmatpush.msra.mxu0 0.0
    %6552 = vmatpush.msra.mxu0 0.0
    %6553 = vmatpush.msra.mxu0 0.0
    %6554 = vmatpush.msra.mxu0 0.0
    %6555 = vmatpush.msra.mxu0 0.0
    %6556 = vmatpush.msra.mxu0 0.0
    %6557 = vmatpush.msra.mxu0 %v6316
    %6558 = vmatpush.msra.mxu0 %v6300
    %6559 = vmatmul.f32.gmra.mxu0 %v6501
    %v6560 = vpop.f32.mrf.mxu0
    %v6561 = vadd.f32 0.0, %v6560
    %6562 = vdwg.mxu0
    %s6563 = scalar_lea.vmem [#allocation21], 960
    %v6564 = vld [vmem:[%s6563] sm:$0xff]
    %v6565 = vld [vmem:[%s6563 + $0x8] sm:$0xff]
    %v6566 = vld [vmem:[%s6563 + $0x10] sm:$0xff]
    %v6567 = vld [vmem:[%s6563 + $0x18] sm:$0xff]
    %v6568 = vld [vmem:[%s6563 + $0x20] sm:$0xff]
    %v6569 = vld [vmem:[%s6563 + $0x28] sm:$0xff]
    %v6570 = vld [vmem:[%s6563 + $0x30] sm:$0xff]
    %v6571 = vld [vmem:[%s6563 + $0x38] sm:$0xff]
    %v6572 = vld [vmem:[%s6563 + $0x40] sm:$0xff]
    %v6573 = vld [vmem:[%s6563 + $0x48] sm:$0xff]
    %v6574 = vld [vmem:[%s6563 + $0x50] sm:$0xff]
    %v6575 = vld [vmem:[%s6563 + $0x58] sm:$0xff]
    %v6576 = vld [vmem:[%s6563 + $0x60] sm:$0xff]
    %v6577 = vld [vmem:[%s6563 + $0x68] sm:$0xff]
    %v6578 = vld [vmem:[%s6563 + $0x70] sm:$0xff]
    %v6579 = vld [vmem:[%s6563 + $0x78] sm:$0xff]
    %v6580 = vld [vmem:[%s6563 + $0x80] sm:$0xff]
    %v6581 = vld [vmem:[%s6563 + $0x88] sm:$0xff]
    %v6582 = vld [vmem:[%s6563 + $0x90] sm:$0xff]
    %v6583 = vld [vmem:[%s6563 + $0x98] sm:$0xff]
    %v6584 = vld [vmem:[%s6563 + $0xa0] sm:$0xff]
    %v6585 = vld [vmem:[%s6563 + $0xa8] sm:$0xff]
    %v6586 = vld [vmem:[%s6563 + $0xb0] sm:$0xff]
    %v6587 = vld [vmem:[%s6563 + $0xb8] sm:$0xff]
    %v6588 = vld [vmem:[%s6563 + $0xc0] sm:$0xff]
    %v6589 = vld [vmem:[%s6563 + $0xc8] sm:$0xff]
    %v6590 = vld [vmem:[%s6563 + $0xd0] sm:$0xff]
    %v6591 = vld [vmem:[%s6563 + $0xd8] sm:$0xff]
    %v6592 = vld [vmem:[%s6563 + $0xe0] sm:$0xff]
    %v6593 = vld [vmem:[%s6563 + $0xe8] sm:$0xff]
    %v6594 = vld [vmem:[%s6563 + $0xf0] sm:$0xff]
    %v6595 = vld [vmem:[%s6563 + $0xf8] sm:$0xff]
    %v6596 = vld [vmem:[%s6563 + $0x100] sm:$0xff]
    %v6597 = vld [vmem:[%s6563 + $0x108] sm:$0xff]
    %v6598 = vld [vmem:[%s6563 + $0x110] sm:$0xff]
    %v6599 = vld [vmem:[%s6563 + $0x118] sm:$0xff]
    %v6600 = vld [vmem:[%s6563 + $0x120] sm:$0xff]
    %v6601 = vld [vmem:[%s6563 + $0x128] sm:$0xff]
    %v6602 = vld [vmem:[%s6563 + $0x130] sm:$0xff]
    %v6603 = vld [vmem:[%s6563 + $0x138] sm:$0xff]
    %v6604 = vld [vmem:[%s6563 + $0x140] sm:$0xff]
    %v6605 = vld [vmem:[%s6563 + $0x148] sm:$0xff]
    %v6606 = vld [vmem:[%s6563 + $0x150] sm:$0xff]
    %v6607 = vld [vmem:[%s6563 + $0x158] sm:$0xff]
    %v6608 = vld [vmem:[%s6563 + $0x160] sm:$0xff]
    %v6609 = vld [vmem:[%s6563 + $0x168] sm:$0xff]
    %v6610 = vld [vmem:[%s6563 + $0x170] sm:$0xff]
    %v6611 = vld [vmem:[%s6563 + $0x178] sm:$0xff]
    %v6612 = vld [vmem:[%s6563 + $0x180] sm:$0xff]
    %v6613 = vld [vmem:[%s6563 + $0x188] sm:$0xff]
    %v6614 = vld [vmem:[%s6563 + $0x190] sm:$0xff]
    %v6615 = vld [vmem:[%s6563 + $0x198] sm:$0xff]
    %v6616 = vld [vmem:[%s6563 + $0x1a0] sm:$0xff]
    %v6617 = vld [vmem:[%s6563 + $0x1a8] sm:$0xff]
    %v6618 = vld [vmem:[%s6563 + $0x1b0] sm:$0xff]
    %v6619 = vld [vmem:[%s6563 + $0x1b8] sm:$0xff]
    %v6620 = vld [vmem:[%s6563 + $0x1c0] sm:$0xff]
    %v6621 = vld [vmem:[%s6563 + $0x1c8] sm:$0xff]
    %v6622 = vld [vmem:[%s6563 + $0x1d0] sm:$0xff]
    %v6623 = vld [vmem:[%s6563 + $0x1d8] sm:$0xff]
    %v6624 = vld [vmem:[%s6563 + $0x1e0] sm:$0xff]
    %v6625 = vld [vmem:[%s6563 + $0x1e8] sm:$0xff]
    %v6626 = vld [vmem:[%s6563 + $0x1f0] sm:$0xff]
    %v6627 = vld [vmem:[%s6563 + $0x1f8] sm:$0xff]
    %v6628 = vld [vmem:[%s6563 + $0x200] sm:$0xff]
    %v6629 = vld [vmem:[%s6563 + $0x208] sm:$0xff]
    %v6630 = vld [vmem:[%s6563 + $0x210] sm:$0xff]
    %v6631 = vld [vmem:[%s6563 + $0x218] sm:$0xff]
    %v6632 = vld [vmem:[%s6563 + $0x220] sm:$0xff]
    %v6633 = vld [vmem:[%s6563 + $0x228] sm:$0xff]
    %v6634 = vld [vmem:[%s6563 + $0x230] sm:$0xff]
    %v6635 = vld [vmem:[%s6563 + $0x238] sm:$0xff]
    %v6636 = vld [vmem:[%s6563 + $0x240] sm:$0xff]
    %v6637 = vld [vmem:[%s6563 + $0x248] sm:$0xff]
    %v6638 = vld [vmem:[%s6563 + $0x250] sm:$0xff]
    %v6639 = vld [vmem:[%s6563 + $0x258] sm:$0xff]
    %v6640 = vld [vmem:[%s6563 + $0x260] sm:$0xff]
    %v6641 = vld [vmem:[%s6563 + $0x268] sm:$0xff]
    %v6642 = vld [vmem:[%s6563 + $0x270] sm:$0xff]
    %v6643 = vld [vmem:[%s6563 + $0x278] sm:$0xff]
    %v6644 = vld [vmem:[%s6563 + $0x280] sm:$0xff]
    %v6645 = vld [vmem:[%s6563 + $0x288] sm:$0xff]
    %v6646 = vld [vmem:[%s6563 + $0x290] sm:$0xff]
    %v6647 = vld [vmem:[%s6563 + $0x298] sm:$0xff]
    %v6648 = vld [vmem:[%s6563 + $0x2a0] sm:$0xff]
    %v6649 = vld [vmem:[%s6563 + $0x2a8] sm:$0xff]
    %v6650 = vld [vmem:[%s6563 + $0x2b0] sm:$0xff]
    %v6651 = vld [vmem:[%s6563 + $0x2b8] sm:$0xff]
    %v6652 = vld [vmem:[%s6563 + $0x2c0] sm:$0xff]
    %v6653 = vld [vmem:[%s6563 + $0x2c8] sm:$0xff]
    %v6654 = vld [vmem:[%s6563 + $0x2d0] sm:$0xff]
    %v6655 = vld [vmem:[%s6563 + $0x2d8] sm:$0xff]
    %v6656 = vld [vmem:[%s6563 + $0x2e0] sm:$0xff]
    %v6657 = vld [vmem:[%s6563 + $0x2e8] sm:$0xff]
    %v6658 = vld [vmem:[%s6563 + $0x2f0] sm:$0xff]
    %v6659 = vld [vmem:[%s6563 + $0x2f8] sm:$0xff]
    %v6660 = vld [vmem:[%s6563 + $0x300] sm:$0xff]
    %v6661 = vld [vmem:[%s6563 + $0x308] sm:$0xff]
    %v6662 = vld [vmem:[%s6563 + $0x310] sm:$0xff]
    %v6663 = vld [vmem:[%s6563 + $0x318] sm:$0xff]
    %v6664 = vld [vmem:[%s6563 + $0x320] sm:$0xff]
    %v6665 = vld [vmem:[%s6563 + $0x328] sm:$0xff]
    %v6666 = vld [vmem:[%s6563 + $0x330] sm:$0xff]
    %v6667 = vld [vmem:[%s6563 + $0x338] sm:$0xff]
    %v6668 = vld [vmem:[%s6563 + $0x340] sm:$0xff]
    %v6669 = vld [vmem:[%s6563 + $0x348] sm:$0xff]
    %v6670 = vld [vmem:[%s6563 + $0x350] sm:$0xff]
    %v6671 = vld [vmem:[%s6563 + $0x358] sm:$0xff]
    %v6672 = vld [vmem:[%s6563 + $0x360] sm:$0xff]
    %v6673 = vld [vmem:[%s6563 + $0x368] sm:$0xff]
    %v6674 = vld [vmem:[%s6563 + $0x370] sm:$0xff]
    %v6675 = vld [vmem:[%s6563 + $0x378] sm:$0xff]
    %v6676 = vld [vmem:[%s6563 + $0x380] sm:$0xff]
    %v6677 = vld [vmem:[%s6563 + $0x388] sm:$0xff]
    %v6678 = vld [vmem:[%s6563 + $0x390] sm:$0xff]
    %v6679 = vld [vmem:[%s6563 + $0x398] sm:$0xff]
    %v6680 = vld [vmem:[%s6563 + $0x3a0] sm:$0xff]
    %v6681 = vld [vmem:[%s6563 + $0x3a8] sm:$0xff]
    %v6682 = vld [vmem:[%s6563 + $0x3b0] sm:$0xff]
    %v6683 = vld [vmem:[%s6563 + $0x3b8] sm:$0xff]
    %v6685 = vsel %vm1250, %v6561, 0
    %6687 = vmatpush.msra.mxu0 %v6609
    %6688 = vmatpush.msra.mxu0 %v6606
    %6689 = vmatpush.msra.mxu0 %v6603
    %6690 = vmatpush.msra.mxu0 %v6600
    %6691 = vmatpush.msra.mxu0 %v6597
    %6692 = vmatpush.msra.mxu0 %v6594
    %6693 = vmatpush.msra.mxu0 %v6591
    %6694 = vmatpush.msra.mxu0 %v6588
    %6695 = vmatpush.msra.mxu0 %v6585
    %6696 = vmatpush.msra.mxu0 %v6582
    %6697 = vmatpush.msra.mxu0 %v6579
    %6698 = vmatpush.msra.mxu0 %v6576
    %6699 = vmatpush.msra.mxu0 %v6573
    %6700 = vmatpush.msra.mxu0 %v6570
    %6701 = vmatpush.msra.mxu0 %v6567
    %6702 = vmatpush.msra.mxu0 %v6564
    %6703 = vmatmul.f32.gmra.mxu0 %v6521
    %v6704 = vpop.f32.mrf.mxu0
    %v6705 = vadd.f32 0.0, %v6704
    %6706 = vdwg.mxu0
    %6707 = vmatpush.msra.mxu0 %v6657
    %6708 = vmatpush.msra.mxu0 %v6654
    %6709 = vmatpush.msra.mxu0 %v6651
    %6710 = vmatpush.msra.mxu0 %v6648
    %6711 = vmatpush.msra.mxu0 %v6645
    %6712 = vmatpush.msra.mxu0 %v6642
    %6713 = vmatpush.msra.mxu0 %v6639
    %6714 = vmatpush.msra.mxu0 %v6636
    %6715 = vmatpush.msra.mxu0 %v6633
    %6716 = vmatpush.msra.mxu0 %v6630
    %6717 = vmatpush.msra.mxu0 %v6627
    %6718 = vmatpush.msra.mxu0 %v6624
    %6719 = vmatpush.msra.mxu0 %v6621
    %6720 = vmatpush.msra.mxu0 %v6618
    %6721 = vmatpush.msra.mxu0 %v6615
    %6722 = vmatpush.msra.mxu0 %v6612
    %6723 = vmatmul.f32.gmra.mxu0 %v6541
    %v6724 = vpop.f32.mrf.mxu0
    %v6725 = vadd.f32 %v6705, %v6724
    %6726 = vdwg.mxu0
    %6727 = vmatpush.msra.mxu0 0.0
    %6728 = vmatpush.msra.mxu0 0.0
    %6729 = vmatpush.msra.mxu0 0.0
    %6730 = vmatpush.msra.mxu0 0.0
    %6731 = vmatpush.msra.mxu0 0.0
    %6732 = vmatpush.msra.mxu0 0.0
    %6733 = vmatpush.msra.mxu0 0.0
    %6734 = vmatpush.msra.mxu0 0.0
    %6735 = vmatpush.msra.mxu0 %v6681
    %6736 = vmatpush.msra.mxu0 %v6678
    %6737 = vmatpush.msra.mxu0 %v6675
    %6738 = vmatpush.msra.mxu0 %v6672
    %6739 = vmatpush.msra.mxu0 %v6669
    %6740 = vmatpush.msra.mxu0 %v6666
    %6741 = vmatpush.msra.mxu0 %v6663
    %6742 = vmatpush.msra.mxu0 %v6660
    %6743 = vmatmul.f32.gmra.mxu0 %v6685
    %v6744 = vpop.f32.mrf.mxu0
    %v6745 = vadd.f32 %v6725, %v6744
    %6746 = vdwg.mxu0
    %6747 = vmatpush.msra.mxu0 %v6610
    %6748 = vmatpush.msra.mxu0 %v6607
    %6749 = vmatpush.msra.mxu0 %v6604
    %6750 = vmatpush.msra.mxu0 %v6601
    %6751 = vmatpush.msra.mxu0 %v6598
    %6752 = vmatpush.msra.mxu0 %v6595
    %6753 = vmatpush.msra.mxu0 %v6592
    %6754 = vmatpush.msra.mxu0 %v6589
    %6755 = vmatpush.msra.mxu0 %v6586
    %6756 = vmatpush.msra.mxu0 %v6583
    %6757 = vmatpush.msra.mxu0 %v6580
    %6758 = vmatpush.msra.mxu0 %v6577
    %6759 = vmatpush.msra.mxu0 %v6574
    %6760 = vmatpush.msra.mxu0 %v6571
    %6761 = vmatpush.msra.mxu0 %v6568
    %6762 = vmatpush.msra.mxu0 %v6565
    %6763 = vmatmul.f32.gmra.mxu0 %v6521
    %v6764 = vpop.f32.mrf.mxu0
    %v6765 = vadd.f32 0.0, %v6764
    %6766 = vdwg.mxu0
    %6767 = vmatpush.msra.mxu0 %v6658
    %6768 = vmatpush.msra.mxu0 %v6655
    %6769 = vmatpush.msra.mxu0 %v6652
    %6770 = vmatpush.msra.mxu0 %v6649
    %6771 = vmatpush.msra.mxu0 %v6646
    %6772 = vmatpush.msra.mxu0 %v6643
    %6773 = vmatpush.msra.mxu0 %v6640
    %6774 = vmatpush.msra.mxu0 %v6637
    %6775 = vmatpush.msra.mxu0 %v6634
    %6776 = vmatpush.msra.mxu0 %v6631
    %6777 = vmatpush.msra.mxu0 %v6628
    %6778 = vmatpush.msra.mxu0 %v6625
    %6779 = vmatpush.msra.mxu0 %v6622
    %6780 = vmatpush.msra.mxu0 %v6619
    %6781 = vmatpush.msra.mxu0 %v6616
    %6782 = vmatpush.msra.mxu0 %v6613
    %6783 = vmatmul.f32.gmra.mxu0 %v6541
    %v6784 = vpop.f32.mrf.mxu0
    %v6785 = vadd.f32 %v6765, %v6784
    %6786 = vdwg.mxu0
    %6787 = vmatpush.msra.mxu0 0.0
    %6788 = vmatpush.msra.mxu0 0.0
    %6789 = vmatpush.msra.mxu0 0.0
    %6790 = vmatpush.msra.mxu0 0.0
    %6791 = vmatpush.msra.mxu0 0.0
    %6792 = vmatpush.msra.mxu0 0.0
    %6793 = vmatpush.msra.mxu0 0.0
    %6794 = vmatpush.msra.mxu0 0.0
    %6795 = vmatpush.msra.mxu0 %v6682
    %6796 = vmatpush.msra.mxu0 %v6679
    %6797 = vmatpush.msra.mxu0 %v6676
    %6798 = vmatpush.msra.mxu0 %v6673
    %6799 = vmatpush.msra.mxu0 %v6670
    %6800 = vmatpush.msra.mxu0 %v6667
    %6801 = vmatpush.msra.mxu0 %v6664
    %6802 = vmatpush.msra.mxu0 %v6661
    %6803 = vmatmul.f32.gmra.mxu0 %v6685
    %v6804 = vpop.f32.mrf.mxu0
    %v6805 = vadd.f32 %v6785, %v6804
    %6806 = vdwg.mxu0
    %6807 = vmatpush.msra.mxu0 %v6611
    %6808 = vmatpush.msra.mxu0 %v6608
    %6809 = vmatpush.msra.mxu0 %v6605
    %6810 = vmatpush.msra.mxu0 %v6602
    %6811 = vmatpush.msra.mxu0 %v6599
    %6812 = vmatpush.msra.mxu0 %v6596
    %6813 = vmatpush.msra.mxu0 %v6593
    %6814 = vmatpush.msra.mxu0 %v6590
    %6815 = vmatpush.msra.mxu0 %v6587
    %6816 = vmatpush.msra.mxu0 %v6584
    %6817 = vmatpush.msra.mxu0 %v6581
    %6818 = vmatpush.msra.mxu0 %v6578
    %6819 = vmatpush.msra.mxu0 %v6575
    %6820 = vmatpush.msra.mxu0 %v6572
    %6821 = vmatpush.msra.mxu0 %v6569
    %6822 = vmatpush.msra.mxu0 %v6566
    %6823 = vmatmul.f32.gmra.mxu0 %v6521
    %v6824 = vpop.f32.mrf.mxu0
    %v6825 = vadd.f32 0.0, %v6824
    %6826 = vdwg.mxu0
    %6827 = vmatpush.msra.mxu0 %v6659
    %6828 = vmatpush.msra.mxu0 %v6656
    %6829 = vmatpush.msra.mxu0 %v6653
    %6830 = vmatpush.msra.mxu0 %v6650
    %6831 = vmatpush.msra.mxu0 %v6647
    %6832 = vmatpush.msra.mxu0 %v6644
    %6833 = vmatpush.msra.mxu0 %v6641
    %6834 = vmatpush.msra.mxu0 %v6638
    %6835 = vmatpush.msra.mxu0 %v6635
    %6836 = vmatpush.msra.mxu0 %v6632
    %6837 = vmatpush.msra.mxu0 %v6629
    %6838 = vmatpush.msra.mxu0 %v6626
    %6839 = vmatpush.msra.mxu0 %v6623
    %6840 = vmatpush.msra.mxu0 %v6620
    %6841 = vmatpush.msra.mxu0 %v6617
    %6842 = vmatpush.msra.mxu0 %v6614
    %6843 = vmatmul.f32.gmra.mxu0 %v6541
    %v6844 = vpop.f32.mrf.mxu0
    %v6845 = vadd.f32 %v6825, %v6844
    %6846 = vdwg.mxu0
    %6847 = vmatpush.msra.mxu0 0.0
    %6848 = vmatpush.msra.mxu0 0.0
    %6849 = vmatpush.msra.mxu0 0.0
    %6850 = vmatpush.msra.mxu0 0.0
    %6851 = vmatpush.msra.mxu0 0.0
    %6852 = vmatpush.msra.mxu0 0.0
    %6853 = vmatpush.msra.mxu0 0.0
    %6854 = vmatpush.msra.mxu0 0.0
    %6855 = vmatpush.msra.mxu0 %v6683
    %6856 = vmatpush.msra.mxu0 %v6680
    %6857 = vmatpush.msra.mxu0 %v6677
    %6858 = vmatpush.msra.mxu0 %v6674
    %6859 = vmatpush.msra.mxu0 %v6671
    %6860 = vmatpush.msra.mxu0 %v6668
    %6861 = vmatpush.msra.mxu0 %v6665
    %6862 = vmatpush.msra.mxu0 %v6662
    %6863 = vmatmul.f32.gmra.mxu0 %v6685
    %v6864 = vpop.f32.mrf.mxu0
    %v6865 = vadd.f32 %v6845, %v6864
    %6866 = vdwg.mxu0
    %v6868 = vsel %vm1250, %v6376, 0
    %6870 = vmatpush.msra.mxu0 %v6423
    %6871 = vmatpush.msra.mxu0 %v6420
    %6872 = vmatpush.msra.mxu0 %v6417
    %6873 = vmatpush.msra.mxu0 %v6414
    %6874 = vmatpush.msra.mxu0 %v6411
    %6875 = vmatpush.msra.mxu0 %v6408
    %6876 = vmatpush.msra.mxu0 %v6405
    %6877 = vmatpush.msra.mxu0 %v6402
    %6878 = vmatpush.msra.mxu0 %v6399
    %6879 = vmatpush.msra.mxu0 %v6396
    %6880 = vmatpush.msra.mxu0 %v6393
    %6881 = vmatpush.msra.mxu0 %v6390
    %6882 = vmatpush.msra.mxu0 %v6387
    %6883 = vmatpush.msra.mxu0 %v6384
    %6884 = vmatpush.msra.mxu0 %v6381
    %6885 = vmatpush.msra.mxu0 %v6378
    %6886 = vmatmul.f32.gmra.mxu0 %v6336
    %v6887 = vpop.f32.mrf.mxu0
    %v6888 = vadd.f32 %v6745, %v6887
    %6889 = vdwg.mxu0
    %6890 = vmatpush.msra.mxu0 %v6471
    %6891 = vmatpush.msra.mxu0 %v6468
    %6892 = vmatpush.msra.mxu0 %v6465
    %6893 = vmatpush.msra.mxu0 %v6462
    %6894 = vmatpush.msra.mxu0 %v6459
    %6895 = vmatpush.msra.mxu0 %v6456
    %6896 = vmatpush.msra.mxu0 %v6453
    %6897 = vmatpush.msra.mxu0 %v6450
    %6898 = vmatpush.msra.mxu0 %v6447
    %6899 = vmatpush.msra.mxu0 %v6444
    %6900 = vmatpush.msra.mxu0 %v6441
    %6901 = vmatpush.msra.mxu0 %v6438
    %6902 = vmatpush.msra.mxu0 %v6435
    %6903 = vmatpush.msra.mxu0 %v6432
    %6904 = vmatpush.msra.mxu0 %v6429
    %6905 = vmatpush.msra.mxu0 %v6426
    %6906 = vmatmul.f32.gmra.mxu0 %v6356
    %v6907 = vpop.f32.mrf.mxu0
    %v6908 = vadd.f32 %v6888, %v6907
    %6909 = vdwg.mxu0
    %6910 = vmatpush.msra.mxu0 0.0
    %6911 = vmatpush.msra.mxu0 0.0
    %6912 = vmatpush.msra.mxu0 0.0
    %6913 = vmatpush.msra.mxu0 0.0
    %6914 = vmatpush.msra.mxu0 0.0
    %6915 = vmatpush.msra.mxu0 0.0
    %6916 = vmatpush.msra.mxu0 0.0
    %6917 = vmatpush.msra.mxu0 0.0
    %6918 = vmatpush.msra.mxu0 %v6495
    %6919 = vmatpush.msra.mxu0 %v6492
    %6920 = vmatpush.msra.mxu0 %v6489
    %6921 = vmatpush.msra.mxu0 %v6486
    %6922 = vmatpush.msra.mxu0 %v6483
    %6923 = vmatpush.msra.mxu0 %v6480
    %6924 = vmatpush.msra.mxu0 %v6477
    %6925 = vmatpush.msra.mxu0 %v6474
    %6926 = vmatmul.f32.gmra.mxu0 %v6868
    %v6927 = vpop.f32.mrf.mxu0
    %v6928 = vadd.f32 %v6908, %v6927
    %6929 = vdwg.mxu0
    %6930 = vmatpush.msra.mxu0 %v6424
    %6931 = vmatpush.msra.mxu0 %v6421
    %6932 = vmatpush.msra.mxu0 %v6418
    %6933 = vmatpush.msra.mxu0 %v6415
    %6934 = vmatpush.msra.mxu0 %v6412
    %6935 = vmatpush.msra.mxu0 %v6409
    %6936 = vmatpush.msra.mxu0 %v6406
    %6937 = vmatpush.msra.mxu0 %v6403
    %6938 = vmatpush.msra.mxu0 %v6400
    %6939 = vmatpush.msra.mxu0 %v6397
    %6940 = vmatpush.msra.mxu0 %v6394
    %6941 = vmatpush.msra.mxu0 %v6391
    %6942 = vmatpush.msra.mxu0 %v6388
    %6943 = vmatpush.msra.mxu0 %v6385
    %6944 = vmatpush.msra.mxu0 %v6382
    %6945 = vmatpush.msra.mxu0 %v6379
    %6946 = vmatmul.f32.gmra.mxu0 %v6336
    %v6947 = vpop.f32.mrf.mxu0
    %v6948 = vadd.f32 %v6805, %v6947
    %6949 = vdwg.mxu0
    %6950 = vmatpush.msra.mxu0 %v6472
    %6951 = vmatpush.msra.mxu0 %v6469
    %6952 = vmatpush.msra.mxu0 %v6466
    %6953 = vmatpush.msra.mxu0 %v6463
    %6954 = vmatpush.msra.mxu0 %v6460
    %6955 = vmatpush.msra.mxu0 %v6457
    %6956 = vmatpush.msra.mxu0 %v6454
    %6957 = vmatpush.msra.mxu0 %v6451
    %6958 = vmatpush.msra.mxu0 %v6448
    %6959 = vmatpush.msra.mxu0 %v6445
    %6960 = vmatpush.msra.mxu0 %v6442
    %6961 = vmatpush.msra.mxu0 %v6439
    %6962 = vmatpush.msra.mxu0 %v6436
    %6963 = vmatpush.msra.mxu0 %v6433
    %6964 = vmatpush.msra.mxu0 %v6430
    %6965 = vmatpush.msra.mxu0 %v6427
    %6966 = vmatmul.f32.gmra.mxu0 %v6356
    %v6967 = vpop.f32.mrf.mxu0
    %v6968 = vadd.f32 %v6948, %v6967
    %6969 = vdwg.mxu0
    %6970 = vmatpush.msra.mxu0 0.0
    %6971 = vmatpush.msra.mxu0 0.0
    %6972 = vmatpush.msra.mxu0 0.0
    %6973 = vmatpush.msra.mxu0 0.0
    %6974 = vmatpush.msra.mxu0 0.0
    %6975 = vmatpush.msra.mxu0 0.0
    %6976 = vmatpush.msra.mxu0 0.0
    %6977 = vmatpush.msra.mxu0 0.0
    %6978 = vmatpush.msra.mxu0 %v6496
    %6979 = vmatpush.msra.mxu0 %v6493
    %6980 = vmatpush.msra.mxu0 %v6490
    %6981 = vmatpush.msra.mxu0 %v6487
    %6982 = vmatpush.msra.mxu0 %v6484
    %6983 = vmatpush.msra.mxu0 %v6481
    %6984 = vmatpush.msra.mxu0 %v6478
    %6985 = vmatpush.msra.mxu0 %v6475
    %6986 = vmatmul.f32.gmra.mxu0 %v6868
    %v6987 = vpop.f32.mrf.mxu0
    %v6988 = vadd.f32 %v6968, %v6987
    %6989 = vdwg.mxu0
    %6990 = vmatpush.msra.mxu0 %v6425
    %6991 = vmatpush.msra.mxu0 %v6422
    %6992 = vmatpush.msra.mxu0 %v6419
    %6993 = vmatpush.msra.mxu0 %v6416
    %6994 = vmatpush.msra.mxu0 %v6413
    %6995 = vmatpush.msra.mxu0 %v6410
    %6996 = vmatpush.msra.mxu0 %v6407
    %6997 = vmatpush.msra.mxu0 %v6404
    %6998 = vmatpush.msra.mxu0 %v6401
    %6999 = vmatpush.msra.mxu0 %v6398
    %7000 = vmatpush.msra.mxu0 %v6395
    %7001 = vmatpush.msra.mxu0 %v6392
    %7002 = vmatpush.msra.mxu0 %v6389
    %7003 = vmatpush.msra.mxu0 %v6386
    %7004 = vmatpush.msra.mxu0 %v6383
    %7005 = vmatpush.msra.mxu0 %v6380
    %7006 = vmatmul.f32.gmra.mxu0 %v6336
    %v7007 = vpop.f32.mrf.mxu0
    %v7008 = vadd.f32 %v6865, %v7007
    %7009 = vdwg.mxu0
    %7010 = vmatpush.msra.mxu0 %v6473
    %7011 = vmatpush.msra.mxu0 %v6470
    %7012 = vmatpush.msra.mxu0 %v6467
    %7013 = vmatpush.msra.mxu0 %v6464
    %7014 = vmatpush.msra.mxu0 %v6461
    %7015 = vmatpush.msra.mxu0 %v6458
    %7016 = vmatpush.msra.mxu0 %v6455
    %7017 = vmatpush.msra.mxu0 %v6452
    %7018 = vmatpush.msra.mxu0 %v6449
    %7019 = vmatpush.msra.mxu0 %v6446
    %7020 = vmatpush.msra.mxu0 %v6443
    %7021 = vmatpush.msra.mxu0 %v6440
    %7022 = vmatpush.msra.mxu0 %v6437
    %7023 = vmatpush.msra.mxu0 %v6434
    %7024 = vmatpush.msra.mxu0 %v6431
    %7025 = vmatpush.msra.mxu0 %v6428
    %7026 = vmatmul.f32.gmra.mxu0 %v6356
    %v7027 = vpop.f32.mrf.mxu0
    %v7028 = vadd.f32 %v7008, %v7027
    %7029 = vdwg.mxu0
    %7030 = vmatpush.msra.mxu0 0.0
    %7031 = vmatpush.msra.mxu0 0.0
    %7032 = vmatpush.msra.mxu0 0.0
    %7033 = vmatpush.msra.mxu0 0.0
    %7034 = vmatpush.msra.mxu0 0.0
    %7035 = vmatpush.msra.mxu0 0.0
    %7036 = vmatpush.msra.mxu0 0.0
    %7037 = vmatpush.msra.mxu0 0.0
    %7038 = vmatpush.msra.mxu0 %v6497
    %7039 = vmatpush.msra.mxu0 %v6494
    %7040 = vmatpush.msra.mxu0 %v6491
    %7041 = vmatpush.msra.mxu0 %v6488
    %7042 = vmatpush.msra.mxu0 %v6485
    %7043 = vmatpush.msra.mxu0 %v6482
    %7044 = vmatpush.msra.mxu0 %v6479
    %7045 = vmatpush.msra.mxu0 %v6476
    %7046 = vmatmul.f32.gmra.mxu0 %v6868
    %v7047 = vpop.f32.mrf.mxu0
    %v7048 = vadd.f32 %v7028, %v7047
    %7049 = vdwg.mxu0
    %s7050 = scalar_lea.vmem %s16, 16
    %v7051 = vld [vmem:[%s7050] sm:$0x3f]
    %v7053 = vsel %vm6305, %v7051, 0
    %7055 = vmatpush.msra.mxu0 0.0
    %7056 = vmatpush.msra.mxu0 0.0
    %7057 = vmatpush.msra.mxu0 0.0
    %7058 = vmatpush.msra.mxu0 0.0
    %7059 = vmatpush.msra.mxu0 0.0
    %7060 = vmatpush.msra.mxu0 0.0
    %7061 = vmatpush.msra.mxu0 0.0
    %7062 = vmatpush.msra.mxu0 0.0
    %7063 = vmatpush.msra.mxu0 0.0
    %7064 = vmatpush.msra.mxu0 0.0
    %7065 = vmatpush.msra.mxu0 0.0
    %7066 = vmatpush.msra.mxu0 0.0
    %7067 = vmatpush.msra.mxu0 0.0
    %7068 = vmatpush.msra.mxu0 0.0
    %7069 = vmatpush.msra.mxu0 %v6310
    %7070 = vmatpush.msra.mxu0 %v6298
    %7071 = vmatmul.f32.gmra.mxu0 %v7053
    %v7072 = vpop.f32.mrf.mxu0
    %v7073 = vadd.f32 0.0, %v7072
    %7074 = vdwg.mxu0
    %7075 = vmatpush.msra.mxu0 0.0
    %7076 = vmatpush.msra.mxu0 0.0
    %7077 = vmatpush.msra.mxu0 0.0
    %7078 = vmatpush.msra.mxu0 0.0
    %7079 = vmatpush.msra.mxu0 0.0
    %7080 = vmatpush.msra.mxu0 0.0
    %7081 = vmatpush.msra.mxu0 0.0
    %7082 = vmatpush.msra.mxu0 0.0
    %7083 = vmatpush.msra.mxu0 0.0
    %7084 = vmatpush.msra.mxu0 0.0
    %7085 = vmatpush.msra.mxu0 0.0
    %7086 = vmatpush.msra.mxu0 0.0
    %7087 = vmatpush.msra.mxu0 0.0
    %7088 = vmatpush.msra.mxu0 0.0
    %7089 = vmatpush.msra.mxu0 %v6313
    %7090 = vmatpush.msra.mxu0 %v6299
    %7091 = vmatmul.f32.gmra.mxu0 %v7053
    %v7092 = vpop.f32.mrf.mxu0
    %v7093 = vadd.f32 0.0, %v7092
    %7094 = vdwg.mxu0
    %7095 = vmatpush.msra.mxu0 0.0
    %7096 = vmatpush.msra.mxu0 0.0
    %7097 = vmatpush.msra.mxu0 0.0
    %7098 = vmatpush.msra.mxu0 0.0
    %7099 = vmatpush.msra.mxu0 0.0
    %7100 = vmatpush.msra.mxu0 0.0
    %7101 = vmatpush.msra.mxu0 0.0
    %7102 = vmatpush.msra.mxu0 0.0
    %7103 = vmatpush.msra.mxu0 0.0
    %7104 = vmatpush.msra.mxu0 0.0
    %7105 = vmatpush.msra.mxu0 0.0
    %7106 = vmatpush.msra.mxu0 0.0
    %7107 = vmatpush.msra.mxu0 0.0
    %7108 = vmatpush.msra.mxu0 0.0
    %7109 = vmatpush.msra.mxu0 %v6316
    %7110 = vmatpush.msra.mxu0 %v6300
    %7111 = vmatmul.f32.gmra.mxu0 %v7053
    %v7112 = vpop.f32.mrf.mxu0
    %v7113 = vadd.f32 0.0, %v7112
    %7114 = vdwg.mxu0
    %s7115 = scalar_lea.vmem [#allocation21], 1920
    %v7116 = vld [vmem:[%s7115] sm:$0xff]
    %v7117 = vld [vmem:[%s7115 + $0x8] sm:$0xff]
    %v7118 = vld [vmem:[%s7115 + $0x10] sm:$0xff]
    %v7119 = vld [vmem:[%s7115 + $0x18] sm:$0xff]
    %v7120 = vld [vmem:[%s7115 + $0x20] sm:$0xff]
    %v7121 = vld [vmem:[%s7115 + $0x28] sm:$0xff]
    %v7122 = vld [vmem:[%s7115 + $0x30] sm:$0xff]
    %v7123 = vld [vmem:[%s7115 + $0x38] sm:$0xff]
    %v7124 = vld [vmem:[%s7115 + $0x40] sm:$0xff]
    %v7125 = vld [vmem:[%s7115 + $0x48] sm:$0xff]
    %v7126 = vld [vmem:[%s7115 + $0x50] sm:$0xff]
    %v7127 = vld [vmem:[%s7115 + $0x58] sm:$0xff]
    %v7128 = vld [vmem:[%s7115 + $0x60] sm:$0xff]
    %v7129 = vld [vmem:[%s7115 + $0x68] sm:$0xff]
    %v7130 = vld [vmem:[%s7115 + $0x70] sm:$0xff]
    %v7131 = vld [vmem:[%s7115 + $0x78] sm:$0xff]
    %v7132 = vld [vmem:[%s7115 + $0x80] sm:$0xff]
    %v7133 = vld [vmem:[%s7115 + $0x88] sm:$0xff]
    %v7134 = vld [vmem:[%s7115 + $0x90] sm:$0xff]
    %v7135 = vld [vmem:[%s7115 + $0x98] sm:$0xff]
    %v7136 = vld [vmem:[%s7115 + $0xa0] sm:$0xff]
    %v7137 = vld [vmem:[%s7115 + $0xa8] sm:$0xff]
    %v7138 = vld [vmem:[%s7115 + $0xb0] sm:$0xff]
    %v7139 = vld [vmem:[%s7115 + $0xb8] sm:$0xff]
    %v7140 = vld [vmem:[%s7115 + $0xc0] sm:$0xff]
    %v7141 = vld [vmem:[%s7115 + $0xc8] sm:$0xff]
    %v7142 = vld [vmem:[%s7115 + $0xd0] sm:$0xff]
    %v7143 = vld [vmem:[%s7115 + $0xd8] sm:$0xff]
    %v7144 = vld [vmem:[%s7115 + $0xe0] sm:$0xff]
    %v7145 = vld [vmem:[%s7115 + $0xe8] sm:$0xff]
    %v7146 = vld [vmem:[%s7115 + $0xf0] sm:$0xff]
    %v7147 = vld [vmem:[%s7115 + $0xf8] sm:$0xff]
    %v7148 = vld [vmem:[%s7115 + $0x100] sm:$0xff]
    %v7149 = vld [vmem:[%s7115 + $0x108] sm:$0xff]
    %v7150 = vld [vmem:[%s7115 + $0x110] sm:$0xff]
    %v7151 = vld [vmem:[%s7115 + $0x118] sm:$0xff]
    %v7152 = vld [vmem:[%s7115 + $0x120] sm:$0xff]
    %v7153 = vld [vmem:[%s7115 + $0x128] sm:$0xff]
    %v7154 = vld [vmem:[%s7115 + $0x130] sm:$0xff]
    %v7155 = vld [vmem:[%s7115 + $0x138] sm:$0xff]
    %v7156 = vld [vmem:[%s7115 + $0x140] sm:$0xff]
    %v7157 = vld [vmem:[%s7115 + $0x148] sm:$0xff]
    %v7158 = vld [vmem:[%s7115 + $0x150] sm:$0xff]
    %v7159 = vld [vmem:[%s7115 + $0x158] sm:$0xff]
    %v7160 = vld [vmem:[%s7115 + $0x160] sm:$0xff]
    %v7161 = vld [vmem:[%s7115 + $0x168] sm:$0xff]
    %v7162 = vld [vmem:[%s7115 + $0x170] sm:$0xff]
    %v7163 = vld [vmem:[%s7115 + $0x178] sm:$0xff]
    %v7164 = vld [vmem:[%s7115 + $0x180] sm:$0xff]
    %v7165 = vld [vmem:[%s7115 + $0x188] sm:$0xff]
    %v7166 = vld [vmem:[%s7115 + $0x190] sm:$0xff]
    %v7167 = vld [vmem:[%s7115 + $0x198] sm:$0xff]
    %v7168 = vld [vmem:[%s7115 + $0x1a0] sm:$0xff]
    %v7169 = vld [vmem:[%s7115 + $0x1a8] sm:$0xff]
    %v7170 = vld [vmem:[%s7115 + $0x1b0] sm:$0xff]
    %v7171 = vld [vmem:[%s7115 + $0x1b8] sm:$0xff]
    %v7172 = vld [vmem:[%s7115 + $0x1c0] sm:$0xff]
    %v7173 = vld [vmem:[%s7115 + $0x1c8] sm:$0xff]
    %v7174 = vld [vmem:[%s7115 + $0x1d0] sm:$0xff]
    %v7175 = vld [vmem:[%s7115 + $0x1d8] sm:$0xff]
    %v7176 = vld [vmem:[%s7115 + $0x1e0] sm:$0xff]
    %v7177 = vld [vmem:[%s7115 + $0x1e8] sm:$0xff]
    %v7178 = vld [vmem:[%s7115 + $0x1f0] sm:$0xff]
    %v7179 = vld [vmem:[%s7115 + $0x1f8] sm:$0xff]
    %v7180 = vld [vmem:[%s7115 + $0x200] sm:$0xff]
    %v7181 = vld [vmem:[%s7115 + $0x208] sm:$0xff]
    %v7182 = vld [vmem:[%s7115 + $0x210] sm:$0xff]
    %v7183 = vld [vmem:[%s7115 + $0x218] sm:$0xff]
    %v7184 = vld [vmem:[%s7115 + $0x220] sm:$0xff]
    %v7185 = vld [vmem:[%s7115 + $0x228] sm:$0xff]
    %v7186 = vld [vmem:[%s7115 + $0x230] sm:$0xff]
    %v7187 = vld [vmem:[%s7115 + $0x238] sm:$0xff]
    %v7188 = vld [vmem:[%s7115 + $0x240] sm:$0xff]
    %v7189 = vld [vmem:[%s7115 + $0x248] sm:$0xff]
    %v7190 = vld [vmem:[%s7115 + $0x250] sm:$0xff]
    %v7191 = vld [vmem:[%s7115 + $0x258] sm:$0xff]
    %v7192 = vld [vmem:[%s7115 + $0x260] sm:$0xff]
    %v7193 = vld [vmem:[%s7115 + $0x268] sm:$0xff]
    %v7194 = vld [vmem:[%s7115 + $0x270] sm:$0xff]
    %v7195 = vld [vmem:[%s7115 + $0x278] sm:$0xff]
    %v7196 = vld [vmem:[%s7115 + $0x280] sm:$0xff]
    %v7197 = vld [vmem:[%s7115 + $0x288] sm:$0xff]
    %v7198 = vld [vmem:[%s7115 + $0x290] sm:$0xff]
    %v7199 = vld [vmem:[%s7115 + $0x298] sm:$0xff]
    %v7200 = vld [vmem:[%s7115 + $0x2a0] sm:$0xff]
    %v7201 = vld [vmem:[%s7115 + $0x2a8] sm:$0xff]
    %v7202 = vld [vmem:[%s7115 + $0x2b0] sm:$0xff]
    %v7203 = vld [vmem:[%s7115 + $0x2b8] sm:$0xff]
    %v7204 = vld [vmem:[%s7115 + $0x2c0] sm:$0xff]
    %v7205 = vld [vmem:[%s7115 + $0x2c8] sm:$0xff]
    %v7206 = vld [vmem:[%s7115 + $0x2d0] sm:$0xff]
    %v7207 = vld [vmem:[%s7115 + $0x2d8] sm:$0xff]
    %v7208 = vld [vmem:[%s7115 + $0x2e0] sm:$0xff]
    %v7209 = vld [vmem:[%s7115 + $0x2e8] sm:$0xff]
    %v7210 = vld [vmem:[%s7115 + $0x2f0] sm:$0xff]
    %v7211 = vld [vmem:[%s7115 + $0x2f8] sm:$0xff]
    %v7212 = vld [vmem:[%s7115 + $0x300] sm:$0xff]
    %v7213 = vld [vmem:[%s7115 + $0x308] sm:$0xff]
    %v7214 = vld [vmem:[%s7115 + $0x310] sm:$0xff]
    %v7215 = vld [vmem:[%s7115 + $0x318] sm:$0xff]
    %v7216 = vld [vmem:[%s7115 + $0x320] sm:$0xff]
    %v7217 = vld [vmem:[%s7115 + $0x328] sm:$0xff]
    %v7218 = vld [vmem:[%s7115 + $0x330] sm:$0xff]
    %v7219 = vld [vmem:[%s7115 + $0x338] sm:$0xff]
    %v7220 = vld [vmem:[%s7115 + $0x340] sm:$0xff]
    %v7221 = vld [vmem:[%s7115 + $0x348] sm:$0xff]
    %v7222 = vld [vmem:[%s7115 + $0x350] sm:$0xff]
    %v7223 = vld [vmem:[%s7115 + $0x358] sm:$0xff]
    %v7224 = vld [vmem:[%s7115 + $0x360] sm:$0xff]
    %v7225 = vld [vmem:[%s7115 + $0x368] sm:$0xff]
    %v7226 = vld [vmem:[%s7115 + $0x370] sm:$0xff]
    %v7227 = vld [vmem:[%s7115 + $0x378] sm:$0xff]
    %v7228 = vld [vmem:[%s7115 + $0x380] sm:$0xff]
    %v7229 = vld [vmem:[%s7115 + $0x388] sm:$0xff]
    %v7230 = vld [vmem:[%s7115 + $0x390] sm:$0xff]
    %v7231 = vld [vmem:[%s7115 + $0x398] sm:$0xff]
    %v7232 = vld [vmem:[%s7115 + $0x3a0] sm:$0xff]
    %v7233 = vld [vmem:[%s7115 + $0x3a8] sm:$0xff]
    %v7234 = vld [vmem:[%s7115 + $0x3b0] sm:$0xff]
    %v7235 = vld [vmem:[%s7115 + $0x3b8] sm:$0xff]
    %v7237 = vsel %vm1250, %v7113, 0
    %7239 = vmatpush.msra.mxu0 %v7161
    %7240 = vmatpush.msra.mxu0 %v7158
    %7241 = vmatpush.msra.mxu0 %v7155
    %7242 = vmatpush.msra.mxu0 %v7152
    %7243 = vmatpush.msra.mxu0 %v7149
    %7244 = vmatpush.msra.mxu0 %v7146
    %7245 = vmatpush.msra.mxu0 %v7143
    %7246 = vmatpush.msra.mxu0 %v7140
    %7247 = vmatpush.msra.mxu0 %v7137
    %7248 = vmatpush.msra.mxu0 %v7134
    %7249 = vmatpush.msra.mxu0 %v7131
    %7250 = vmatpush.msra.mxu0 %v7128
    %7251 = vmatpush.msra.mxu0 %v7125
    %7252 = vmatpush.msra.mxu0 %v7122
    %7253 = vmatpush.msra.mxu0 %v7119
    %7254 = vmatpush.msra.mxu0 %v7116
    %7255 = vmatmul.f32.gmra.mxu0 %v7073
    %v7256 = vpop.f32.mrf.mxu0
    %v7257 = vadd.f32 0.0, %v7256
    %7258 = vdwg.mxu0
    %7259 = vmatpush.msra.mxu0 %v7209
    %7260 = vmatpush.msra.mxu0 %v7206
    %7261 = vmatpush.msra.mxu0 %v7203
    %7262 = vmatpush.msra.mxu0 %v7200
    %7263 = vmatpush.msra.mxu0 %v7197
    %7264 = vmatpush.msra.mxu0 %v7194
    %7265 = vmatpush.msra.mxu0 %v7191
    %7266 = vmatpush.msra.mxu0 %v7188
    %7267 = vmatpush.msra.mxu0 %v7185
    %7268 = vmatpush.msra.mxu0 %v7182
    %7269 = vmatpush.msra.mxu0 %v7179
    %7270 = vmatpush.msra.mxu0 %v7176
    %7271 = vmatpush.msra.mxu0 %v7173
    %7272 = vmatpush.msra.mxu0 %v7170
    %7273 = vmatpush.msra.mxu0 %v7167
    %7274 = vmatpush.msra.mxu0 %v7164
    %7275 = vmatmul.f32.gmra.mxu0 %v7093
    %v7276 = vpop.f32.mrf.mxu0
    %v7277 = vadd.f32 %v7257, %v7276
    %7278 = vdwg.mxu0
    %7279 = vmatpush.msra.mxu0 0.0
    %7280 = vmatpush.msra.mxu0 0.0
    %7281 = vmatpush.msra.mxu0 0.0
    %7282 = vmatpush.msra.mxu0 0.0
    %7283 = vmatpush.msra.mxu0 0.0
    %7284 = vmatpush.msra.mxu0 0.0
    %7285 = vmatpush.msra.mxu0 0.0
    %7286 = vmatpush.msra.mxu0 0.0
    %7287 = vmatpush.msra.mxu0 %v7233
    %7288 = vmatpush.msra.mxu0 %v7230
    %7289 = vmatpush.msra.mxu0 %v7227
    %7290 = vmatpush.msra.mxu0 %v7224
    %7291 = vmatpush.msra.mxu0 %v7221
    %7292 = vmatpush.msra.mxu0 %v7218
    %7293 = vmatpush.msra.mxu0 %v7215
    %7294 = vmatpush.msra.mxu0 %v7212
    %7295 = vmatmul.f32.gmra.mxu0 %v7237
    %v7296 = vpop.f32.mrf.mxu0
    %v7297 = vadd.f32 %v7277, %v7296
    %7298 = vdwg.mxu0
    %7299 = vmatpush.msra.mxu0 %v7162
    %7300 = vmatpush.msra.mxu0 %v7159
    %7301 = vmatpush.msra.mxu0 %v7156
    %7302 = vmatpush.msra.mxu0 %v7153
    %7303 = vmatpush.msra.mxu0 %v7150
    %7304 = vmatpush.msra.mxu0 %v7147
    %7305 = vmatpush.msra.mxu0 %v7144
    %7306 = vmatpush.msra.mxu0 %v7141
    %7307 = vmatpush.msra.mxu0 %v7138
    %7308 = vmatpush.msra.mxu0 %v7135
    %7309 = vmatpush.msra.mxu0 %v7132
    %7310 = vmatpush.msra.mxu0 %v7129
    %7311 = vmatpush.msra.mxu0 %v7126
    %7312 = vmatpush.msra.mxu0 %v7123
    %7313 = vmatpush.msra.mxu0 %v7120
    %7314 = vmatpush.msra.mxu0 %v7117
    %7315 = vmatmul.f32.gmra.mxu0 %v7073
    %v7316 = vpop.f32.mrf.mxu0
    %v7317 = vadd.f32 0.0, %v7316
    %7318 = vdwg.mxu0
    %7319 = vmatpush.msra.mxu0 %v7210
    %7320 = vmatpush.msra.mxu0 %v7207
    %7321 = vmatpush.msra.mxu0 %v7204
    %7322 = vmatpush.msra.mxu0 %v7201
    %7323 = vmatpush.msra.mxu0 %v7198
    %7324 = vmatpush.msra.mxu0 %v7195
    %7325 = vmatpush.msra.mxu0 %v7192
    %7326 = vmatpush.msra.mxu0 %v7189
    %7327 = vmatpush.msra.mxu0 %v7186
    %7328 = vmatpush.msra.mxu0 %v7183
    %7329 = vmatpush.msra.mxu0 %v7180
    %7330 = vmatpush.msra.mxu0 %v7177
    %7331 = vmatpush.msra.mxu0 %v7174
    %7332 = vmatpush.msra.mxu0 %v7171
    %7333 = vmatpush.msra.mxu0 %v7168
    %7334 = vmatpush.msra.mxu0 %v7165
    %7335 = vmatmul.f32.gmra.mxu0 %v7093
    %v7336 = vpop.f32.mrf.mxu0
    %v7337 = vadd.f32 %v7317, %v7336
    %7338 = vdwg.mxu0
    %7339 = vmatpush.msra.mxu0 0.0
    %7340 = vmatpush.msra.mxu0 0.0
    %7341 = vmatpush.msra.mxu0 0.0
    %7342 = vmatpush.msra.mxu0 0.0
    %7343 = vmatpush.msra.mxu0 0.0
    %7344 = vmatpush.msra.mxu0 0.0
    %7345 = vmatpush.msra.mxu0 0.0
    %7346 = vmatpush.msra.mxu0 0.0
    %7347 = vmatpush.msra.mxu0 %v7234
    %7348 = vmatpush.msra.mxu0 %v7231
    %7349 = vmatpush.msra.mxu0 %v7228
    %7350 = vmatpush.msra.mxu0 %v7225
    %7351 = vmatpush.msra.mxu0 %v7222
    %7352 = vmatpush.msra.mxu0 %v7219
    %7353 = vmatpush.msra.mxu0 %v7216
    %7354 = vmatpush.msra.mxu0 %v7213
    %7355 = vmatmul.f32.gmra.mxu0 %v7237
    %v7356 = vpop.f32.mrf.mxu0
    %v7357 = vadd.f32 %v7337, %v7356
    %7358 = vdwg.mxu0
    %7359 = vmatpush.msra.mxu0 %v7163
    %7360 = vmatpush.msra.mxu0 %v7160
    %7361 = vmatpush.msra.mxu0 %v7157
    %7362 = vmatpush.msra.mxu0 %v7154
    %7363 = vmatpush.msra.mxu0 %v7151
    %7364 = vmatpush.msra.mxu0 %v7148
    %7365 = vmatpush.msra.mxu0 %v7145
    %7366 = vmatpush.msra.mxu0 %v7142
    %7367 = vmatpush.msra.mxu0 %v7139
    %7368 = vmatpush.msra.mxu0 %v7136
    %7369 = vmatpush.msra.mxu0 %v7133
    %7370 = vmatpush.msra.mxu0 %v7130
    %7371 = vmatpush.msra.mxu0 %v7127
    %7372 = vmatpush.msra.mxu0 %v7124
    %7373 = vmatpush.msra.mxu0 %v7121
    %7374 = vmatpush.msra.mxu0 %v7118
    %7375 = vmatmul.f32.gmra.mxu0 %v7073
    %v7376 = vpop.f32.mrf.mxu0
    %v7377 = vadd.f32 0.0, %v7376
    %7378 = vdwg.mxu0
    %7379 = vmatpush.msra.mxu0 %v7211
    %7380 = vmatpush.msra.mxu0 %v7208
    %7381 = vmatpush.msra.mxu0 %v7205
    %7382 = vmatpush.msra.mxu0 %v7202
    %7383 = vmatpush.msra.mxu0 %v7199
    %7384 = vmatpush.msra.mxu0 %v7196
    %7385 = vmatpush.msra.mxu0 %v7193
    %7386 = vmatpush.msra.mxu0 %v7190
    %7387 = vmatpush.msra.mxu0 %v7187
    %7388 = vmatpush.msra.mxu0 %v7184
    %7389 = vmatpush.msra.mxu0 %v7181
    %7390 = vmatpush.msra.mxu0 %v7178
    %7391 = vmatpush.msra.mxu0 %v7175
    %7392 = vmatpush.msra.mxu0 %v7172
    %7393 = vmatpush.msra.mxu0 %v7169
    %7394 = vmatpush.msra.mxu0 %v7166
    %7395 = vmatmul.f32.gmra.mxu0 %v7093
    %v7396 = vpop.f32.mrf.mxu0
    %v7397 = vadd.f32 %v7377, %v7396
    %7398 = vdwg.mxu0
    %7399 = vmatpush.msra.mxu0 0.0
    %7400 = vmatpush.msra.mxu0 0.0
    %7401 = vmatpush.msra.mxu0 0.0
    %7402 = vmatpush.msra.mxu0 0.0
    %7403 = vmatpush.msra.mxu0 0.0
    %7404 = vmatpush.msra.mxu0 0.0
    %7405 = vmatpush.msra.mxu0 0.0
    %7406 = vmatpush.msra.mxu0 0.0
    %7407 = vmatpush.msra.mxu0 %v7235
    %7408 = vmatpush.msra.mxu0 %v7232
    %7409 = vmatpush.msra.mxu0 %v7229
    %7410 = vmatpush.msra.mxu0 %v7226
    %7411 = vmatpush.msra.mxu0 %v7223
    %7412 = vmatpush.msra.mxu0 %v7220
    %7413 = vmatpush.msra.mxu0 %v7217
    %7414 = vmatpush.msra.mxu0 %v7214
    %7415 = vmatmul.f32.gmra.mxu0 %v7237
    %v7416 = vpop.f32.mrf.mxu0
    %v7417 = vadd.f32 %v7397, %v7416
    %7418 = vdwg.mxu0
    %v7419 = vadd.f32 %v6928, %v7297
    %v7420 = vadd.f32 %v6988, %v7357
    %v7421 = vadd.f32 %v7048, %v7417
    %s7422 = scalar_lea.vmem %s16, 24
    %v7423 = vld [vmem:[%s7422] sm:$0x3f]
    %v7425 = vsel %vm6305, %v7423, 0
    %7427 = vmatpush.msra.mxu0 0.0
    %7428 = vmatpush.msra.mxu0 0.0
    %7429 = vmatpush.msra.mxu0 0.0
    %7430 = vmatpush.msra.mxu0 0.0
    %7431 = vmatpush.msra.mxu0 0.0
    %7432 = vmatpush.msra.mxu0 0.0
    %7433 = vmatpush.msra.mxu0 0.0
    %7434 = vmatpush.msra.mxu0 0.0
    %7435 = vmatpush.msra.mxu0 0.0
    %7436 = vmatpush.msra.mxu0 0.0
    %7437 = vmatpush.msra.mxu0 0.0
    %7438 = vmatpush.msra.mxu0 0.0
    %7439 = vmatpush.msra.mxu0 0.0
    %7440 = vmatpush.msra.mxu0 0.0
    %7441 = vmatpush.msra.mxu0 %v6310
    %7442 = vmatpush.msra.mxu0 %v6298
    %7443 = vmatmul.f32.gmra.mxu0 %v7425
    %v7444 = vpop.f32.mrf.mxu0
    %v7445 = vadd.f32 0.0, %v7444
    %7446 = vdwg.mxu0
    %7447 = vmatpush.msra.mxu0 0.0
    %7448 = vmatpush.msra.mxu0 0.0
    %7449 = vmatpush.msra.mxu0 0.0
    %7450 = vmatpush.msra.mxu0 0.0
    %7451 = vmatpush.msra.mxu0 0.0
    %7452 = vmatpush.msra.mxu0 0.0
    %7453 = vmatpush.msra.mxu0 0.0
    %7454 = vmatpush.msra.mxu0 0.0
    %7455 = vmatpush.msra.mxu0 0.0
    %7456 = vmatpush.msra.mxu0 0.0
    %7457 = vmatpush.msra.mxu0 0.0
    %7458 = vmatpush.msra.mxu0 0.0
    %7459 = vmatpush.msra.mxu0 0.0
    %7460 = vmatpush.msra.mxu0 0.0
    %7461 = vmatpush.msra.mxu0 %v6313
    %7462 = vmatpush.msra.mxu0 %v6299
    %7463 = vmatmul.f32.gmra.mxu0 %v7425
    %v7464 = vpop.f32.mrf.mxu0
    %v7465 = vadd.f32 0.0, %v7464
    %7466 = vdwg.mxu0
    %7467 = vmatpush.msra.mxu0 0.0
    %7468 = vmatpush.msra.mxu0 0.0
    %7469 = vmatpush.msra.mxu0 0.0
    %7470 = vmatpush.msra.mxu0 0.0
    %7471 = vmatpush.msra.mxu0 0.0
    %7472 = vmatpush.msra.mxu0 0.0
    %7473 = vmatpush.msra.mxu0 0.0
    %7474 = vmatpush.msra.mxu0 0.0
    %7475 = vmatpush.msra.mxu0 0.0
    %7476 = vmatpush.msra.mxu0 0.0
    %7477 = vmatpush.msra.mxu0 0.0
    %7478 = vmatpush.msra.mxu0 0.0
    %7479 = vmatpush.msra.mxu0 0.0
    %7480 = vmatpush.msra.mxu0 0.0
    %7481 = vmatpush.msra.mxu0 %v6316
    %7482 = vmatpush.msra.mxu0 %v6300
    %7483 = vmatmul.f32.gmra.mxu0 %v7425
    %v7484 = vpop.f32.mrf.mxu0
    %v7485 = vadd.f32 0.0, %v7484
    %7486 = vdwg.mxu0
    %s7487 = scalar_lea.vmem [#allocation21], 2880
    %v7488 = vld [vmem:[%s7487] sm:$0xff]
    %v7489 = vld [vmem:[%s7487 + $0x8] sm:$0xff]
    %v7490 = vld [vmem:[%s7487 + $0x10] sm:$0xff]
    %v7491 = vld [vmem:[%s7487 + $0x18] sm:$0xff]
    %v7492 = vld [vmem:[%s7487 + $0x20] sm:$0xff]
    %v7493 = vld [vmem:[%s7487 + $0x28] sm:$0xff]
    %v7494 = vld [vmem:[%s7487 + $0x30] sm:$0xff]
    %v7495 = vld [vmem:[%s7487 + $0x38] sm:$0xff]
    %v7496 = vld [vmem:[%s7487 + $0x40] sm:$0xff]
    %v7497 = vld [vmem:[%s7487 + $0x48] sm:$0xff]
    %v7498 = vld [vmem:[%s7487 + $0x50] sm:$0xff]
    %v7499 = vld [vmem:[%s7487 + $0x58] sm:$0xff]
    %v7500 = vld [vmem:[%s7487 + $0x60] sm:$0xff]
    %v7501 = vld [vmem:[%s7487 + $0x68] sm:$0xff]
    %v7502 = vld [vmem:[%s7487 + $0x70] sm:$0xff]
    %v7503 = vld [vmem:[%s7487 + $0x78] sm:$0xff]
    %v7504 = vld [vmem:[%s7487 + $0x80] sm:$0xff]
    %v7505 = vld [vmem:[%s7487 + $0x88] sm:$0xff]
    %v7506 = vld [vmem:[%s7487 + $0x90] sm:$0xff]
    %v7507 = vld [vmem:[%s7487 + $0x98] sm:$0xff]
    %v7508 = vld [vmem:[%s7487 + $0xa0] sm:$0xff]
    %v7509 = vld [vmem:[%s7487 + $0xa8] sm:$0xff]
    %v7510 = vld [vmem:[%s7487 + $0xb0] sm:$0xff]
    %v7511 = vld [vmem:[%s7487 + $0xb8] sm:$0xff]
    %v7512 = vld [vmem:[%s7487 + $0xc0] sm:$0xff]
    %v7513 = vld [vmem:[%s7487 + $0xc8] sm:$0xff]
    %v7514 = vld [vmem:[%s7487 + $0xd0] sm:$0xff]
    %v7515 = vld [vmem:[%s7487 + $0xd8] sm:$0xff]
    %v7516 = vld [vmem:[%s7487 + $0xe0] sm:$0xff]
    %v7517 = vld [vmem:[%s7487 + $0xe8] sm:$0xff]
    %v7518 = vld [vmem:[%s7487 + $0xf0] sm:$0xff]
    %v7519 = vld [vmem:[%s7487 + $0xf8] sm:$0xff]
    %v7520 = vld [vmem:[%s7487 + $0x100] sm:$0xff]
    %v7521 = vld [vmem:[%s7487 + $0x108] sm:$0xff]
    %v7522 = vld [vmem:[%s7487 + $0x110] sm:$0xff]
    %v7523 = vld [vmem:[%s7487 + $0x118] sm:$0xff]
    %v7524 = vld [vmem:[%s7487 + $0x120] sm:$0xff]
    %v7525 = vld [vmem:[%s7487 + $0x128] sm:$0xff]
    %v7526 = vld [vmem:[%s7487 + $0x130] sm:$0xff]
    %v7527 = vld [vmem:[%s7487 + $0x138] sm:$0xff]
    %v7528 = vld [vmem:[%s7487 + $0x140] sm:$0xff]
    %v7529 = vld [vmem:[%s7487 + $0x148] sm:$0xff]
    %v7530 = vld [vmem:[%s7487 + $0x150] sm:$0xff]
    %v7531 = vld [vmem:[%s7487 + $0x158] sm:$0xff]
    %v7532 = vld [vmem:[%s7487 + $0x160] sm:$0xff]
    %v7533 = vld [vmem:[%s7487 + $0x168] sm:$0xff]
    %v7534 = vld [vmem:[%s7487 + $0x170] sm:$0xff]
    %v7535 = vld [vmem:[%s7487 + $0x178] sm:$0xff]
    %v7536 = vld [vmem:[%s7487 + $0x180] sm:$0xff]
    %v7537 = vld [vmem:[%s7487 + $0x188] sm:$0xff]
    %v7538 = vld [vmem:[%s7487 + $0x190] sm:$0xff]
    %v7539 = vld [vmem:[%s7487 + $0x198] sm:$0xff]
    %v7540 = vld [vmem:[%s7487 + $0x1a0] sm:$0xff]
    %v7541 = vld [vmem:[%s7487 + $0x1a8] sm:$0xff]
    %v7542 = vld [vmem:[%s7487 + $0x1b0] sm:$0xff]
    %v7543 = vld [vmem:[%s7487 + $0x1b8] sm:$0xff]
    %v7544 = vld [vmem:[%s7487 + $0x1c0] sm:$0xff]
    %v7545 = vld [vmem:[%s7487 + $0x1c8] sm:$0xff]
    %v7546 = vld [vmem:[%s7487 + $0x1d0] sm:$0xff]
    %v7547 = vld [vmem:[%s7487 + $0x1d8] sm:$0xff]
    %v7548 = vld [vmem:[%s7487 + $0x1e0] sm:$0xff]
    %v7549 = vld [vmem:[%s7487 + $0x1e8] sm:$0xff]
    %v7550 = vld [vmem:[%s7487 + $0x1f0] sm:$0xff]
    %v7551 = vld [vmem:[%s7487 + $0x1f8] sm:$0xff]
    %v7552 = vld [vmem:[%s7487 + $0x200] sm:$0xff]
    %v7553 = vld [vmem:[%s7487 + $0x208] sm:$0xff]
    %v7554 = vld [vmem:[%s7487 + $0x210] sm:$0xff]
    %v7555 = vld [vmem:[%s7487 + $0x218] sm:$0xff]
    %v7556 = vld [vmem:[%s7487 + $0x220] sm:$0xff]
    %v7557 = vld [vmem:[%s7487 + $0x228] sm:$0xff]
    %v7558 = vld [vmem:[%s7487 + $0x230] sm:$0xff]
    %v7559 = vld [vmem:[%s7487 + $0x238] sm:$0xff]
    %v7560 = vld [vmem:[%s7487 + $0x240] sm:$0xff]
    %v7561 = vld [vmem:[%s7487 + $0x248] sm:$0xff]
    %v7562 = vld [vmem:[%s7487 + $0x250] sm:$0xff]
    %v7563 = vld [vmem:[%s7487 + $0x258] sm:$0xff]
    %v7564 = vld [vmem:[%s7487 + $0x260] sm:$0xff]
    %v7565 = vld [vmem:[%s7487 + $0x268] sm:$0xff]
    %v7566 = vld [vmem:[%s7487 + $0x270] sm:$0xff]
    %v7567 = vld [vmem:[%s7487 + $0x278] sm:$0xff]
    %v7568 = vld [vmem:[%s7487 + $0x280] sm:$0xff]
    %v7569 = vld [vmem:[%s7487 + $0x288] sm:$0xff]
    %v7570 = vld [vmem:[%s7487 + $0x290] sm:$0xff]
    %v7571 = vld [vmem:[%s7487 + $0x298] sm:$0xff]
    %v7572 = vld [vmem:[%s7487 + $0x2a0] sm:$0xff]
    %v7573 = vld [vmem:[%s7487 + $0x2a8] sm:$0xff]
    %v7574 = vld [vmem:[%s7487 + $0x2b0] sm:$0xff]
    %v7575 = vld [vmem:[%s7487 + $0x2b8] sm:$0xff]
    %v7576 = vld [vmem:[%s7487 + $0x2c0] sm:$0xff]
    %v7577 = vld [vmem:[%s7487 + $0x2c8] sm:$0xff]
    %v7578 = vld [vmem:[%s7487 + $0x2d0] sm:$0xff]
    %v7579 = vld [vmem:[%s7487 + $0x2d8] sm:$0xff]
    %v7580 = vld [vmem:[%s7487 + $0x2e0] sm:$0xff]
    %v7581 = vld [vmem:[%s7487 + $0x2e8] sm:$0xff]
    %v7582 = vld [vmem:[%s7487 + $0x2f0] sm:$0xff]
    %v7583 = vld [vmem:[%s7487 + $0x2f8] sm:$0xff]
    %v7584 = vld [vmem:[%s7487 + $0x300] sm:$0xff]
    %v7585 = vld [vmem:[%s7487 + $0x308] sm:$0xff]
    %v7586 = vld [vmem:[%s7487 + $0x310] sm:$0xff]
    %v7587 = vld [vmem:[%s7487 + $0x318] sm:$0xff]
    %v7588 = vld [vmem:[%s7487 + $0x320] sm:$0xff]
    %v7589 = vld [vmem:[%s7487 + $0x328] sm:$0xff]
    %v7590 = vld [vmem:[%s7487 + $0x330] sm:$0xff]
    %v7591 = vld [vmem:[%s7487 + $0x338] sm:$0xff]
    %v7592 = vld [vmem:[%s7487 + $0x340] sm:$0xff]
    %v7593 = vld [vmem:[%s7487 + $0x348] sm:$0xff]
    %v7594 = vld [vmem:[%s7487 + $0x350] sm:$0xff]
    %v7595 = vld [vmem:[%s7487 + $0x358] sm:$0xff]
    %v7596 = vld [vmem:[%s7487 + $0x360] sm:$0xff]
    %v7597 = vld [vmem:[%s7487 + $0x368] sm:$0xff]
    %v7598 = vld [vmem:[%s7487 + $0x370] sm:$0xff]
    %v7599 = vld [vmem:[%s7487 + $0x378] sm:$0xff]
    %v7600 = vld [vmem:[%s7487 + $0x380] sm:$0xff]
    %v7601 = vld [vmem:[%s7487 + $0x388] sm:$0xff]
    %v7602 = vld [vmem:[%s7487 + $0x390] sm:$0xff]
    %v7603 = vld [vmem:[%s7487 + $0x398] sm:$0xff]
    %v7604 = vld [vmem:[%s7487 + $0x3a0] sm:$0xff]
    %v7605 = vld [vmem:[%s7487 + $0x3a8] sm:$0xff]
    %v7606 = vld [vmem:[%s7487 + $0x3b0] sm:$0xff]
    %v7607 = vld [vmem:[%s7487 + $0x3b8] sm:$0xff]
    %v7609 = vsel %vm1250, %v7485, 0
    %7611 = vmatpush.msra.mxu0 %v7533
    %7612 = vmatpush.msra.mxu0 %v7530
    %7613 = vmatpush.msra.mxu0 %v7527
    %7614 = vmatpush.msra.mxu0 %v7524
    %7615 = vmatpush.msra.mxu0 %v7521
    %7616 = vmatpush.msra.mxu0 %v7518
    %7617 = vmatpush.msra.mxu0 %v7515
    %7618 = vmatpush.msra.mxu0 %v7512
    %7619 = vmatpush.msra.mxu0 %v7509
    %7620 = vmatpush.msra.mxu0 %v7506
    %7621 = vmatpush.msra.mxu0 %v7503
    %7622 = vmatpush.msra.mxu0 %v7500
    %7623 = vmatpush.msra.mxu0 %v7497
    %7624 = vmatpush.msra.mxu0 %v7494
    %7625 = vmatpush.msra.mxu0 %v7491
    %7626 = vmatpush.msra.mxu0 %v7488
    %7627 = vmatmul.f32.gmra.mxu0 %v7445
    %v7628 = vpop.f32.mrf.mxu0
    %v7629 = vadd.f32 0.0, %v7628
    %7630 = vdwg.mxu0
    %7631 = vmatpush.msra.mxu0 %v7581
    %7632 = vmatpush.msra.mxu0 %v7578
    %7633 = vmatpush.msra.mxu0 %v7575
    %7634 = vmatpush.msra.mxu0 %v7572
    %7635 = vmatpush.msra.mxu0 %v7569
    %7636 = vmatpush.msra.mxu0 %v7566
    %7637 = vmatpush.msra.mxu0 %v7563
    %7638 = vmatpush.msra.mxu0 %v7560
    %7639 = vmatpush.msra.mxu0 %v7557
    %7640 = vmatpush.msra.mxu0 %v7554
    %7641 = vmatpush.msra.mxu0 %v7551
    %7642 = vmatpush.msra.mxu0 %v7548
    %7643 = vmatpush.msra.mxu0 %v7545
    %7644 = vmatpush.msra.mxu0 %v7542
    %7645 = vmatpush.msra.mxu0 %v7539
    %7646 = vmatpush.msra.mxu0 %v7536
    %7647 = vmatmul.f32.gmra.mxu0 %v7465
    %v7648 = vpop.f32.mrf.mxu0
    %v7649 = vadd.f32 %v7629, %v7648
    %7650 = vdwg.mxu0
    %7651 = vmatpush.msra.mxu0 0.0
    %7652 = vmatpush.msra.mxu0 0.0
    %7653 = vmatpush.msra.mxu0 0.0
    %7654 = vmatpush.msra.mxu0 0.0
    %7655 = vmatpush.msra.mxu0 0.0
    %7656 = vmatpush.msra.mxu0 0.0
    %7657 = vmatpush.msra.mxu0 0.0
    %7658 = vmatpush.msra.mxu0 0.0
    %7659 = vmatpush.msra.mxu0 %v7605
    %7660 = vmatpush.msra.mxu0 %v7602
    %7661 = vmatpush.msra.mxu0 %v7599
    %7662 = vmatpush.msra.mxu0 %v7596
    %7663 = vmatpush.msra.mxu0 %v7593
    %7664 = vmatpush.msra.mxu0 %v7590
    %7665 = vmatpush.msra.mxu0 %v7587
    %7666 = vmatpush.msra.mxu0 %v7584
    %7667 = vmatmul.f32.gmra.mxu0 %v7609
    %v7668 = vpop.f32.mrf.mxu0
    %v7669 = vadd.f32 %v7649, %v7668
    %7670 = vdwg.mxu0
    %7671 = vmatpush.msra.mxu0 %v7534
    %7672 = vmatpush.msra.mxu0 %v7531
    %7673 = vmatpush.msra.mxu0 %v7528
    %7674 = vmatpush.msra.mxu0 %v7525
    %7675 = vmatpush.msra.mxu0 %v7522
    %7676 = vmatpush.msra.mxu0 %v7519
    %7677 = vmatpush.msra.mxu0 %v7516
    %7678 = vmatpush.msra.mxu0 %v7513
    %7679 = vmatpush.msra.mxu0 %v7510
    %7680 = vmatpush.msra.mxu0 %v7507
    %7681 = vmatpush.msra.mxu0 %v7504
    %7682 = vmatpush.msra.mxu0 %v7501
    %7683 = vmatpush.msra.mxu0 %v7498
    %7684 = vmatpush.msra.mxu0 %v7495
    %7685 = vmatpush.msra.mxu0 %v7492
    %7686 = vmatpush.msra.mxu0 %v7489
    %7687 = vmatmul.f32.gmra.mxu0 %v7445
    %v7688 = vpop.f32.mrf.mxu0
    %v7689 = vadd.f32 0.0, %v7688
    %7690 = vdwg.mxu0
    %7691 = vmatpush.msra.mxu0 %v7582
    %7692 = vmatpush.msra.mxu0 %v7579
    %7693 = vmatpush.msra.mxu0 %v7576
    %7694 = vmatpush.msra.mxu0 %v7573
    %7695 = vmatpush.msra.mxu0 %v7570
    %7696 = vmatpush.msra.mxu0 %v7567
    %7697 = vmatpush.msra.mxu0 %v7564
    %7698 = vmatpush.msra.mxu0 %v7561
    %7699 = vmatpush.msra.mxu0 %v7558
    %7700 = vmatpush.msra.mxu0 %v7555
    %7701 = vmatpush.msra.mxu0 %v7552
    %7702 = vmatpush.msra.mxu0 %v7549
    %7703 = vmatpush.msra.mxu0 %v7546
    %7704 = vmatpush.msra.mxu0 %v7543
    %7705 = vmatpush.msra.mxu0 %v7540
    %7706 = vmatpush.msra.mxu0 %v7537
    %7707 = vmatmul.f32.gmra.mxu0 %v7465
    %v7708 = vpop.f32.mrf.mxu0
    %v7709 = vadd.f32 %v7689, %v7708
    %7710 = vdwg.mxu0
    %7711 = vmatpush.msra.mxu0 0.0
    %7712 = vmatpush.msra.mxu0 0.0
    %7713 = vmatpush.msra.mxu0 0.0
    %7714 = vmatpush.msra.mxu0 0.0
    %7715 = vmatpush.msra.mxu0 0.0
    %7716 = vmatpush.msra.mxu0 0.0
    %7717 = vmatpush.msra.mxu0 0.0
    %7718 = vmatpush.msra.mxu0 0.0
    %7719 = vmatpush.msra.mxu0 %v7606
    %7720 = vmatpush.msra.mxu0 %v7603
    %7721 = vmatpush.msra.mxu0 %v7600
    %7722 = vmatpush.msra.mxu0 %v7597
    %7723 = vmatpush.msra.mxu0 %v7594
    %7724 = vmatpush.msra.mxu0 %v7591
    %7725 = vmatpush.msra.mxu0 %v7588
    %7726 = vmatpush.msra.mxu0 %v7585
    %7727 = vmatmul.f32.gmra.mxu0 %v7609
    %v7728 = vpop.f32.mrf.mxu0
    %v7729 = vadd.f32 %v7709, %v7728
    %7730 = vdwg.mxu0
    %7731 = vmatpush.msra.mxu0 %v7535
    %7732 = vmatpush.msra.mxu0 %v7532
    %7733 = vmatpush.msra.mxu0 %v7529
    %7734 = vmatpush.msra.mxu0 %v7526
    %7735 = vmatpush.msra.mxu0 %v7523
    %7736 = vmatpush.msra.mxu0 %v7520
    %7737 = vmatpush.msra.mxu0 %v7517
    %7738 = vmatpush.msra.mxu0 %v7514
    %7739 = vmatpush.msra.mxu0 %v7511
    %7740 = vmatpush.msra.mxu0 %v7508
    %7741 = vmatpush.msra.mxu0 %v7505
    %7742 = vmatpush.msra.mxu0 %v7502
    %7743 = vmatpush.msra.mxu0 %v7499
    %7744 = vmatpush.msra.mxu0 %v7496
    %7745 = vmatpush.msra.mxu0 %v7493
    %7746 = vmatpush.msra.mxu0 %v7490
    %7747 = vmatmul.f32.gmra.mxu0 %v7445
    %v7748 = vpop.f32.mrf.mxu0
    %v7749 = vadd.f32 0.0, %v7748
    %7750 = vdwg.mxu0
    %7751 = vmatpush.msra.mxu0 %v7583
    %7752 = vmatpush.msra.mxu0 %v7580
    %7753 = vmatpush.msra.mxu0 %v7577
    %7754 = vmatpush.msra.mxu0 %v7574
    %7755 = vmatpush.msra.mxu0 %v7571
    %7756 = vmatpush.msra.mxu0 %v7568
    %7757 = vmatpush.msra.mxu0 %v7565
    %7758 = vmatpush.msra.mxu0 %v7562
    %7759 = vmatpush.msra.mxu0 %v7559
    %7760 = vmatpush.msra.mxu0 %v7556
    %7761 = vmatpush.msra.mxu0 %v7553
    %7762 = vmatpush.msra.mxu0 %v7550
    %7763 = vmatpush.msra.mxu0 %v7547
    %7764 = vmatpush.msra.mxu0 %v7544
    %7765 = vmatpush.msra.mxu0 %v7541
    %7766 = vmatpush.msra.mxu0 %v7538
    %7767 = vmatmul.f32.gmra.mxu0 %v7465
    %v7768 = vpop.f32.mrf.mxu0
    %v7769 = vadd.f32 %v7749, %v7768
    %7770 = vdwg.mxu0
    %7771 = vmatpush.msra.mxu0 0.0
    %7772 = vmatpush.msra.mxu0 0.0
    %7773 = vmatpush.msra.mxu0 0.0
    %7774 = vmatpush.msra.mxu0 0.0
    %7775 = vmatpush.msra.mxu0 0.0
    %7776 = vmatpush.msra.mxu0 0.0
    %7777 = vmatpush.msra.mxu0 0.0
    %7778 = vmatpush.msra.mxu0 0.0
    %7779 = vmatpush.msra.mxu0 %v7607
    %7780 = vmatpush.msra.mxu0 %v7604
    %7781 = vmatpush.msra.mxu0 %v7601
    %7782 = vmatpush.msra.mxu0 %v7598
    %7783 = vmatpush.msra.mxu0 %v7595
    %7784 = vmatpush.msra.mxu0 %v7592
    %7785 = vmatpush.msra.mxu0 %v7589
    %7786 = vmatpush.msra.mxu0 %v7586
    %7787 = vmatmul.f32.gmra.mxu0 %v7609
    %v7788 = vpop.f32.mrf.mxu0
    %v7789 = vadd.f32 %v7769, %v7788
    %7790 = vdwg.mxu0
    %v7791 = vadd.f32 %v7419, %v7669
    %v7792 = vadd.f32 %v7420, %v7729
    %v7793 = vadd.f32 %v7421, %v7789
    %vm7794 = vcmask 1045504
    %v7795 = vsel %vm7794, %v7791, 0.0
    %v7796 = vrot.slane %v7795, 4
    %v7797 = vadd.f32 %v7795, %v7796
    %v7798 = vrot.slane %v7797, 2
    %v7799 = vadd.f32 %v7797, %v7798
    %v7800 = vrot.slane %v7799, 1
    %v7801 = vadd.f32 %v7799, %v7800
    %v7802 = vsel %vm7794, %v7792, 0.0
    %v7803 = vrot.slane %v7802, 4
    %v7804 = vadd.f32 %v7802, %v7803
    %v7805 = vrot.slane %v7804, 2
    %v7806 = vadd.f32 %v7804, %v7805
    %v7807 = vrot.slane %v7806, 1
    %v7808 = vadd.f32 %v7806, %v7807
    %vm7809 = vcmask 521216
    %v7810 = vsel %vm7809, %v7793, 0.0
    %v7811 = vrot.slane %v7810, 4
    %v7812 = vadd.f32 %v7810, %v7811
    %v7813 = vrot.slane %v7812, 2
    %v7814 = vadd.f32 %v7812, %v7813
    %v7815 = vrot.slane %v7814, 1
    %v7816 = vadd.f32 %v7814, %v7815
    %v7817 = vld [vmem:[%s18] sm:$0xff]
    %v7818 = vld [vmem:[%s18 + $0x8] sm:$0xff]
    %v7819 = vld [vmem:[%s18 + $0x10] sm:$0xff]
    %v7820 = vld [vmem:[%s18 + $0x18] sm:$0xff]
    %v7821 = vld [vmem:[%s18 + $0x20] sm:$0xff]
    %v7822 = vld [vmem:[%s18 + $0x28] sm:$0xff]
    %v7823 = vld [vmem:[%s18 + $0x30] sm:$0xff]
    %v7824 = vld [vmem:[%s18 + $0x38] sm:$0xff]
    %v7825 = vld [vmem:[%s18 + $0x40] sm:$0xff]
    %v7826 = vld [vmem:[%s18 + $0x48] sm:$0xff]
    %v7827 = vld [vmem:[%s18 + $0x50] sm:$0xff]
    %v7828 = vld [vmem:[%s18 + $0x58] sm:$0xff]
    %v7829 = vld [vmem:[%s18 + $0x60] sm:$0xff]
    %v7830 = vld [vmem:[%s18 + $0x68] sm:$0xff]
    %v7831 = vld [vmem:[%s18 + $0x70] sm:$0xff]
    %v7832 = vld [vmem:[%s18 + $0x78] sm:$0xff]
    %v7833 = vld [vmem:[%s18 + $0x80] sm:$0xff]
    %v7834 = vld [vmem:[%s18 + $0x88] sm:$0xff]
    %v7835 = vld [vmem:[%s18 + $0x90] sm:$0xff]
    %v7836 = vld [vmem:[%s18 + $0x98] sm:$0xff]
    %v7837 = vld [vmem:[%s18 + $0xa0] sm:$0xff]
    %v7838 = vld [vmem:[%s18 + $0xa8] sm:$0xff]
    %v7839 = vld [vmem:[%s18 + $0xb0] sm:$0xff]
    %v7840 = vld [vmem:[%s18 + $0xb8] sm:$0xff]
    %v7841 = vld [vmem:[%s18 + $0xc0] sm:$0xff]
    %v7842 = vld [vmem:[%s18 + $0xc8] sm:$0xff]
    %v7843 = vld [vmem:[%s18 + $0xd0] sm:$0xff]
    %v7844 = vld [vmem:[%s18 + $0xd8] sm:$0xff]
    %v7845 = vld [vmem:[%s18 + $0xe0] sm:$0xff]
    %v7846 = vld [vmem:[%s18 + $0xe8] sm:$0xff]
    %v7847 = vld [vmem:[%s18 + $0xf0] sm:$0xff]
    %v7848 = vld [vmem:[%s18 + $0xf8] sm:$0xff]
    %v7849 = vld [vmem:[%s18 + $0x100] sm:$0xff]
    %v7850 = vld [vmem:[%s18 + $0x108] sm:$0xff]
    %v7851 = vld [vmem:[%s18 + $0x110] sm:$0xff]
    %v7852 = vld [vmem:[%s18 + $0x118] sm:$0xff]
    %v7853 = vld [vmem:[%s18 + $0x120] sm:$0xff]
    %v7854 = vld [vmem:[%s18 + $0x128] sm:$0xff]
    %v7855 = vld [vmem:[%s18 + $0x130] sm:$0xff]
    %v7856 = vld [vmem:[%s18 + $0x138] sm:$0xff]
    %v7858 = vsel %vm1250, %v7816, 0
    %7860 = vmatpush.msra.mxu0 %v7832
    %7861 = vmatpush.msra.mxu0 %v7831
    %7862 = vmatpush.msra.mxu0 %v7830
    %7863 = vmatpush.msra.mxu0 %v7829
    %7864 = vmatpush.msra.mxu0 %v7828
    %7865 = vmatpush.msra.mxu0 %v7827
    %7866 = vmatpush.msra.mxu0 %v7826
    %7867 = vmatpush.msra.mxu0 %v7825
    %7868 = vmatpush.msra.mxu0 %v7824
    %7869 = vmatpush.msra.mxu0 %v7823
    %7870 = vmatpush.msra.mxu0 %v7822
    %7871 = vmatpush.msra.mxu0 %v7821
    %7872 = vmatpush.msra.mxu0 %v7820
    %7873 = vmatpush.msra.mxu0 %v7819
    %7874 = vmatpush.msra.mxu0 %v7818
    %7875 = vmatpush.msra.mxu0 %v7817
    %7876 = vmatmul.f32.gmra.mxu0 %v7801
    %v7877 = vpop.f32.mrf.mxu0
    %v7878 = vadd.f32 0.0, %v7877
    %7879 = vdwg.mxu0
    %7880 = vmatpush.msra.mxu0 %v7848
    %7881 = vmatpush.msra.mxu0 %v7847
    %7882 = vmatpush.msra.mxu0 %v7846
    %7883 = vmatpush.msra.mxu0 %v7845
    %7884 = vmatpush.msra.mxu0 %v7844
    %7885 = vmatpush.msra.mxu0 %v7843
    %7886 = vmatpush.msra.mxu0 %v7842
    %7887 = vmatpush.msra.mxu0 %v7841
    %7888 = vmatpush.msra.mxu0 %v7840
    %7889 = vmatpush.msra.mxu0 %v7839
    %7890 = vmatpush.msra.mxu0 %v7838
    %7891 = vmatpush.msra.mxu0 %v7837
    %7892 = vmatpush.msra.mxu0 %v7836
    %7893 = vmatpush.msra.mxu0 %v7835
    %7894 = vmatpush.msra.mxu0 %v7834
    %7895 = vmatpush.msra.mxu0 %v7833
    %7896 = vmatmul.f32.gmra.mxu0 %v7808
    %v7897 = vpop.f32.mrf.mxu0
    %v7898 = vadd.f32 %v7878, %v7897
    %7899 = vdwg.mxu0
    %7900 = vmatpush.msra.mxu0 0.0
    %7901 = vmatpush.msra.mxu0 0.0
    %7902 = vmatpush.msra.mxu0 0.0
    %7903 = vmatpush.msra.mxu0 0.0
    %7904 = vmatpush.msra.mxu0 0.0
    %7905 = vmatpush.msra.mxu0 0.0
    %7906 = vmatpush.msra.mxu0 0.0
    %7907 = vmatpush.msra.mxu0 0.0
    %7908 = vmatpush.msra.mxu0 %v7856
    %7909 = vmatpush.msra.mxu0 %v7855
    %7910 = vmatpush.msra.mxu0 %v7854
    %7911 = vmatpush.msra.mxu0 %v7853
    %7912 = vmatpush.msra.mxu0 %v7852
    %7913 = vmatpush.msra.mxu0 %v7851
    %7914 = vmatpush.msra.mxu0 %v7850
    %7915 = vmatpush.msra.mxu0 %v7849
    %7916 = vmatmul.f32.gmra.mxu0 %v7858
    %v7917 = vpop.f32.mrf.mxu0
    %v7918 = vadd.f32 %v7898, %v7917
    %7919 = vdwg.mxu0
    %v7920 = vmul.f32 %v7918, 0.033333335
    %v7921 = vld [vmem:[#allocation22] sm:$0xff]
    %v7922 = vld [vmem:[#allocation22 + $0x8] sm:$0xff]
    %v7923 = vld [vmem:[#allocation22 + $0x10] sm:$0xff]
    %v7924 = vld [vmem:[#allocation22 + $0x18] sm:$0xff]
    %v7925 = vld [vmem:[#allocation22 + $0x20] sm:$0xff]
    %v7926 = vld [vmem:[#allocation22 + $0x28] sm:$0xff]
    %v7927 = vld [vmem:[#allocation22 + $0x30] sm:$0xff]
    %v7928 = vld [vmem:[#allocation22 + $0x38] sm:$0xff]
    %v7929 = vld [vmem:[#allocation22 + $0x40] sm:$0xff]
    %v7930 = vld [vmem:[#allocation22 + $0x48] sm:$0xff]
    %v7931 = vld [vmem:[#allocation22 + $0x50] sm:$0xff]
    %v7932 = vld [vmem:[#allocation22 + $0x58] sm:$0xff]
    %v7933 = vld [vmem:[#allocation22 + $0x60] sm:$0xff]
    %v7934 = vld [vmem:[#allocation22 + $0x68] sm:$0xff]
    %v7935 = vld [vmem:[#allocation22 + $0x70] sm:$0xff]
    %v7936 = vld [vmem:[#allocation22 + $0x78] sm:$0xff]
    %v7937 = vld [vmem:[#allocation22 + $0x80] sm:$0xff]
    %v7938 = vld [vmem:[#allocation22 + $0x88] sm:$0xff]
    %v7939 = vld [vmem:[#allocation22 + $0x90] sm:$0xff]
    %v7940 = vld [vmem:[#allocation22 + $0x98] sm:$0xff]
    %v7941 = vld [vmem:[#allocation22 + $0xa0] sm:$0xff]
    %v7942 = vld [vmem:[#allocation22 + $0xa8] sm:$0xff]
    %v7943 = vld [vmem:[#allocation22 + $0xb0] sm:$0xff]
    %v7944 = vld [vmem:[#allocation22 + $0xb8] sm:$0xff]
    %v7946 = vsel %vm1250, %v7920, 0
    %7948 = vmatpush.msra.mxu0 0.0
    %7949 = vmatpush.msra.mxu0 0.0
    %7950 = vmatpush.msra.mxu0 0.0
    %7951 = vmatpush.msra.mxu0 0.0
    %7952 = vmatpush.msra.mxu0 0.0
    %7953 = vmatpush.msra.mxu0 0.0
    %7954 = vmatpush.msra.mxu0 0.0
    %7955 = vmatpush.msra.mxu0 0.0
    %7956 = vmatpush.msra.mxu0 %v7942
    %7957 = vmatpush.msra.mxu0 %v7939
    %7958 = vmatpush.msra.mxu0 %v7936
    %7959 = vmatpush.msra.mxu0 %v7933
    %7960 = vmatpush.msra.mxu0 %v7930
    %7961 = vmatpush.msra.mxu0 %v7927
    %7962 = vmatpush.msra.mxu0 %v7924
    %7963 = vmatpush.msra.mxu0 %v7921
    %7964 = vmatmul.f32.gmra.mxu0 %v7946
    %v7965 = vpop.f32.mrf.mxu0
    %v7966 = vadd.f32 0.0, %v7965
    %7967 = vdwg.mxu0
    %7968 = vmatpush.msra.mxu0 0.0
    %7969 = vmatpush.msra.mxu0 0.0
    %7970 = vmatpush.msra.mxu0 0.0
    %7971 = vmatpush.msra.mxu0 0.0
    %7972 = vmatpush.msra.mxu0 0.0
    %7973 = vmatpush.msra.mxu0 0.0
    %7974 = vmatpush.msra.mxu0 0.0
    %7975 = vmatpush.msra.mxu0 0.0
    %7976 = vmatpush.msra.mxu0 %v7943
    %7977 = vmatpush.msra.mxu0 %v7940
    %7978 = vmatpush.msra.mxu0 %v7937
    %7979 = vmatpush.msra.mxu0 %v7934
    %7980 = vmatpush.msra.mxu0 %v7931
    %7981 = vmatpush.msra.mxu0 %v7928
    %7982 = vmatpush.msra.mxu0 %v7925
    %7983 = vmatpush.msra.mxu0 %v7922
    %7984 = vmatmul.f32.gmra.mxu0 %v7946
    %v7985 = vpop.f32.mrf.mxu0
    %v7986 = vadd.f32 0.0, %v7985
    %7987 = vdwg.mxu0
    %7988 = vmatpush.msra.mxu0 0.0
    %7989 = vmatpush.msra.mxu0 0.0
    %7990 = vmatpush.msra.mxu0 0.0
    %7991 = vmatpush.msra.mxu0 0.0
    %7992 = vmatpush.msra.mxu0 0.0
    %7993 = vmatpush.msra.mxu0 0.0
    %7994 = vmatpush.msra.mxu0 0.0
    %7995 = vmatpush.msra.mxu0 0.0
    %7996 = vmatpush.msra.mxu0 %v7944
    %7997 = vmatpush.msra.mxu0 %v7941
    %7998 = vmatpush.msra.mxu0 %v7938
    %7999 = vmatpush.msra.mxu0 %v7935
    %8000 = vmatpush.msra.mxu0 %v7932
    %8001 = vmatpush.msra.mxu0 %v7929
    %8002 = vmatpush.msra.mxu0 %v7926
    %8003 = vmatpush.msra.mxu0 %v7923
    %8004 = vmatmul.f32.gmra.mxu0 %v7946
    %v8005 = vpop.f32.mrf.mxu0
    %v8006 = vadd.f32 0.0, %v8005
    %8007 = vdwg.mxu0
    %v8008 = vperm.slane %v7966, 0
    %v8009 = vperm.slane %v7986, 0
    %v8010 = vperm.slane %v8006, 0
    %v8011 = vsub.f32 %v7791, %v8008
    %v8012 = vsub.f32 %v7792, %v8009
    %v8013 = vsub.f32 %v7793, %v8010
    %v8014 = vmul.f32 %v8011, %v8011
    %v8015 = vmul.f32 %v8012, %v8012
    %v8016 = vmul.f32 %v8013, %v8013
    %v8017 = vsel %vm7794, %v8014, 0.0
    %v8018 = vrot.slane %v8017, 4
    %v8019 = vadd.f32 %v8017, %v8018
    %v8020 = vrot.slane %v8019, 2
    %v8021 = vadd.f32 %v8019, %v8020
    %v8022 = vrot.slane %v8021, 1
    %v8023 = vadd.f32 %v8021, %v8022
    %v8024 = vsel %vm7794, %v8015, 0.0
    %v8025 = vrot.slane %v8024, 4
    %v8026 = vadd.f32 %v8024, %v8025
    %v8027 = vrot.slane %v8026, 2
    %v8028 = vadd.f32 %v8026, %v8027
    %v8029 = vrot.slane %v8028, 1
    %v8030 = vadd.f32 %v8028, %v8029
    %v8031 = vsel %vm7809, %v8016, 0.0
    %v8032 = vrot.slane %v8031, 4
    %v8033 = vadd.f32 %v8031, %v8032
    %v8034 = vrot.slane %v8033, 2
    %v8035 = vadd.f32 %v8033, %v8034
    %v8036 = vrot.slane %v8035, 1
    %v8037 = vadd.f32 %v8035, %v8036
    %v8039 = vsel %vm1250, %v8037, 0
    %8041 = vmatpush.msra.mxu0 %v7832
    %8042 = vmatpush.msra.mxu0 %v7831
    %8043 = vmatpush.msra.mxu0 %v7830
    %8044 = vmatpush.msra.mxu0 %v7829
    %8045 = vmatpush.msra.mxu0 %v7828
    %8046 = vmatpush.msra.mxu0 %v7827
    %8047 = vmatpush.msra.mxu0 %v7826
    %8048 = vmatpush.msra.mxu0 %v7825
    %8049 = vmatpush.msra.mxu0 %v7824
    %8050 = vmatpush.msra.mxu0 %v7823
    %8051 = vmatpush.msra.mxu0 %v7822
    %8052 = vmatpush.msra.mxu0 %v7821
    %8053 = vmatpush.msra.mxu0 %v7820
    %8054 = vmatpush.msra.mxu0 %v7819
    %8055 = vmatpush.msra.mxu0 %v7818
    %8056 = vmatpush.msra.mxu0 %v7817
    %8057 = vmatmul.f32.gmra.mxu0 %v8023
    %v8058 = vpop.f32.mrf.mxu0
    %v8059 = vadd.f32 0.0, %v8058
    %8060 = vdwg.mxu0
    %8061 = vmatpush.msra.mxu0 %v7848
    %8062 = vmatpush.msra.mxu0 %v7847
    %8063 = vmatpush.msra.mxu0 %v7846
    %8064 = vmatpush.msra.mxu0 %v7845
    %8065 = vmatpush.msra.mxu0 %v7844
    %8066 = vmatpush.msra.mxu0 %v7843
    %8067 = vmatpush.msra.mxu0 %v7842
    %8068 = vmatpush.msra.mxu0 %v7841
    %8069 = vmatpush.msra.mxu0 %v7840
    %8070 = vmatpush.msra.mxu0 %v7839
    %8071 = vmatpush.msra.mxu0 %v7838
    %8072 = vmatpush.msra.mxu0 %v7837
    %8073 = vmatpush.msra.mxu0 %v7836
    %8074 = vmatpush.msra.mxu0 %v7835
    %8075 = vmatpush.msra.mxu0 %v7834
    %8076 = vmatpush.msra.mxu0 %v7833
    %8077 = vmatmul.f32.gmra.mxu0 %v8030
    %v8078 = vpop.f32.mrf.mxu0
    %v8079 = vadd.f32 %v8059, %v8078
    %8080 = vdwg.mxu0
    %8081 = vmatpush.msra.mxu0 0.0
    %8082 = vmatpush.msra.mxu0 0.0
    %8083 = vmatpush.msra.mxu0 0.0
    %8084 = vmatpush.msra.mxu0 0.0
    %8085 = vmatpush.msra.mxu0 0.0
    %8086 = vmatpush.msra.mxu0 0.0
    %8087 = vmatpush.msra.mxu0 0.0
    %8088 = vmatpush.msra.mxu0 0.0
    %8089 = vmatpush.msra.mxu0 %v7856
    %8090 = vmatpush.msra.mxu0 %v7855
    %8091 = vmatpush.msra.mxu0 %v7854
    %8092 = vmatpush.msra.mxu0 %v7853
    %8093 = vmatpush.msra.mxu0 %v7852
    %8094 = vmatpush.msra.mxu0 %v7851
    %8095 = vmatpush.msra.mxu0 %v7850
    %8096 = vmatpush.msra.mxu0 %v7849
    %8097 = vmatmul.f32.gmra.mxu0 %v8039
    %v8098 = vpop.f32.mrf.mxu0
    %v8099 = vadd.f32 %v8079, %v8098
    %8100 = vdwg.mxu0
    %v8101 = vmul.f32 %v8099, 0.033333335
    %v8102 = vld [vmem:[#allocation24] sm:$0x1]
    %v8103 = vadd.f32 %v8101, 1e-05
    %v8104 = vrsqrt.pop %v8103
    %v8105 = vmul.f32 %v8104, %v8103
    %v8106 = vmul.f32 %v8105, %v8104
    %v8107 = vmul.f32 0.5, %v8106
    %v8108 = vsub.f32 1.5, %v8107
    %v8109 = vmul.f32 %v8104, %v8108
    %vm8110 = vweird.f32 %v8103
    %vm8111 = vweird.f32 %v8104
    %vm8112 = vmor %vm8110, %vm8111
    %v8113 = vsel %vm8112, %v8104, %v8109
    %v8114 = vmul.f32 %v8102, %v8113
    %v8116 = vsel %vm1250, %v8114, 0
    %8118 = vmatpush.msra.mxu0 0.0
    %8119 = vmatpush.msra.mxu0 0.0
    %8120 = vmatpush.msra.mxu0 0.0
    %8121 = vmatpush.msra.mxu0 0.0
    %8122 = vmatpush.msra.mxu0 0.0
    %8123 = vmatpush.msra.mxu0 0.0
    %8124 = vmatpush.msra.mxu0 0.0
    %8125 = vmatpush.msra.mxu0 0.0
    %8126 = vmatpush.msra.mxu0 %v7942
    %8127 = vmatpush.msra.mxu0 %v7939
    %8128 = vmatpush.msra.mxu0 %v7936
    %8129 = vmatpush.msra.mxu0 %v7933
    %8130 = vmatpush.msra.mxu0 %v7930
    %8131 = vmatpush.msra.mxu0 %v7927
    %8132 = vmatpush.msra.mxu0 %v7924
    %8133 = vmatpush.msra.mxu0 %v7921
    %8134 = vmatmul.f32.gmra.mxu0 %v8116
    %v8135 = vpop.f32.mrf.mxu0
    %v8136 = vadd.f32 0.0, %v8135
    %8137 = vdwg.mxu0
    %8138 = vmatpush.msra.mxu0 0.0
    %8139 = vmatpush.msra.mxu0 0.0
    %8140 = vmatpush.msra.mxu0 0.0
    %8141 = vmatpush.msra.mxu0 0.0
    %8142 = vmatpush.msra.mxu0 0.0
    %8143 = vmatpush.msra.mxu0 0.0
    %8144 = vmatpush.msra.mxu0 0.0
    %8145 = vmatpush.msra.mxu0 0.0
    %8146 = vmatpush.msra.mxu0 %v7943
    %8147 = vmatpush.msra.mxu0 %v7940
    %8148 = vmatpush.msra.mxu0 %v7937
    %8149 = vmatpush.msra.mxu0 %v7934
    %8150 = vmatpush.msra.mxu0 %v7931
    %8151 = vmatpush.msra.mxu0 %v7928
    %8152 = vmatpush.msra.mxu0 %v7925
    %8153 = vmatpush.msra.mxu0 %v7922
    %8154 = vmatmul.f32.gmra.mxu0 %v8116
    %v8155 = vpop.f32.mrf.mxu0
    %v8156 = vadd.f32 0.0, %v8155
    %8157 = vdwg.mxu0
    %8158 = vmatpush.msra.mxu0 0.0
    %8159 = vmatpush.msra.mxu0 0.0
    %8160 = vmatpush.msra.mxu0 0.0
    %8161 = vmatpush.msra.mxu0 0.0
    %8162 = vmatpush.msra.mxu0 0.0
    %8163 = vmatpush.msra.mxu0 0.0
    %8164 = vmatpush.msra.mxu0 0.0
    %8165 = vmatpush.msra.mxu0 0.0
    %8166 = vmatpush.msra.mxu0 %v7944
    %8167 = vmatpush.msra.mxu0 %v7941
    %8168 = vmatpush.msra.mxu0 %v7938
    %8169 = vmatpush.msra.mxu0 %v7935
    %8170 = vmatpush.msra.mxu0 %v7932
    %8171 = vmatpush.msra.mxu0 %v7929
    %8172 = vmatpush.msra.mxu0 %v7926
    %8173 = vmatpush.msra.mxu0 %v7923
    %8174 = vmatmul.f32.gmra.mxu0 %v8116
    %v8175 = vpop.f32.mrf.mxu0
    %v8176 = vadd.f32 0.0, %v8175
    %8177 = vdwg.mxu0
    %v8178 = vld [vmem:[#allocation24 + $0x1] sm:$0x1]
    %v8180 = vsel %vm1250, %v8178, 0
    %8182 = vmatpush.msra.mxu0 0.0
    %8183 = vmatpush.msra.mxu0 0.0
    %8184 = vmatpush.msra.mxu0 0.0
    %8185 = vmatpush.msra.mxu0 0.0
    %8186 = vmatpush.msra.mxu0 0.0
    %8187 = vmatpush.msra.mxu0 0.0
    %8188 = vmatpush.msra.mxu0 0.0
    %8189 = vmatpush.msra.mxu0 0.0
    %8190 = vmatpush.msra.mxu0 %v7942
    %8191 = vmatpush.msra.mxu0 %v7939
    %8192 = vmatpush.msra.mxu0 %v7936
    %8193 = vmatpush.msra.mxu0 %v7933
    %8194 = vmatpush.msra.mxu0 %v7930
    %8195 = vmatpush.msra.mxu0 %v7927
    %8196 = vmatpush.msra.mxu0 %v7924
    %8197 = vmatpush.msra.mxu0 %v7921
    %8198 = vmatmul.f32.gmra.mxu0 %v8180
    %v8199 = vpop.f32.mrf.mxu0
    %v8200 = vadd.f32 0.0, %v8199
    %8201 = vdwg.mxu0
    %8202 = vmatpush.msra.mxu0 0.0
    %8203 = vmatpush.msra.mxu0 0.0
    %8204 = vmatpush.msra.mxu0 0.0
    %8205 = vmatpush.msra.mxu0 0.0
    %8206 = vmatpush.msra.mxu0 0.0
    %8207 = vmatpush.msra.mxu0 0.0
    %8208 = vmatpush.msra.mxu0 0.0
    %8209 = vmatpush.msra.mxu0 0.0
    %8210 = vmatpush.msra.mxu0 %v7943
    %8211 = vmatpush.msra.mxu0 %v7940
    %8212 = vmatpush.msra.mxu0 %v7937
    %8213 = vmatpush.msra.mxu0 %v7934
    %8214 = vmatpush.msra.mxu0 %v7931
    %8215 = vmatpush.msra.mxu0 %v7928
    %8216 = vmatpush.msra.mxu0 %v7925
    %8217 = vmatpush.msra.mxu0 %v7922
    %8218 = vmatmul.f32.gmra.mxu0 %v8180
    %v8219 = vpop.f32.mrf.mxu0
    %v8220 = vadd.f32 0.0, %v8219
    %8221 = vdwg.mxu0
    %8222 = vmatpush.msra.mxu0 0.0
    %8223 = vmatpush.msra.mxu0 0.0
    %8224 = vmatpush.msra.mxu0 0.0
    %8225 = vmatpush.msra.mxu0 0.0
    %8226 = vmatpush.msra.mxu0 0.0
    %8227 = vmatpush.msra.mxu0 0.0
    %8228 = vmatpush.msra.mxu0 0.0
    %8229 = vmatpush.msra.mxu0 0.0
    %8230 = vmatpush.msra.mxu0 %v7944
    %8231 = vmatpush.msra.mxu0 %v7941
    %8232 = vmatpush.msra.mxu0 %v7938
    %8233 = vmatpush.msra.mxu0 %v7935
    %8234 = vmatpush.msra.mxu0 %v7932
    %8235 = vmatpush.msra.mxu0 %v7929
    %8236 = vmatpush.msra.mxu0 %v7926
    %8237 = vmatpush.msra.mxu0 %v7923
    %8238 = vmatmul.f32.gmra.mxu0 %v8180
    %v8239 = vpop.f32.mrf.mxu0
    %v8240 = vadd.f32 0.0, %v8239
    %8241 = vdwg.mxu0
    %v8242 = vperm.slane %v8136, 0
    %v8243 = vperm.slane %v8156, 0
    %v8244 = vperm.slane %v8176, 0
    %v8245 = vmul.f32 %v8011, %v8242
    %v8246 = vmul.f32 %v8012, %v8243
    %v8247 = vmul.f32 %v8013, %v8244
    %v8248 = vperm.slane %v8200, 0
    %v8249 = vperm.slane %v8220, 0
    %v8250 = vperm.slane %v8240, 0
    %v8251 = vadd.f32 %v8245, %v8248
    %v8252 = vadd.f32 %v8246, %v8249
    %v8253 = vadd.f32 %v8247, %v8250
    %vm8254 = vcmp.ge.f32.partialorder %v8251, 0.0
    %vm8255 = vcmp.ge.f32.partialorder %v8252, 0.0
    %vm8256 = vcmp.ge.f32.partialorder %v8253, 0.0
    %v8257 = vmul.f32 %v8251, 0.2
    %v8258 = vmul.f32 %v8252, 0.2
    %v8259 = vmul.f32 %v8253, 0.2
    %v8260 = vsel %vm8254, %v8251, %v8257
    %v8261 = vsel %vm8255, %v8252, %v8258
    %v8262 = vsel %vm8256, %v8253, %v8259
    %v8263 = vld [vmem:[#allocation25] sm:$0x3f]
    %v8264 = vld [vmem:[#allocation25 + $0x8] sm:$0x3f]
    %v8265 = vld [vmem:[#allocation25 + $0x10] sm:$0x3f]
    %v8266 = vmul.f32 %v8260, %v8263
    %v8267 = vmul.f32 %v8261, %v8264
    %v8268 = vmul.f32 %v8262, %v8265
    %v8269 = vsel %vm7794, %v8266, 0.0
    %v8270 = vsel %vm7794, %v8267, 0.0
    %v8271 = vadd.f32 %v8269, %v8270
    %v8272 = vsel %vm7809, %v8268, 0.0
    %v8273 = vadd.f32 %v8271, %v8272
    %8274 = vadd.xlane.f32.xlu0 %v8273
    %v8275 = vpop.xlane.xlu0 %8274
    %v8276 = vld [vmem:[#allocation27] sm:$0x3]
    %vm8277 = vcmask 48128
    %v8279 = vsel %vm8277, %v8276, 0
    %v8282 = vsel %vm7794, %v8275, 0
    %8284 = vmatpush.msra.mxu0 0.0
    %8285 = vmatpush.msra.mxu0 0.0
    %8286 = vmatpush.msra.mxu0 0.0
    %8287 = vmatpush.msra.mxu0 0.0
    %8288 = vmatpush.msra.mxu0 0.0
    %8289 = vmatpush.msra.mxu0 0.0
    %8290 = vmatpush.msra.mxu0 0.0
    %8291 = vmatpush.msra.mxu0 0.0
    %8292 = vmatpush.msra.mxu0 0.0
    %8293 = vmatpush.msra.mxu0 0.0
    %8294 = vmatpush.msra.mxu0 0.0
    %8295 = vmatpush.msra.mxu0 0.0
    %8296 = vmatpush.msra.mxu0 0.0
    %8297 = vmatpush.msra.mxu0 0.0
    %8298 = vmatpush.msra.mxu0 0.0
    %8299 = vmatpush.msra.mxu0 %v8282
    %8300 = vmatmul.f32.gmra.mxu0 %v8279
    %v8301 = vpop.f32.mrf.mxu0
    %v8302 = vadd.f32 0.0, %v8301
    %8303 = vdwg.mxu0
    %vm8304 = vcmask 1024
    %8305 = vst.msk [vmem:[%s23] sm:$0x3] %vm8304, %v8302
    // Predicated region
    $region162: #{linnet_d_forward.1} parent=1 // pred_check
      _
    $region163: #{linnet_d_forward.1} parent=1 // pred_check_branch
      %8307 = sbr.rel (0) target = $region165
    $region164: #{linnet_d_forward.1} parent=1 // pred_region
      _
    $region165: #{linnet_d_forward.1} parent=1 // pred_fallthru
      _
    // Predicated region
    $region166: #{linnet_d_forward.1} parent=1 // pred_check
      _
    $region167: #{linnet_d_forward.1} parent=1 // pred_check_branch
      %8309 = sbr.rel (0) target = $region169
    $region168: #{linnet_d_forward.1} parent=1 // pred_region
      _
    $region169: #{linnet_d_forward.1} parent=1 // pred_fallthru
      _
    %8310 = vsyncpa [#allocation3], 1
    %8311 = vsyncpa [#allocation5], 1
    %8312 = vsyncpa [#allocation8], 1
    %8313 = vsyncpa [#allocation11], 1
    %8314 = vsyncpa [#allocation14], 1
    %8315 = vsyncpa [#allocation17], 1
    %8316 = vsyncpa [#allocation20], 1
    %8317 = vsyncpa [#allocation23], 1
    %8318 = vsyncpa [#allocation26], 1

</llo_original>
